<compile_context>
chip_gen: v5e
topology: v5e:2x2
jax: 0.10.0
libtpu: 0.0.40
codegen_flags: <defaults>
</compile_context>

<pallas_src>
import jax
import jax.numpy as jnp
from jax.experimental import pallas as pl
from jax.experimental.pallas import tpu as pltpu

EMB = 256          # model width (== L)
NHEAD = 8
HDIM = EMB // NHEAD
NCHN = 19          # channels (C)
SEQ = NCHN + 1     # 19 channel tokens + 1 "mask" token
H_LSTM = 100       # LSTM hidden size (PyTorch)
HP = 128           # lane-padded hidden size used inside the kernel
LN_EPS = 1e-5
NEG_INF = -1e9


# --------------------------------------------------------------------------- #
# helpers
# --------------------------------------------------------------------------- #
def _layernorm(x, w, b, eps=LN_EPS):
    mu = jnp.mean(x, axis=-1, keepdims=True)
    xc = x - mu
    var = jnp.mean(xc * xc, axis=-1, keepdims=True)
    return xc * jax.lax.rsqrt(var + eps) * w + b


def _replicated_spec(arr):
    nd = arr.ndim
    return pl.BlockSpec(arr.shape, lambda g, _nd=nd: (0,) * _nd)


def _pick_seq_block(n, cap=16):
    """Sequences per grid step for kernel 1 (BN).  BN*SEQ must be a multiple
    of 8 (sublane rule) unless BN == n; prefer >=2 grid steps (megacore)."""
    valid = [d for d in range(1, min(n, cap) + 1)
             if n % d == 0 and (d * SEQ) % 8 == 0]
    pref = [d for d in valid if n // d >= 2]
    if pref:
        return max(pref)
    if valid:
        return max(valid)
    return n                       # whole-array block (always legal)


def _pick_batch_block(b, cap=16):
    """Batch rows per grid step for kernel 2 (Bb).  Bb must be a multiple of 8
    (sublane rule) unless Bb == b; prefer >=2 grid steps (megacore)."""
    valid = [d for d in range(1, min(b, cap) + 1) if b % d == 0 and d % 8 == 0]
    pref = [d for d in valid if b // d >= 2]
    if pref:
        return max(pref)
    if valid:
        return max(valid)
    return b


def _block_diag_mask(bn):
    """Additive attention mask (0 on the block diagonal, -1e9 elsewhere) so one
    big (BN*SEQ, BN*SEQ) softmax equals BN independent per-sequence softmaxes."""
    seq_id = jnp.repeat(jnp.arange(bn, dtype=jnp.int32), SEQ)
    return jnp.where(seq_id[:, None] == seq_id[None, :], 0.0, NEG_INF
                     ).astype(jnp.float32)


# --------------------------------------------------------------------------- #
# Kernel 1: TransformerEncoderLayer (post-norm, relu, nhead=8, dff=256)
# one grid step == BN token-sequences flattened to (BN*SEQ, EMB)
# --------------------------------------------------------------------------- #
def tx_encoder_kernel(x_ref, mask_ref, wqkv_ref, bqkv_ref, wo_ref, bo_ref,
                      n1w_ref, n1b_ref, w1_ref, b1_ref, w2_ref, b2_ref,
                      n2w_ref, n2b_ref, o_ref):
    x = x_ref[...]                                      # (M, EMB), M = BN*SEQ
    mask = mask_ref[...]                                # (M, M) block-diagonal
    wo = wo_ref[...]                                    # (EMB, EMB)

    # single QKV projection, big-M matmul (scale folded into Q weights)
    qkv = jnp.dot(x, wqkv_ref[...],
                  preferred_element_type=jnp.float32) + bqkv_ref[...]  # (M, 768)

    attn = jnp.zeros(x.shape, jnp.float32)
    for h in range(NHEAD):                              # unrolled per head
        lo = h * HDIM
        qh = qkv[:, lo:lo + HDIM]
        kh = qkv[:, EMB + lo:EMB + lo + HDIM]
        vh = qkv[:, 2 * EMB + lo:2 * EMB + lo + HDIM]
        s = jnp.dot(qh, kh.T, preferred_element_type=jnp.float32) + mask
        s = s - jnp.max(s, axis=-1, keepdims=True)
        p = jnp.exp(s)
        p = p * pl.reciprocal(jnp.sum(p, axis=-1, keepdims=True), approx=True)
        hv = jnp.dot(p, vh, preferred_element_type=jnp.float32)       # (M, 32)
        # fold head output straight into the output projection (no concat)
        attn = attn + jnp.dot(hv, wo[lo:lo + HDIM, :],
                              preferred_element_type=jnp.float32)
    attn = attn + bo_ref[...]

    src = _layernorm(x + attn, n1w_ref[...], n1b_ref[...])            # post-norm
    ff = jnp.dot(src, w1_ref[...], preferred_element_type=jnp.float32) + b1_ref[...]
    ff = jnp.maximum(ff, 0.0)                                          # relu
    ff = jnp.dot(ff, w2_ref[...], preferred_element_type=jnp.float32) + b2_ref[...]
    o_ref[...] = _layernorm(src + ff, n2w_ref[...], n2b_ref[...])


def run_tx_encoder(tx2d, P, n_seq):
    bn = _pick_seq_block(n_seq)
    m = bn * SEQ
    mask = _block_diag_mask(bn)
    weights = [mask, P['wqkv_t'], P['bqkv'], P['wo_t'], P['bo'],
               P['n1w'], P['n1b'], P['w1_t'], P['b1'], P['w2_t'], P['b2'],
               P['n2w'], P['n2b']]
    return pl.pallas_call(
        tx_encoder_kernel,
        out_shape=jax.ShapeDtypeStruct((n_seq * SEQ, EMB), jnp.float32),
        grid=(n_seq // bn,),
        in_specs=[pl.BlockSpec((m, EMB), lambda g: (g, 0))]
                 + [_replicated_spec(w) for w in weights],
        out_specs=pl.BlockSpec((m, EMB), lambda g: (g, 0)),
        compiler_params=pltpu.CompilerParams(dimension_semantics=("parallel",)),
    )(tx2d, *weights)


# --------------------------------------------------------------------------- #
# Kernel 2: bidirectional LSTM recurrence (hidden=100, zero-padded to 128
# lanes).  The input-to-hidden projections (+ biases) are precomputed outside
# the kernel as one big matmul, so each timestep only does the recurrent
# (Bb,128)@(128,512) matmul plus gate nonlinearities.  Forward and backward
# directions are interleaved in one fori_loop for ILP.  Hidden states are
# written straight to lane-dense (T, Bb, 128) output refs.
# The final Linear(200 -> 2) is applied in the JAX wrapper.
# --------------------------------------------------------------------------- #
def bilstm_kernel(gxf_ref, gxb_ref, whh_f_ref, whh_b_ref, of_ref, ob_ref):
    T = gxf_ref.shape[0]
    Bb = gxf_ref.shape[1]
    whh_f = whh_f_ref[...]                               # (HP, 4*HP)
    whh_b = whh_b_ref[...]

    def gates(g, c):
        i = jax.nn.sigmoid(g[:, 0:HP])
        f = jax.nn.sigmoid(g[:, HP:2 * HP])
        gg = jnp.tanh(g[:, 2 * HP:3 * HP])
        o = jax.nn.sigmoid(g[:, 3 * HP:4 * HP])
        c_new = f * c + i * gg
        h_new = o * jnp.tanh(c_new)
        return h_new, c_new

    z = jnp.zeros((Bb, HP), jnp.float32)

    def step(t, carry):
        hf, cf, hb, cb = carry
        # forward direction, time t
        gf = gxf_ref[t] + jnp.dot(hf, whh_f, preferred_element_type=jnp.float32)
        hf, cf = gates(gf, cf)
        of_ref[t] = hf
        # backward direction, time T-1-t (interleaved with forward for ILP)
        tb = T - 1 - t
        gb = gxb_ref[tb] + jnp.dot(hb, whh_b, preferred_element_type=jnp.float32)
        hb, cb = gates(gb, cb)
        ob_ref[tb] = hb
        return hf, cf, hb, cb

    jax.lax.fori_loop(0, T, step, (z, z, z, z))


def run_bilstm(gxf_t, gxb_t, P):
    T, B, _ = gxf_t.shape
    blk = _pick_batch_block(B)
    weights = [P['whh_f_t'], P['whh_b_t']]
    return pl.pallas_call(
        bilstm_kernel,
        out_shape=(jax.ShapeDtypeStruct((T, B, HP), jnp.float32),
                   jax.ShapeDtypeStruct((T, B, HP), jnp.float32)),
        grid=(B // blk,),
        in_specs=[pl.BlockSpec((T, blk, 4 * HP), lambda g: (0, g, 0)),
                  pl.BlockSpec((T, blk, 4 * HP), lambda g: (0, g, 0))]
                 + [_replicated_spec(w) for w in weights],
        out_specs=[pl.BlockSpec((T, blk, HP), lambda g: (0, g, 0)),
                   pl.BlockSpec((T, blk, HP), lambda g: (0, g, 0))],
        compiler_params=pltpu.CompilerParams(dimension_semantics=("parallel",)),
    )(gxf_t, gxb_t, *weights)


# --------------------------------------------------------------------------- #
# parameter construction (deterministic, synthetic)
# --------------------------------------------------------------------------- #
def make_raw_params(key):
    ks = jax.random.split(key, 32)
    nrm = lambda k, shape, s=0.05: jax.random.normal(k, shape, dtype=jnp.float32) * s
    R = {}
    R['emb'] = nrm(ks[0], (20, EMB), 0.1)                       # nn.Embedding(20, 256)
    R['in_proj_w'] = nrm(ks[1], (3 * EMB, EMB))                 # MHA in_proj
    R['in_proj_b'] = nrm(ks[2], (3 * EMB,))
    R['out_proj_w'] = nrm(ks[3], (EMB, EMB))
    R['out_proj_b'] = nrm(ks[4], (EMB,))
    R['n1w'] = jnp.ones((EMB,), jnp.float32)
    R['n1b'] = jnp.zeros((EMB,), jnp.float32)
    R['w1'] = nrm(ks[5], (EMB, EMB))                            # dim_feedforward=256
    R['b1'] = nrm(ks[6], (EMB,))
    R['w2'] = nrm(ks[7], (EMB, EMB))
    R['b2'] = nrm(ks[8], (EMB,))
    R['n2w'] = jnp.ones((EMB,), jnp.float32)
    R['n2b'] = jnp.zeros((EMB,), jnp.float32)
    R['wih_f'] = nrm(ks[9], (4 * H_LSTM, EMB))
    R['whh_f'] = nrm(ks[10], (4 * H_LSTM, H_LSTM))
    R['bih_f'] = nrm(ks[11], (4 * H_LSTM,))
    R['bhh_f'] = nrm(ks[12], (4 * H_LSTM,))
    R['wih_b'] = nrm(ks[13], (4 * H_LSTM, EMB))
    R['whh_b'] = nrm(ks[14], (4 * H_LSTM, H_LSTM))
    R['bih_b'] = nrm(ks[15], (4 * H_LSTM,))
    R['bhh_b'] = nrm(ks[16], (4 * H_LSTM,))
    R['lin_w'] = nrm(ks[17], (2, 2 * H_LSTM))
    R['lin_b'] = nrm(ks[18], (2,))
    return R


def _pad_gate_rows(w):
    # (4*H_LSTM, D) -> (4*HP, D), each gate block zero padded from 100 to 128 rows
    out = jnp.zeros((4 * HP, w.shape[1]), w.dtype)
    for g in range(4):
        out = out.at[g * HP:g * HP + H_LSTM].set(w[g * H_LSTM:(g + 1) * H_LSTM])
    return out


def _pad_gate_vec(b):
    out = jnp.zeros((4 * HP,), b.dtype)
    for g in range(4):
        out = out.at[g * HP:g * HP + H_LSTM].set(b[g * H_LSTM:(g + 1) * H_LSTM])
    return out


def prepare_kernel_params(R):
    P = {}
    P['emb'] = R['emb']
    scale = 1.0 / (HDIM ** 0.5)
    wqkv_t = R['in_proj_w'].T                            # (256, 768)
    wqkv_t = wqkv_t.at[:, :EMB].multiply(scale)          # fold 1/sqrt(d) into Q
    bqkv = R['in_proj_b'].reshape(1, -1)
    bqkv = bqkv.at[:, :EMB].multiply(scale)
    P['wqkv_t'] = wqkv_t
    P['bqkv'] = bqkv
    P['wo_t'] = R['out_proj_w'].T
    P['bo'] = R['out_proj_b'].reshape(1, -1)
    P['n1w'] = R['n1w'].reshape(1, -1)
    P['n1b'] = R['n1b'].reshape(1, -1)
    P['w1_t'] = R['w1'].T
    P['b1'] = R['b1'].reshape(1, -1)
    P['w2_t'] = R['w2'].T
    P['b2'] = R['b2'].reshape(1, -1)
    P['n2w'] = R['n2w'].reshape(1, -1)
    P['n2b'] = R['n2b'].reshape(1, -1)

    def prep_dir(wih, whh, bih, bhh):
        wih_p = _pad_gate_rows(wih)                                    # (512, 256)
        whh_p = jnp.pad(_pad_gate_rows(whh), ((0, 0), (0, HP - H_LSTM)))  # (512, 128)
        b = (_pad_gate_vec(bih) + _pad_gate_vec(bhh)).reshape(1, -1)   # (1, 512)
        return wih_p.T, whh_p.T, b

    P['wih_f_t'], P['whh_f_t'], P['bf'] = prep_dir(R['wih_f'], R['whh_f'], R['bih_f'], R['bhh_f'])
    P['wih_b_t'], P['whh_b_t'], P['bb'] = prep_dir(R['wih_b'], R['whh_b'], R['bih_b'], R['bhh_b'])

    wlin_p = jnp.zeros((2, 2 * HP), jnp.float32)
    wlin_p = wlin_p.at[:, :H_LSTM].set(R['lin_w'][:, :H_LSTM])
    wlin_p = wlin_p.at[:, HP:HP + H_LSTM].set(R['lin_w'][:, H_LSTM:])
    P['wlin_t'] = wlin_p.T                                # (256, 2)
    P['blin'] = R['lin_b'].reshape(1, -1)
    return P


# --------------------------------------------------------------------------- #
# full forward (glue in plain JAX, hot paths in Pallas kernels)
# --------------------------------------------------------------------------- #
def forward(x, P):
    B, T, C, L = x.shape
    assert C == NCHN and L == EMB
    emb = P['emb']
    N = B * T

    h_c = x + emb[:C][None, None]                                  # positional embedding add
    h_m0 = jnp.broadcast_to(emb[C], (N, 1, L))                     # "mask" token (index 19)
    tx_in = jnp.concatenate([h_c.reshape(N, C, L), h_m0], axis=1)  # (N, 20, 256)

    tx_out = run_tx_encoder(tx_in.reshape(N * SEQ, EMB), P, N)     # Pallas kernel 1
    tx_out = tx_out.reshape(N, SEQ, EMB)
    h_c_out = tx_out[:, :-1, :].reshape(B, T, C, L)
    h_m = tx_out[:, -1, :]                                         # (N, 256)

    # hoisted LSTM input-to-hidden projections: one big matmul per direction
    # (biases folded in), done once outside the sequential recurrence.
    gxf = (h_m @ P['wih_f_t'] + P['bf']).reshape(B, T, 4 * HP)
    gxb = (h_m @ P['wih_b_t'] + P['bb']).reshape(B, T, 4 * HP)
    gxf_t = jnp.transpose(gxf, (1, 0, 2))                          # (T, B, 512) time-major
    gxb_t = jnp.transpose(gxb, (1, 0, 2))

    hf_t, hb_t = run_bilstm(gxf_t, gxb_t, P)                       # Pallas kernel 2
    hf = jnp.transpose(hf_t, (1, 0, 2))                            # (B, T, 128) padded
    hb = jnp.transpose(hb_t, (1, 0, 2))
    h_all = jnp.concatenate([hf, hb], axis=-1)                     # (B, T, 256) padded

    # tiny Linear(200 -> 2) on the lane-dense, zero-padded hidden layout
    proba = (h_all.reshape(N, 2 * HP) @ P['wlin_t'] + P['blin']).reshape(B, T, 2)
    # TODO(synk): return_attn=True branch (host-side argmax + np.histogram) not implemented.
    return proba, h_c_out, None


# --------------------------------------------------------------------------- #
# pure-JAX reference (for a sanity check against the Pallas kernels)
# --------------------------------------------------------------------------- #
def ref_forward(x, R):
    B, T, C, L = x.shape
    emb = R['emb']
    h_c = x + emb[:C][None, None]
    tx_in = jnp.concatenate([h_c.reshape(B * T, C, L),
                             jnp.broadcast_to(emb[C], (B * T, 1, L))], axis=1)

    wq, wk, wv = jnp.split(R['in_proj_w'], 3, axis=0)
    bq, bk, bv = jnp.split(R['in_proj_b'], 3)
    q = tx_in @ wq.T + bq
    k = tx_in @ wk.T + bk
    v = tx_in @ wv.T + bv
    Nn, S, E = q.shape
    qh = q.reshape(Nn, S, NHEAD, HDIM)
    kh = k.reshape(Nn, S, NHEAD, HDIM)
    vh = v.reshape(Nn, S, NHEAD, HDIM)
    s = jnp.einsum('nqhd,nkhd->nhqk', qh, kh) / (HDIM ** 0.5)
    p = jax.nn.softmax(s, axis=-1)
    a = jnp.einsum('nhqk,nkhd->nqhd', p, vh).reshape(Nn, S, E)
    a = a @ R['out_proj_w'].T + R['out_proj_b']
    src = _layernorm(tx_in + a, R['n1w'], R['n1b'])
    ff = jax.nn.relu(src @ R['w1'].T + R['b1']) @ R['w2'].T + R['b2']
    tx_out = _layernorm(src + ff, R['n2w'], R['n2b'])

    h_c_out = tx_out[:, :-1, :].reshape(B, T, C, L)
    h_m = tx_out[:, -1, :].reshape(B, T, L)

    def lstm_dir(xs, wih, whh, bih, bhh, reverse):
        def step(carry, xt):
            h, c = carry
            g = xt @ wih.T + bih + h @ whh.T + bhh
            i, f, gg, o = jnp.split(g, 4)
            i, f, o = jax.nn.sigmoid(i), jax.nn.sigmoid(f), jax.nn.sigmoid(o)
            gg = jnp.tanh(gg)
            c = f * c + i * gg
            h = o * jnp.tanh(c)
            return (h, c), h
        init = (jnp.zeros((H_LSTM,)), jnp.zeros((H_LSTM,)))
        _, hs = jax.lax.scan(step, init, xs, reverse=reverse)
        return hs

    hf = jax.vmap(lambda xs: lstm_dir(xs, R['wih_f'], R['whh_f'], R['bih_f'], R['bhh_f'], False))(h_m)
    hb = jax.vmap(lambda xs: lstm_dir(xs, R['wih_b'], R['whh_b'], R['bih_b'], R['bhh_b'], True))(h_m)
    hcat = jnp.concatenate([hf, hb], axis=-1)                      # (B, T, 200)
    proba = (hcat.reshape(B * T, -1) @ R['lin_w'].T + R['lin_b']).reshape(B, T, 2)
    return proba, h_c_out, None


# --------------------------------------------------------------------------- #
if __name__ == "__main__":
    B, T = 2, 4
    key = jax.random.PRNGKey(0)
    k_x, k_p = jax.random.split(key)
    x = jax.random.normal(k_x, (B, T, NCHN, EMB), dtype=jnp.float32) * 0.1

    R = make_raw_params(k_p)
    P = prepare_kernel_params(R)

    proba, h_c, sat = jax.jit(forward)(x, P)
    jax.block_until_ready((proba, h_c))

    proba_ref, h_c_ref, _ = ref_forward(x, R)
    assert proba.shape == (B, T, 2) and h_c.shape == (B, T, NCHN, EMB)
    assert jnp.allclose(proba, proba_ref, atol=5e-2, rtol=5e-2)
    assert jnp.allclose(h_c, h_c_ref, atol=5e-2, rtol=5e-2)

    print("KERNEL_OK")
</pallas_src>

<mosaic_0001>
module attributes {stable_mosaic.version = 11 : i64} {
  func.func @tx_encoder_kernel(%arg0: i32, %arg1: memref<80x256xf32, #tpu.memory_space<vmem>>, %arg2: memref<80x80xf32, #tpu.memory_space<vmem>>, %arg3: memref<256x768xf32, #tpu.memory_space<vmem>>, %arg4: memref<1x768xf32, #tpu.memory_space<vmem>>, %arg5: memref<256x256xf32, #tpu.memory_space<vmem>>, %arg6: memref<1x256xf32, #tpu.memory_space<vmem>>, %arg7: memref<1x256xf32, #tpu.memory_space<vmem>>, %arg8: memref<1x256xf32, #tpu.memory_space<vmem>>, %arg9: memref<256x256xf32, #tpu.memory_space<vmem>>, %arg10: memref<1x256xf32, #tpu.memory_space<vmem>>, %arg11: memref<256x256xf32, #tpu.memory_space<vmem>>, %arg12: memref<1x256xf32, #tpu.memory_space<vmem>>, %arg13: memref<1x256xf32, #tpu.memory_space<vmem>>, %arg14: memref<1x256xf32, #tpu.memory_space<vmem>>, %arg15: memref<80x256xf32, #tpu.memory_space<vmem>>) attributes {dimension_semantics = [#tpu.dimension_semantics<parallel>], iteration_bounds = array<i64: 2>, scalar_prefetch = 0 : i64, scratch_operands = 0 : i64, tpu.core_type = #tpu.core_type<tc>, window_params = [{transform_indices = @transform_0, window_bounds = array<i64: 80, 256>}, {pipeline_mode = #tpu.pipeline_mode<synchronous>, transform_indices = @transform_1, window_bounds = array<i64: 80, 80>}, {pipeline_mode = #tpu.pipeline_mode<synchronous>, transform_indices = @transform_2, window_bounds = array<i64: 256, 768>}, {pipeline_mode = #tpu.pipeline_mode<synchronous>, transform_indices = @transform_3, window_bounds = array<i64: 1, 768>}, {pipeline_mode = #tpu.pipeline_mode<synchronous>, transform_indices = @transform_4, window_bounds = array<i64: 256, 256>}, {pipeline_mode = #tpu.pipeline_mode<synchronous>, transform_indices = @transform_5, window_bounds = array<i64: 1, 256>}, {pipeline_mode = #tpu.pipeline_mode<synchronous>, transform_indices = @transform_6, window_bounds = array<i64: 1, 256>}, {pipeline_mode = #tpu.pipeline_mode<synchronous>, transform_indices = @transform_7, window_bounds = array<i64: 1, 256>}, {pipeline_mode = #tpu.pipeline_mode<synchronous>, transform_indices = @transform_8, window_bounds = array<i64: 256, 256>}, {pipeline_mode = #tpu.pipeline_mode<synchronous>, transform_indices = @transform_9, window_bounds = array<i64: 1, 256>}, {pipeline_mode = #tpu.pipeline_mode<synchronous>, transform_indices = @transform_10, window_bounds = array<i64: 256, 256>}, {pipeline_mode = #tpu.pipeline_mode<synchronous>, transform_indices = @transform_11, window_bounds = array<i64: 1, 256>}, {pipeline_mode = #tpu.pipeline_mode<synchronous>, transform_indices = @transform_12, window_bounds = array<i64: 1, 256>}, {pipeline_mode = #tpu.pipeline_mode<synchronous>, transform_indices = @transform_13, window_bounds = array<i64: 1, 256>}, {transform_indices = @transform_14, window_bounds = array<i64: 80, 256>}]} {
    %c0 = arith.constant 0 : index
    %c0_0 = arith.constant 0 : index
    %0 = vector.load %arg1[%c0, %c0_0] : memref<80x256xf32, #tpu.memory_space<vmem>>, vector<80x256xf32>
    %c0_1 = arith.constant 0 : index
    %c0_2 = arith.constant 0 : index
    %1 = vector.load %arg2[%c0_1, %c0_2] : memref<80x80xf32, #tpu.memory_space<vmem>>, vector<80x80xf32>
    %c0_3 = arith.constant 0 : index
    %c0_4 = arith.constant 0 : index
    %2 = vector.load %arg5[%c0_3, %c0_4] : memref<256x256xf32, #tpu.memory_space<vmem>>, vector<256x256xf32>
    %c0_5 = arith.constant 0 : index
    %c0_6 = arith.constant 0 : index
    %3 = vector.load %arg3[%c0_5, %c0_6] : memref<256x768xf32, #tpu.memory_space<vmem>>, vector<256x768xf32>
    %cst = arith.constant dense<0.000000e+00> : vector<80x768xf32>
    %4 = tpu.matmul %0, %3, %cst {dimension_numbers = #tpu.dot_dimension_numbers<[1], [0], [0], [1], [0, 0, 1, 1], [], []>} : vector<80x256xf32>, vector<256x768xf32>, vector<80x768xf32> -> vector<80x768xf32>
    %c0_7 = arith.constant 0 : index
    %c0_8 = arith.constant 0 : index
    %5 = vector.load %arg4[%c0_7, %c0_8] : memref<1x768xf32, #tpu.memory_space<vmem>>, vector<1x768xf32>
    %6 = vector.broadcast %5 : vector<1x768xf32> to vector<80x768xf32>
    %7 = arith.addf %4, %6 : vector<80x768xf32>
    %cst_9 = arith.constant 0.000000e+00 : f32
    %8 = vector.broadcast %cst_9 : f32 to vector<80x256xf32>
    %9 = vector.extract_strided_slice %7 {offsets = [0, 0], sizes = [80, 32], strides = [1, 1]} : vector<80x768xf32> to vector<80x32xf32>
    %10 = vector.extract_strided_slice %7 {offsets = [0, 256], sizes = [80, 32], strides = [1, 1]} : vector<80x768xf32> to vector<80x32xf32>
    %11 = vector.extract_strided_slice %7 {offsets = [0, 512], sizes = [80, 32], strides = [1, 1]} : vector<80x768xf32> to vector<80x32xf32>
    %12 = tpu.transpose %10, [1, 0] : vector<80x32xf32> -> vector<32x80xf32>
    %cst_10 = arith.constant dense<0.000000e+00> : vector<80x80xf32>
    %13 = tpu.matmul %9, %12, %cst_10 {dimension_numbers = #tpu.dot_dimension_numbers<[1], [0], [0], [1], [0, 0, 1, 1], [], []>} : vector<80x32xf32>, vector<32x80xf32>, vector<80x80xf32> -> vector<80x80xf32>
    %14 = arith.addf %13, %1 : vector<80x80xf32>
    %cst_11 = arith.constant dense<0xFF800000> : vector<80xf32>
    %15 = vector.multi_reduction <maximumf>, %14, %cst_11 [1] : vector<80x80xf32> to vector<80xf32>
    %16 = vector.shape_cast %15 : vector<80xf32> to vector<80x1xf32>
    %17 = vector.broadcast %16 : vector<80x1xf32> to vector<80x80xf32>
    %18 = arith.subf %14, %17 : vector<80x80xf32>
    %19 = math.exp %18 : vector<80x80xf32>
    %cst_12 = arith.constant dense<0.000000e+00> : vector<80xf32>
    %20 = vector.multi_reduction <add>, %19, %cst_12 [1] : vector<80x80xf32> to vector<80xf32>
    %21 = vector.shape_cast %20 : vector<80xf32> to vector<80x1xf32>
    %22 = tpu.reciprocal %21 {approx = true} : vector<80x1xf32> -> vector<80x1xf32>
    %23 = vector.broadcast %22 : vector<80x1xf32> to vector<80x80xf32>
    %24 = arith.mulf %19, %23 : vector<80x80xf32>
    %cst_13 = arith.constant dense<0.000000e+00> : vector<80x32xf32>
    %25 = tpu.matmul %24, %11, %cst_13 {dimension_numbers = #tpu.dot_dimension_numbers<[1], [0], [0], [1], [0, 0, 1, 1], [], []>} : vector<80x80xf32>, vector<80x32xf32>, vector<80x32xf32> -> vector<80x32xf32>
    %26 = vector.extract_strided_slice %2 {offsets = [0, 0], sizes = [32, 256], strides = [1, 1]} : vector<256x256xf32> to vector<32x256xf32>
    %cst_14 = arith.constant dense<0.000000e+00> : vector<80x256xf32>
    %27 = tpu.matmul %25, %26, %cst_14 {dimension_numbers = #tpu.dot_dimension_numbers<[1], [0], [0], [1], [0, 0, 1, 1], [], []>} : vector<80x32xf32>, vector<32x256xf32>, vector<80x256xf32> -> vector<80x256xf32>
    %28 = arith.addf %8, %27 : vector<80x256xf32>
    %29 = vector.extract_strided_slice %7 {offsets = [0, 32], sizes = [80, 32], strides = [1, 1]} : vector<80x768xf32> to vector<80x32xf32>
    %30 = vector.extract_strided_slice %7 {offsets = [0, 288], sizes = [80, 32], strides = [1, 1]} : vector<80x768xf32> to vector<80x32xf32>
    %31 = vector.extract_strided_slice %7 {offsets = [0, 544], sizes = [80, 32], strides = [1, 1]} : vector<80x768xf32> to vector<80x32xf32>
    %32 = tpu.transpose %30, [1, 0] : vector<80x32xf32> -> vector<32x80xf32>
    %cst_15 = arith.constant dense<0.000000e+00> : vector<80x80xf32>
    %33 = tpu.matmul %29, %32, %cst_15 {dimension_numbers = #tpu.dot_dimension_numbers<[1], [0], [0], [1], [0, 0, 1, 1], [], []>} : vector<80x32xf32>, vector<32x80xf32>, vector<80x80xf32> -> vector<80x80xf32>
    %34 = arith.addf %33, %1 : vector<80x80xf32>
    %cst_16 = arith.constant dense<0xFF800000> : vector<80xf32>
    %35 = vector.multi_reduction <maximumf>, %34, %cst_16 [1] : vector<80x80xf32> to vector<80xf32>
    %36 = vector.shape_cast %35 : vector<80xf32> to vector<80x1xf32>
    %37 = vector.broadcast %36 : vector<80x1xf32> to vector<80x80xf32>
    %38 = arith.subf %34, %37 : vector<80x80xf32>
    %39 = math.exp %38 : vector<80x80xf32>
    %cst_17 = arith.constant dense<0.000000e+00> : vector<80xf32>
    %40 = vector.multi_reduction <add>, %39, %cst_17 [1] : vector<80x80xf32> to vector<80xf32>
    %41 = vector.shape_cast %40 : vector<80xf32> to vector<80x1xf32>
    %42 = tpu.reciprocal %41 {approx = true} : vector<80x1xf32> -> vector<80x1xf32>
    %43 = vector.broadcast %42 : vector<80x1xf32> to vector<80x80xf32>
    %44 = arith.mulf %39, %43 : vector<80x80xf32>
    %cst_18 = arith.constant dense<0.000000e+00> : vector<80x32xf32>
    %45 = tpu.matmul %44, %31, %cst_18 {dimension_numbers = #tpu.dot_dimension_numbers<[1], [0], [0], [1], [0, 0, 1, 1], [], []>} : vector<80x80xf32>, vector<80x32xf32>, vector<80x32xf32> -> vector<80x32xf32>
    %46 = vector.extract_strided_slice %2 {offsets = [32, 0], sizes = [32, 256], strides = [1, 1]} : vector<256x256xf32> to vector<32x256xf32>
    %cst_19 = arith.constant dense<0.000000e+00> : vector<80x256xf32>
    %47 = tpu.matmul %45, %46, %cst_19 {dimension_numbers = #tpu.dot_dimension_numbers<[1], [0], [0], [1], [0, 0, 1, 1], [], []>} : vector<80x32xf32>, vector<32x256xf32>, vector<80x256xf32> -> vector<80x256xf32>
    %48 = arith.addf %28, %47 : vector<80x256xf32>
    %49 = vector.extract_strided_slice %7 {offsets = [0, 64], sizes = [80, 32], strides = [1, 1]} : vector<80x768xf32> to vector<80x32xf32>
    %50 = vector.extract_strided_slice %7 {offsets = [0, 320], sizes = [80, 32], strides = [1, 1]} : vector<80x768xf32> to vector<80x32xf32>
    %51 = vector.extract_strided_slice %7 {offsets = [0, 576], sizes = [80, 32], strides = [1, 1]} : vector<80x768xf32> to vector<80x32xf32>
    %52 = tpu.transpose %50, [1, 0] : vector<80x32xf32> -> vector<32x80xf32>
    %cst_20 = arith.constant dense<0.000000e+00> : vector<80x80xf32>
    %53 = tpu.matmul %49, %52, %cst_20 {dimension_numbers = #tpu.dot_dimension_numbers<[1], [0], [0], [1], [0, 0, 1, 1], [], []>} : vector<80x32xf32>, vector<32x80xf32>, vector<80x80xf32> -> vector<80x80xf32>
    %54 = arith.addf %53, %1 : vector<80x80xf32>
    %cst_21 = arith.constant dense<0xFF800000> : vector<80xf32>
    %55 = vector.multi_reduction <maximumf>, %54, %cst_21 [1] : vector<80x80xf32> to vector<80xf32>
    %56 = vector.shape_cast %55 : vector<80xf32> to vector<80x1xf32>
    %57 = vector.broadcast %56 : vector<80x1xf32> to vector<80x80xf32>
    %58 = arith.subf %54, %57 : vector<80x80xf32>
    %59 = math.exp %58 : vector<80x80xf32>
    %cst_22 = arith.constant dense<0.000000e+00> : vector<80xf32>
    %60 = vector.multi_reduction <add>, %59, %cst_22 [1] : vector<80x80xf32> to vector<80xf32>
    %61 = vector.shape_cast %60 : vector<80xf32> to vector<80x1xf32>
    %62 = tpu.reciprocal %61 {approx = true} : vector<80x1xf32> -> vector<80x1xf32>
    %63 = vector.broadcast %62 : vector<80x1xf32> to vector<80x80xf32>
    %64 = arith.mulf %59, %63 : vector<80x80xf32>
    %cst_23 = arith.constant dense<0.000000e+00> : vector<80x32xf32>
    %65 = tpu.matmul %64, %51, %cst_23 {dimension_numbers = #tpu.dot_dimension_numbers<[1], [0], [0], [1], [0, 0, 1, 1], [], []>} : vector<80x80xf32>, vector<80x32xf32>, vector<80x32xf32> -> vector<80x32xf32>
    %66 = vector.extract_strided_slice %2 {offsets = [64, 0], sizes = [32, 256], strides = [1, 1]} : vector<256x256xf32> to vector<32x256xf32>
    %cst_24 = arith.constant dense<0.000000e+00> : vector<80x256xf32>
    %67 = tpu.matmul %65, %66, %cst_24 {dimension_numbers = #tpu.dot_dimension_numbers<[1], [0], [0], [1], [0, 0, 1, 1], [], []>} : vector<80x32xf32>, vector<32x256xf32>, vector<80x256xf32> -> vector<80x256xf32>
    %68 = arith.addf %48, %67 : vector<80x256xf32>
    %69 = vector.extract_strided_slice %7 {offsets = [0, 96], sizes = [80, 32], strides = [1, 1]} : vector<80x768xf32> to vector<80x32xf32>
    %70 = vector.extract_strided_slice %7 {offsets = [0, 352], sizes = [80, 32], strides = [1, 1]} : vector<80x768xf32> to vector<80x32xf32>
    %71 = vector.extract_strided_slice %7 {offsets = [0, 608], sizes = [80, 32], strides = [1, 1]} : vector<80x768xf32> to vector<80x32xf32>
    %72 = tpu.transpose %70, [1, 0] : vector<80x32xf32> -> vector<32x80xf32>
    %cst_25 = arith.constant dense<0.000000e+00> : vector<80x80xf32>
    %73 = tpu.matmul %69, %72, %cst_25 {dimension_numbers = #tpu.dot_dimension_numbers<[1], [0], [0], [1], [0, 0, 1, 1], [], []>} : vector<80x32xf32>, vector<32x80xf32>, vector<80x80xf32> -> vector<80x80xf32>
    %74 = arith.addf %73, %1 : vector<80x80xf32>
    %cst_26 = arith.constant dense<0xFF800000> : vector<80xf32>
    %75 = vector.multi_reduction <maximumf>, %74, %cst_26 [1] : vector<80x80xf32> to vector<80xf32>
    %76 = vector.shape_cast %75 : vector<80xf32> to vector<80x1xf32>
    %77 = vector.broadcast %76 : vector<80x1xf32> to vector<80x80xf32>
    %78 = arith.subf %74, %77 : vector<80x80xf32>
    %79 = math.exp %78 : vector<80x80xf32>
    %cst_27 = arith.constant dense<0.000000e+00> : vector<80xf32>
    %80 = vector.multi_reduction <add>, %79, %cst_27 [1] : vector<80x80xf32> to vector<80xf32>
    %81 = vector.shape_cast %80 : vector<80xf32> to vector<80x1xf32>
    %82 = tpu.reciprocal %81 {approx = true} : vector<80x1xf32> -> vector<80x1xf32>
    %83 = vector.broadcast %82 : vector<80x1xf32> to vector<80x80xf32>
    %84 = arith.mulf %79, %83 : vector<80x80xf32>
    %cst_28 = arith.constant dense<0.000000e+00> : vector<80x32xf32>
    %85 = tpu.matmul %84, %71, %cst_28 {dimension_numbers = #tpu.dot_dimension_numbers<[1], [0], [0], [1], [0, 0, 1, 1], [], []>} : vector<80x80xf32>, vector<80x32xf32>, vector<80x32xf32> -> vector<80x32xf32>
    %86 = vector.extract_strided_slice %2 {offsets = [96, 0], sizes = [32, 256], strides = [1, 1]} : vector<256x256xf32> to vector<32x256xf32>
    %cst_29 = arith.constant dense<0.000000e+00> : vector<80x256xf32>
    %87 = tpu.matmul %85, %86, %cst_29 {dimension_numbers = #tpu.dot_dimension_numbers<[1], [0], [0], [1], [0, 0, 1, 1], [], []>} : vector<80x32xf32>, vector<32x256xf32>, vector<80x256xf32> -> vector<80x256xf32>
    %88 = arith.addf %68, %87 : vector<80x256xf32>
    %89 = vector.extract_strided_slice %7 {offsets = [0, 128], sizes = [80, 32], strides = [1, 1]} : vector<80x768xf32> to vector<80x32xf32>
    %90 = vector.extract_strided_slice %7 {offsets = [0, 384], sizes = [80, 32], strides = [1, 1]} : vector<80x768xf32> to vector<80x32xf32>
    %91 = vector.extract_strided_slice %7 {offsets = [0, 640], sizes = [80, 32], strides = [1, 1]} : vector<80x768xf32> to vector<80x32xf32>
    %92 = tpu.transpose %90, [1, 0] : vector<80x32xf32> -> vector<32x80xf32>
    %cst_30 = arith.constant dense<0.000000e+00> : vector<80x80xf32>
    %93 = tpu.matmul %89, %92, %cst_30 {dimension_numbers = #tpu.dot_dimension_numbers<[1], [0], [0], [1], [0, 0, 1, 1], [], []>} : vector<80x32xf32>, vector<32x80xf32>, vector<80x80xf32> -> vector<80x80xf32>
    %94 = arith.addf %93, %1 : vector<80x80xf32>
    %cst_31 = arith.constant dense<0xFF800000> : vector<80xf32>
    %95 = vector.multi_reduction <maximumf>, %94, %cst_31 [1] : vector<80x80xf32> to vector<80xf32>
    %96 = vector.shape_cast %95 : vector<80xf32> to vector<80x1xf32>
    %97 = vector.broadcast %96 : vector<80x1xf32> to vector<80x80xf32>
    %98 = arith.subf %94, %97 : vector<80x80xf32>
    %99 = math.exp %98 : vector<80x80xf32>
    %cst_32 = arith.constant dense<0.000000e+00> : vector<80xf32>
    %100 = vector.multi_reduction <add>, %99, %cst_32 [1] : vector<80x80xf32> to vector<80xf32>
    %101 = vector.shape_cast %100 : vector<80xf32> to vector<80x1xf32>
    %102 = tpu.reciprocal %101 {approx = true} : vector<80x1xf32> -> vector<80x1xf32>
    %103 = vector.broadcast %102 : vector<80x1xf32> to vector<80x80xf32>
    %104 = arith.mulf %99, %103 : vector<80x80xf32>
    %cst_33 = arith.constant dense<0.000000e+00> : vector<80x32xf32>
    %105 = tpu.matmul %104, %91, %cst_33 {dimension_numbers = #tpu.dot_dimension_numbers<[1], [0], [0], [1], [0, 0, 1, 1], [], []>} : vector<80x80xf32>, vector<80x32xf32>, vector<80x32xf32> -> vector<80x32xf32>
    %106 = vector.extract_strided_slice %2 {offsets = [128, 0], sizes = [32, 256], strides = [1, 1]} : vector<256x256xf32> to vector<32x256xf32>
    %cst_34 = arith.constant dense<0.000000e+00> : vector<80x256xf32>
    %107 = tpu.matmul %105, %106, %cst_34 {dimension_numbers = #tpu.dot_dimension_numbers<[1], [0], [0], [1], [0, 0, 1, 1], [], []>} : vector<80x32xf32>, vector<32x256xf32>, vector<80x256xf32> -> vector<80x256xf32>
    %108 = arith.addf %88, %107 : vector<80x256xf32>
    %109 = vector.extract_strided_slice %7 {offsets = [0, 160], sizes = [80, 32], strides = [1, 1]} : vector<80x768xf32> to vector<80x32xf32>
    %110 = vector.extract_strided_slice %7 {offsets = [0, 416], sizes = [80, 32], strides = [1, 1]} : vector<80x768xf32> to vector<80x32xf32>
    %111 = vector.extract_strided_slice %7 {offsets = [0, 672], sizes = [80, 32], strides = [1, 1]} : vector<80x768xf32> to vector<80x32xf32>
    %112 = tpu.transpose %110, [1, 0] : vector<80x32xf32> -> vector<32x80xf32>
    %cst_35 = arith.constant dense<0.000000e+00> : vector<80x80xf32>
    %113 = tpu.matmul %109, %112, %cst_35 {dimension_numbers = #tpu.dot_dimension_numbers<[1], [0], [0], [1], [0, 0, 1, 1], [], []>} : vector<80x32xf32>, vector<32x80xf32>, vector<80x80xf32> -> vector<80x80xf32>
    %114 = arith.addf %113, %1 : vector<80x80xf32>
    %cst_36 = arith.constant dense<0xFF800000> : vector<80xf32>
    %115 = vector.multi_reduction <maximumf>, %114, %cst_36 [1] : vector<80x80xf32> to vector<80xf32>
    %116 = vector.shape_cast %115 : vector<80xf32> to vector<80x1xf32>
    %117 = vector.broadcast %116 : vector<80x1xf32> to vector<80x80xf32>
    %118 = arith.subf %114, %117 : vector<80x80xf32>
    %119 = math.exp %118 : vector<80x80xf32>
    %cst_37 = arith.constant dense<0.000000e+00> : vector<80xf32>
    %120 = vector.multi_reduction <add>, %119, %cst_37 [1] : vector<80x80xf32> to vector<80xf32>
    %121 = vector.shape_cast %120 : vector<80xf32> to vector<80x1xf32>
    %122 = tpu.reciprocal %121 {approx = true} : vector<80x1xf32> -> vector<80x1xf32>
    %123 = vector.broadcast %122 : vector<80x1xf32> to vector<80x80xf32>
    %124 = arith.mulf %119, %123 : vector<80x80xf32>
    %cst_38 = arith.constant dense<0.000000e+00> : vector<80x32xf32>
    %125 = tpu.matmul %124, %111, %cst_38 {dimension_numbers = #tpu.dot_dimension_numbers<[1], [0], [0], [1], [0, 0, 1, 1], [], []>} : vector<80x80xf32>, vector<80x32xf32>, vector<80x32xf32> -> vector<80x32xf32>
    %126 = vector.extract_strided_slice %2 {offsets = [160, 0], sizes = [32, 256], strides = [1, 1]} : vector<256x256xf32> to vector<32x256xf32>
    %cst_39 = arith.constant dense<0.000000e+00> : vector<80x256xf32>
    %127 = tpu.matmul %125, %126, %cst_39 {dimension_numbers = #tpu.dot_dimension_numbers<[1], [0], [0], [1], [0, 0, 1, 1], [], []>} : vector<80x32xf32>, vector<32x256xf32>, vector<80x256xf32> -> vector<80x256xf32>
    %128 = arith.addf %108, %127 : vector<80x256xf32>
    %129 = vector.extract_strided_slice %7 {offsets = [0, 192], sizes = [80, 32], strides = [1, 1]} : vector<80x768xf32> to vector<80x32xf32>
    %130 = vector.extract_strided_slice %7 {offsets = [0, 448], sizes = [80, 32], strides = [1, 1]} : vector<80x768xf32> to vector<80x32xf32>
    %131 = vector.extract_strided_slice %7 {offsets = [0, 704], sizes = [80, 32], strides = [1, 1]} : vector<80x768xf32> to vector<80x32xf32>
    %132 = tpu.transpose %130, [1, 0] : vector<80x32xf32> -> vector<32x80xf32>
    %cst_40 = arith.constant dense<0.000000e+00> : vector<80x80xf32>
    %133 = tpu.matmul %129, %132, %cst_40 {dimension_numbers = #tpu.dot_dimension_numbers<[1], [0], [0], [1], [0, 0, 1, 1], [], []>} : vector<80x32xf32>, vector<32x80xf32>, vector<80x80xf32> -> vector<80x80xf32>
    %134 = arith.addf %133, %1 : vector<80x80xf32>
    %cst_41 = arith.constant dense<0xFF800000> : vector<80xf32>
    %135 = vector.multi_reduction <maximumf>, %134, %cst_41 [1] : vector<80x80xf32> to vector<80xf32>
    %136 = vector.shape_cast %135 : vector<80xf32> to vector<80x1xf32>
    %137 = vector.broadcast %136 : vector<80x1xf32> to vector<80x80xf32>
    %138 = arith.subf %134, %137 : vector<80x80xf32>
    %139 = math.exp %138 : vector<80x80xf32>
    %cst_42 = arith.constant dense<0.000000e+00> : vector<80xf32>
    %140 = vector.multi_reduction <add>, %139, %cst_42 [1] : vector<80x80xf32> to vector<80xf32>
    %141 = vector.shape_cast %140 : vector<80xf32> to vector<80x1xf32>
    %142 = tpu.reciprocal %141 {approx = true} : vector<80x1xf32> -> vector<80x1xf32>
    %143 = vector.broadcast %142 : vector<80x1xf32> to vector<80x80xf32>
    %144 = arith.mulf %139, %143 : vector<80x80xf32>
    %cst_43 = arith.constant dense<0.000000e+00> : vector<80x32xf32>
    %145 = tpu.matmul %144, %131, %cst_43 {dimension_numbers = #tpu.dot_dimension_numbers<[1], [0], [0], [1], [0, 0, 1, 1], [], []>} : vector<80x80xf32>, vector<80x32xf32>, vector<80x32xf32> -> vector<80x32xf32>
    %146 = vector.extract_strided_slice %2 {offsets = [192, 0], sizes = [32, 256], strides = [1, 1]} : vector<256x256xf32> to vector<32x256xf32>
    %cst_44 = arith.constant dense<0.000000e+00> : vector<80x256xf32>
    %147 = tpu.matmul %145, %146, %cst_44 {dimension_numbers = #tpu.dot_dimension_numbers<[1], [0], [0], [1], [0, 0, 1, 1], [], []>} : vector<80x32xf32>, vector<32x256xf32>, vector<80x256xf32> -> vector<80x256xf32>
    %148 = arith.addf %128, %147 : vector<80x256xf32>
    %149 = vector.extract_strided_slice %7 {offsets = [0, 224], sizes = [80, 32], strides = [1, 1]} : vector<80x768xf32> to vector<80x32xf32>
    %150 = vector.extract_strided_slice %7 {offsets = [0, 480], sizes = [80, 32], strides = [1, 1]} : vector<80x768xf32> to vector<80x32xf32>
    %151 = vector.extract_strided_slice %7 {offsets = [0, 736], sizes = [80, 32], strides = [1, 1]} : vector<80x768xf32> to vector<80x32xf32>
    %152 = tpu.transpose %150, [1, 0] : vector<80x32xf32> -> vector<32x80xf32>
    %cst_45 = arith.constant dense<0.000000e+00> : vector<80x80xf32>
    %153 = tpu.matmul %149, %152, %cst_45 {dimension_numbers = #tpu.dot_dimension_numbers<[1], [0], [0], [1], [0, 0, 1, 1], [], []>} : vector<80x32xf32>, vector<32x80xf32>, vector<80x80xf32> -> vector<80x80xf32>
    %154 = arith.addf %153, %1 : vector<80x80xf32>
    %cst_46 = arith.constant dense<0xFF800000> : vector<80xf32>
    %155 = vector.multi_reduction <maximumf>, %154, %cst_46 [1] : vector<80x80xf32> to vector<80xf32>
    %156 = vector.shape_cast %155 : vector<80xf32> to vector<80x1xf32>
    %157 = vector.broadcast %156 : vector<80x1xf32> to vector<80x80xf32>
    %158 = arith.subf %154, %157 : vector<80x80xf32>
    %159 = math.exp %158 : vector<80x80xf32>
    %cst_47 = arith.constant dense<0.000000e+00> : vector<80xf32>
    %160 = vector.multi_reduction <add>, %159, %cst_47 [1] : vector<80x80xf32> to vector<80xf32>
    %161 = vector.shape_cast %160 : vector<80xf32> to vector<80x1xf32>
    %162 = tpu.reciprocal %161 {approx = true} : vector<80x1xf32> -> vector<80x1xf32>
    %163 = vector.broadcast %162 : vector<80x1xf32> to vector<80x80xf32>
    %164 = arith.mulf %159, %163 : vector<80x80xf32>
    %cst_48 = arith.constant dense<0.000000e+00> : vector<80x32xf32>
    %165 = tpu.matmul %164, %151, %cst_48 {dimension_numbers = #tpu.dot_dimension_numbers<[1], [0], [0], [1], [0, 0, 1, 1], [], []>} : vector<80x80xf32>, vector<80x32xf32>, vector<80x32xf32> -> vector<80x32xf32>
    %166 = vector.extract_strided_slice %2 {offsets = [224, 0], sizes = [32, 256], strides = [1, 1]} : vector<256x256xf32> to vector<32x256xf32>
    %cst_49 = arith.constant dense<0.000000e+00> : vector<80x256xf32>
    %167 = tpu.matmul %165, %166, %cst_49 {dimension_numbers = #tpu.dot_dimension_numbers<[1], [0], [0], [1], [0, 0, 1, 1], [], []>} : vector<80x32xf32>, vector<32x256xf32>, vector<80x256xf32> -> vector<80x256xf32>
    %168 = arith.addf %148, %167 : vector<80x256xf32>
    %c0_50 = arith.constant 0 : index
    %c0_51 = arith.constant 0 : index
    %169 = vector.load %arg6[%c0_50, %c0_51] : memref<1x256xf32, #tpu.memory_space<vmem>>, vector<1x256xf32>
    %170 = vector.broadcast %169 : vector<1x256xf32> to vector<80x256xf32>
    %171 = arith.addf %168, %170 : vector<80x256xf32>
    %172 = arith.addf %0, %171 : vector<80x256xf32>
    %c0_52 = arith.constant 0 : index
    %c0_53 = arith.constant 0 : index
    %173 = vector.load %arg7[%c0_52, %c0_53] : memref<1x256xf32, #tpu.memory_space<vmem>>, vector<1x256xf32>
    %c0_54 = arith.constant 0 : index
    %c0_55 = arith.constant 0 : index
    %174 = vector.load %arg8[%c0_54, %c0_55] : memref<1x256xf32, #tpu.memory_space<vmem>>, vector<1x256xf32>
    %cst_56 = arith.constant dense<0.000000e+00> : vector<80xf32>
    %175 = vector.multi_reduction <add>, %172, %cst_56 [1] : vector<80x256xf32> to vector<80xf32>
    %176 = vector.shape_cast %175 : vector<80xf32> to vector<80x1xf32>
    %cst_57 = arith.constant 2.560000e+02 : f32
    %177 = vector.broadcast %cst_57 : f32 to vector<80x1xf32>
    %178 = arith.divf %176, %177 : vector<80x1xf32>
    %179 = vector.broadcast %178 : vector<80x1xf32> to vector<80x256xf32>
    %180 = arith.subf %172, %179 : vector<80x256xf32>
    %181 = arith.mulf %180, %180 : vector<80x256xf32>
    %cst_58 = arith.constant dense<0.000000e+00> : vector<80xf32>
    %182 = vector.multi_reduction <add>, %181, %cst_58 [1] : vector<80x256xf32> to vector<80xf32>
    %183 = vector.shape_cast %182 : vector<80xf32> to vector<80x1xf32>
    %cst_59 = arith.constant 2.560000e+02 : f32
    %184 = vector.broadcast %cst_59 : f32 to vector<80x1xf32>
    %185 = arith.divf %183, %184 : vector<80x1xf32>
    %cst_60 = arith.constant 9.99999974E-6 : f32
    %186 = vector.broadcast %cst_60 : f32 to vector<80x1xf32>
    %187 = arith.addf %185, %186 : vector<80x1xf32>
    %188 = math.rsqrt %187 : vector<80x1xf32>
    %189 = vector.broadcast %188 : vector<80x1xf32> to vector<80x256xf32>
    %190 = arith.mulf %180, %189 : vector<80x256xf32>
    %191 = vector.broadcast %173 : vector<1x256xf32> to vector<80x256xf32>
    %192 = arith.mulf %190, %191 : vector<80x256xf32>
    %193 = vector.broadcast %174 : vector<1x256xf32> to vector<80x256xf32>
    %194 = arith.addf %192, %193 : vector<80x256xf32>
    %c0_61 = arith.constant 0 : index
    %c0_62 = arith.constant 0 : index
    %195 = vector.load %arg9[%c0_61, %c0_62] : memref<256x256xf32, #tpu.memory_space<vmem>>, vector<256x256xf32>
    %cst_63 = arith.constant dense<0.000000e+00> : vector<80x256xf32>
    %196 = tpu.matmul %194, %195, %cst_63 {dimension_numbers = #tpu.dot_dimension_numbers<[1], [0], [0], [1], [0, 0, 1, 1], [], []>} : vector<80x256xf32>, vector<256x256xf32>, vector<80x256xf32> -> vector<80x256xf32>
    %c0_64 = arith.constant 0 : index
    %c0_65 = arith.constant 0 : index
    %197 = vector.load %arg10[%c0_64, %c0_65] : memref<1x256xf32, #tpu.memory_space<vmem>>, vector<1x256xf32>
    %198 = vector.broadcast %197 : vector<1x256xf32> to vector<80x256xf32>
    %199 = arith.addf %196, %198 : vector<80x256xf32>
    %cst_66 = arith.constant 0.000000e+00 : f32
    %200 = vector.broadcast %cst_66 : f32 to vector<80x256xf32>
    %201 = arith.maximumf %199, %200 : vector<80x256xf32>
    %c0_67 = arith.constant 0 : index
    %c0_68 = arith.constant 0 : index
    %202 = vector.load %arg11[%c0_67, %c0_68] : memref<256x256xf32, #tpu.memory_space<vmem>>, vector<256x256xf32>
    %cst_69 = arith.constant dense<0.000000e+00> : vector<80x256xf32>
    %203 = tpu.matmul %201, %202, %cst_69 {dimension_numbers = #tpu.dot_dimension_numbers<[1], [0], [0], [1], [0, 0, 1, 1], [], []>} : vector<80x256xf32>, vector<256x256xf32>, vector<80x256xf32> -> vector<80x256xf32>
    %c0_70 = arith.constant 0 : index
    %c0_71 = arith.constant 0 : index
    %204 = vector.load %arg12[%c0_70, %c0_71] : memref<1x256xf32, #tpu.memory_space<vmem>>, vector<1x256xf32>
    %205 = vector.broadcast %204 : vector<1x256xf32> to vector<80x256xf32>
    %206 = arith.addf %203, %205 : vector<80x256xf32>
    %207 = arith.addf %194, %206 : vector<80x256xf32>
    %c0_72 = arith.constant 0 : index
    %c0_73 = arith.constant 0 : index
    %208 = vector.load %arg13[%c0_72, %c0_73] : memref<1x256xf32, #tpu.memory_space<vmem>>, vector<1x256xf32>
    %c0_74 = arith.constant 0 : index
    %c0_75 = arith.constant 0 : index
    %209 = vector.load %arg14[%c0_74, %c0_75] : memref<1x256xf32, #tpu.memory_space<vmem>>, vector<1x256xf32>
    %cst_76 = arith.constant dense<0.000000e+00> : vector<80xf32>
    %210 = vector.multi_reduction <add>, %207, %cst_76 [1] : vector<80x256xf32> to vector<80xf32>
    %211 = vector.shape_cast %210 : vector<80xf32> to vector<80x1xf32>
    %cst_77 = arith.constant 2.560000e+02 : f32
    %212 = vector.broadcast %cst_77 : f32 to vector<80x1xf32>
    %213 = arith.divf %211, %212 : vector<80x1xf32>
    %214 = vector.broadcast %213 : vector<80x1xf32> to vector<80x256xf32>
    %215 = arith.subf %207, %214 : vector<80x256xf32>
    %216 = arith.mulf %215, %215 : vector<80x256xf32>
    %cst_78 = arith.constant dense<0.000000e+00> : vector<80xf32>
    %217 = vector.multi_reduction <add>, %216, %cst_78 [1] : vector<80x256xf32> to vector<80xf32>
    %218 = vector.shape_cast %217 : vector<80xf32> to vector<80x1xf32>
    %cst_79 = arith.constant 2.560000e+02 : f32
    %219 = vector.broadcast %cst_79 : f32 to vector<80x1xf32>
    %220 = arith.divf %218, %219 : vector<80x1xf32>
    %cst_80 = arith.constant 9.99999974E-6 : f32
    %221 = vector.broadcast %cst_80 : f32 to vector<80x1xf32>
    %222 = arith.addf %220, %221 : vector<80x1xf32>
    %223 = math.rsqrt %222 : vector<80x1xf32>
    %224 = vector.broadcast %223 : vector<80x1xf32> to vector<80x256xf32>
    %225 = arith.mulf %215, %224 : vector<80x256xf32>
    %226 = vector.broadcast %208 : vector<1x256xf32> to vector<80x256xf32>
    %227 = arith.mulf %225, %226 : vector<80x256xf32>
    %228 = vector.broadcast %209 : vector<1x256xf32> to vector<80x256xf32>
    %229 = arith.addf %227, %228 : vector<80x256xf32>
    %c0_81 = arith.constant 0 : index
    %c0_82 = arith.constant 0 : index
    %230 = vector.load %arg15[%c0_81, %c0_82] : memref<80x256xf32, #tpu.memory_space<vmem>>, vector<80x256xf32>
    tpu.vector_store %arg15[%c0_81, %c0_82], %229 {strides = array<i32>} : memref<80x256xf32, #tpu.memory_space<vmem>>, vector<80x256xf32>,
    return
  }
  func.func @transform_0(%arg0: i32) -> (i32, i32) {
    %c0_i32 = arith.constant 0 : i32
    %c0_i32_0 = arith.constant 0 : i32
    return %arg0, %c0_i32 : i32, i32
  }
  func.func @transform_1(%arg0: i32) -> (i32, i32) {
    %c0_i32 = arith.constant 0 : i32
    %c0_i32_0 = arith.constant 0 : i32
    %c0_i32_1 = arith.constant 0 : i32
    return %c0_i32, %c0_i32_0 : i32, i32
  }
  func.func @transform_2(%arg0: i32) -> (i32, i32) {
    %c0_i32 = arith.constant 0 : i32
    %c0_i32_0 = arith.constant 0 : i32
    %c0_i32_1 = arith.constant 0 : i32
    return %c0_i32, %c0_i32_0 : i32, i32
  }
  func.func @transform_3(%arg0: i32) -> (i32, i32) {
    %c0_i32 = arith.constant 0 : i32
    %c0_i32_0 = arith.constant 0 : i32
    %c0_i32_1 = arith.constant 0 : i32
    return %c0_i32, %c0_i32_0 : i32, i32
  }
  func.func @transform_4(%arg0: i32) -> (i32, i32) {
    %c0_i32 = arith.constant 0 : i32
    %c0_i32_0 = arith.constant 0 : i32
    %c0_i32_1 = arith.constant 0 : i32
    return %c0_i32, %c0_i32_0 : i32, i32
  }
  func.func @transform_5(%arg0: i32) -> (i32, i32) {
    %c0_i32 = arith.constant 0 : i32
    %c0_i32_0 = arith.constant 0 : i32
    %c0_i32_1 = arith.constant 0 : i32
    return %c0_i32, %c0_i32_0 : i32, i32
  }
  func.func @transform_6(%arg0: i32) -> (i32, i32) {
    %c0_i32 = arith.constant 0 : i32
    %c0_i32_0 = arith.constant 0 : i32
    %c0_i32_1 = arith.constant 0 : i32
    return %c0_i32, %c0_i32_0 : i32, i32
  }
  func.func @transform_7(%arg0: i32) -> (i32, i32) {
    %c0_i32 = arith.constant 0 : i32
    %c0_i32_0 = arith.constant 0 : i32
    %c0_i32_1 = arith.constant 0 : i32
    return %c0_i32, %c0_i32_0 : i32, i32
  }
  func.func @transform_8(%arg0: i32) -> (i32, i32) {
    %c0_i32 = arith.constant 0 : i32
    %c0_i32_0 = arith.constant 0 : i32
    %c0_i32_1 = arith.constant 0 : i32
    return %c0_i32, %c0_i32_0 : i32, i32
  }
  func.func @transform_9(%arg0: i32) -> (i32, i32) {
    %c0_i32 = arith.constant 0 : i32
    %c0_i32_0 = arith.constant 0 : i32
    %c0_i32_1 = arith.constant 0 : i32
    return %c0_i32, %c0_i32_0 : i32, i32
  }
  func.func @transform_10(%arg0: i32) -> (i32, i32) {
    %c0_i32 = arith.constant 0 : i32
    %c0_i32_0 = arith.constant 0 : i32
    %c0_i32_1 = arith.constant 0 : i32
    return %c0_i32, %c0_i32_0 : i32, i32
  }
  func.func @transform_11(%arg0: i32) -> (i32, i32) {
    %c0_i32 = arith.constant 0 : i32
    %c0_i32_0 = arith.constant 0 : i32
    %c0_i32_1 = arith.constant 0 : i32
    return %c0_i32, %c0_i32_0 : i32, i32
  }
  func.func @transform_12(%arg0: i32) -> (i32, i32) {
    %c0_i32 = arith.constant 0 : i32
    %c0_i32_0 = arith.constant 0 : i32
    %c0_i32_1 = arith.constant 0 : i32
    return %c0_i32, %c0_i32_0 : i32, i32
  }
  func.func @transform_13(%arg0: i32) -> (i32, i32) {
    %c0_i32 = arith.constant 0 : i32
    %c0_i32_0 = arith.constant 0 : i32
    %c0_i32_1 = arith.constant 0 : i32
    return %c0_i32, %c0_i32_0 : i32, i32
  }
  func.func @transform_14(%arg0: i32) -> (i32, i32) {
    %c0_i32 = arith.constant 0 : i32
    %c0_i32_0 = arith.constant 0 : i32
    return %arg0, %c0_i32 : i32, i32
  }
}

module attributes {stable_mosaic.version = 11 : i64} {
  func.func @bilstm_kernel(%arg0: i32, %arg1: memref<4x2x512xf32, #tpu.memory_space<vmem>>, %arg2: memref<4x2x512xf32, #tpu.memory_space<vmem>>, %arg3: memref<128x512xf32, #tpu.memory_space<vmem>>, %arg4: memref<128x512xf32, #tpu.memory_space<vmem>>, %arg5: memref<4x2x128xf32, #tpu.memory_space<vmem>>, %arg6: memref<4x2x128xf32, #tpu.memory_space<vmem>>) attributes {dimension_semantics = [#tpu.dimension_semantics<parallel>], iteration_bounds = array<i64: 1>, scalar_prefetch = 0 : i64, scratch_operands = 0 : i64, tpu.core_type = #tpu.core_type<tc>, window_params = [{transform_indices = @transform_0, window_bounds = array<i64: 4, 2, 512>}, {transform_indices = @transform_1, window_bounds = array<i64: 4, 2, 512>}, {pipeline_mode = #tpu.pipeline_mode<synchronous>, transform_indices = @transform_2, window_bounds = array<i64: 128, 512>}, {pipeline_mode = #tpu.pipeline_mode<synchronous>, transform_indices = @transform_3, window_bounds = array<i64: 128, 512>}, {transform_indices = @transform_4, window_bounds = array<i64: 4, 2, 128>}, {transform_indices = @transform_5, window_bounds = array<i64: 4, 2, 128>}]} {
    %c0 = arith.constant 0 : index
    %c0_0 = arith.constant 0 : index
    %0 = vector.load %arg3[%c0, %c0_0] : memref<128x512xf32, #tpu.memory_space<vmem>>, vector<128x512xf32>
    %c0_1 = arith.constant 0 : index
    %c0_2 = arith.constant 0 : index
    %1 = vector.load %arg4[%c0_1, %c0_2] : memref<128x512xf32, #tpu.memory_space<vmem>>, vector<128x512xf32>
    %cst = arith.constant 0.000000e+00 : f32
    %2 = vector.broadcast %cst : f32 to vector<2x128xf32>
    %c0_i32 = arith.constant 0 : i32
    %c4_i32 = arith.constant 4 : i32
    %3 = arith.addi %c0_i32, %c4_i32 : i32
    %c1_i32 = arith.constant 1 : i32
    %4:4 = scf.for %arg7 = %c0_i32 to %3 step %c1_i32 iter_args(%arg8 = %2, %arg9 = %2, %arg10 = %2, %arg11 = %2) -> (vector<2x128xf32>, vector<2x128xf32>, vector<2x128xf32>, vector<2x128xf32>)  : i32 {
      %5 = arith.index_cast %arg7 : i32 to index
      %c0_4 = arith.constant 0 : index
      %c0_5 = arith.constant 0 : index
      %6 = vector.load %arg1[%5, %c0_4, %c0_5] : memref<4x2x512xf32, #tpu.memory_space<vmem>>, vector<1x2x512xf32>
      %7 = vector.shape_cast %6 : vector<1x2x512xf32> to vector<2x512xf32>
      %cst_6 = arith.constant dense<0.000000e+00> : vector<2x512xf32>
      %8 = tpu.matmul %arg8, %0, %cst_6 {dimension_numbers = #tpu.dot_dimension_numbers<[1], [0], [0], [1], [0, 0, 1, 1], [], []>} : vector<2x128xf32>, vector<128x512xf32>, vector<2x512xf32> -> vector<2x512xf32>
      %9 = arith.addf %7, %8 : vector<2x512xf32>
      %10 = vector.extract_strided_slice %9 {offsets = [0, 0], sizes = [2, 128], strides = [1, 1]} : vector<2x512xf32> to vector<2x128xf32>
      %11 = arith.negf %10 : vector<2x128xf32>
      %12 = math.exp %11 : vector<2x128xf32>
      %cst_7 = arith.constant 1.000000e+00 : f32
      %13 = vector.broadcast %cst_7 : f32 to vector<2x128xf32>
      %14 = arith.addf %13, %12 : vector<2x128xf32>
      %15 = arith.divf %13, %14 : vector<2x128xf32>
      %16 = vector.extract_strided_slice %9 {offsets = [0, 128], sizes = [2, 128], strides = [1, 1]} : vector<2x512xf32> to vector<2x128xf32>
      %17 = arith.negf %16 : vector<2x128xf32>
      %18 = math.exp %17 : vector<2x128xf32>
      %cst_8 = arith.constant 1.000000e+00 : f32
      %19 = vector.broadcast %cst_8 : f32 to vector<2x128xf32>
      %20 = arith.addf %19, %18 : vector<2x128xf32>
      %21 = arith.divf %19, %20 : vector<2x128xf32>
      %22 = vector.extract_strided_slice %9 {offsets = [0, 256], sizes = [2, 128], strides = [1, 1]} : vector<2x512xf32> to vector<2x128xf32>
      %23 = math.tanh %22 : vector<2x128xf32>
      %24 = vector.extract_strided_slice %9 {offsets = [0, 384], sizes = [2, 128], strides = [1, 1]} : vector<2x512xf32> to vector<2x128xf32>
      %25 = arith.negf %24 : vector<2x128xf32>
      %26 = math.exp %25 : vector<2x128xf32>
      %cst_9 = arith.constant 1.000000e+00 : f32
      %27 = vector.broadcast %cst_9 : f32 to vector<2x128xf32>
      %28 = arith.addf %27, %26 : vector<2x128xf32>
      %29 = arith.divf %27, %28 : vector<2x128xf32>
      %30 = arith.mulf %21, %arg9 : vector<2x128xf32>
      %31 = arith.mulf %15, %23 : vector<2x128xf32>
      %32 = arith.addf %30, %31 : vector<2x128xf32>
      %33 = math.tanh %32 : vector<2x128xf32>
      %34 = arith.mulf %29, %33 : vector<2x128xf32>
      %35 = arith.index_cast %arg7 : i32 to index
      %c0_10 = arith.constant 0 : index
      %c0_11 = arith.constant 0 : index
      %36 = vector.load %arg5[%35, %c0_10, %c0_11] : memref<4x2x128xf32, #tpu.memory_space<vmem>>, vector<1x2x128xf32>
      %37 = vector.shape_cast %36 : vector<1x2x128xf32> to vector<2x128xf32>
      %38 = vector.shape_cast %34 : vector<2x128xf32> to vector<1x2x128xf32>
      tpu.vector_store %arg5[%35, %c0_10, %c0_11], %38 {strides = array<i32>} : memref<4x2x128xf32, #tpu.memory_space<vmem>>, vector<1x2x128xf32>,
      %c3_i32 = arith.constant 3 : i32
      %39 = arith.subi %c3_i32, %arg7 : i32
      %40 = arith.index_cast %39 : i32 to index
      %c0_12 = arith.constant 0 : index
      %c0_13 = arith.constant 0 : index
      %41 = vector.load %arg2[%40, %c0_12, %c0_13] : memref<4x2x512xf32, #tpu.memory_space<vmem>>, vector<1x2x512xf32>
      %42 = vector.shape_cast %41 : vector<1x2x512xf32> to vector<2x512xf32>
      %cst_14 = arith.constant dense<0.000000e+00> : vector<2x512xf32>
      %43 = tpu.matmul %arg10, %1, %cst_14 {dimension_numbers = #tpu.dot_dimension_numbers<[1], [0], [0], [1], [0, 0, 1, 1], [], []>} : vector<2x128xf32>, vector<128x512xf32>, vector<2x512xf32> -> vector<2x512xf32>
      %44 = arith.addf %42, %43 : vector<2x512xf32>
      %45 = vector.extract_strided_slice %44 {offsets = [0, 0], sizes = [2, 128], strides = [1, 1]} : vector<2x512xf32> to vector<2x128xf32>
      %46 = arith.negf %45 : vector<2x128xf32>
      %47 = math.exp %46 : vector<2x128xf32>
      %cst_15 = arith.constant 1.000000e+00 : f32
      %48 = vector.broadcast %cst_15 : f32 to vector<2x128xf32>
      %49 = arith.addf %48, %47 : vector<2x128xf32>
      %50 = arith.divf %48, %49 : vector<2x128xf32>
      %51 = vector.extract_strided_slice %44 {offsets = [0, 128], sizes = [2, 128], strides = [1, 1]} : vector<2x512xf32> to vector<2x128xf32>
      %52 = arith.negf %51 : vector<2x128xf32>
      %53 = math.exp %52 : vector<2x128xf32>
      %cst_16 = arith.constant 1.000000e+00 : f32
      %54 = vector.broadcast %cst_16 : f32 to vector<2x128xf32>
      %55 = arith.addf %54, %53 : vector<2x128xf32>
      %56 = arith.divf %54, %55 : vector<2x128xf32>
      %57 = vector.extract_strided_slice %44 {offsets = [0, 256], sizes = [2, 128], strides = [1, 1]} : vector<2x512xf32> to vector<2x128xf32>
      %58 = math.tanh %57 : vector<2x128xf32>
      %59 = vector.extract_strided_slice %44 {offsets = [0, 384], sizes = [2, 128], strides = [1, 1]} : vector<2x512xf32> to vector<2x128xf32>
      %60 = arith.negf %59 : vector<2x128xf32>
      %61 = math.exp %60 : vector<2x128xf32>
      %cst_17 = arith.constant 1.000000e+00 : f32
      %62 = vector.broadcast %cst_17 : f32 to vector<2x128xf32>
      %63 = arith.addf %62, %61 : vector<2x128xf32>
      %64 = arith.divf %62, %63 : vector<2x128xf32>
      %65 = arith.mulf %56, %arg11 : vector<2x128xf32>
      %66 = arith.mulf %50, %58 : vector<2x128xf32>
      %67 = arith.addf %65, %66 : vector<2x128xf32>
      %68 = math.tanh %67 : vector<2x128xf32>
      %69 = arith.mulf %64, %68 : vector<2x128xf32>
      %70 = arith.index_cast %39 : i32 to index
      %c0_18 = arith.constant 0 : index
      %c0_19 = arith.constant 0 : index
      %71 = vector.load %arg6[%70, %c0_18, %c0_19] : memref<4x2x128xf32, #tpu.memory_space<vmem>>, vector<1x2x128xf32>
      %72 = vector.shape_cast %71 : vector<1x2x128xf32> to vector<2x128xf32>
      %73 = vector.shape_cast %69 : vector<2x128xf32> to vector<1x2x128xf32>
      tpu.vector_store %arg6[%70, %c0_18, %c0_19], %73 {strides = array<i32>} : memref<4x2x128xf32, #tpu.memory_space<vmem>>, vector<1x2x128xf32>,
      scf.yield %34, %32, %69, %67 : vector<2x128xf32>, vector<2x128xf32>, vector<2x128xf32>, vector<2x128xf32>
    }
    %c4_i32_3 = arith.constant 4 : i32
    return
  }
  func.func @transform_0(%arg0: i32) -> (i32, i32, i32) {
    %c0_i32 = arith.constant 0 : i32
    %c0_i32_0 = arith.constant 0 : i32
    %c0_i32_1 = arith.constant 0 : i32
    return %c0_i32, %arg0, %c0_i32_0 : i32, i32, i32
  }
  func.func @transform_1(%arg0: i32) -> (i32, i32, i32) {
    %c0_i32 = arith.constant 0 : i32
    %c0_i32_0 = arith.constant 0 : i32
    %c0_i32_1 = arith.constant 0 : i32
    return %c0_i32, %arg0, %c0_i32_0 : i32, i32, i32
  }
  func.func @transform_2(%arg0: i32) -> (i32, i32) {
    %c0_i32 = arith.constant 0 : i32
    %c0_i32_0 = arith.constant 0 : i32
    %c0_i32_1 = arith.constant 0 : i32
    return %c0_i32, %c0_i32_0 : i32, i32
  }
  func.func @transform_3(%arg0: i32) -> (i32, i32) {
    %c0_i32 = arith.constant 0 : i32
    %c0_i32_0 = arith.constant 0 : i32
    %c0_i32_1 = arith.constant 0 : i32
    return %c0_i32, %c0_i32_0 : i32, i32
  }
  func.func @transform_4(%arg0: i32) -> (i32, i32, i32) {
    %c0_i32 = arith.constant 0 : i32
    %c0_i32_0 = arith.constant 0 : i32
    %c0_i32_1 = arith.constant 0 : i32
    return %c0_i32, %arg0, %c0_i32_0 : i32, i32, i32
  }
  func.func @transform_5(%arg0: i32) -> (i32, i32, i32) {
    %c0_i32 = arith.constant 0 : i32
    %c0_i32_0 = arith.constant 0 : i32
    %c0_i32_1 = arith.constant 0 : i32
    return %c0_i32, %arg0, %c0_i32_0 : i32, i32, i32
  }
}

</mosaic_0001>

<llo_original>
// kernel: eq.8
$region0: #{eq.8}
  %s0 = inlined_call_operand.vmem [shape: s32[4,20], index: 0, kind: input, shape index: {}]
  %s1 = inlined_call_operand.vmem [shape: s32[80], index: 1, kind: output, shape index: {}]
  $region1: #{eq.8} parent=0
    #allocation0 [shape = 'u8[4096]{0}', space=vmem, size = 0x1000, scoped, tag = 'scoped mem for output reshape']
    #allocation1 [shape = 'u8[4096]{0}', space=vmem, size = 0x1000, scoped, tag = 'scoped mem for input reshape']
    %s3 = ssub.s32 16, 1
    %v4 = vld [vmem:[%s0] sm:%s3]
    %5 = vst [vmem:[#allocation1] sm:%s3] %v4
    %v6 = vld [vmem:[#allocation1] sm:$0x1]
    %vm7 = vcmask 162816
    %8 = vst.msk [vmem:[#allocation0] sm:$0x1] %vm7, %v6
    %s9 = scalar_lea.vmem [#allocation1], 3
    %v10 = vld [vmem:[%s9] sm:$0x1]
    %11 = vrot.lane.b32.xlu0 %v10, 60
    %v12 = vpop.permute.xlu0 %11
    %vm13 = vcmask 654816
    %14 = vst.msk [vmem:[#allocation0] sm:$0x1] %vm13, %v12
    %s15 = scalar_lea.vmem [#allocation1], 2
    %v16 = vld [vmem:[%s15] sm:$0x1]
    %17 = vrot.lane.b32.xlu0 %v16, 40
    %v18 = vpop.permute.xlu0 %17
    %vm19 = vcmask 490816
    %20 = vst.msk [vmem:[#allocation0] sm:$0x1] %vm19, %v18
    %s21 = scalar_lea.vmem [#allocation1], 1
    %v22 = vld [vmem:[%s21] sm:$0x1]
    %23 = vrot.lane.b32.xlu0 %v22, 20
    %v24 = vpop.permute.xlu0 %23
    %vm25 = vcmask 326816
    %26 = vst.msk [vmem:[#allocation0] sm:$0x1] %vm25, %v24
    %s28 = ssub.s32 2, 1
    %v29 = vld [vmem:[#allocation0] sm:%s28]
    %s31 = ssub.s32 2, 1
    %32 = vst [vmem:[%s1] sm:%s31] %v29

// kernel: forward.3
$region0: #{forward.3}
  #allocation0 [shape = 'u32[]', space=smem, size = 0x4, offset = 0x4, fixed_abs, tag = 'smem constant byte address 0x4 - core index']
  #allocation1 [shape = 'u32[72,128]{1,0:T(1,128)}', space=vmem, size = 0x9000, scoped, tag = 'internal scratch']
  %s0 = inlined_call_operand.vmem [shape: f32[4,2,512], index: 0, kind: input, shape index: {}]
  %s1 = inlined_call_operand.vmem [shape: f32[4,2,512], index: 1, kind: input, shape index: {}]
  %s2 = inlined_call_operand.vmem [shape: f32[128,512], index: 2, kind: input, shape index: {}]
  %s3 = inlined_call_operand.vmem [shape: f32[128,512], index: 3, kind: input, shape index: {}]
  %s4 = inlined_call_operand.vmem [shape: f32[4,2,128], index: 4, kind: output, shape index: {0}]
  %s5 = inlined_call_operand.vmem [shape: f32[4,2,128], index: 5, kind: output, shape index: {1}]
  %6 = xla_tuple %s4, %s5
  %s7 = sld [smem:[#allocation0]]
  $region41: #{forward.3} parent=0
    _
  %s9 = ssub.s32 1, %s7
  %s10 = scalar_select 0, %s9, %s7
  // Predicated region
  $region2: #{forward.3} parent=0 // pred_check
    _
  $region3: #{forward.3} parent=0 // pred_check_branch
    %12 = sbr.rel (0) target = $region5
  $region4: #{forward.3} parent=0 // pred_region
    _
  $region5: #{forward.3} parent=0 // pred_fallthru
    _
  // Predicated region
  $region6: #{forward.3} parent=0 // pred_check
    _
  $region7: #{forward.3} parent=0 // pred_check_branch
    %14 = sbr.rel (0) target = $region9
  $region8: #{forward.3} parent=0 // pred_region
    _
  $region9: #{forward.3} parent=0 // pred_fallthru
    _
  // Predicated region
  $region10: #{forward.3} parent=0 // pred_check
    _
  $region11: #{forward.3} parent=0 // pred_check_branch
    %16 = sbr.rel (0) target = $region13
  $region12: #{forward.3} parent=0 // pred_region
    _
  $region13: #{forward.3} parent=0 // pred_fallthru
    _
  // Predicated region
  $region14: #{forward.3} parent=0 // pred_check
    _
  $region15: #{forward.3} parent=0 // pred_check_branch
    %18 = sbr.rel (0) target = $region17
  $region16: #{forward.3} parent=0 // pred_region
    _
  $region17: #{forward.3} parent=0 // pred_fallthru
    _
  %v19 = vld [vmem:[%s2] sm:$0xff]
  %v20 = vld [vmem:[%s2 + $0x8] sm:$0xff]
  %v21 = vld [vmem:[%s2 + $0x10] sm:$0xff]
  %v22 = vld [vmem:[%s2 + $0x18] sm:$0xff]
  %v23 = vld [vmem:[%s2 + $0x20] sm:$0xff]
  %v24 = vld [vmem:[%s2 + $0x28] sm:$0xff]
  %v25 = vld [vmem:[%s2 + $0x30] sm:$0xff]
  %v26 = vld [vmem:[%s2 + $0x38] sm:$0xff]
  %v27 = vld [vmem:[%s2 + $0x40] sm:$0xff]
  %v28 = vld [vmem:[%s2 + $0x48] sm:$0xff]
  %v29 = vld [vmem:[%s2 + $0x50] sm:$0xff]
  %v30 = vld [vmem:[%s2 + $0x58] sm:$0xff]
  %v31 = vld [vmem:[%s2 + $0x60] sm:$0xff]
  %v32 = vld [vmem:[%s2 + $0x68] sm:$0xff]
  %v33 = vld [vmem:[%s2 + $0x70] sm:$0xff]
  %v34 = vld [vmem:[%s2 + $0x78] sm:$0xff]
  %v35 = vld [vmem:[%s2 + $0x80] sm:$0xff]
  %v36 = vld [vmem:[%s2 + $0x88] sm:$0xff]
  %v37 = vld [vmem:[%s2 + $0x90] sm:$0xff]
  %v38 = vld [vmem:[%s2 + $0x98] sm:$0xff]
  %v39 = vld [vmem:[%s2 + $0xa0] sm:$0xff]
  %v40 = vld [vmem:[%s2 + $0xa8] sm:$0xff]
  %v41 = vld [vmem:[%s2 + $0xb0] sm:$0xff]
  %v42 = vld [vmem:[%s2 + $0xb8] sm:$0xff]
  %v43 = vld [vmem:[%s2 + $0xc0] sm:$0xff]
  %v44 = vld [vmem:[%s2 + $0xc8] sm:$0xff]
  %v45 = vld [vmem:[%s2 + $0xd0] sm:$0xff]
  %v46 = vld [vmem:[%s2 + $0xd8] sm:$0xff]
  %v47 = vld [vmem:[%s2 + $0xe0] sm:$0xff]
  %v48 = vld [vmem:[%s2 + $0xe8] sm:$0xff]
  %v49 = vld [vmem:[%s2 + $0xf0] sm:$0xff]
  %v50 = vld [vmem:[%s2 + $0xf8] sm:$0xff]
  %v51 = vld [vmem:[%s2 + $0x100] sm:$0xff]
  %v52 = vld [vmem:[%s2 + $0x108] sm:$0xff]
  %v53 = vld [vmem:[%s2 + $0x110] sm:$0xff]
  %v54 = vld [vmem:[%s2 + $0x118] sm:$0xff]
  %v55 = vld [vmem:[%s2 + $0x120] sm:$0xff]
  %v56 = vld [vmem:[%s2 + $0x128] sm:$0xff]
  %v57 = vld [vmem:[%s2 + $0x130] sm:$0xff]
  %v58 = vld [vmem:[%s2 + $0x138] sm:$0xff]
  %v59 = vld [vmem:[%s2 + $0x140] sm:$0xff]
  %v60 = vld [vmem:[%s2 + $0x148] sm:$0xff]
  %v61 = vld [vmem:[%s2 + $0x150] sm:$0xff]
  %v62 = vld [vmem:[%s2 + $0x158] sm:$0xff]
  %v63 = vld [vmem:[%s2 + $0x160] sm:$0xff]
  %v64 = vld [vmem:[%s2 + $0x168] sm:$0xff]
  %v65 = vld [vmem:[%s2 + $0x170] sm:$0xff]
  %v66 = vld [vmem:[%s2 + $0x178] sm:$0xff]
  %v67 = vld [vmem:[%s2 + $0x180] sm:$0xff]
  %v68 = vld [vmem:[%s2 + $0x188] sm:$0xff]
  %v69 = vld [vmem:[%s2 + $0x190] sm:$0xff]
  %v70 = vld [vmem:[%s2 + $0x198] sm:$0xff]
  %v71 = vld [vmem:[%s2 + $0x1a0] sm:$0xff]
  %v72 = vld [vmem:[%s2 + $0x1a8] sm:$0xff]
  %v73 = vld [vmem:[%s2 + $0x1b0] sm:$0xff]
  %v74 = vld [vmem:[%s2 + $0x1b8] sm:$0xff]
  %v75 = vld [vmem:[%s2 + $0x1c0] sm:$0xff]
  %v76 = vld [vmem:[%s2 + $0x1c8] sm:$0xff]
  %v77 = vld [vmem:[%s2 + $0x1d0] sm:$0xff]
  %v78 = vld [vmem:[%s2 + $0x1d8] sm:$0xff]
  %v79 = vld [vmem:[%s2 + $0x1e0] sm:$0xff]
  %v80 = vld [vmem:[%s2 + $0x1e8] sm:$0xff]
  %v81 = vld [vmem:[%s2 + $0x1f0] sm:$0xff]
  %v82 = vld [vmem:[%s2 + $0x1f8] sm:$0xff]
  %v83 = vld [vmem:[%s3] sm:$0xff]
  %v84 = vld [vmem:[%s3 + $0x8] sm:$0xff]
  %v85 = vld [vmem:[%s3 + $0x10] sm:$0xff]
  %v86 = vld [vmem:[%s3 + $0x18] sm:$0xff]
  %v87 = vld [vmem:[%s3 + $0x20] sm:$0xff]
  %v88 = vld [vmem:[%s3 + $0x28] sm:$0xff]
  %v89 = vld [vmem:[%s3 + $0x30] sm:$0xff]
  %v90 = vld [vmem:[%s3 + $0x38] sm:$0xff]
  %v91 = vld [vmem:[%s3 + $0x40] sm:$0xff]
  %v92 = vld [vmem:[%s3 + $0x48] sm:$0xff]
  %v93 = vld [vmem:[%s3 + $0x50] sm:$0xff]
  %v94 = vld [vmem:[%s3 + $0x58] sm:$0xff]
  %v95 = vld [vmem:[%s3 + $0x60] sm:$0xff]
  %v96 = vld [vmem:[%s3 + $0x68] sm:$0xff]
  %v97 = vld [vmem:[%s3 + $0x70] sm:$0xff]
  %v98 = vld [vmem:[%s3 + $0x78] sm:$0xff]
  %v99 = vld [vmem:[%s3 + $0x80] sm:$0xff]
  %v100 = vld [vmem:[%s3 + $0x88] sm:$0xff]
  %v101 = vld [vmem:[%s3 + $0x90] sm:$0xff]
  %v102 = vld [vmem:[%s3 + $0x98] sm:$0xff]
  %v103 = vld [vmem:[%s3 + $0xa0] sm:$0xff]
  %v104 = vld [vmem:[%s3 + $0xa8] sm:$0xff]
  %v105 = vld [vmem:[%s3 + $0xb0] sm:$0xff]
  %v106 = vld [vmem:[%s3 + $0xb8] sm:$0xff]
  %v107 = vld [vmem:[%s3 + $0xc0] sm:$0xff]
  %v108 = vld [vmem:[%s3 + $0xc8] sm:$0xff]
  %v109 = vld [vmem:[%s3 + $0xd0] sm:$0xff]
  %v110 = vld [vmem:[%s3 + $0xd8] sm:$0xff]
  %v111 = vld [vmem:[%s3 + $0xe0] sm:$0xff]
  %v112 = vld [vmem:[%s3 + $0xe8] sm:$0xff]
  %v113 = vld [vmem:[%s3 + $0xf0] sm:$0xff]
  %v114 = vld [vmem:[%s3 + $0xf8] sm:$0xff]
  %v115 = vld [vmem:[%s3 + $0x100] sm:$0xff]
  %v116 = vld [vmem:[%s3 + $0x108] sm:$0xff]
  %v117 = vld [vmem:[%s3 + $0x110] sm:$0xff]
  %v118 = vld [vmem:[%s3 + $0x118] sm:$0xff]
  %v119 = vld [vmem:[%s3 + $0x120] sm:$0xff]
  %v120 = vld [vmem:[%s3 + $0x128] sm:$0xff]
  %v121 = vld [vmem:[%s3 + $0x130] sm:$0xff]
  %v122 = vld [vmem:[%s3 + $0x138] sm:$0xff]
  %v123 = vld [vmem:[%s3 + $0x140] sm:$0xff]
  %v124 = vld [vmem:[%s3 + $0x148] sm:$0xff]
  %v125 = vld [vmem:[%s3 + $0x150] sm:$0xff]
  %v126 = vld [vmem:[%s3 + $0x158] sm:$0xff]
  %v127 = vld [vmem:[%s3 + $0x160] sm:$0xff]
  %v128 = vld [vmem:[%s3 + $0x168] sm:$0xff]
  %v129 = vld [vmem:[%s3 + $0x170] sm:$0xff]
  %v130 = vld [vmem:[%s3 + $0x178] sm:$0xff]
  %v131 = vld [vmem:[%s3 + $0x180] sm:$0xff]
  %v132 = vld [vmem:[%s3 + $0x188] sm:$0xff]
  %v133 = vld [vmem:[%s3 + $0x190] sm:$0xff]
  %v134 = vld [vmem:[%s3 + $0x198] sm:$0xff]
  %v135 = vld [vmem:[%s3 + $0x1a0] sm:$0xff]
  %v136 = vld [vmem:[%s3 + $0x1a8] sm:$0xff]
  %v137 = vld [vmem:[%s3 + $0x1b0] sm:$0xff]
  %v138 = vld [vmem:[%s3 + $0x1b8] sm:$0xff]
  %v139 = vld [vmem:[%s3 + $0x1c0] sm:$0xff]
  %v140 = vld [vmem:[%s3 + $0x1c8] sm:$0xff]
  %v141 = vld [vmem:[%s3 + $0x1d0] sm:$0xff]
  %v142 = vld [vmem:[%s3 + $0x1d8] sm:$0xff]
  %v143 = vld [vmem:[%s3 + $0x1e0] sm:$0xff]
  %v144 = vld [vmem:[%s3 + $0x1e8] sm:$0xff]
  %v145 = vld [vmem:[%s3 + $0x1f0] sm:$0xff]
  %v146 = vld [vmem:[%s3 + $0x1f8] sm:$0xff]
  loop: start=0, step=1, limit=4
  $region18: #{forward.3} parent=0 // loop_pre_header
    _
  $region19: #{forward.3} parent=0 // loop_header
    %s148 = sphi 0, %s152
    %p149 = scmp.ge.s32.totalorder %s148, 4
    %v153 = vphi 0.0, %v325
    %v154 = vphi 0.0, %v323
    %v155 = vphi 0.0, %v495
    %v156 = vphi 0.0, %v493
  $region20: #{forward.3} parent=0 // loop_header_branch
    %151 = sbr.rel (%p149) target = $region24
  $region21: #{forward.3} parent=0 // loop_body
    %s157 = smul.u32 %s148, 4
    %s158 = smul.addr %s157, 2
    %s159 = scalar_lea.vmem %s0, %s158
    %v160 = vld [vmem:[%s159] sm:$0xff]
    %161 = vmatpush.msra.mxu0 %v79
    %162 = vmatpush.msra.mxu0 %v75
    %163 = vmatpush.msra.mxu0 %v71
    %164 = vmatpush.msra.mxu0 %v67
    %165 = vmatpush.msra.mxu0 %v63
    %166 = vmatpush.msra.mxu0 %v59
    %167 = vmatpush.msra.mxu0 %v55
    %168 = vmatpush.msra.mxu0 %v51
    %169 = vmatpush.msra.mxu0 %v47
    %170 = vmatpush.msra.mxu0 %v43
    %171 = vmatpush.msra.mxu0 %v39
    %172 = vmatpush.msra.mxu0 %v35
    %173 = vmatpush.msra.mxu0 %v31
    %174 = vmatpush.msra.mxu0 %v27
    %175 = vmatpush.msra.mxu0 %v23
    %176 = vmatpush.msra.mxu0 %v19
    %177 = vmatmul.f32.gmra.mxu0 %v153
    %v178 = vpop.f32.mrf.mxu0
    %v179 = vadd.f32 0.0, %v178
    %180 = vdwg.mxu0
    %181 = vmatpush.msra.mxu0 %v80
    %182 = vmatpush.msra.mxu0 %v76
    %183 = vmatpush.msra.mxu0 %v72
    %184 = vmatpush.msra.mxu0 %v68
    %185 = vmatpush.msra.mxu0 %v64
    %186 = vmatpush.msra.mxu0 %v60
    %187 = vmatpush.msra.mxu0 %v56
    %188 = vmatpush.msra.mxu0 %v52
    %189 = vmatpush.msra.mxu0 %v48
    %190 = vmatpush.msra.mxu0 %v44
    %191 = vmatpush.msra.mxu0 %v40
    %192 = vmatpush.msra.mxu0 %v36
    %193 = vmatpush.msra.mxu0 %v32
    %194 = vmatpush.msra.mxu0 %v28
    %195 = vmatpush.msra.mxu0 %v24
    %196 = vmatpush.msra.mxu0 %v20
    %197 = vmatmul.f32.gmra.mxu0 %v153
    %v198 = vpop.f32.mrf.mxu0
    %v199 = vadd.f32 0.0, %v198
    %200 = vdwg.mxu0
    %201 = vmatpush.msra.mxu0 %v81
    %202 = vmatpush.msra.mxu0 %v77
    %203 = vmatpush.msra.mxu0 %v73
    %204 = vmatpush.msra.mxu0 %v69
    %205 = vmatpush.msra.mxu0 %v65
    %206 = vmatpush.msra.mxu0 %v61
    %207 = vmatpush.msra.mxu0 %v57
    %208 = vmatpush.msra.mxu0 %v53
    %209 = vmatpush.msra.mxu0 %v49
    %210 = vmatpush.msra.mxu0 %v45
    %211 = vmatpush.msra.mxu0 %v41
    %212 = vmatpush.msra.mxu0 %v37
    %213 = vmatpush.msra.mxu0 %v33
    %214 = vmatpush.msra.mxu0 %v29
    %215 = vmatpush.msra.mxu0 %v25
    %216 = vmatpush.msra.mxu0 %v21
    %217 = vmatmul.f32.gmra.mxu0 %v153
    %v218 = vpop.f32.mrf.mxu0
    %v219 = vadd.f32 0.0, %v218
    %220 = vdwg.mxu0
    %221 = vmatpush.msra.mxu0 %v82
    %222 = vmatpush.msra.mxu0 %v78
    %223 = vmatpush.msra.mxu0 %v74
    %224 = vmatpush.msra.mxu0 %v70
    %225 = vmatpush.msra.mxu0 %v66
    %226 = vmatpush.msra.mxu0 %v62
    %227 = vmatpush.msra.mxu0 %v58
    %228 = vmatpush.msra.mxu0 %v54
    %229 = vmatpush.msra.mxu0 %v50
    %230 = vmatpush.msra.mxu0 %v46
    %231 = vmatpush.msra.mxu0 %v42
    %232 = vmatpush.msra.mxu0 %v38
    %233 = vmatpush.msra.mxu0 %v34
    %234 = vmatpush.msra.mxu0 %v30
    %235 = vmatpush.msra.mxu0 %v26
    %236 = vmatpush.msra.mxu0 %v22
    %237 = vmatmul.f32.gmra.mxu0 %v153
    %v238 = vpop.f32.mrf.mxu0
    %v239 = vadd.f32 0.0, %v238
    %240 = vdwg.mxu0
    %v245 = vrot.slane %v199, 6
    %v246 = vrot.slane %v219, 4
    %v247 = vrot.slane %v239, 2
    %vm248 = vcmask 1041408
    %v249 = vsel %vm248, %v179, %v245
    %vm250 = vcmask 1045508
    %v251 = vsel %vm250, %v246, %v247
    %vm252 = vcmask 1043456
    %v253 = vsel %vm252, %v249, %v251
    %v255 = vadd.f32 %v160, %v253
    %v256 = vxor.u32 %v255, 2147483648
    %v257 = vmul.f32 %v256, 1.442695
    %v258 = vpow.pop %v257
    %v259 = vadd.f32 %v258, 1.0
    %v260 = vrcp.pop %v259
    %v261 = vmul.f32 %v259, %v260
    %v262 = vsub.f32 1.0, %v261
    %v263 = vmul.f32 %v260, %v262
    %v264 = vadd.f32 %v260, %v263
    %vm265 = vweird.f32 %v259
    %vm266 = vweird.f32 %v260
    %vm267 = vmor %vm265, %vm266
    %v268 = vsel %vm267, %v260, %v264
    %v269 = vand.u32 2147483647, %v259
    %vm270 = vcmp.eq.f32.partialorder %v269, 8.507059e+37
    %v271 = vand.u32 %v259, 2147483648
    %v272 = vor.u32 1.1754944e-38, %v271
    %v273 = vsel %vm270, %v272, %v268
    %v274 = vmul.f32 1.0, %v273
    %v276 = vrot.slane %v255, 2
    %v278 = vxor.u32 %v276, 2147483648
    %v279 = vmul.f32 %v278, 1.442695
    %v280 = vpow.pop %v279
    %v281 = vadd.f32 %v280, 1.0
    %v282 = vrcp.pop %v281
    %v283 = vmul.f32 %v281, %v282
    %v284 = vsub.f32 1.0, %v283
    %v285 = vmul.f32 %v282, %v284
    %v286 = vadd.f32 %v282, %v285
    %vm287 = vweird.f32 %v281
    %vm288 = vweird.f32 %v282
    %vm289 = vmor %vm287, %vm288
    %v290 = vsel %vm289, %v282, %v286
    %v291 = vand.u32 2147483647, %v281
    %vm292 = vcmp.eq.f32.partialorder %v291, 8.507059e+37
    %v293 = vand.u32 %v281, 2147483648
    %v294 = vor.u32 1.1754944e-38, %v293
    %v295 = vsel %vm292, %v294, %v290
    %v296 = vmul.f32 1.0, %v295
    %v297 = vrot.slane %v255, 4
    %v299 = vtanh.pop %v297
    %v300 = vrot.slane %v255, 6
    %v302 = vxor.u32 %v300, 2147483648
    %v303 = vmul.f32 %v302, 1.442695
    %v304 = vpow.pop %v303
    %v305 = vadd.f32 %v304, 1.0
    %v306 = vrcp.pop %v305
    %v307 = vmul.f32 %v305, %v306
    %v308 = vsub.f32 1.0, %v307
    %v309 = vmul.f32 %v306, %v308
    %v310 = vadd.f32 %v306, %v309
    %vm311 = vweird.f32 %v305
    %vm312 = vweird.f32 %v306
    %vm313 = vmor %vm311, %vm312
    %v314 = vsel %vm313, %v306, %v310
    %v315 = vand.u32 2147483647, %v305
    %vm316 = vcmp.eq.f32.partialorder %v315, 8.507059e+37
    %v317 = vand.u32 %v305, 2147483648
    %v318 = vor.u32 1.1754944e-38, %v317
    %v319 = vsel %vm316, %v318, %v314
    %v320 = vmul.f32 1.0, %v319
    %v321 = vmul.f32 %v296, %v154
    %v322 = vmul.f32 %v274, %v299
    %v323 = vadd.f32 %v321, %v322
    %v324 = vtanh.pop %v323
    %v325 = vmul.f32 %v320, %v324
    %s326 = smul.u32 %s148, 2
    %s327 = scalar_lea.vmem %s4, %s326
    %328 = vst [vmem:[%s327] sm:$0x3] %v325
    %s329 = ssub.s32 3, %s148
    %s330 = smul.u32 %s329, 4
    %s331 = smul.addr %s330, 2
    %s332 = scalar_lea.vmem %s1, %s331
    %v333 = vld [vmem:[%s332] sm:$0xff]
    %334 = vmatpush.msra.mxu0 %v143
    %335 = vmatpush.msra.mxu0 %v139
    %336 = vmatpush.msra.mxu0 %v135
    %337 = vmatpush.msra.mxu0 %v131
    %338 = vmatpush.msra.mxu0 %v127
    %339 = vmatpush.msra.mxu0 %v123
    %340 = vmatpush.msra.mxu0 %v119
    %341 = vmatpush.msra.mxu0 %v115
    %342 = vmatpush.msra.mxu0 %v111
    %343 = vmatpush.msra.mxu0 %v107
    %344 = vmatpush.msra.mxu0 %v103
    %345 = vmatpush.msra.mxu0 %v99
    %346 = vmatpush.msra.mxu0 %v95
    %347 = vmatpush.msra.mxu0 %v91
    %348 = vmatpush.msra.mxu0 %v87
    %349 = vmatpush.msra.mxu0 %v83
    %350 = vmatmul.f32.gmra.mxu0 %v155
    %v351 = vpop.f32.mrf.mxu0
    %v352 = vadd.f32 0.0, %v351
    %353 = vdwg.mxu0
    %354 = vmatpush.msra.mxu0 %v144
    %355 = vmatpush.msra.mxu0 %v140
    %356 = vmatpush.msra.mxu0 %v136
    %357 = vmatpush.msra.mxu0 %v132
    %358 = vmatpush.msra.mxu0 %v128
    %359 = vmatpush.msra.mxu0 %v124
    %360 = vmatpush.msra.mxu0 %v120
    %361 = vmatpush.msra.mxu0 %v116
    %362 = vmatpush.msra.mxu0 %v112
    %363 = vmatpush.msra.mxu0 %v108
    %364 = vmatpush.msra.mxu0 %v104
    %365 = vmatpush.msra.mxu0 %v100
    %366 = vmatpush.msra.mxu0 %v96
    %367 = vmatpush.msra.mxu0 %v92
    %368 = vmatpush.msra.mxu0 %v88
    %369 = vmatpush.msra.mxu0 %v84
    %370 = vmatmul.f32.gmra.mxu0 %v155
    %v371 = vpop.f32.mrf.mxu0
    %v372 = vadd.f32 0.0, %v371
    %373 = vdwg.mxu0
    %374 = vmatpush.msra.mxu0 %v145
    %375 = vmatpush.msra.mxu0 %v141
    %376 = vmatpush.msra.mxu0 %v137
    %377 = vmatpush.msra.mxu0 %v133
    %378 = vmatpush.msra.mxu0 %v129
    %379 = vmatpush.msra.mxu0 %v125
    %380 = vmatpush.msra.mxu0 %v121
    %381 = vmatpush.msra.mxu0 %v117
    %382 = vmatpush.msra.mxu0 %v113
    %383 = vmatpush.msra.mxu0 %v109
    %384 = vmatpush.msra.mxu0 %v105
    %385 = vmatpush.msra.mxu0 %v101
    %386 = vmatpush.msra.mxu0 %v97
    %387 = vmatpush.msra.mxu0 %v93
    %388 = vmatpush.msra.mxu0 %v89
    %389 = vmatpush.msra.mxu0 %v85
    %390 = vmatmul.f32.gmra.mxu0 %v155
    %v391 = vpop.f32.mrf.mxu0
    %v392 = vadd.f32 0.0, %v391
    %393 = vdwg.mxu0
    %394 = vmatpush.msra.mxu0 %v146
    %395 = vmatpush.msra.mxu0 %v142
    %396 = vmatpush.msra.mxu0 %v138
    %397 = vmatpush.msra.mxu0 %v134
    %398 = vmatpush.msra.mxu0 %v130
    %399 = vmatpush.msra.mxu0 %v126
    %400 = vmatpush.msra.mxu0 %v122
    %401 = vmatpush.msra.mxu0 %v118
    %402 = vmatpush.msra.mxu0 %v114
    %403 = vmatpush.msra.mxu0 %v110
    %404 = vmatpush.msra.mxu0 %v106
    %405 = vmatpush.msra.mxu0 %v102
    %406 = vmatpush.msra.mxu0 %v98
    %407 = vmatpush.msra.mxu0 %v94
    %408 = vmatpush.msra.mxu0 %v90
    %409 = vmatpush.msra.mxu0 %v86
    %410 = vmatmul.f32.gmra.mxu0 %v155
    %v411 = vpop.f32.mrf.mxu0
    %v412 = vadd.f32 0.0, %v411
    %413 = vdwg.mxu0
    %v418 = vrot.slane %v372, 6
    %v419 = vrot.slane %v392, 4
    %v420 = vrot.slane %v412, 2
    %v421 = vsel %vm248, %v352, %v418
    %v422 = vsel %vm250, %v419, %v420
    %v423 = vsel %vm252, %v421, %v422
    %v425 = vadd.f32 %v333, %v423
    %v426 = vxor.u32 %v425, 2147483648
    %v427 = vmul.f32 %v426, 1.442695
    %v428 = vpow.pop %v427
    %v429 = vadd.f32 %v428, 1.0
    %v430 = vrcp.pop %v429
    %v431 = vmul.f32 %v429, %v430
    %v432 = vsub.f32 1.0, %v431
    %v433 = vmul.f32 %v430, %v432
    %v434 = vadd.f32 %v430, %v433
    %vm435 = vweird.f32 %v429
    %vm436 = vweird.f32 %v430
    %vm437 = vmor %vm435, %vm436
    %v438 = vsel %vm437, %v430, %v434
    %v439 = vand.u32 2147483647, %v429
    %vm440 = vcmp.eq.f32.partialorder %v439, 8.507059e+37
    %v441 = vand.u32 %v429, 2147483648
    %v442 = vor.u32 1.1754944e-38, %v441
    %v443 = vsel %vm440, %v442, %v438
    %v444 = vmul.f32 1.0, %v443
    %v446 = vrot.slane %v425, 2
    %v448 = vxor.u32 %v446, 2147483648
    %v449 = vmul.f32 %v448, 1.442695
    %v450 = vpow.pop %v449
    %v451 = vadd.f32 %v450, 1.0
    %v452 = vrcp.pop %v451
    %v453 = vmul.f32 %v451, %v452
    %v454 = vsub.f32 1.0, %v453
    %v455 = vmul.f32 %v452, %v454
    %v456 = vadd.f32 %v452, %v455
    %vm457 = vweird.f32 %v451
    %vm458 = vweird.f32 %v452
    %vm459 = vmor %vm457, %vm458
    %v460 = vsel %vm459, %v452, %v456
    %v461 = vand.u32 2147483647, %v451
    %vm462 = vcmp.eq.f32.partialorder %v461, 8.507059e+37
    %v463 = vand.u32 %v451, 2147483648
    %v464 = vor.u32 1.1754944e-38, %v463
    %v465 = vsel %vm462, %v464, %v460
    %v466 = vmul.f32 1.0, %v465
    %v467 = vrot.slane %v425, 4
    %v469 = vtanh.pop %v467
    %v470 = vrot.slane %v425, 6
    %v472 = vxor.u32 %v470, 2147483648
    %v473 = vmul.f32 %v472, 1.442695
    %v474 = vpow.pop %v473
    %v475 = vadd.f32 %v474, 1.0
    %v476 = vrcp.pop %v475
    %v477 = vmul.f32 %v475, %v476
    %v478 = vsub.f32 1.0, %v477
    %v479 = vmul.f32 %v476, %v478
    %v480 = vadd.f32 %v476, %v479
    %vm481 = vweird.f32 %v475
    %vm482 = vweird.f32 %v476
    %vm483 = vmor %vm481, %vm482
    %v484 = vsel %vm483, %v476, %v480
    %v485 = vand.u32 2147483647, %v475
    %vm486 = vcmp.eq.f32.partialorder %v485, 8.507059e+37
    %v487 = vand.u32 %v475, 2147483648
    %v488 = vor.u32 1.1754944e-38, %v487
    %v489 = vsel %vm486, %v488, %v484
    %v490 = vmul.f32 1.0, %v489
    %v491 = vmul.f32 %v466, %v156
    %v492 = vmul.f32 %v444, %v469
    %v493 = vadd.f32 %v491, %v492
    %v494 = vtanh.pop %v493
    %v495 = vmul.f32 %v490, %v494
    %s496 = smul.u32 %s329, 2
    %s497 = scalar_lea.vmem %s5, %s496
    %498 = vst [vmem:[%s497] sm:$0x3] %v495
  $region22: #{forward.3} parent=0 // loop_footer
    %s152 = sadd.s32 1, %s148
  $region23: #{forward.3} parent=0 // loop_footer_branch
    %147 = sbr.rel target = $region19
  $region24: #{forward.3} parent=0 // loop_exit
    _
  // Predicated region
  $region25: #{forward.3} parent=0 // pred_check
    _
  $region26: #{forward.3} parent=0 // pred_check_branch
    %500 = sbr.rel (0) target = $region28
  $region27: #{forward.3} parent=0 // pred_region
    _
  $region28: #{forward.3} parent=0 // pred_fallthru
    _
  // Predicated region
  $region29: #{forward.3} parent=0 // pred_check
    _
  $region30: #{forward.3} parent=0 // pred_check_branch
    %502 = sbr.rel (0) target = $region32
  $region31: #{forward.3} parent=0 // pred_region
    _
  $region32: #{forward.3} parent=0 // pred_fallthru
    _
  // Predicated region
  $region33: #{forward.3} parent=0 // pred_check
    _
  $region34: #{forward.3} parent=0 // pred_check_branch
    %504 = sbr.rel (0) target = $region36
  $region35: #{forward.3} parent=0 // pred_region
    _
  $region36: #{forward.3} parent=0 // pred_fallthru
    _
  // Predicated region
  $region37: #{forward.3} parent=0 // pred_check
    _
  $region38: #{forward.3} parent=0 // pred_check_branch
    %506 = sbr.rel (0) target = $region40
  $region39: #{forward.3} parent=0 // pred_region
    _
  $region40: #{forward.3} parent=0 // pred_fallthru
    _

// kernel: forward.2
$region0: #{forward.2}
  #allocation0 [shape = 'u32[]', space=smem, size = 0x4, offset = 0x4, fixed_abs, tag = 'smem constant byte address 0x4 - core index']
  #allocation1 [shape = 'u32[72,128]{1,0:T(1,128)}', space=vmem, size = 0x9000, scoped, tag = 'internal scratch']
  %s0 = inlined_call_operand.vmem [shape: f32[160,256], index: 0, kind: input, shape index: {}]
  %s1 = inlined_call_operand.vmem [shape: f32[80,80], index: 1, kind: input, shape index: {}]
  %s2 = inlined_call_operand.vmem [shape: f32[256,768], index: 2, kind: input, shape index: {}]
  %s3 = inlined_call_operand.vmem [shape: f32[1,768], index: 3, kind: input, shape index: {}]
  %s4 = inlined_call_operand.vmem [shape: f32[256,256], index: 4, kind: input, shape index: {}]
  %s5 = inlined_call_operand.vmem [shape: f32[1,256], index: 5, kind: input, shape index: {}]
  %s6 = inlined_call_operand.vmem [shape: f32[1,256], index: 6, kind: input, shape index: {}]
  %s7 = inlined_call_operand.vmem [shape: f32[1,256], index: 7, kind: input, shape index: {}]
  %s8 = inlined_call_operand.vmem [shape: f32[256,256], index: 8, kind: input, shape index: {}]
  %s9 = inlined_call_operand.vmem [shape: f32[1,256], index: 9, kind: input, shape index: {}]
  %s10 = inlined_call_operand.vmem [shape: f32[256,256], index: 10, kind: input, shape index: {}]
  %s11 = inlined_call_operand.vmem [shape: f32[1,256], index: 11, kind: input, shape index: {}]
  %s12 = inlined_call_operand.vmem [shape: f32[1,256], index: 12, kind: input, shape index: {}]
  %s13 = inlined_call_operand.vmem [shape: f32[1,256], index: 13, kind: input, shape index: {}]
  %s14 = inlined_call_operand.vmem [shape: f32[160,256], index: 14, kind: output, shape index: {}]
  %s15 = sld [smem:[#allocation0]]
  $region89: #{forward.2} parent=0
    _
  %s17 = ssub.s32 1, %s15
  %s18 = scalar_select 0, %s17, %s15
  loop: start=0, step=1, limit=4
  $region2: #{forward.2} parent=0 // loop_pre_header
    _
  $region3: #{forward.2} parent=0 // loop_header
    %s20 = sphi 0, %s24
    %p21 = scmp.ge.s32.totalorder %s20, 4
    %s30 = sphi 0, %s32
    %s33 = sphi 0, %s30
    %s34 = sphi 0, %s33
    %s50 = sphi 0, %s34
    %s54 = sphi 0, %s54
    %s56 = sphi 0, %s54
    %s57 = sphi 0, %s56
    %s71 = sphi 0, %s57
    %s75 = sphi 0, %s75
    %s77 = sphi 0, %s75
    %s78 = sphi 0, %s77
    %s92 = sphi 0, %s78
    %s96 = sphi 0, %s96
    %s98 = sphi 0, %s96
    %s99 = sphi 0, %s98
    %s113 = sphi 0, %s99
    %s117 = sphi 0, %s117
    %s119 = sphi 0, %s117
    %s120 = sphi 0, %s119
    %s134 = sphi 0, %s120
    %s138 = sphi 0, %s138
    %s140 = sphi 0, %s138
    %s141 = sphi 0, %s140
    %s155 = sphi 0, %s141
    %s159 = sphi 0, %s159
    %s161 = sphi 0, %s159
    %s162 = sphi 0, %s161
    %s176 = sphi 0, %s162
    %s180 = sphi 0, %s180
    %s182 = sphi 0, %s180
    %s183 = sphi 0, %s182
    %s197 = sphi 0, %s183
    %s201 = sphi 0, %s201
    %s203 = sphi 0, %s201
    %s204 = sphi 0, %s203
    %s218 = sphi 0, %s204
    %s222 = sphi 0, %s222
    %s224 = sphi 0, %s222
    %s225 = sphi 0, %s224
    %s239 = sphi 0, %s225
    %s243 = sphi 0, %s243
    %s245 = sphi 0, %s243
    %s246 = sphi 0, %s245
    %s260 = sphi 0, %s246
    %s264 = sphi 0, %s264
    %s266 = sphi 0, %s264
    %s267 = sphi 0, %s266
    %s281 = sphi 0, %s267
    %s285 = sphi 0, %s285
    %s287 = sphi 0, %s285
    %s288 = sphi 0, %s287
    %s302 = sphi 0, %s288
    %s306 = sphi 0, %s306
    %s308 = sphi 0, %s306
    %s309 = sphi 0, %s308
    %s323 = sphi 0, %s309
    %s329 = sphi 0, %s331
    %s332 = sphi 0, %s329
    %s333 = sphi 0, %s332
    %s349 = sphi 0, %s333
  $region4: #{forward.2} parent=0 // loop_header_branch
    %23 = sbr.rel (%p21) target = $region8
  $region5: #{forward.2} parent=0 // loop_body
    %s25 = ssub.s32 %s20, 1
    %s26 = ssub.s32 %s20, 2
    %s27 = sadd.s32 %s20, 1
    %s28 = ssub.s32 %s20, %s27
    %p29 = scmp.eq.s32.totalorder %s28, 0
    %s31 = sadd.s32 %s30, 1
    %s32 = scalar_select %p29, %s30, %s31
    %p35 = pneg %p29
    %p36 = scmp.eq.s32.totalorder %s20, 1
    %p37 = por %p35, %p36
    %p38 = scmp.ne.s32.totalorder %s30, %s33
    %p39 = scmp.eq.s32.totalorder %s20, 0
    %p40 = por %p38, %p39
    %p41 = scmp.ne.s32.totalorder %s30, %s33
    %p42 = scmp.eq.s32.totalorder %s25, 1
    %p43 = por %p41, %p42
    %p44 = scmp.ne.s32.totalorder %s33, %s34
    %p45 = scmp.eq.s32.totalorder %s25, 0
    %p46 = por %p44, %p45
    %p47 = scmp.ne.s32.totalorder %s33, %s34
    %p48 = scmp.eq.s32.totalorder %s26, 1
    %p49 = por %p47, %p48
    %p51 = scmp.ne.s32.totalorder %s34, %s50
    %p52 = scmp.eq.s32.totalorder %s26, 0
    %p53 = por %p51, %p52
    %s55 = sadd.s32 %s54, 1
    %p58 = scmp.eq.s32.totalorder %s20, 1
    %p59 = scmp.ne.s32.totalorder %s54, %s56
    %p60 = scmp.eq.s32.totalorder %s20, 0
    %p61 = por %p59, %p60
    %p62 = scmp.ne.s32.totalorder %s54, %s56
    %p63 = scmp.eq.s32.totalorder %s25, 1
    %p64 = por %p62, %p63
    %p65 = scmp.ne.s32.totalorder %s56, %s57
    %p66 = scmp.eq.s32.totalorder %s25, 0
    %p67 = por %p65, %p66
    %p68 = scmp.ne.s32.totalorder %s56, %s57
    %p69 = scmp.eq.s32.totalorder %s26, 1
    %p70 = por %p68, %p69
    %p72 = scmp.ne.s32.totalorder %s57, %s71
    %p73 = scmp.eq.s32.totalorder %s26, 0
    %p74 = por %p72, %p73
    %s76 = sadd.s32 %s75, 1
    %p79 = scmp.eq.s32.totalorder %s20, 1
    %p80 = scmp.ne.s32.totalorder %s75, %s77
    %p81 = scmp.eq.s32.totalorder %s20, 0
    %p82 = por %p80, %p81
    %p83 = scmp.ne.s32.totalorder %s75, %s77
    %p84 = scmp.eq.s32.totalorder %s25, 1
    %p85 = por %p83, %p84
    %p86 = scmp.ne.s32.totalorder %s77, %s78
    %p87 = scmp.eq.s32.totalorder %s25, 0
    %p88 = por %p86, %p87
    %p89 = scmp.ne.s32.totalorder %s77, %s78
    %p90 = scmp.eq.s32.totalorder %s26, 1
    %p91 = por %p89, %p90
    %p93 = scmp.ne.s32.totalorder %s78, %s92
    %p94 = scmp.eq.s32.totalorder %s26, 0
    %p95 = por %p93, %p94
    %s97 = sadd.s32 %s96, 1
    %p100 = scmp.eq.s32.totalorder %s20, 1
    %p101 = scmp.ne.s32.totalorder %s96, %s98
    %p102 = scmp.eq.s32.totalorder %s20, 0
    %p103 = por %p101, %p102
    %p104 = scmp.ne.s32.totalorder %s96, %s98
    %p105 = scmp.eq.s32.totalorder %s25, 1
    %p106 = por %p104, %p105
    %p107 = scmp.ne.s32.totalorder %s98, %s99
    %p108 = scmp.eq.s32.totalorder %s25, 0
    %p109 = por %p107, %p108
    %p110 = scmp.ne.s32.totalorder %s98, %s99
    %p111 = scmp.eq.s32.totalorder %s26, 1
    %p112 = por %p110, %p111
    %p114 = scmp.ne.s32.totalorder %s99, %s113
    %p115 = scmp.eq.s32.totalorder %s26, 0
    %p116 = por %p114, %p115
    %s118 = sadd.s32 %s117, 1
    %p121 = scmp.eq.s32.totalorder %s20, 1
    %p122 = scmp.ne.s32.totalorder %s117, %s119
    %p123 = scmp.eq.s32.totalorder %s20, 0
    %p124 = por %p122, %p123
    %p125 = scmp.ne.s32.totalorder %s117, %s119
    %p126 = scmp.eq.s32.totalorder %s25, 1
    %p127 = por %p125, %p126
    %p128 = scmp.ne.s32.totalorder %s119, %s120
    %p129 = scmp.eq.s32.totalorder %s25, 0
    %p130 = por %p128, %p129
    %p131 = scmp.ne.s32.totalorder %s119, %s120
    %p132 = scmp.eq.s32.totalorder %s26, 1
    %p133 = por %p131, %p132
    %p135 = scmp.ne.s32.totalorder %s120, %s134
    %p136 = scmp.eq.s32.totalorder %s26, 0
    %p137 = por %p135, %p136
    %s139 = sadd.s32 %s138, 1
    %p142 = scmp.eq.s32.totalorder %s20, 1
    %p143 = scmp.ne.s32.totalorder %s138, %s140
    %p144 = scmp.eq.s32.totalorder %s20, 0
    %p145 = por %p143, %p144
    %p146 = scmp.ne.s32.totalorder %s138, %s140
    %p147 = scmp.eq.s32.totalorder %s25, 1
    %p148 = por %p146, %p147
    %p149 = scmp.ne.s32.totalorder %s140, %s141
    %p150 = scmp.eq.s32.totalorder %s25, 0
    %p151 = por %p149, %p150
    %p152 = scmp.ne.s32.totalorder %s140, %s141
    %p153 = scmp.eq.s32.totalorder %s26, 1
    %p154 = por %p152, %p153
    %p156 = scmp.ne.s32.totalorder %s141, %s155
    %p157 = scmp.eq.s32.totalorder %s26, 0
    %p158 = por %p156, %p157
    %s160 = sadd.s32 %s159, 1
    %p163 = scmp.eq.s32.totalorder %s20, 1
    %p164 = scmp.ne.s32.totalorder %s159, %s161
    %p165 = scmp.eq.s32.totalorder %s20, 0
    %p166 = por %p164, %p165
    %p167 = scmp.ne.s32.totalorder %s159, %s161
    %p168 = scmp.eq.s32.totalorder %s25, 1
    %p169 = por %p167, %p168
    %p170 = scmp.ne.s32.totalorder %s161, %s162
    %p171 = scmp.eq.s32.totalorder %s25, 0
    %p172 = por %p170, %p171
    %p173 = scmp.ne.s32.totalorder %s161, %s162
    %p174 = scmp.eq.s32.totalorder %s26, 1
    %p175 = por %p173, %p174
    %p177 = scmp.ne.s32.totalorder %s162, %s176
    %p178 = scmp.eq.s32.totalorder %s26, 0
    %p179 = por %p177, %p178
    %s181 = sadd.s32 %s180, 1
    %p184 = scmp.eq.s32.totalorder %s20, 1
    %p185 = scmp.ne.s32.totalorder %s180, %s182
    %p186 = scmp.eq.s32.totalorder %s20, 0
    %p187 = por %p185, %p186
    %p188 = scmp.ne.s32.totalorder %s180, %s182
    %p189 = scmp.eq.s32.totalorder %s25, 1
    %p190 = por %p188, %p189
    %p191 = scmp.ne.s32.totalorder %s182, %s183
    %p192 = scmp.eq.s32.totalorder %s25, 0
    %p193 = por %p191, %p192
    %p194 = scmp.ne.s32.totalorder %s182, %s183
    %p195 = scmp.eq.s32.totalorder %s26, 1
    %p196 = por %p194, %p195
    %p198 = scmp.ne.s32.totalorder %s183, %s197
    %p199 = scmp.eq.s32.totalorder %s26, 0
    %p200 = por %p198, %p199
    %s202 = sadd.s32 %s201, 1
    %p205 = scmp.eq.s32.totalorder %s20, 1
    %p206 = scmp.ne.s32.totalorder %s201, %s203
    %p207 = scmp.eq.s32.totalorder %s20, 0
    %p208 = por %p206, %p207
    %p209 = scmp.ne.s32.totalorder %s201, %s203
    %p210 = scmp.eq.s32.totalorder %s25, 1
    %p211 = por %p209, %p210
    %p212 = scmp.ne.s32.totalorder %s203, %s204
    %p213 = scmp.eq.s32.totalorder %s25, 0
    %p214 = por %p212, %p213
    %p215 = scmp.ne.s32.totalorder %s203, %s204
    %p216 = scmp.eq.s32.totalorder %s26, 1
    %p217 = por %p215, %p216
    %p219 = scmp.ne.s32.totalorder %s204, %s218
    %p220 = scmp.eq.s32.totalorder %s26, 0
    %p221 = por %p219, %p220
    %s223 = sadd.s32 %s222, 1
    %p226 = scmp.eq.s32.totalorder %s20, 1
    %p227 = scmp.ne.s32.totalorder %s222, %s224
    %p228 = scmp.eq.s32.totalorder %s20, 0
    %p229 = por %p227, %p228
    %p230 = scmp.ne.s32.totalorder %s222, %s224
    %p231 = scmp.eq.s32.totalorder %s25, 1
    %p232 = por %p230, %p231
    %p233 = scmp.ne.s32.totalorder %s224, %s225
    %p234 = scmp.eq.s32.totalorder %s25, 0
    %p235 = por %p233, %p234
    %p236 = scmp.ne.s32.totalorder %s224, %s225
    %p237 = scmp.eq.s32.totalorder %s26, 1
    %p238 = por %p236, %p237
    %p240 = scmp.ne.s32.totalorder %s225, %s239
    %p241 = scmp.eq.s32.totalorder %s26, 0
    %p242 = por %p240, %p241
    %s244 = sadd.s32 %s243, 1
    %p247 = scmp.eq.s32.totalorder %s20, 1
    %p248 = scmp.ne.s32.totalorder %s243, %s245
    %p249 = scmp.eq.s32.totalorder %s20, 0
    %p250 = por %p248, %p249
    %p251 = scmp.ne.s32.totalorder %s243, %s245
    %p252 = scmp.eq.s32.totalorder %s25, 1
    %p253 = por %p251, %p252
    %p254 = scmp.ne.s32.totalorder %s245, %s246
    %p255 = scmp.eq.s32.totalorder %s25, 0
    %p256 = por %p254, %p255
    %p257 = scmp.ne.s32.totalorder %s245, %s246
    %p258 = scmp.eq.s32.totalorder %s26, 1
    %p259 = por %p257, %p258
    %p261 = scmp.ne.s32.totalorder %s246, %s260
    %p262 = scmp.eq.s32.totalorder %s26, 0
    %p263 = por %p261, %p262
    %s265 = sadd.s32 %s264, 1
    %p268 = scmp.eq.s32.totalorder %s20, 1
    %p269 = scmp.ne.s32.totalorder %s264, %s266
    %p270 = scmp.eq.s32.totalorder %s20, 0
    %p271 = por %p269, %p270
    %p272 = scmp.ne.s32.totalorder %s264, %s266
    %p273 = scmp.eq.s32.totalorder %s25, 1
    %p274 = por %p272, %p273
    %p275 = scmp.ne.s32.totalorder %s266, %s267
    %p276 = scmp.eq.s32.totalorder %s25, 0
    %p277 = por %p275, %p276
    %p278 = scmp.ne.s32.totalorder %s266, %s267
    %p279 = scmp.eq.s32.totalorder %s26, 1
    %p280 = por %p278, %p279
    %p282 = scmp.ne.s32.totalorder %s267, %s281
    %p283 = scmp.eq.s32.totalorder %s26, 0
    %p284 = por %p282, %p283
    %s286 = sadd.s32 %s285, 1
    %p289 = scmp.eq.s32.totalorder %s20, 1
    %p290 = scmp.ne.s32.totalorder %s285, %s287
    %p291 = scmp.eq.s32.totalorder %s20, 0
    %p292 = por %p290, %p291
    %p293 = scmp.ne.s32.totalorder %s285, %s287
    %p294 = scmp.eq.s32.totalorder %s25, 1
    %p295 = por %p293, %p294
    %p296 = scmp.ne.s32.totalorder %s287, %s288
    %p297 = scmp.eq.s32.totalorder %s25, 0
    %p298 = por %p296, %p297
    %p299 = scmp.ne.s32.totalorder %s287, %s288
    %p300 = scmp.eq.s32.totalorder %s26, 1
    %p301 = por %p299, %p300
    %p303 = scmp.ne.s32.totalorder %s288, %s302
    %p304 = scmp.eq.s32.totalorder %s26, 0
    %p305 = por %p303, %p304
    %s307 = sadd.s32 %s306, 1
    %p310 = scmp.eq.s32.totalorder %s20, 1
    %p311 = scmp.ne.s32.totalorder %s306, %s308
    %p312 = scmp.eq.s32.totalorder %s20, 0
    %p313 = por %p311, %p312
    %p314 = scmp.ne.s32.totalorder %s306, %s308
    %p315 = scmp.eq.s32.totalorder %s25, 1
    %p316 = por %p314, %p315
    %p317 = scmp.ne.s32.totalorder %s308, %s309
    %p318 = scmp.eq.s32.totalorder %s25, 0
    %p319 = por %p317, %p318
    %p320 = scmp.ne.s32.totalorder %s308, %s309
    %p321 = scmp.eq.s32.totalorder %s26, 1
    %p322 = por %p320, %p321
    %p324 = scmp.ne.s32.totalorder %s309, %s323
    %p325 = scmp.eq.s32.totalorder %s26, 0
    %p326 = por %p324, %p325
    %s327 = ssub.s32 %s20, %s27
    %p328 = scmp.eq.s32.totalorder %s327, 0
    %s330 = sadd.s32 %s329, 1
    %s331 = scalar_select %p328, %s329, %s330
    %p334 = pneg %p328
    %p335 = scmp.eq.s32.totalorder %s20, 1
    %p336 = por %p334, %p335
    %p337 = scmp.ne.s32.totalorder %s329, %s332
    %p338 = scmp.eq.s32.totalorder %s20, 0
    %p339 = por %p337, %p338
    %p340 = scmp.ne.s32.totalorder %s329, %s332
    %p341 = scmp.eq.s32.totalorder %s25, 1
    %p342 = por %p340, %p341
    %p343 = scmp.ne.s32.totalorder %s332, %s333
    %p344 = scmp.eq.s32.totalorder %s25, 0
    %p345 = por %p343, %p344
    %p346 = scmp.ne.s32.totalorder %s332, %s333
    %p347 = scmp.eq.s32.totalorder %s26, 1
    %p348 = por %p346, %p347
    %p350 = scmp.ne.s32.totalorder %s333, %s349
    %p351 = scmp.eq.s32.totalorder %s26, 0
    %p352 = por %p350, %p351
    %p353 = scmp.le.s32.totalorder 1, %s20
    %p354 = scmp.lt.s32.totalorder %s20, 3
    %p355 = pnand %p353, %p354
    %p356 = pneg %p355
    // Predicated region
    $region9: #{forward.2} parent=5 // pred_check
      _
    $region10: #{forward.2} parent=5 // pred_check_branch
      %358 = sbr.rel (%p355) target = $region12
    $region11: #{forward.2} parent=5 // pred_region
      %s359 = ssub.s32 %s20, 1
      // Predicated region
      $region13: #{forward.2} parent=11 // pred_check
        %p360 = pneg %p67
      $region14: #{forward.2} parent=11 // pred_check_branch
        %362 = sbr.rel (%p360) target = $region16
      $region15: #{forward.2} parent=11 // pred_region
        _
      $region16: #{forward.2} parent=11 // pred_fallthru
        _
      // Predicated region
      $region17: #{forward.2} parent=11 // pred_check
        %p363 = pneg %p88
      $region18: #{forward.2} parent=11 // pred_check_branch
        %365 = sbr.rel (%p363) target = $region20
      $region19: #{forward.2} parent=11 // pred_region
        _
      $region20: #{forward.2} parent=11 // pred_fallthru
        _
      // Predicated region
      $region21: #{forward.2} parent=11 // pred_check
        %p366 = pneg %p109
      $region22: #{forward.2} parent=11 // pred_check_branch
        %368 = sbr.rel (%p366) target = $region24
      $region23: #{forward.2} parent=11 // pred_region
        _
      $region24: #{forward.2} parent=11 // pred_fallthru
        _
      // Predicated region
      $region25: #{forward.2} parent=11 // pred_check
        %p369 = pneg %p130
      $region26: #{forward.2} parent=11 // pred_check_branch
        %371 = sbr.rel (%p369) target = $region28
      $region27: #{forward.2} parent=11 // pred_region
        _
      $region28: #{forward.2} parent=11 // pred_fallthru
        _
      // Predicated region
      $region29: #{forward.2} parent=11 // pred_check
        %p372 = pneg %p151
      $region30: #{forward.2} parent=11 // pred_check_branch
        %374 = sbr.rel (%p372) target = $region32
      $region31: #{forward.2} parent=11 // pred_region
        _
      $region32: #{forward.2} parent=11 // pred_fallthru
        _
      // Predicated region
      $region33: #{forward.2} parent=11 // pred_check
        %p375 = pneg %p172
      $region34: #{forward.2} parent=11 // pred_check_branch
        %377 = sbr.rel (%p375) target = $region36
      $region35: #{forward.2} parent=11 // pred_region
        _
      $region36: #{forward.2} parent=11 // pred_fallthru
        _
      // Predicated region
      $region37: #{forward.2} parent=11 // pred_check
        %p378 = pneg %p193
      $region38: #{forward.2} parent=11 // pred_check_branch
        %380 = sbr.rel (%p378) target = $region40
      $region39: #{forward.2} parent=11 // pred_region
        _
      $region40: #{forward.2} parent=11 // pred_fallthru
        _
      // Predicated region
      $region41: #{forward.2} parent=11 // pred_check
        %p381 = pneg %p214
      $region42: #{forward.2} parent=11 // pred_check_branch
        %383 = sbr.rel (%p381) target = $region44
      $region43: #{forward.2} parent=11 // pred_region
        _
      $region44: #{forward.2} parent=11 // pred_fallthru
        _
      // Predicated region
      $region45: #{forward.2} parent=11 // pred_check
        %p384 = pneg %p235
      $region46: #{forward.2} parent=11 // pred_check_branch
        %386 = sbr.rel (%p384) target = $region48
      $region47: #{forward.2} parent=11 // pred_region
        _
      $region48: #{forward.2} parent=11 // pred_fallthru
        _
      // Predicated region
      $region49: #{forward.2} parent=11 // pred_check
        %p387 = pneg %p256
      $region50: #{forward.2} parent=11 // pred_check_branch
        %389 = sbr.rel (%p387) target = $region52
      $region51: #{forward.2} parent=11 // pred_region
        _
      $region52: #{forward.2} parent=11 // pred_fallthru
        _
      // Predicated region
      $region53: #{forward.2} parent=11 // pred_check
        %p390 = pneg %p277
      $region54: #{forward.2} parent=11 // pred_check_branch
        %392 = sbr.rel (%p390) target = $region56
      $region55: #{forward.2} parent=11 // pred_region
        _
      $region56: #{forward.2} parent=11 // pred_fallthru
        _
      // Predicated region
      $region57: #{forward.2} parent=11 // pred_check
        %p393 = pneg %p298
      $region58: #{forward.2} parent=11 // pred_check_branch
        %395 = sbr.rel (%p393) target = $region60
      $region59: #{forward.2} parent=11 // pred_region
        _
      $region60: #{forward.2} parent=11 // pred_fallthru
        _
      // Predicated region
      $region61: #{forward.2} parent=11 // pred_check
        %p396 = pneg %p319
      $region62: #{forward.2} parent=11 // pred_check_branch
        %398 = sbr.rel (%p396) target = $region64
      $region63: #{forward.2} parent=11 // pred_region
        _
      $region64: #{forward.2} parent=11 // pred_fallthru
        _
    $region12: #{forward.2} parent=5 // pred_fallthru
      _
    %p399 = scmp.lt.s32.totalorder %s20, 2
    // Predicated region
    $region65: #{forward.2} parent=5 // pred_check
      %p400 = pneg %p399
    $region66: #{forward.2} parent=5 // pred_check_branch
      %402 = sbr.rel (%p400) target = $region68
    $region67: #{forward.2} parent=5 // pred_region
      // Predicated region
      $region69: #{forward.2} parent=67 // pred_check
        %p403 = pneg %p40
      $region70: #{forward.2} parent=67 // pred_check_branch
        %405 = sbr.rel (%p403) target = $region72
      $region71: #{forward.2} parent=67 // pred_region
        %s406 = smul.u32 10, %s20
        %p407 = scmp.lt.s32.totalorder %s406, 19
        %s408 = scalar_select %p407, %s406, 19
        %s409 = smul.addr %s408, 2
        %s410 = smul.addr %s409, 8
        %s411 = scalar_lea.vmem %s0, %s410
        %s412 = smul.u32 10, %s20
      $region72: #{forward.2} parent=67 // pred_fallthru
        _
    $region68: #{forward.2} parent=5 // pred_fallthru
      _
    %p413 = scmp.le.s32.totalorder 1, %s20
    %p414 = scmp.lt.s32.totalorder %s20, 3
    %p415 = pnand %p413, %p414
    %p416 = pneg %p415
    // Predicated region
    $region73: #{forward.2} parent=5 // pred_check
      _
    $region74: #{forward.2} parent=5 // pred_check_branch
      %418 = sbr.rel (%p415) target = $region76
    $region75: #{forward.2} parent=5 // pred_region
      %s419 = ssub.s32 %s20, 1
      %s420 = smul.u32 10, %s25
      %p421 = scmp.lt.s32.totalorder %s420, 19
      %s422 = scalar_select %p421, %s420, 19
      %s423 = smul.addr %s422, 2
      %s424 = smul.addr %s423, 8
      %s425 = scalar_lea.vmem %s0, %s424
      %p426 = pneg %p46
      %p427 = pneg %p43
      %p428 = pneg %p67
      %p429 = pneg %p64
      %p430 = pneg %p88
      %p431 = pneg %p85
      %p432 = pneg %p109
      %p433 = pneg %p106
      %p434 = pneg %p130
      %p435 = pneg %p127
      %p436 = pneg %p151
      %p437 = pneg %p148
      %p438 = pneg %p172
      %p439 = pneg %p169
      %p440 = pneg %p193
      %p441 = pneg %p190
      %p442 = pneg %p214
      %p443 = pneg %p211
      %p444 = pneg %p235
      %p445 = pneg %p232
      %p446 = pneg %p256
      %p447 = pneg %p253
      %p448 = pneg %p277
      %p449 = pneg %p274
      %p450 = pneg %p298
      %p451 = pneg %p295
      %p452 = pneg %p319
      %p453 = pneg %p316
      %p454 = pneg %p345
      %p455 = pneg %p342
      %s456 = smul.u32 10, %s25
      %p457 = scmp.lt.s32.totalorder %s456, 19
      %s458 = scalar_select %p457, %s456, 19
      %s459 = smul.addr %s458, 2
      %s460 = smul.addr %s459, 8
      %s461 = scalar_lea.vmem %s14, %s460
      %s462 = smul.u32 10, %s25
      %p463 = scmp.lt.s32.totalorder %s462, 19
      %s464 = scalar_select %p463, %s462, 19
      %s465 = smul.addr %s464, 2
      %s466 = smul.addr %s465, 8
      %s467 = scalar_lea.vmem %s0, %s466
      %s468 = smul.u32 10, %s25
      %s469 = smul.u32 10, %s25
      %p470 = scmp.lt.s32.totalorder %s469, 19
      %s471 = scalar_select %p470, %s469, 19
      %s472 = smul.addr %s471, 2
      %s473 = smul.addr %s472, 8
      %s474 = scalar_lea.vmem %s14, %s473
      %s475 = smul.u32 10, %s25
      %v476 = vld [vmem:[%s467] sm:$0xff]
      %v477 = vld [vmem:[%s467 + $0x8] sm:$0xff]
      %v478 = vld [vmem:[%s467 + $0x10] sm:$0xff]
      %v479 = vld [vmem:[%s467 + $0x18] sm:$0xff]
      %v480 = vld [vmem:[%s467 + $0x20] sm:$0xff]
      %v481 = vld [vmem:[%s467 + $0x28] sm:$0xff]
      %v482 = vld [vmem:[%s467 + $0x30] sm:$0xff]
      %v483 = vld [vmem:[%s467 + $0x38] sm:$0xff]
      %v484 = vld [vmem:[%s467 + $0x40] sm:$0xff]
      %v485 = vld [vmem:[%s467 + $0x48] sm:$0xff]
      %v486 = vld [vmem:[%s467 + $0x50] sm:$0xff]
      %v487 = vld [vmem:[%s467 + $0x58] sm:$0xff]
      %v488 = vld [vmem:[%s467 + $0x60] sm:$0xff]
      %v489 = vld [vmem:[%s467 + $0x68] sm:$0xff]
      %v490 = vld [vmem:[%s467 + $0x70] sm:$0xff]
      %v491 = vld [vmem:[%s467 + $0x78] sm:$0xff]
      %v492 = vld [vmem:[%s467 + $0x80] sm:$0xff]
      %v493 = vld [vmem:[%s467 + $0x88] sm:$0xff]
      %v494 = vld [vmem:[%s467 + $0x90] sm:$0xff]
      %v495 = vld [vmem:[%s467 + $0x98] sm:$0xff]
      %v496 = vld [vmem:[%s1] sm:$0xff]
      %v497 = vld [vmem:[%s1 + $0x8] sm:$0xff]
      %v498 = vld [vmem:[%s1 + $0x10] sm:$0xff]
      %v499 = vld [vmem:[%s1 + $0x18] sm:$0xff]
      %v500 = vld [vmem:[%s1 + $0x20] sm:$0xff]
      %v501 = vld [vmem:[%s1 + $0x28] sm:$0xff]
      %v502 = vld [vmem:[%s1 + $0x30] sm:$0xff]
      %v503 = vld [vmem:[%s1 + $0x38] sm:$0xff]
      %v504 = vld [vmem:[%s1 + $0x40] sm:$0xff]
      %v505 = vld [vmem:[%s1 + $0x48] sm:$0xff]
      %v506 = vld [vmem:[%s4] sm:$0xff]
      %v507 = vld [vmem:[%s4 + $0x8] sm:$0xff]
      %v508 = vld [vmem:[%s4 + $0x10] sm:$0xff]
      %v509 = vld [vmem:[%s4 + $0x18] sm:$0xff]
      %v510 = vld [vmem:[%s4 + $0x20] sm:$0xff]
      %v511 = vld [vmem:[%s4 + $0x28] sm:$0xff]
      %v512 = vld [vmem:[%s4 + $0x30] sm:$0xff]
      %v513 = vld [vmem:[%s4 + $0x38] sm:$0xff]
      %v514 = vld [vmem:[%s4 + $0x40] sm:$0xff]
      %v515 = vld [vmem:[%s4 + $0x48] sm:$0xff]
      %v516 = vld [vmem:[%s4 + $0x50] sm:$0xff]
      %v517 = vld [vmem:[%s4 + $0x58] sm:$0xff]
      %v518 = vld [vmem:[%s4 + $0x60] sm:$0xff]
      %v519 = vld [vmem:[%s4 + $0x68] sm:$0xff]
      %v520 = vld [vmem:[%s4 + $0x70] sm:$0xff]
      %v521 = vld [vmem:[%s4 + $0x78] sm:$0xff]
      %v522 = vld [vmem:[%s4 + $0x80] sm:$0xff]
      %v523 = vld [vmem:[%s4 + $0x88] sm:$0xff]
      %v524 = vld [vmem:[%s4 + $0x90] sm:$0xff]
      %v525 = vld [vmem:[%s4 + $0x98] sm:$0xff]
      %v526 = vld [vmem:[%s4 + $0xa0] sm:$0xff]
      %v527 = vld [vmem:[%s4 + $0xa8] sm:$0xff]
      %v528 = vld [vmem:[%s4 + $0xb0] sm:$0xff]
      %v529 = vld [vmem:[%s4 + $0xb8] sm:$0xff]
      %v530 = vld [vmem:[%s4 + $0xc0] sm:$0xff]
      %v531 = vld [vmem:[%s4 + $0xc8] sm:$0xff]
      %v532 = vld [vmem:[%s4 + $0xd0] sm:$0xff]
      %v533 = vld [vmem:[%s4 + $0xd8] sm:$0xff]
      %v534 = vld [vmem:[%s4 + $0xe0] sm:$0xff]
      %v535 = vld [vmem:[%s4 + $0xe8] sm:$0xff]
      %v536 = vld [vmem:[%s4 + $0xf0] sm:$0xff]
      %v537 = vld [vmem:[%s4 + $0xf8] sm:$0xff]
      %v538 = vld [vmem:[%s4 + $0x100] sm:$0xff]
      %v539 = vld [vmem:[%s4 + $0x108] sm:$0xff]
      %v540 = vld [vmem:[%s4 + $0x110] sm:$0xff]
      %v541 = vld [vmem:[%s4 + $0x118] sm:$0xff]
      %v542 = vld [vmem:[%s4 + $0x120] sm:$0xff]
      %v543 = vld [vmem:[%s4 + $0x128] sm:$0xff]
      %v544 = vld [vmem:[%s4 + $0x130] sm:$0xff]
      %v545 = vld [vmem:[%s4 + $0x138] sm:$0xff]
      %v546 = vld [vmem:[%s4 + $0x140] sm:$0xff]
      %v547 = vld [vmem:[%s4 + $0x148] sm:$0xff]
      %v548 = vld [vmem:[%s4 + $0x150] sm:$0xff]
      %v549 = vld [vmem:[%s4 + $0x158] sm:$0xff]
      %v550 = vld [vmem:[%s4 + $0x160] sm:$0xff]
      %v551 = vld [vmem:[%s4 + $0x168] sm:$0xff]
      %v552 = vld [vmem:[%s4 + $0x170] sm:$0xff]
      %v553 = vld [vmem:[%s4 + $0x178] sm:$0xff]
      %v554 = vld [vmem:[%s4 + $0x180] sm:$0xff]
      %v555 = vld [vmem:[%s4 + $0x188] sm:$0xff]
      %v556 = vld [vmem:[%s4 + $0x190] sm:$0xff]
      %v557 = vld [vmem:[%s4 + $0x198] sm:$0xff]
      %v558 = vld [vmem:[%s4 + $0x1a0] sm:$0xff]
      %v559 = vld [vmem:[%s4 + $0x1a8] sm:$0xff]
      %v560 = vld [vmem:[%s4 + $0x1b0] sm:$0xff]
      %v561 = vld [vmem:[%s4 + $0x1b8] sm:$0xff]
      %v562 = vld [vmem:[%s4 + $0x1c0] sm:$0xff]
      %v563 = vld [vmem:[%s4 + $0x1c8] sm:$0xff]
      %v564 = vld [vmem:[%s4 + $0x1d0] sm:$0xff]
      %v565 = vld [vmem:[%s4 + $0x1d8] sm:$0xff]
      %v566 = vld [vmem:[%s4 + $0x1e0] sm:$0xff]
      %v567 = vld [vmem:[%s4 + $0x1e8] sm:$0xff]
      %v568 = vld [vmem:[%s4 + $0x1f0] sm:$0xff]
      %v569 = vld [vmem:[%s4 + $0x1f8] sm:$0xff]
      %v570 = vld [vmem:[%s2] sm:$0xff]
      %v571 = vld [vmem:[%s2 + $0x8] sm:$0xff]
      %v572 = vld [vmem:[%s2 + $0x10] sm:$0xff]
      %v573 = vld [vmem:[%s2 + $0x18] sm:$0xff]
      %v574 = vld [vmem:[%s2 + $0x20] sm:$0xff]
      %v575 = vld [vmem:[%s2 + $0x28] sm:$0xff]
      %v576 = vld [vmem:[%s2 + $0x30] sm:$0xff]
      %v577 = vld [vmem:[%s2 + $0x38] sm:$0xff]
      %v578 = vld [vmem:[%s2 + $0x40] sm:$0xff]
      %v579 = vld [vmem:[%s2 + $0x48] sm:$0xff]
      %v580 = vld [vmem:[%s2 + $0x50] sm:$0xff]
      %v581 = vld [vmem:[%s2 + $0x58] sm:$0xff]
      %v582 = vld [vmem:[%s2 + $0x60] sm:$0xff]
      %v583 = vld [vmem:[%s2 + $0x68] sm:$0xff]
      %v584 = vld [vmem:[%s2 + $0x70] sm:$0xff]
      %v585 = vld [vmem:[%s2 + $0x78] sm:$0xff]
      %v586 = vld [vmem:[%s2 + $0x80] sm:$0xff]
      %v587 = vld [vmem:[%s2 + $0x88] sm:$0xff]
      %v588 = vld [vmem:[%s2 + $0x90] sm:$0xff]
      %v589 = vld [vmem:[%s2 + $0x98] sm:$0xff]
      %v590 = vld [vmem:[%s2 + $0xa0] sm:$0xff]
      %v591 = vld [vmem:[%s2 + $0xa8] sm:$0xff]
      %v592 = vld [vmem:[%s2 + $0xb0] sm:$0xff]
      %v593 = vld [vmem:[%s2 + $0xb8] sm:$0xff]
      %v594 = vld [vmem:[%s2 + $0xc0] sm:$0xff]
      %v595 = vld [vmem:[%s2 + $0xc8] sm:$0xff]
      %v596 = vld [vmem:[%s2 + $0xd0] sm:$0xff]
      %v597 = vld [vmem:[%s2 + $0xd8] sm:$0xff]
      %v598 = vld [vmem:[%s2 + $0xe0] sm:$0xff]
      %v599 = vld [vmem:[%s2 + $0xe8] sm:$0xff]
      %v600 = vld [vmem:[%s2 + $0xf0] sm:$0xff]
      %v601 = vld [vmem:[%s2 + $0xf8] sm:$0xff]
      %v602 = vld [vmem:[%s2 + $0x100] sm:$0xff]
      %v603 = vld [vmem:[%s2 + $0x108] sm:$0xff]
      %v604 = vld [vmem:[%s2 + $0x110] sm:$0xff]
      %v605 = vld [vmem:[%s2 + $0x118] sm:$0xff]
      %v606 = vld [vmem:[%s2 + $0x120] sm:$0xff]
      %v607 = vld [vmem:[%s2 + $0x128] sm:$0xff]
      %v608 = vld [vmem:[%s2 + $0x130] sm:$0xff]
      %v609 = vld [vmem:[%s2 + $0x138] sm:$0xff]
      %v610 = vld [vmem:[%s2 + $0x140] sm:$0xff]
      %v611 = vld [vmem:[%s2 + $0x148] sm:$0xff]
      %v612 = vld [vmem:[%s2 + $0x150] sm:$0xff]
      %v613 = vld [vmem:[%s2 + $0x158] sm:$0xff]
      %v614 = vld [vmem:[%s2 + $0x160] sm:$0xff]
      %v615 = vld [vmem:[%s2 + $0x168] sm:$0xff]
      %v616 = vld [vmem:[%s2 + $0x170] sm:$0xff]
      %v617 = vld [vmem:[%s2 + $0x178] sm:$0xff]
      %v618 = vld [vmem:[%s2 + $0x180] sm:$0xff]
      %v619 = vld [vmem:[%s2 + $0x188] sm:$0xff]
      %v620 = vld [vmem:[%s2 + $0x190] sm:$0xff]
      %v621 = vld [vmem:[%s2 + $0x198] sm:$0xff]
      %v622 = vld [vmem:[%s2 + $0x1a0] sm:$0xff]
      %v623 = vld [vmem:[%s2 + $0x1a8] sm:$0xff]
      %v624 = vld [vmem:[%s2 + $0x1b0] sm:$0xff]
      %v625 = vld [vmem:[%s2 + $0x1b8] sm:$0xff]
      %v626 = vld [vmem:[%s2 + $0x1c0] sm:$0xff]
      %v627 = vld [vmem:[%s2 + $0x1c8] sm:$0xff]
      %v628 = vld [vmem:[%s2 + $0x1d0] sm:$0xff]
      %v629 = vld [vmem:[%s2 + $0x1d8] sm:$0xff]
      %v630 = vld [vmem:[%s2 + $0x1e0] sm:$0xff]
      %v631 = vld [vmem:[%s2 + $0x1e8] sm:$0xff]
      %v632 = vld [vmem:[%s2 + $0x1f0] sm:$0xff]
      %v633 = vld [vmem:[%s2 + $0x1f8] sm:$0xff]
      %v634 = vld [vmem:[%s2 + $0x200] sm:$0xff]
      %v635 = vld [vmem:[%s2 + $0x208] sm:$0xff]
      %v636 = vld [vmem:[%s2 + $0x210] sm:$0xff]
      %v637 = vld [vmem:[%s2 + $0x218] sm:$0xff]
      %v638 = vld [vmem:[%s2 + $0x220] sm:$0xff]
      %v639 = vld [vmem:[%s2 + $0x228] sm:$0xff]
      %v640 = vld [vmem:[%s2 + $0x230] sm:$0xff]
      %v641 = vld [vmem:[%s2 + $0x238] sm:$0xff]
      %v642 = vld [vmem:[%s2 + $0x240] sm:$0xff]
      %v643 = vld [vmem:[%s2 + $0x248] sm:$0xff]
      %v644 = vld [vmem:[%s2 + $0x250] sm:$0xff]
      %v645 = vld [vmem:[%s2 + $0x258] sm:$0xff]
      %v646 = vld [vmem:[%s2 + $0x260] sm:$0xff]
      %v647 = vld [vmem:[%s2 + $0x268] sm:$0xff]
      %v648 = vld [vmem:[%s2 + $0x270] sm:$0xff]
      %v649 = vld [vmem:[%s2 + $0x278] sm:$0xff]
      %v650 = vld [vmem:[%s2 + $0x280] sm:$0xff]
      %v651 = vld [vmem:[%s2 + $0x288] sm:$0xff]
      %v652 = vld [vmem:[%s2 + $0x290] sm:$0xff]
      %v653 = vld [vmem:[%s2 + $0x298] sm:$0xff]
      %v654 = vld [vmem:[%s2 + $0x2a0] sm:$0xff]
      %v655 = vld [vmem:[%s2 + $0x2a8] sm:$0xff]
      %v656 = vld [vmem:[%s2 + $0x2b0] sm:$0xff]
      %v657 = vld [vmem:[%s2 + $0x2b8] sm:$0xff]
      %v658 = vld [vmem:[%s2 + $0x2c0] sm:$0xff]
      %v659 = vld [vmem:[%s2 + $0x2c8] sm:$0xff]
      %v660 = vld [vmem:[%s2 + $0x2d0] sm:$0xff]
      %v661 = vld [vmem:[%s2 + $0x2d8] sm:$0xff]
      %v662 = vld [vmem:[%s2 + $0x2e0] sm:$0xff]
      %v663 = vld [vmem:[%s2 + $0x2e8] sm:$0xff]
      %v664 = vld [vmem:[%s2 + $0x2f0] sm:$0xff]
      %v665 = vld [vmem:[%s2 + $0x2f8] sm:$0xff]
      %v666 = vld [vmem:[%s2 + $0x300] sm:$0xff]
      %v667 = vld [vmem:[%s2 + $0x308] sm:$0xff]
      %v668 = vld [vmem:[%s2 + $0x310] sm:$0xff]
      %v669 = vld [vmem:[%s2 + $0x318] sm:$0xff]
      %v670 = vld [vmem:[%s2 + $0x320] sm:$0xff]
      %v671 = vld [vmem:[%s2 + $0x328] sm:$0xff]
      %v672 = vld [vmem:[%s2 + $0x330] sm:$0xff]
      %v673 = vld [vmem:[%s2 + $0x338] sm:$0xff]
      %v674 = vld [vmem:[%s2 + $0x340] sm:$0xff]
      %v675 = vld [vmem:[%s2 + $0x348] sm:$0xff]
      %v676 = vld [vmem:[%s2 + $0x350] sm:$0xff]
      %v677 = vld [vmem:[%s2 + $0x358] sm:$0xff]
      %v678 = vld [vmem:[%s2 + $0x360] sm:$0xff]
      %v679 = vld [vmem:[%s2 + $0x368] sm:$0xff]
      %v680 = vld [vmem:[%s2 + $0x370] sm:$0xff]
      %v681 = vld [vmem:[%s2 + $0x378] sm:$0xff]
      %v682 = vld [vmem:[%s2 + $0x380] sm:$0xff]
      %v683 = vld [vmem:[%s2 + $0x388] sm:$0xff]
      %v684 = vld [vmem:[%s2 + $0x390] sm:$0xff]
      %v685 = vld [vmem:[%s2 + $0x398] sm:$0xff]
      %v686 = vld [vmem:[%s2 + $0x3a0] sm:$0xff]
      %v687 = vld [vmem:[%s2 + $0x3a8] sm:$0xff]
      %v688 = vld [vmem:[%s2 + $0x3b0] sm:$0xff]
      %v689 = vld [vmem:[%s2 + $0x3b8] sm:$0xff]
      %v690 = vld [vmem:[%s2 + $0x3c0] sm:$0xff]
      %v691 = vld [vmem:[%s2 + $0x3c8] sm:$0xff]
      %v692 = vld [vmem:[%s2 + $0x3d0] sm:$0xff]
      %v693 = vld [vmem:[%s2 + $0x3d8] sm:$0xff]
      %v694 = vld [vmem:[%s2 + $0x3e0] sm:$0xff]
      %v695 = vld [vmem:[%s2 + $0x3e8] sm:$0xff]
      %v696 = vld [vmem:[%s2 + $0x3f0] sm:$0xff]
      %v697 = vld [vmem:[%s2 + $0x3f8] sm:$0xff]
      %v698 = vld [vmem:[%s2 + $0x400] sm:$0xff]
      %v699 = vld [vmem:[%s2 + $0x408] sm:$0xff]
      %v700 = vld [vmem:[%s2 + $0x410] sm:$0xff]
      %v701 = vld [vmem:[%s2 + $0x418] sm:$0xff]
      %v702 = vld [vmem:[%s2 + $0x420] sm:$0xff]
      %v703 = vld [vmem:[%s2 + $0x428] sm:$0xff]
      %v704 = vld [vmem:[%s2 + $0x430] sm:$0xff]
      %v705 = vld [vmem:[%s2 + $0x438] sm:$0xff]
      %v706 = vld [vmem:[%s2 + $0x440] sm:$0xff]
      %v707 = vld [vmem:[%s2 + $0x448] sm:$0xff]
      %v708 = vld [vmem:[%s2 + $0x450] sm:$0xff]
      %v709 = vld [vmem:[%s2 + $0x458] sm:$0xff]
      %v710 = vld [vmem:[%s2 + $0x460] sm:$0xff]
      %v711 = vld [vmem:[%s2 + $0x468] sm:$0xff]
      %v712 = vld [vmem:[%s2 + $0x470] sm:$0xff]
      %v713 = vld [vmem:[%s2 + $0x478] sm:$0xff]
      %v714 = vld [vmem:[%s2 + $0x480] sm:$0xff]
      %v715 = vld [vmem:[%s2 + $0x488] sm:$0xff]
      %v716 = vld [vmem:[%s2 + $0x490] sm:$0xff]
      %v717 = vld [vmem:[%s2 + $0x498] sm:$0xff]
      %v718 = vld [vmem:[%s2 + $0x4a0] sm:$0xff]
      %v719 = vld [vmem:[%s2 + $0x4a8] sm:$0xff]
      %v720 = vld [vmem:[%s2 + $0x4b0] sm:$0xff]
      %v721 = vld [vmem:[%s2 + $0x4b8] sm:$0xff]
      %v722 = vld [vmem:[%s2 + $0x4c0] sm:$0xff]
      %v723 = vld [vmem:[%s2 + $0x4c8] sm:$0xff]
      %v724 = vld [vmem:[%s2 + $0x4d0] sm:$0xff]
      %v725 = vld [vmem:[%s2 + $0x4d8] sm:$0xff]
      %v726 = vld [vmem:[%s2 + $0x4e0] sm:$0xff]
      %v727 = vld [vmem:[%s2 + $0x4e8] sm:$0xff]
      %v728 = vld [vmem:[%s2 + $0x4f0] sm:$0xff]
      %v729 = vld [vmem:[%s2 + $0x4f8] sm:$0xff]
      %v730 = vld [vmem:[%s2 + $0x500] sm:$0xff]
      %v731 = vld [vmem:[%s2 + $0x508] sm:$0xff]
      %v732 = vld [vmem:[%s2 + $0x510] sm:$0xff]
      %v733 = vld [vmem:[%s2 + $0x518] sm:$0xff]
      %v734 = vld [vmem:[%s2 + $0x520] sm:$0xff]
      %v735 = vld [vmem:[%s2 + $0x528] sm:$0xff]
      %v736 = vld [vmem:[%s2 + $0x530] sm:$0xff]
      %v737 = vld [vmem:[%s2 + $0x538] sm:$0xff]
      %v738 = vld [vmem:[%s2 + $0x540] sm:$0xff]
      %v739 = vld [vmem:[%s2 + $0x548] sm:$0xff]
      %v740 = vld [vmem:[%s2 + $0x550] sm:$0xff]
      %v741 = vld [vmem:[%s2 + $0x558] sm:$0xff]
      %v742 = vld [vmem:[%s2 + $0x560] sm:$0xff]
      %v743 = vld [vmem:[%s2 + $0x568] sm:$0xff]
      %v744 = vld [vmem:[%s2 + $0x570] sm:$0xff]
      %v745 = vld [vmem:[%s2 + $0x578] sm:$0xff]
      %v746 = vld [vmem:[%s2 + $0x580] sm:$0xff]
      %v747 = vld [vmem:[%s2 + $0x588] sm:$0xff]
      %v748 = vld [vmem:[%s2 + $0x590] sm:$0xff]
      %v749 = vld [vmem:[%s2 + $0x598] sm:$0xff]
      %v750 = vld [vmem:[%s2 + $0x5a0] sm:$0xff]
      %v751 = vld [vmem:[%s2 + $0x5a8] sm:$0xff]
      %v752 = vld [vmem:[%s2 + $0x5b0] sm:$0xff]
      %v753 = vld [vmem:[%s2 + $0x5b8] sm:$0xff]
      %v754 = vld [vmem:[%s2 + $0x5c0] sm:$0xff]
      %v755 = vld [vmem:[%s2 + $0x5c8] sm:$0xff]
      %v756 = vld [vmem:[%s2 + $0x5d0] sm:$0xff]
      %v757 = vld [vmem:[%s2 + $0x5d8] sm:$0xff]
      %v758 = vld [vmem:[%s2 + $0x5e0] sm:$0xff]
      %v759 = vld [vmem:[%s2 + $0x5e8] sm:$0xff]
      %v760 = vld [vmem:[%s2 + $0x5f0] sm:$0xff]
      %v761 = vld [vmem:[%s2 + $0x5f8] sm:$0xff]
      %v762 = vld [vmem:[%s3] sm:$0x3f]
      %v764 = vperm.slane %v762, 0
      %v765 = vperm.slane %v762, 1
      %v766 = vperm.slane %v762, 2
      %v767 = vperm.slane %v762, 3
      %v768 = vperm.slane %v762, 4
      %v769 = vperm.slane %v762, 5
      %776 = vmatpush.msra.mxu0 %v660
      %777 = vmatpush.msra.mxu0 %v654
      %778 = vmatpush.msra.mxu0 %v648
      %779 = vmatpush.msra.mxu0 %v642
      %780 = vmatpush.msra.mxu0 %v636
      %781 = vmatpush.msra.mxu0 %v630
      %782 = vmatpush.msra.mxu0 %v624
      %783 = vmatpush.msra.mxu0 %v618
      %784 = vmatpush.msra.mxu0 %v612
      %785 = vmatpush.msra.mxu0 %v606
      %786 = vmatpush.msra.mxu0 %v600
      %787 = vmatpush.msra.mxu0 %v594
      %788 = vmatpush.msra.mxu0 %v588
      %789 = vmatpush.msra.mxu0 %v582
      %790 = vmatpush.msra.mxu0 %v576
      %791 = vmatpush.msra.mxu0 %v570
      %792 = vmatmul.f32.gmra.mxu0 %v476
      %v793 = vpop.f32.mrf.mxu0
      %v794 = vadd.f32 %v764, %v793
      %795 = vmatmul.f32.gmra.mxu0 %v478
      %v796 = vpop.f32.mrf.mxu0
      %v797 = vadd.f32 %v764, %v796
      %798 = vmatmul.f32.gmra.mxu0 %v480
      %v799 = vpop.f32.mrf.mxu0
      %v800 = vadd.f32 %v764, %v799
      %801 = vmatmul.f32.gmra.mxu0 %v482
      %v802 = vpop.f32.mrf.mxu0
      %v803 = vadd.f32 %v764, %v802
      %804 = vmatmul.f32.gmra.mxu0 %v484
      %v805 = vpop.f32.mrf.mxu0
      %v806 = vadd.f32 %v764, %v805
      %807 = vmatmul.f32.gmra.mxu0 %v486
      %v808 = vpop.f32.mrf.mxu0
      %v809 = vadd.f32 %v764, %v808
      %810 = vmatmul.f32.gmra.mxu0 %v488
      %v811 = vpop.f32.mrf.mxu0
      %v812 = vadd.f32 %v764, %v811
      %813 = vmatmul.f32.gmra.mxu0 %v490
      %v814 = vpop.f32.mrf.mxu0
      %v815 = vadd.f32 %v764, %v814
      %816 = vmatmul.f32.gmra.mxu0 %v492
      %v817 = vpop.f32.mrf.mxu0
      %v818 = vadd.f32 %v764, %v817
      %819 = vmatmul.f32.gmra.mxu0 %v494
      %v820 = vpop.f32.mrf.mxu0
      %v821 = vadd.f32 %v764, %v820
      %822 = vdwg.mxu0
      %823 = vmatpush.msra.mxu0 %v756
      %824 = vmatpush.msra.mxu0 %v750
      %825 = vmatpush.msra.mxu0 %v744
      %826 = vmatpush.msra.mxu0 %v738
      %827 = vmatpush.msra.mxu0 %v732
      %828 = vmatpush.msra.mxu0 %v726
      %829 = vmatpush.msra.mxu0 %v720
      %830 = vmatpush.msra.mxu0 %v714
      %831 = vmatpush.msra.mxu0 %v708
      %832 = vmatpush.msra.mxu0 %v702
      %833 = vmatpush.msra.mxu0 %v696
      %834 = vmatpush.msra.mxu0 %v690
      %835 = vmatpush.msra.mxu0 %v684
      %836 = vmatpush.msra.mxu0 %v678
      %837 = vmatpush.msra.mxu0 %v672
      %838 = vmatpush.msra.mxu0 %v666
      %839 = vmatmul.f32.gmra.mxu0 %v477
      %v840 = vpop.f32.mrf.mxu0
      %v841 = vadd.f32 %v794, %v840
      %842 = vmatmul.f32.gmra.mxu0 %v479
      %v843 = vpop.f32.mrf.mxu0
      %v844 = vadd.f32 %v797, %v843
      %845 = vmatmul.f32.gmra.mxu0 %v481
      %v846 = vpop.f32.mrf.mxu0
      %v847 = vadd.f32 %v800, %v846
      %848 = vmatmul.f32.gmra.mxu0 %v483
      %v849 = vpop.f32.mrf.mxu0
      %v850 = vadd.f32 %v803, %v849
      %851 = vmatmul.f32.gmra.mxu0 %v485
      %v852 = vpop.f32.mrf.mxu0
      %v853 = vadd.f32 %v806, %v852
      %854 = vmatmul.f32.gmra.mxu0 %v487
      %v855 = vpop.f32.mrf.mxu0
      %v856 = vadd.f32 %v809, %v855
      %857 = vmatmul.f32.gmra.mxu0 %v489
      %v858 = vpop.f32.mrf.mxu0
      %v859 = vadd.f32 %v812, %v858
      %860 = vmatmul.f32.gmra.mxu0 %v491
      %v861 = vpop.f32.mrf.mxu0
      %v862 = vadd.f32 %v815, %v861
      %863 = vmatmul.f32.gmra.mxu0 %v493
      %v864 = vpop.f32.mrf.mxu0
      %v865 = vadd.f32 %v818, %v864
      %866 = vmatmul.f32.gmra.mxu0 %v495
      %v867 = vpop.f32.mrf.mxu0
      %v868 = vadd.f32 %v821, %v867
      %869 = vdwg.mxu0
      %870 = vmatpush.msra.mxu0 %v661
      %871 = vmatpush.msra.mxu0 %v655
      %872 = vmatpush.msra.mxu0 %v649
      %873 = vmatpush.msra.mxu0 %v643
      %874 = vmatpush.msra.mxu0 %v637
      %875 = vmatpush.msra.mxu0 %v631
      %876 = vmatpush.msra.mxu0 %v625
      %877 = vmatpush.msra.mxu0 %v619
      %878 = vmatpush.msra.mxu0 %v613
      %879 = vmatpush.msra.mxu0 %v607
      %880 = vmatpush.msra.mxu0 %v601
      %881 = vmatpush.msra.mxu0 %v595
      %882 = vmatpush.msra.mxu0 %v589
      %883 = vmatpush.msra.mxu0 %v583
      %884 = vmatpush.msra.mxu0 %v577
      %885 = vmatpush.msra.mxu0 %v571
      %886 = vmatmul.f32.gmra.mxu0 %v476
      %v887 = vpop.f32.mrf.mxu0
      %v888 = vadd.f32 %v765, %v887
      %889 = vmatmul.f32.gmra.mxu0 %v478
      %v890 = vpop.f32.mrf.mxu0
      %v891 = vadd.f32 %v765, %v890
      %892 = vmatmul.f32.gmra.mxu0 %v480
      %v893 = vpop.f32.mrf.mxu0
      %v894 = vadd.f32 %v765, %v893
      %895 = vmatmul.f32.gmra.mxu0 %v482
      %v896 = vpop.f32.mrf.mxu0
      %v897 = vadd.f32 %v765, %v896
      %898 = vmatmul.f32.gmra.mxu0 %v484
      %v899 = vpop.f32.mrf.mxu0
      %v900 = vadd.f32 %v765, %v899
      %901 = vmatmul.f32.gmra.mxu0 %v486
      %v902 = vpop.f32.mrf.mxu0
      %v903 = vadd.f32 %v765, %v902
      %904 = vmatmul.f32.gmra.mxu0 %v488
      %v905 = vpop.f32.mrf.mxu0
      %v906 = vadd.f32 %v765, %v905
      %907 = vmatmul.f32.gmra.mxu0 %v490
      %v908 = vpop.f32.mrf.mxu0
      %v909 = vadd.f32 %v765, %v908
      %910 = vmatmul.f32.gmra.mxu0 %v492
      %v911 = vpop.f32.mrf.mxu0
      %v912 = vadd.f32 %v765, %v911
      %913 = vmatmul.f32.gmra.mxu0 %v494
      %v914 = vpop.f32.mrf.mxu0
      %v915 = vadd.f32 %v765, %v914
      %916 = vdwg.mxu0
      %917 = vmatpush.msra.mxu0 %v757
      %918 = vmatpush.msra.mxu0 %v751
      %919 = vmatpush.msra.mxu0 %v745
      %920 = vmatpush.msra.mxu0 %v739
      %921 = vmatpush.msra.mxu0 %v733
      %922 = vmatpush.msra.mxu0 %v727
      %923 = vmatpush.msra.mxu0 %v721
      %924 = vmatpush.msra.mxu0 %v715
      %925 = vmatpush.msra.mxu0 %v709
      %926 = vmatpush.msra.mxu0 %v703
      %927 = vmatpush.msra.mxu0 %v697
      %928 = vmatpush.msra.mxu0 %v691
      %929 = vmatpush.msra.mxu0 %v685
      %930 = vmatpush.msra.mxu0 %v679
      %931 = vmatpush.msra.mxu0 %v673
      %932 = vmatpush.msra.mxu0 %v667
      %933 = vmatmul.f32.gmra.mxu0 %v477
      %v934 = vpop.f32.mrf.mxu0
      %v935 = vadd.f32 %v888, %v934
      %936 = vmatmul.f32.gmra.mxu0 %v479
      %v937 = vpop.f32.mrf.mxu0
      %v938 = vadd.f32 %v891, %v937
      %939 = vmatmul.f32.gmra.mxu0 %v481
      %v940 = vpop.f32.mrf.mxu0
      %v941 = vadd.f32 %v894, %v940
      %942 = vmatmul.f32.gmra.mxu0 %v483
      %v943 = vpop.f32.mrf.mxu0
      %v944 = vadd.f32 %v897, %v943
      %945 = vmatmul.f32.gmra.mxu0 %v485
      %v946 = vpop.f32.mrf.mxu0
      %v947 = vadd.f32 %v900, %v946
      %948 = vmatmul.f32.gmra.mxu0 %v487
      %v949 = vpop.f32.mrf.mxu0
      %v950 = vadd.f32 %v903, %v949
      %951 = vmatmul.f32.gmra.mxu0 %v489
      %v952 = vpop.f32.mrf.mxu0
      %v953 = vadd.f32 %v906, %v952
      %954 = vmatmul.f32.gmra.mxu0 %v491
      %v955 = vpop.f32.mrf.mxu0
      %v956 = vadd.f32 %v909, %v955
      %957 = vmatmul.f32.gmra.mxu0 %v493
      %v958 = vpop.f32.mrf.mxu0
      %v959 = vadd.f32 %v912, %v958
      %960 = vmatmul.f32.gmra.mxu0 %v495
      %v961 = vpop.f32.mrf.mxu0
      %v962 = vadd.f32 %v915, %v961
      %963 = vdwg.mxu0
      %964 = vmatpush.msra.mxu0 %v662
      %965 = vmatpush.msra.mxu0 %v656
      %966 = vmatpush.msra.mxu0 %v650
      %967 = vmatpush.msra.mxu0 %v644
      %968 = vmatpush.msra.mxu0 %v638
      %969 = vmatpush.msra.mxu0 %v632
      %970 = vmatpush.msra.mxu0 %v626
      %971 = vmatpush.msra.mxu0 %v620
      %972 = vmatpush.msra.mxu0 %v614
      %973 = vmatpush.msra.mxu0 %v608
      %974 = vmatpush.msra.mxu0 %v602
      %975 = vmatpush.msra.mxu0 %v596
      %976 = vmatpush.msra.mxu0 %v590
      %977 = vmatpush.msra.mxu0 %v584
      %978 = vmatpush.msra.mxu0 %v578
      %979 = vmatpush.msra.mxu0 %v572
      %980 = vmatmul.f32.gmra.mxu0 %v476
      %v981 = vpop.f32.mrf.mxu0
      %v982 = vadd.f32 %v766, %v981
      %983 = vmatmul.f32.gmra.mxu0 %v478
      %v984 = vpop.f32.mrf.mxu0
      %v985 = vadd.f32 %v766, %v984
      %986 = vmatmul.f32.gmra.mxu0 %v480
      %v987 = vpop.f32.mrf.mxu0
      %v988 = vadd.f32 %v766, %v987
      %989 = vmatmul.f32.gmra.mxu0 %v482
      %v990 = vpop.f32.mrf.mxu0
      %v991 = vadd.f32 %v766, %v990
      %992 = vmatmul.f32.gmra.mxu0 %v484
      %v993 = vpop.f32.mrf.mxu0
      %v994 = vadd.f32 %v766, %v993
      %995 = vmatmul.f32.gmra.mxu0 %v486
      %v996 = vpop.f32.mrf.mxu0
      %v997 = vadd.f32 %v766, %v996
      %998 = vmatmul.f32.gmra.mxu0 %v488
      %v999 = vpop.f32.mrf.mxu0
      %v1000 = vadd.f32 %v766, %v999
      %1001 = vmatmul.f32.gmra.mxu0 %v490
      %v1002 = vpop.f32.mrf.mxu0
      %v1003 = vadd.f32 %v766, %v1002
      %1004 = vmatmul.f32.gmra.mxu0 %v492
      %v1005 = vpop.f32.mrf.mxu0
      %v1006 = vadd.f32 %v766, %v1005
      %1007 = vmatmul.f32.gmra.mxu0 %v494
      %v1008 = vpop.f32.mrf.mxu0
      %v1009 = vadd.f32 %v766, %v1008
      %1010 = vdwg.mxu0
      %1011 = vmatpush.msra.mxu0 %v758
      %1012 = vmatpush.msra.mxu0 %v752
      %1013 = vmatpush.msra.mxu0 %v746
      %1014 = vmatpush.msra.mxu0 %v740
      %1015 = vmatpush.msra.mxu0 %v734
      %1016 = vmatpush.msra.mxu0 %v728
      %1017 = vmatpush.msra.mxu0 %v722
      %1018 = vmatpush.msra.mxu0 %v716
      %1019 = vmatpush.msra.mxu0 %v710
      %1020 = vmatpush.msra.mxu0 %v704
      %1021 = vmatpush.msra.mxu0 %v698
      %1022 = vmatpush.msra.mxu0 %v692
      %1023 = vmatpush.msra.mxu0 %v686
      %1024 = vmatpush.msra.mxu0 %v680
      %1025 = vmatpush.msra.mxu0 %v674
      %1026 = vmatpush.msra.mxu0 %v668
      %1027 = vmatmul.f32.gmra.mxu0 %v477
      %v1028 = vpop.f32.mrf.mxu0
      %v1029 = vadd.f32 %v982, %v1028
      %1030 = vmatmul.f32.gmra.mxu0 %v479
      %v1031 = vpop.f32.mrf.mxu0
      %v1032 = vadd.f32 %v985, %v1031
      %1033 = vmatmul.f32.gmra.mxu0 %v481
      %v1034 = vpop.f32.mrf.mxu0
      %v1035 = vadd.f32 %v988, %v1034
      %1036 = vmatmul.f32.gmra.mxu0 %v483
      %v1037 = vpop.f32.mrf.mxu0
      %v1038 = vadd.f32 %v991, %v1037
      %1039 = vmatmul.f32.gmra.mxu0 %v485
      %v1040 = vpop.f32.mrf.mxu0
      %v1041 = vadd.f32 %v994, %v1040
      %1042 = vmatmul.f32.gmra.mxu0 %v487
      %v1043 = vpop.f32.mrf.mxu0
      %v1044 = vadd.f32 %v997, %v1043
      %1045 = vmatmul.f32.gmra.mxu0 %v489
      %v1046 = vpop.f32.mrf.mxu0
      %v1047 = vadd.f32 %v1000, %v1046
      %1048 = vmatmul.f32.gmra.mxu0 %v491
      %v1049 = vpop.f32.mrf.mxu0
      %v1050 = vadd.f32 %v1003, %v1049
      %1051 = vmatmul.f32.gmra.mxu0 %v493
      %v1052 = vpop.f32.mrf.mxu0
      %v1053 = vadd.f32 %v1006, %v1052
      %1054 = vmatmul.f32.gmra.mxu0 %v495
      %v1055 = vpop.f32.mrf.mxu0
      %v1056 = vadd.f32 %v1009, %v1055
      %1057 = vdwg.mxu0
      %1058 = vmatpush.msra.mxu0 %v663
      %1059 = vmatpush.msra.mxu0 %v657
      %1060 = vmatpush.msra.mxu0 %v651
      %1061 = vmatpush.msra.mxu0 %v645
      %1062 = vmatpush.msra.mxu0 %v639
      %1063 = vmatpush.msra.mxu0 %v633
      %1064 = vmatpush.msra.mxu0 %v627
      %1065 = vmatpush.msra.mxu0 %v621
      %1066 = vmatpush.msra.mxu0 %v615
      %1067 = vmatpush.msra.mxu0 %v609
      %1068 = vmatpush.msra.mxu0 %v603
      %1069 = vmatpush.msra.mxu0 %v597
      %1070 = vmatpush.msra.mxu0 %v591
      %1071 = vmatpush.msra.mxu0 %v585
      %1072 = vmatpush.msra.mxu0 %v579
      %1073 = vmatpush.msra.mxu0 %v573
      %1074 = vmatmul.f32.gmra.mxu0 %v476
      %v1075 = vpop.f32.mrf.mxu0
      %v1076 = vadd.f32 %v767, %v1075
      %1077 = vmatmul.f32.gmra.mxu0 %v478
      %v1078 = vpop.f32.mrf.mxu0
      %v1079 = vadd.f32 %v767, %v1078
      %1080 = vmatmul.f32.gmra.mxu0 %v480
      %v1081 = vpop.f32.mrf.mxu0
      %v1082 = vadd.f32 %v767, %v1081
      %1083 = vmatmul.f32.gmra.mxu0 %v482
      %v1084 = vpop.f32.mrf.mxu0
      %v1085 = vadd.f32 %v767, %v1084
      %1086 = vmatmul.f32.gmra.mxu0 %v484
      %v1087 = vpop.f32.mrf.mxu0
      %v1088 = vadd.f32 %v767, %v1087
      %1089 = vmatmul.f32.gmra.mxu0 %v486
      %v1090 = vpop.f32.mrf.mxu0
      %v1091 = vadd.f32 %v767, %v1090
      %1092 = vmatmul.f32.gmra.mxu0 %v488
      %v1093 = vpop.f32.mrf.mxu0
      %v1094 = vadd.f32 %v767, %v1093
      %1095 = vmatmul.f32.gmra.mxu0 %v490
      %v1096 = vpop.f32.mrf.mxu0
      %v1097 = vadd.f32 %v767, %v1096
      %1098 = vmatmul.f32.gmra.mxu0 %v492
      %v1099 = vpop.f32.mrf.mxu0
      %v1100 = vadd.f32 %v767, %v1099
      %1101 = vmatmul.f32.gmra.mxu0 %v494
      %v1102 = vpop.f32.mrf.mxu0
      %v1103 = vadd.f32 %v767, %v1102
      %1104 = vdwg.mxu0
      %1105 = vmatpush.msra.mxu0 %v759
      %1106 = vmatpush.msra.mxu0 %v753
      %1107 = vmatpush.msra.mxu0 %v747
      %1108 = vmatpush.msra.mxu0 %v741
      %1109 = vmatpush.msra.mxu0 %v735
      %1110 = vmatpush.msra.mxu0 %v729
      %1111 = vmatpush.msra.mxu0 %v723
      %1112 = vmatpush.msra.mxu0 %v717
      %1113 = vmatpush.msra.mxu0 %v711
      %1114 = vmatpush.msra.mxu0 %v705
      %1115 = vmatpush.msra.mxu0 %v699
      %1116 = vmatpush.msra.mxu0 %v693
      %1117 = vmatpush.msra.mxu0 %v687
      %1118 = vmatpush.msra.mxu0 %v681
      %1119 = vmatpush.msra.mxu0 %v675
      %1120 = vmatpush.msra.mxu0 %v669
      %1121 = vmatmul.f32.gmra.mxu0 %v477
      %v1122 = vpop.f32.mrf.mxu0
      %v1123 = vadd.f32 %v1076, %v1122
      %1124 = vmatmul.f32.gmra.mxu0 %v479
      %v1125 = vpop.f32.mrf.mxu0
      %v1126 = vadd.f32 %v1079, %v1125
      %1127 = vmatmul.f32.gmra.mxu0 %v481
      %v1128 = vpop.f32.mrf.mxu0
      %v1129 = vadd.f32 %v1082, %v1128
      %1130 = vmatmul.f32.gmra.mxu0 %v483
      %v1131 = vpop.f32.mrf.mxu0
      %v1132 = vadd.f32 %v1085, %v1131
      %1133 = vmatmul.f32.gmra.mxu0 %v485
      %v1134 = vpop.f32.mrf.mxu0
      %v1135 = vadd.f32 %v1088, %v1134
      %1136 = vmatmul.f32.gmra.mxu0 %v487
      %v1137 = vpop.f32.mrf.mxu0
      %v1138 = vadd.f32 %v1091, %v1137
      %1139 = vmatmul.f32.gmra.mxu0 %v489
      %v1140 = vpop.f32.mrf.mxu0
      %v1141 = vadd.f32 %v1094, %v1140
      %1142 = vmatmul.f32.gmra.mxu0 %v491
      %v1143 = vpop.f32.mrf.mxu0
      %v1144 = vadd.f32 %v1097, %v1143
      %1145 = vmatmul.f32.gmra.mxu0 %v493
      %v1146 = vpop.f32.mrf.mxu0
      %v1147 = vadd.f32 %v1100, %v1146
      %1148 = vmatmul.f32.gmra.mxu0 %v495
      %v1149 = vpop.f32.mrf.mxu0
      %v1150 = vadd.f32 %v1103, %v1149
      %1151 = vdwg.mxu0
      %1152 = vmatpush.msra.mxu0 %v664
      %1153 = vmatpush.msra.mxu0 %v658
      %1154 = vmatpush.msra.mxu0 %v652
      %1155 = vmatpush.msra.mxu0 %v646
      %1156 = vmatpush.msra.mxu0 %v640
      %1157 = vmatpush.msra.mxu0 %v634
      %1158 = vmatpush.msra.mxu0 %v628
      %1159 = vmatpush.msra.mxu0 %v622
      %1160 = vmatpush.msra.mxu0 %v616
      %1161 = vmatpush.msra.mxu0 %v610
      %1162 = vmatpush.msra.mxu0 %v604
      %1163 = vmatpush.msra.mxu0 %v598
      %1164 = vmatpush.msra.mxu0 %v592
      %1165 = vmatpush.msra.mxu0 %v586
      %1166 = vmatpush.msra.mxu0 %v580
      %1167 = vmatpush.msra.mxu0 %v574
      %1168 = vmatmul.f32.gmra.mxu0 %v476
      %v1169 = vpop.f32.mrf.mxu0
      %v1170 = vadd.f32 %v768, %v1169
      %1171 = vmatmul.f32.gmra.mxu0 %v478
      %v1172 = vpop.f32.mrf.mxu0
      %v1173 = vadd.f32 %v768, %v1172
      %1174 = vmatmul.f32.gmra.mxu0 %v480
      %v1175 = vpop.f32.mrf.mxu0
      %v1176 = vadd.f32 %v768, %v1175
      %1177 = vmatmul.f32.gmra.mxu0 %v482
      %v1178 = vpop.f32.mrf.mxu0
      %v1179 = vadd.f32 %v768, %v1178
      %1180 = vmatmul.f32.gmra.mxu0 %v484
      %v1181 = vpop.f32.mrf.mxu0
      %v1182 = vadd.f32 %v768, %v1181
      %1183 = vmatmul.f32.gmra.mxu0 %v486
      %v1184 = vpop.f32.mrf.mxu0
      %v1185 = vadd.f32 %v768, %v1184
      %1186 = vmatmul.f32.gmra.mxu0 %v488
      %v1187 = vpop.f32.mrf.mxu0
      %v1188 = vadd.f32 %v768, %v1187
      %1189 = vmatmul.f32.gmra.mxu0 %v490
      %v1190 = vpop.f32.mrf.mxu0
      %v1191 = vadd.f32 %v768, %v1190
      %1192 = vmatmul.f32.gmra.mxu0 %v492
      %v1193 = vpop.f32.mrf.mxu0
      %v1194 = vadd.f32 %v768, %v1193
      %1195 = vmatmul.f32.gmra.mxu0 %v494
      %v1196 = vpop.f32.mrf.mxu0
      %v1197 = vadd.f32 %v768, %v1196
      %1198 = vdwg.mxu0
      %1199 = vmatpush.msra.mxu0 %v760
      %1200 = vmatpush.msra.mxu0 %v754
      %1201 = vmatpush.msra.mxu0 %v748
      %1202 = vmatpush.msra.mxu0 %v742
      %1203 = vmatpush.msra.mxu0 %v736
      %1204 = vmatpush.msra.mxu0 %v730
      %1205 = vmatpush.msra.mxu0 %v724
      %1206 = vmatpush.msra.mxu0 %v718
      %1207 = vmatpush.msra.mxu0 %v712
      %1208 = vmatpush.msra.mxu0 %v706
      %1209 = vmatpush.msra.mxu0 %v700
      %1210 = vmatpush.msra.mxu0 %v694
      %1211 = vmatpush.msra.mxu0 %v688
      %1212 = vmatpush.msra.mxu0 %v682
      %1213 = vmatpush.msra.mxu0 %v676
      %1214 = vmatpush.msra.mxu0 %v670
      %1215 = vmatmul.f32.gmra.mxu0 %v477
      %v1216 = vpop.f32.mrf.mxu0
      %v1217 = vadd.f32 %v1170, %v1216
      %1218 = vmatmul.f32.gmra.mxu0 %v479
      %v1219 = vpop.f32.mrf.mxu0
      %v1220 = vadd.f32 %v1173, %v1219
      %1221 = vmatmul.f32.gmra.mxu0 %v481
      %v1222 = vpop.f32.mrf.mxu0
      %v1223 = vadd.f32 %v1176, %v1222
      %1224 = vmatmul.f32.gmra.mxu0 %v483
      %v1225 = vpop.f32.mrf.mxu0
      %v1226 = vadd.f32 %v1179, %v1225
      %1227 = vmatmul.f32.gmra.mxu0 %v485
      %v1228 = vpop.f32.mrf.mxu0
      %v1229 = vadd.f32 %v1182, %v1228
      %1230 = vmatmul.f32.gmra.mxu0 %v487
      %v1231 = vpop.f32.mrf.mxu0
      %v1232 = vadd.f32 %v1185, %v1231
      %1233 = vmatmul.f32.gmra.mxu0 %v489
      %v1234 = vpop.f32.mrf.mxu0
      %v1235 = vadd.f32 %v1188, %v1234
      %1236 = vmatmul.f32.gmra.mxu0 %v491
      %v1237 = vpop.f32.mrf.mxu0
      %v1238 = vadd.f32 %v1191, %v1237
      %1239 = vmatmul.f32.gmra.mxu0 %v493
      %v1240 = vpop.f32.mrf.mxu0
      %v1241 = vadd.f32 %v1194, %v1240
      %1242 = vmatmul.f32.gmra.mxu0 %v495
      %v1243 = vpop.f32.mrf.mxu0
      %v1244 = vadd.f32 %v1197, %v1243
      %1245 = vdwg.mxu0
      %1246 = vmatpush.msra.mxu0 %v665
      %1247 = vmatpush.msra.mxu0 %v659
      %1248 = vmatpush.msra.mxu0 %v653
      %1249 = vmatpush.msra.mxu0 %v647
      %1250 = vmatpush.msra.mxu0 %v641
      %1251 = vmatpush.msra.mxu0 %v635
      %1252 = vmatpush.msra.mxu0 %v629
      %1253 = vmatpush.msra.mxu0 %v623
      %1254 = vmatpush.msra.mxu0 %v617
      %1255 = vmatpush.msra.mxu0 %v611
      %1256 = vmatpush.msra.mxu0 %v605
      %1257 = vmatpush.msra.mxu0 %v599
      %1258 = vmatpush.msra.mxu0 %v593
      %1259 = vmatpush.msra.mxu0 %v587
      %1260 = vmatpush.msra.mxu0 %v581
      %1261 = vmatpush.msra.mxu0 %v575
      %1262 = vmatmul.f32.gmra.mxu0 %v476
      %v1263 = vpop.f32.mrf.mxu0
      %v1264 = vadd.f32 %v769, %v1263
      %1265 = vmatmul.f32.gmra.mxu0 %v478
      %v1266 = vpop.f32.mrf.mxu0
      %v1267 = vadd.f32 %v769, %v1266
      %1268 = vmatmul.f32.gmra.mxu0 %v480
      %v1269 = vpop.f32.mrf.mxu0
      %v1270 = vadd.f32 %v769, %v1269
      %1271 = vmatmul.f32.gmra.mxu0 %v482
      %v1272 = vpop.f32.mrf.mxu0
      %v1273 = vadd.f32 %v769, %v1272
      %1274 = vmatmul.f32.gmra.mxu0 %v484
      %v1275 = vpop.f32.mrf.mxu0
      %v1276 = vadd.f32 %v769, %v1275
      %1277 = vmatmul.f32.gmra.mxu0 %v486
      %v1278 = vpop.f32.mrf.mxu0
      %v1279 = vadd.f32 %v769, %v1278
      %1280 = vmatmul.f32.gmra.mxu0 %v488
      %v1281 = vpop.f32.mrf.mxu0
      %v1282 = vadd.f32 %v769, %v1281
      %1283 = vmatmul.f32.gmra.mxu0 %v490
      %v1284 = vpop.f32.mrf.mxu0
      %v1285 = vadd.f32 %v769, %v1284
      %1286 = vmatmul.f32.gmra.mxu0 %v492
      %v1287 = vpop.f32.mrf.mxu0
      %v1288 = vadd.f32 %v769, %v1287
      %1289 = vmatmul.f32.gmra.mxu0 %v494
      %v1290 = vpop.f32.mrf.mxu0
      %v1291 = vadd.f32 %v769, %v1290
      %1292 = vdwg.mxu0
      %1293 = vmatpush.msra.mxu0 %v761
      %1294 = vmatpush.msra.mxu0 %v755
      %1295 = vmatpush.msra.mxu0 %v749
      %1296 = vmatpush.msra.mxu0 %v743
      %1297 = vmatpush.msra.mxu0 %v737
      %1298 = vmatpush.msra.mxu0 %v731
      %1299 = vmatpush.msra.mxu0 %v725
      %1300 = vmatpush.msra.mxu0 %v719
      %1301 = vmatpush.msra.mxu0 %v713
      %1302 = vmatpush.msra.mxu0 %v707
      %1303 = vmatpush.msra.mxu0 %v701
      %1304 = vmatpush.msra.mxu0 %v695
      %1305 = vmatpush.msra.mxu0 %v689
      %1306 = vmatpush.msra.mxu0 %v683
      %1307 = vmatpush.msra.mxu0 %v677
      %1308 = vmatpush.msra.mxu0 %v671
      %1309 = vmatmul.f32.gmra.mxu0 %v477
      %v1310 = vpop.f32.mrf.mxu0
      %v1311 = vadd.f32 %v1264, %v1310
      %1312 = vmatmul.f32.gmra.mxu0 %v479
      %v1313 = vpop.f32.mrf.mxu0
      %v1314 = vadd.f32 %v1267, %v1313
      %1315 = vmatmul.f32.gmra.mxu0 %v481
      %v1316 = vpop.f32.mrf.mxu0
      %v1317 = vadd.f32 %v1270, %v1316
      %1318 = vmatmul.f32.gmra.mxu0 %v483
      %v1319 = vpop.f32.mrf.mxu0
      %v1320 = vadd.f32 %v1273, %v1319
      %1321 = vmatmul.f32.gmra.mxu0 %v485
      %v1322 = vpop.f32.mrf.mxu0
      %v1323 = vadd.f32 %v1276, %v1322
      %1324 = vmatmul.f32.gmra.mxu0 %v487
      %v1325 = vpop.f32.mrf.mxu0
      %v1326 = vadd.f32 %v1279, %v1325
      %1327 = vmatmul.f32.gmra.mxu0 %v489
      %v1328 = vpop.f32.mrf.mxu0
      %v1329 = vadd.f32 %v1282, %v1328
      %1330 = vmatmul.f32.gmra.mxu0 %v491
      %v1331 = vpop.f32.mrf.mxu0
      %v1332 = vadd.f32 %v1285, %v1331
      %1333 = vmatmul.f32.gmra.mxu0 %v493
      %v1334 = vpop.f32.mrf.mxu0
      %v1335 = vadd.f32 %v1288, %v1334
      %1336 = vmatmul.f32.gmra.mxu0 %v495
      %v1337 = vpop.f32.mrf.mxu0
      %v1338 = vadd.f32 %v1291, %v1337
      %1339 = vdwg.mxu0
      %vm1340 = vcmask 261120
      %v1342 = vsel %vm1340, %v841, 0
      %v1345 = vsel %vm1340, %v844, 0
      %v1348 = vsel %vm1340, %v847, 0
      %v1351 = vsel %vm1340, %v850, 0
      %v1354 = vsel %vm1340, %v853, 0
      %v1357 = vsel %vm1340, %v856, 0
      %v1360 = vsel %vm1340, %v859, 0
      %v1363 = vsel %vm1340, %v862, 0
      %v1366 = vsel %vm1340, %v865, 0
      %v1369 = vsel %vm1340, %v868, 0
      %v1372 = vsel %vm1340, %v1029, 0
      %v1375 = vsel %vm1340, %v1032, 0
      %v1378 = vsel %vm1340, %v1035, 0
      %v1381 = vsel %vm1340, %v1038, 0
      %v1384 = vsel %vm1340, %v1041, 0
      %v1387 = vsel %vm1340, %v1044, 0
      %v1390 = vsel %vm1340, %v1047, 0
      %v1393 = vsel %vm1340, %v1050, 0
      %v1396 = vsel %vm1340, %v1053, 0
      %v1399 = vsel %vm1340, %v1056, 0
      %1401 = vmatpush.xpose.msra.mxu0 0.0
      %1402 = vmatpush.xpose.msra.mxu0 0.0
      %1403 = vmatpush.xpose.msra.mxu0 0.0
      %1404 = vmatpush.xpose.msra.mxu0 0.0
      %1405 = vmatpush.xpose.msra.mxu0 0.0
      %1406 = vmatpush.xpose.msra.mxu0 0.0
      %1407 = vmatpush.xpose.msra.mxu0 %v1399
      %1408 = vmatpush.xpose.msra.mxu0 %v1396
      %1409 = vmatpush.xpose.msra.mxu0 %v1393
      %1410 = vmatpush.xpose.msra.mxu0 %v1390
      %1411 = vmatpush.xpose.msra.mxu0 %v1387
      %1412 = vmatpush.xpose.msra.mxu0 %v1384
      %1413 = vmatpush.xpose.msra.mxu0 %v1381
      %1414 = vmatpush.xpose.msra.mxu0 %v1378
      %1415 = vmatpush.xpose.msra.mxu0 %v1375
      %1416 = vmatpush.xpose.msra.mxu0 %v1372
      %1417 = vmatmul.f32.gmra.mxu0 %v1342
      %v1418 = vpop.f32.mrf.mxu0
      %v1419 = vadd.f32 %v496, %v1418
      %1420 = vmatmul.f32.gmra.mxu0 %v1345
      %v1421 = vpop.f32.mrf.mxu0
      %v1422 = vadd.f32 %v497, %v1421
      %1423 = vmatmul.f32.gmra.mxu0 %v1348
      %v1424 = vpop.f32.mrf.mxu0
      %v1425 = vadd.f32 %v498, %v1424
      %1426 = vmatmul.f32.gmra.mxu0 %v1351
      %v1427 = vpop.f32.mrf.mxu0
      %v1428 = vadd.f32 %v499, %v1427
      %1429 = vmatmul.f32.gmra.mxu0 %v1354
      %v1430 = vpop.f32.mrf.mxu0
      %v1431 = vadd.f32 %v500, %v1430
      %1432 = vmatmul.f32.gmra.mxu0 %v1357
      %v1433 = vpop.f32.mrf.mxu0
      %v1434 = vadd.f32 %v501, %v1433
      %1435 = vmatmul.f32.gmra.mxu0 %v1360
      %v1436 = vpop.f32.mrf.mxu0
      %v1437 = vadd.f32 %v502, %v1436
      %1438 = vmatmul.f32.gmra.mxu0 %v1363
      %v1439 = vpop.f32.mrf.mxu0
      %v1440 = vadd.f32 %v503, %v1439
      %1441 = vmatmul.f32.gmra.mxu0 %v1366
      %v1442 = vpop.f32.mrf.mxu0
      %v1443 = vadd.f32 %v504, %v1442
      %1444 = vmatmul.f32.gmra.mxu0 %v1369
      %v1445 = vpop.f32.mrf.mxu0
      %v1446 = vadd.f32 %v505, %v1445
      %1447 = vdwg.mxu0
      %vm1448 = vcmask 654336
      %v1449 = vsel %vm1448, %v1419, -inf
      %1450 = vmax.xlane.f32.xlu0 %v1449
      %v1451 = vpop.xlane.xlu0 %1450
      %v1452 = vsel %vm1448, %v1422, -inf
      %1453 = vmax.xlane.f32.xlu0 %v1452
      %v1454 = vpop.xlane.xlu0 %1453
      %v1455 = vsel %vm1448, %v1425, -inf
      %1456 = vmax.xlane.f32.xlu0 %v1455
      %v1457 = vpop.xlane.xlu0 %1456
      %v1458 = vsel %vm1448, %v1428, -inf
      %1459 = vmax.xlane.f32.xlu0 %v1458
      %v1460 = vpop.xlane.xlu0 %1459
      %v1461 = vsel %vm1448, %v1431, -inf
      %1462 = vmax.xlane.f32.xlu0 %v1461
      %v1463 = vpop.xlane.xlu0 %1462
      %v1464 = vsel %vm1448, %v1434, -inf
      %1465 = vmax.xlane.f32.xlu0 %v1464
      %v1466 = vpop.xlane.xlu0 %1465
      %v1467 = vsel %vm1448, %v1437, -inf
      %1468 = vmax.xlane.f32.xlu0 %v1467
      %v1469 = vpop.xlane.xlu0 %1468
      %v1470 = vsel %vm1448, %v1440, -inf
      %1471 = vmax.xlane.f32.xlu0 %v1470
      %v1472 = vpop.xlane.xlu0 %1471
      %v1473 = vsel %vm1448, %v1443, -inf
      %1474 = vmax.xlane.f32.xlu0 %v1473
      %v1475 = vpop.xlane.xlu0 %1474
      %v1476 = vsel %vm1448, %v1446, -inf
      %1477 = vmax.xlane.f32.xlu0 %v1476
      %v1478 = vpop.xlane.xlu0 %1477
      %v1479 = vsub.f32 %v1419, %v1451
      %v1480 = vsub.f32 %v1422, %v1454
      %v1481 = vsub.f32 %v1425, %v1457
      %v1482 = vsub.f32 %v1428, %v1460
      %v1483 = vsub.f32 %v1431, %v1463
      %v1484 = vsub.f32 %v1434, %v1466
      %v1485 = vsub.f32 %v1437, %v1469
      %v1486 = vsub.f32 %v1440, %v1472
      %v1487 = vsub.f32 %v1443, %v1475
      %v1488 = vsub.f32 %v1446, %v1478
      %v1489 = vmul.f32 %v1479, 1.442695
      %v1490 = vpow.pop %v1489
      %v1491 = vmul.f32 %v1480, 1.442695
      %v1492 = vpow.pop %v1491
      %v1493 = vmul.f32 %v1481, 1.442695
      %v1494 = vpow.pop %v1493
      %v1495 = vmul.f32 %v1482, 1.442695
      %v1496 = vpow.pop %v1495
      %v1497 = vmul.f32 %v1483, 1.442695
      %v1498 = vpow.pop %v1497
      %v1499 = vmul.f32 %v1484, 1.442695
      %v1500 = vpow.pop %v1499
      %v1501 = vmul.f32 %v1485, 1.442695
      %v1502 = vpow.pop %v1501
      %v1503 = vmul.f32 %v1486, 1.442695
      %v1504 = vpow.pop %v1503
      %v1505 = vmul.f32 %v1487, 1.442695
      %v1506 = vpow.pop %v1505
      %v1507 = vmul.f32 %v1488, 1.442695
      %v1508 = vpow.pop %v1507
      %v1509 = vsel %vm1448, %v1490, 0.0
      %1510 = vadd.xlane.f32.xlu0 %v1509
      %v1511 = vpop.xlane.xlu0 %1510
      %v1512 = vsel %vm1448, %v1492, 0.0
      %1513 = vadd.xlane.f32.xlu0 %v1512
      %v1514 = vpop.xlane.xlu0 %1513
      %v1515 = vsel %vm1448, %v1494, 0.0
      %1516 = vadd.xlane.f32.xlu0 %v1515
      %v1517 = vpop.xlane.xlu0 %1516
      %v1518 = vsel %vm1448, %v1496, 0.0
      %1519 = vadd.xlane.f32.xlu0 %v1518
      %v1520 = vpop.xlane.xlu0 %1519
      %v1521 = vsel %vm1448, %v1498, 0.0
      %1522 = vadd.xlane.f32.xlu0 %v1521
      %v1523 = vpop.xlane.xlu0 %1522
      %v1524 = vsel %vm1448, %v1500, 0.0
      %1525 = vadd.xlane.f32.xlu0 %v1524
      %v1526 = vpop.xlane.xlu0 %1525
      %v1527 = vsel %vm1448, %v1502, 0.0
      %1528 = vadd.xlane.f32.xlu0 %v1527
      %v1529 = vpop.xlane.xlu0 %1528
      %v1530 = vsel %vm1448, %v1504, 0.0
      %1531 = vadd.xlane.f32.xlu0 %v1530
      %v1532 = vpop.xlane.xlu0 %1531
      %v1533 = vsel %vm1448, %v1506, 0.0
      %1534 = vadd.xlane.f32.xlu0 %v1533
      %v1535 = vpop.xlane.xlu0 %1534
      %v1536 = vsel %vm1448, %v1508, 0.0
      %1537 = vadd.xlane.f32.xlu0 %v1536
      %v1538 = vpop.xlane.xlu0 %1537
      %v1539 = vrcp.pop %v1511
      %v1540 = vrcp.pop %v1514
      %v1541 = vrcp.pop %v1517
      %v1542 = vrcp.pop %v1520
      %v1543 = vrcp.pop %v1523
      %v1544 = vrcp.pop %v1526
      %v1545 = vrcp.pop %v1529
      %v1546 = vrcp.pop %v1532
      %v1547 = vrcp.pop %v1535
      %v1548 = vrcp.pop %v1538
      %v1549 = vmul.f32 %v1490, %v1539
      %v1550 = vmul.f32 %v1492, %v1540
      %v1551 = vmul.f32 %v1494, %v1541
      %v1552 = vmul.f32 %v1496, %v1542
      %v1553 = vmul.f32 %v1498, %v1543
      %v1554 = vmul.f32 %v1500, %v1544
      %v1555 = vmul.f32 %v1502, %v1545
      %v1556 = vmul.f32 %v1504, %v1546
      %v1557 = vmul.f32 %v1506, %v1547
      %v1558 = vmul.f32 %v1508, %v1548
      %v1560 = vsel %vm1448, %v1549, 0
      %v1563 = vsel %vm1448, %v1550, 0
      %v1566 = vsel %vm1448, %v1551, 0
      %v1569 = vsel %vm1448, %v1552, 0
      %v1572 = vsel %vm1448, %v1553, 0
      %v1575 = vsel %vm1448, %v1554, 0
      %v1578 = vsel %vm1448, %v1555, 0
      %v1581 = vsel %vm1448, %v1556, 0
      %v1584 = vsel %vm1448, %v1557, 0
      %v1587 = vsel %vm1448, %v1558, 0
      %1589 = vmatpush.msra.mxu0 0.0
      %1590 = vmatpush.msra.mxu0 0.0
      %1591 = vmatpush.msra.mxu0 0.0
      %1592 = vmatpush.msra.mxu0 0.0
      %1593 = vmatpush.msra.mxu0 0.0
      %1594 = vmatpush.msra.mxu0 0.0
      %1595 = vmatpush.msra.mxu0 %v1244
      %1596 = vmatpush.msra.mxu0 %v1241
      %1597 = vmatpush.msra.mxu0 %v1238
      %1598 = vmatpush.msra.mxu0 %v1235
      %1599 = vmatpush.msra.mxu0 %v1232
      %1600 = vmatpush.msra.mxu0 %v1229
      %1601 = vmatpush.msra.mxu0 %v1226
      %1602 = vmatpush.msra.mxu0 %v1223
      %1603 = vmatpush.msra.mxu0 %v1220
      %1604 = vmatpush.msra.mxu0 %v1217
      %1605 = vmatmul.f32.gmra.mxu0 %v1560
      %v1606 = vpop.f32.mrf.mxu0
      %v1607 = vadd.f32 0.0, %v1606
      %1608 = vmatmul.f32.gmra.mxu0 %v1563
      %v1609 = vpop.f32.mrf.mxu0
      %v1610 = vadd.f32 0.0, %v1609
      %1611 = vmatmul.f32.gmra.mxu0 %v1566
      %v1612 = vpop.f32.mrf.mxu0
      %v1613 = vadd.f32 0.0, %v1612
      %1614 = vmatmul.f32.gmra.mxu0 %v1569
      %v1615 = vpop.f32.mrf.mxu0
      %v1616 = vadd.f32 0.0, %v1615
      %1617 = vmatmul.f32.gmra.mxu0 %v1572
      %v1618 = vpop.f32.mrf.mxu0
      %v1619 = vadd.f32 0.0, %v1618
      %1620 = vmatmul.f32.gmra.mxu0 %v1575
      %v1621 = vpop.f32.mrf.mxu0
      %v1622 = vadd.f32 0.0, %v1621
      %1623 = vmatmul.f32.gmra.mxu0 %v1578
      %v1624 = vpop.f32.mrf.mxu0
      %v1625 = vadd.f32 0.0, %v1624
      %1626 = vmatmul.f32.gmra.mxu0 %v1581
      %v1627 = vpop.f32.mrf.mxu0
      %v1628 = vadd.f32 0.0, %v1627
      %1629 = vmatmul.f32.gmra.mxu0 %v1584
      %v1630 = vpop.f32.mrf.mxu0
      %v1631 = vadd.f32 0.0, %v1630
      %1632 = vmatmul.f32.gmra.mxu0 %v1587
      %v1633 = vpop.f32.mrf.mxu0
      %v1634 = vadd.f32 0.0, %v1633
      %1635 = vdwg.mxu0
      %1636 = vrot.lane.b32.xlu0 %v841, 96
      %v1637 = vpop.permute.xlu0 %1636
      %1638 = vrot.lane.b32.xlu0 %v844, 96
      %v1639 = vpop.permute.xlu0 %1638
      %1640 = vrot.lane.b32.xlu0 %v847, 96
      %v1641 = vpop.permute.xlu0 %1640
      %1642 = vrot.lane.b32.xlu0 %v850, 96
      %v1643 = vpop.permute.xlu0 %1642
      %1644 = vrot.lane.b32.xlu0 %v853, 96
      %v1645 = vpop.permute.xlu0 %1644
      %1646 = vrot.lane.b32.xlu0 %v856, 96
      %v1647 = vpop.permute.xlu0 %1646
      %1648 = vrot.lane.b32.xlu0 %v859, 96
      %v1649 = vpop.permute.xlu0 %1648
      %1650 = vrot.lane.b32.xlu0 %v862, 96
      %v1651 = vpop.permute.xlu0 %1650
      %1652 = vrot.lane.b32.xlu0 %v865, 96
      %v1653 = vpop.permute.xlu0 %1652
      %1654 = vrot.lane.b32.xlu0 %v868, 96
      %v1655 = vpop.permute.xlu0 %1654
      %1656 = vrot.lane.b32.xlu0 %v1029, 96
      %v1657 = vpop.permute.xlu0 %1656
      %1658 = vrot.lane.b32.xlu0 %v1032, 96
      %v1659 = vpop.permute.xlu0 %1658
      %1660 = vrot.lane.b32.xlu0 %v1035, 96
      %v1661 = vpop.permute.xlu0 %1660
      %1662 = vrot.lane.b32.xlu0 %v1038, 96
      %v1663 = vpop.permute.xlu0 %1662
      %1664 = vrot.lane.b32.xlu0 %v1041, 96
      %v1665 = vpop.permute.xlu0 %1664
      %1666 = vrot.lane.b32.xlu0 %v1044, 96
      %v1667 = vpop.permute.xlu0 %1666
      %1668 = vrot.lane.b32.xlu0 %v1047, 96
      %v1669 = vpop.permute.xlu0 %1668
      %1670 = vrot.lane.b32.xlu0 %v1050, 96
      %v1671 = vpop.permute.xlu0 %1670
      %1672 = vrot.lane.b32.xlu0 %v1053, 96
      %v1673 = vpop.permute.xlu0 %1672
      %1674 = vrot.lane.b32.xlu0 %v1056, 96
      %v1675 = vpop.permute.xlu0 %1674
      %v1676 = vsel %vm1340, %v1637, 0
      %v1678 = vsel %vm1340, %v1639, 0
      %v1680 = vsel %vm1340, %v1641, 0
      %v1682 = vsel %vm1340, %v1643, 0
      %v1684 = vsel %vm1340, %v1645, 0
      %v1686 = vsel %vm1340, %v1647, 0
      %v1688 = vsel %vm1340, %v1649, 0
      %v1690 = vsel %vm1340, %v1651, 0
      %v1692 = vsel %vm1340, %v1653, 0
      %v1694 = vsel %vm1340, %v1655, 0
      %v1696 = vsel %vm1340, %v1657, 0
      %v1698 = vsel %vm1340, %v1659, 0
      %v1700 = vsel %vm1340, %v1661, 0
      %v1702 = vsel %vm1340, %v1663, 0
      %v1704 = vsel %vm1340, %v1665, 0
      %v1706 = vsel %vm1340, %v1667, 0
      %v1708 = vsel %vm1340, %v1669, 0
      %v1710 = vsel %vm1340, %v1671, 0
      %v1712 = vsel %vm1340, %v1673, 0
      %v1714 = vsel %vm1340, %v1675, 0
      %1716 = vmatpush.xpose.msra.mxu0 0.0
      %1717 = vmatpush.xpose.msra.mxu0 0.0
      %1718 = vmatpush.xpose.msra.mxu0 0.0
      %1719 = vmatpush.xpose.msra.mxu0 0.0
      %1720 = vmatpush.xpose.msra.mxu0 0.0
      %1721 = vmatpush.xpose.msra.mxu0 0.0
      %1722 = vmatpush.xpose.msra.mxu0 %v1714
      %1723 = vmatpush.xpose.msra.mxu0 %v1712
      %1724 = vmatpush.xpose.msra.mxu0 %v1710
      %1725 = vmatpush.xpose.msra.mxu0 %v1708
      %1726 = vmatpush.xpose.msra.mxu0 %v1706
      %1727 = vmatpush.xpose.msra.mxu0 %v1704
      %1728 = vmatpush.xpose.msra.mxu0 %v1702
      %1729 = vmatpush.xpose.msra.mxu0 %v1700
      %1730 = vmatpush.xpose.msra.mxu0 %v1698
      %1731 = vmatpush.xpose.msra.mxu0 %v1696
      %1732 = vmatmul.f32.gmra.mxu0 %v1676
      %v1733 = vpop.f32.mrf.mxu0
      %v1734 = vadd.f32 %v496, %v1733
      %1735 = vmatmul.f32.gmra.mxu0 %v1678
      %v1736 = vpop.f32.mrf.mxu0
      %v1737 = vadd.f32 %v497, %v1736
      %1738 = vmatmul.f32.gmra.mxu0 %v1680
      %v1739 = vpop.f32.mrf.mxu0
      %v1740 = vadd.f32 %v498, %v1739
      %1741 = vmatmul.f32.gmra.mxu0 %v1682
      %v1742 = vpop.f32.mrf.mxu0
      %v1743 = vadd.f32 %v499, %v1742
      %1744 = vmatmul.f32.gmra.mxu0 %v1684
      %v1745 = vpop.f32.mrf.mxu0
      %v1746 = vadd.f32 %v500, %v1745
      %1747 = vmatmul.f32.gmra.mxu0 %v1686
      %v1748 = vpop.f32.mrf.mxu0
      %v1749 = vadd.f32 %v501, %v1748
      %1750 = vmatmul.f32.gmra.mxu0 %v1688
      %v1751 = vpop.f32.mrf.mxu0
      %v1752 = vadd.f32 %v502, %v1751
      %1753 = vmatmul.f32.gmra.mxu0 %v1690
      %v1754 = vpop.f32.mrf.mxu0
      %v1755 = vadd.f32 %v503, %v1754
      %1756 = vmatmul.f32.gmra.mxu0 %v1692
      %v1757 = vpop.f32.mrf.mxu0
      %v1758 = vadd.f32 %v504, %v1757
      %1759 = vmatmul.f32.gmra.mxu0 %v1694
      %v1760 = vpop.f32.mrf.mxu0
      %v1761 = vadd.f32 %v505, %v1760
      %1762 = vdwg.mxu0
      %v1763 = vsel %vm1448, %v1734, -inf
      %1764 = vmax.xlane.f32.xlu0 %v1763
      %v1765 = vpop.xlane.xlu0 %1764
      %v1766 = vsel %vm1448, %v1737, -inf
      %1767 = vmax.xlane.f32.xlu0 %v1766
      %v1768 = vpop.xlane.xlu0 %1767
      %v1769 = vsel %vm1448, %v1740, -inf
      %1770 = vmax.xlane.f32.xlu0 %v1769
      %v1771 = vpop.xlane.xlu0 %1770
      %v1772 = vsel %vm1448, %v1743, -inf
      %1773 = vmax.xlane.f32.xlu0 %v1772
      %v1774 = vpop.xlane.xlu0 %1773
      %v1775 = vsel %vm1448, %v1746, -inf
      %1776 = vmax.xlane.f32.xlu0 %v1775
      %v1777 = vpop.xlane.xlu0 %1776
      %v1778 = vsel %vm1448, %v1749, -inf
      %1779 = vmax.xlane.f32.xlu0 %v1778
      %v1780 = vpop.xlane.xlu0 %1779
      %v1781 = vsel %vm1448, %v1752, -inf
      %1782 = vmax.xlane.f32.xlu0 %v1781
      %v1783 = vpop.xlane.xlu0 %1782
      %v1784 = vsel %vm1448, %v1755, -inf
      %1785 = vmax.xlane.f32.xlu0 %v1784
      %v1786 = vpop.xlane.xlu0 %1785
      %v1787 = vsel %vm1448, %v1758, -inf
      %1788 = vmax.xlane.f32.xlu0 %v1787
      %v1789 = vpop.xlane.xlu0 %1788
      %v1790 = vsel %vm1448, %v1761, -inf
      %1791 = vmax.xlane.f32.xlu0 %v1790
      %v1792 = vpop.xlane.xlu0 %1791
      %v1793 = vsub.f32 %v1734, %v1765
      %v1794 = vsub.f32 %v1737, %v1768
      %v1795 = vsub.f32 %v1740, %v1771
      %v1796 = vsub.f32 %v1743, %v1774
      %v1797 = vsub.f32 %v1746, %v1777
      %v1798 = vsub.f32 %v1749, %v1780
      %v1799 = vsub.f32 %v1752, %v1783
      %v1800 = vsub.f32 %v1755, %v1786
      %v1801 = vsub.f32 %v1758, %v1789
      %v1802 = vsub.f32 %v1761, %v1792
      %v1803 = vmul.f32 %v1793, 1.442695
      %v1804 = vpow.pop %v1803
      %v1805 = vmul.f32 %v1794, 1.442695
      %v1806 = vpow.pop %v1805
      %v1807 = vmul.f32 %v1795, 1.442695
      %v1808 = vpow.pop %v1807
      %v1809 = vmul.f32 %v1796, 1.442695
      %v1810 = vpow.pop %v1809
      %v1811 = vmul.f32 %v1797, 1.442695
      %v1812 = vpow.pop %v1811
      %v1813 = vmul.f32 %v1798, 1.442695
      %v1814 = vpow.pop %v1813
      %v1815 = vmul.f32 %v1799, 1.442695
      %v1816 = vpow.pop %v1815
      %v1817 = vmul.f32 %v1800, 1.442695
      %v1818 = vpow.pop %v1817
      %v1819 = vmul.f32 %v1801, 1.442695
      %v1820 = vpow.pop %v1819
      %v1821 = vmul.f32 %v1802, 1.442695
      %v1822 = vpow.pop %v1821
      %v1823 = vsel %vm1448, %v1804, 0.0
      %1824 = vadd.xlane.f32.xlu0 %v1823
      %v1825 = vpop.xlane.xlu0 %1824
      %v1826 = vsel %vm1448, %v1806, 0.0
      %1827 = vadd.xlane.f32.xlu0 %v1826
      %v1828 = vpop.xlane.xlu0 %1827
      %v1829 = vsel %vm1448, %v1808, 0.0
      %1830 = vadd.xlane.f32.xlu0 %v1829
      %v1831 = vpop.xlane.xlu0 %1830
      %v1832 = vsel %vm1448, %v1810, 0.0
      %1833 = vadd.xlane.f32.xlu0 %v1832
      %v1834 = vpop.xlane.xlu0 %1833
      %v1835 = vsel %vm1448, %v1812, 0.0
      %1836 = vadd.xlane.f32.xlu0 %v1835
      %v1837 = vpop.xlane.xlu0 %1836
      %v1838 = vsel %vm1448, %v1814, 0.0
      %1839 = vadd.xlane.f32.xlu0 %v1838
      %v1840 = vpop.xlane.xlu0 %1839
      %v1841 = vsel %vm1448, %v1816, 0.0
      %1842 = vadd.xlane.f32.xlu0 %v1841
      %v1843 = vpop.xlane.xlu0 %1842
      %v1844 = vsel %vm1448, %v1818, 0.0
      %1845 = vadd.xlane.f32.xlu0 %v1844
      %v1846 = vpop.xlane.xlu0 %1845
      %v1847 = vsel %vm1448, %v1820, 0.0
      %1848 = vadd.xlane.f32.xlu0 %v1847
      %v1849 = vpop.xlane.xlu0 %1848
      %v1850 = vsel %vm1448, %v1822, 0.0
      %1851 = vadd.xlane.f32.xlu0 %v1850
      %v1852 = vpop.xlane.xlu0 %1851
      %v1853 = vrcp.pop %v1825
      %v1854 = vrcp.pop %v1828
      %v1855 = vrcp.pop %v1831
      %v1856 = vrcp.pop %v1834
      %v1857 = vrcp.pop %v1837
      %v1858 = vrcp.pop %v1840
      %v1859 = vrcp.pop %v1843
      %v1860 = vrcp.pop %v1846
      %v1861 = vrcp.pop %v1849
      %v1862 = vrcp.pop %v1852
      %v1863 = vmul.f32 %v1804, %v1853
      %v1864 = vmul.f32 %v1806, %v1854
      %v1865 = vmul.f32 %v1808, %v1855
      %v1866 = vmul.f32 %v1810, %v1856
      %v1867 = vmul.f32 %v1812, %v1857
      %v1868 = vmul.f32 %v1814, %v1858
      %v1869 = vmul.f32 %v1816, %v1859
      %v1870 = vmul.f32 %v1818, %v1860
      %v1871 = vmul.f32 %v1820, %v1861
      %v1872 = vmul.f32 %v1822, %v1862
      %1883 = vrot.lane.b32.xlu0 %v1217, 96
      %v1884 = vpop.permute.xlu0 %1883
      %1885 = vrot.lane.b32.xlu0 %v1220, 96
      %v1886 = vpop.permute.xlu0 %1885
      %1887 = vrot.lane.b32.xlu0 %v1223, 96
      %v1888 = vpop.permute.xlu0 %1887
      %1889 = vrot.lane.b32.xlu0 %v1226, 96
      %v1890 = vpop.permute.xlu0 %1889
      %1891 = vrot.lane.b32.xlu0 %v1229, 96
      %v1892 = vpop.permute.xlu0 %1891
      %1893 = vrot.lane.b32.xlu0 %v1232, 96
      %v1894 = vpop.permute.xlu0 %1893
      %1895 = vrot.lane.b32.xlu0 %v1235, 96
      %v1896 = vpop.permute.xlu0 %1895
      %1897 = vrot.lane.b32.xlu0 %v1238, 96
      %v1898 = vpop.permute.xlu0 %1897
      %1899 = vrot.lane.b32.xlu0 %v1241, 96
      %v1900 = vpop.permute.xlu0 %1899
      %1901 = vrot.lane.b32.xlu0 %v1244, 96
      %v1902 = vpop.permute.xlu0 %1901
      %v1914 = vsel %vm1448, %v1863, 0
      %v1917 = vsel %vm1448, %v1864, 0
      %v1920 = vsel %vm1448, %v1865, 0
      %v1923 = vsel %vm1448, %v1866, 0
      %v1926 = vsel %vm1448, %v1867, 0
      %v1929 = vsel %vm1448, %v1868, 0
      %v1932 = vsel %vm1448, %v1869, 0
      %v1935 = vsel %vm1448, %v1870, 0
      %v1938 = vsel %vm1448, %v1871, 0
      %v1941 = vsel %vm1448, %v1872, 0
      %1943 = vmatpush.msra.mxu0 0.0
      %1944 = vmatpush.msra.mxu0 0.0
      %1945 = vmatpush.msra.mxu0 0.0
      %1946 = vmatpush.msra.mxu0 0.0
      %1947 = vmatpush.msra.mxu0 0.0
      %1948 = vmatpush.msra.mxu0 0.0
      %1949 = vmatpush.msra.mxu0 %v1902
      %1950 = vmatpush.msra.mxu0 %v1900
      %1951 = vmatpush.msra.mxu0 %v1898
      %1952 = vmatpush.msra.mxu0 %v1896
      %1953 = vmatpush.msra.mxu0 %v1894
      %1954 = vmatpush.msra.mxu0 %v1892
      %1955 = vmatpush.msra.mxu0 %v1890
      %1956 = vmatpush.msra.mxu0 %v1888
      %1957 = vmatpush.msra.mxu0 %v1886
      %1958 = vmatpush.msra.mxu0 %v1884
      %1959 = vmatmul.f32.gmra.mxu0 %v1914
      %v1960 = vpop.f32.mrf.mxu0
      %v1961 = vadd.f32 0.0, %v1960
      %1962 = vmatmul.f32.gmra.mxu0 %v1917
      %v1963 = vpop.f32.mrf.mxu0
      %v1964 = vadd.f32 0.0, %v1963
      %1965 = vmatmul.f32.gmra.mxu0 %v1920
      %v1966 = vpop.f32.mrf.mxu0
      %v1967 = vadd.f32 0.0, %v1966
      %1968 = vmatmul.f32.gmra.mxu0 %v1923
      %v1969 = vpop.f32.mrf.mxu0
      %v1970 = vadd.f32 0.0, %v1969
      %1971 = vmatmul.f32.gmra.mxu0 %v1926
      %v1972 = vpop.f32.mrf.mxu0
      %v1973 = vadd.f32 0.0, %v1972
      %1974 = vmatmul.f32.gmra.mxu0 %v1929
      %v1975 = vpop.f32.mrf.mxu0
      %v1976 = vadd.f32 0.0, %v1975
      %1977 = vmatmul.f32.gmra.mxu0 %v1932
      %v1978 = vpop.f32.mrf.mxu0
      %v1979 = vadd.f32 0.0, %v1978
      %1980 = vmatmul.f32.gmra.mxu0 %v1935
      %v1981 = vpop.f32.mrf.mxu0
      %v1982 = vadd.f32 0.0, %v1981
      %1983 = vmatmul.f32.gmra.mxu0 %v1938
      %v1984 = vpop.f32.mrf.mxu0
      %v1985 = vadd.f32 0.0, %v1984
      %1986 = vmatmul.f32.gmra.mxu0 %v1941
      %v1987 = vpop.f32.mrf.mxu0
      %v1988 = vadd.f32 0.0, %v1987
      %1989 = vdwg.mxu0
      %v1991 = vsel %vm1340, %v1961, 0
      %v1994 = vsel %vm1340, %v1964, 0
      %v1997 = vsel %vm1340, %v1967, 0
      %v2000 = vsel %vm1340, %v1970, 0
      %v2003 = vsel %vm1340, %v1973, 0
      %v2006 = vsel %vm1340, %v1976, 0
      %v2009 = vsel %vm1340, %v1979, 0
      %v2012 = vsel %vm1340, %v1982, 0
      %v2015 = vsel %vm1340, %v1985, 0
      %v2018 = vsel %vm1340, %v1988, 0
      %2020 = vmatpush.msra.mxu0 0.0
      %2021 = vmatpush.msra.mxu0 0.0
      %2022 = vmatpush.msra.mxu0 0.0
      %2023 = vmatpush.msra.mxu0 0.0
      %2024 = vmatpush.msra.mxu0 0.0
      %2025 = vmatpush.msra.mxu0 0.0
      %2026 = vmatpush.msra.mxu0 0.0
      %2027 = vmatpush.msra.mxu0 0.0
      %2028 = vmatpush.msra.mxu0 0.0
      %2029 = vmatpush.msra.mxu0 0.0
      %2030 = vmatpush.msra.mxu0 0.0
      %2031 = vmatpush.msra.mxu0 0.0
      %2032 = vmatpush.msra.mxu0 %v520
      %2033 = vmatpush.msra.mxu0 %v518
      %2034 = vmatpush.msra.mxu0 %v516
      %2035 = vmatpush.msra.mxu0 %v514
      %2036 = vmatmul.f32.gmra.mxu0 %v1991
      %v2037 = vpop.f32.mrf.mxu0
      %v2038 = vadd.f32 0.0, %v2037
      %2039 = vmatmul.f32.gmra.mxu0 %v1994
      %v2040 = vpop.f32.mrf.mxu0
      %v2041 = vadd.f32 0.0, %v2040
      %2042 = vmatmul.f32.gmra.mxu0 %v1997
      %v2043 = vpop.f32.mrf.mxu0
      %v2044 = vadd.f32 0.0, %v2043
      %2045 = vmatmul.f32.gmra.mxu0 %v2000
      %v2046 = vpop.f32.mrf.mxu0
      %v2047 = vadd.f32 0.0, %v2046
      %2048 = vmatmul.f32.gmra.mxu0 %v2003
      %v2049 = vpop.f32.mrf.mxu0
      %v2050 = vadd.f32 0.0, %v2049
      %2051 = vmatmul.f32.gmra.mxu0 %v2006
      %v2052 = vpop.f32.mrf.mxu0
      %v2053 = vadd.f32 0.0, %v2052
      %2054 = vmatmul.f32.gmra.mxu0 %v2009
      %v2055 = vpop.f32.mrf.mxu0
      %v2056 = vadd.f32 0.0, %v2055
      %2057 = vmatmul.f32.gmra.mxu0 %v2012
      %v2058 = vpop.f32.mrf.mxu0
      %v2059 = vadd.f32 0.0, %v2058
      %2060 = vmatmul.f32.gmra.mxu0 %v2015
      %v2061 = vpop.f32.mrf.mxu0
      %v2062 = vadd.f32 0.0, %v2061
      %2063 = vmatmul.f32.gmra.mxu0 %v2018
      %v2064 = vpop.f32.mrf.mxu0
      %v2065 = vadd.f32 0.0, %v2064
      %2066 = vdwg.mxu0
      %2067 = vmatpush.msra.mxu0 0.0
      %2068 = vmatpush.msra.mxu0 0.0
      %2069 = vmatpush.msra.mxu0 0.0
      %2070 = vmatpush.msra.mxu0 0.0
      %2071 = vmatpush.msra.mxu0 0.0
      %2072 = vmatpush.msra.mxu0 0.0
      %2073 = vmatpush.msra.mxu0 0.0
      %2074 = vmatpush.msra.mxu0 0.0
      %2075 = vmatpush.msra.mxu0 0.0
      %2076 = vmatpush.msra.mxu0 0.0
      %2077 = vmatpush.msra.mxu0 0.0
      %2078 = vmatpush.msra.mxu0 0.0
      %2079 = vmatpush.msra.mxu0 %v521
      %2080 = vmatpush.msra.mxu0 %v519
      %2081 = vmatpush.msra.mxu0 %v517
      %2082 = vmatpush.msra.mxu0 %v515
      %2083 = vmatmul.f32.gmra.mxu0 %v1991
      %v2084 = vpop.f32.mrf.mxu0
      %v2085 = vadd.f32 0.0, %v2084
      %2086 = vmatmul.f32.gmra.mxu0 %v1994
      %v2087 = vpop.f32.mrf.mxu0
      %v2088 = vadd.f32 0.0, %v2087
      %2089 = vmatmul.f32.gmra.mxu0 %v1997
      %v2090 = vpop.f32.mrf.mxu0
      %v2091 = vadd.f32 0.0, %v2090
      %2092 = vmatmul.f32.gmra.mxu0 %v2000
      %v2093 = vpop.f32.mrf.mxu0
      %v2094 = vadd.f32 0.0, %v2093
      %2095 = vmatmul.f32.gmra.mxu0 %v2003
      %v2096 = vpop.f32.mrf.mxu0
      %v2097 = vadd.f32 0.0, %v2096
      %2098 = vmatmul.f32.gmra.mxu0 %v2006
      %v2099 = vpop.f32.mrf.mxu0
      %v2100 = vadd.f32 0.0, %v2099
      %2101 = vmatmul.f32.gmra.mxu0 %v2009
      %v2102 = vpop.f32.mrf.mxu0
      %v2103 = vadd.f32 0.0, %v2102
      %2104 = vmatmul.f32.gmra.mxu0 %v2012
      %v2105 = vpop.f32.mrf.mxu0
      %v2106 = vadd.f32 0.0, %v2105
      %2107 = vmatmul.f32.gmra.mxu0 %v2015
      %v2108 = vpop.f32.mrf.mxu0
      %v2109 = vadd.f32 0.0, %v2108
      %2110 = vmatmul.f32.gmra.mxu0 %v2018
      %v2111 = vpop.f32.mrf.mxu0
      %v2112 = vadd.f32 0.0, %v2111
      %2113 = vdwg.mxu0
      %v2115 = vsel %vm1340, %v1607, 0
      %v2118 = vsel %vm1340, %v1610, 0
      %v2121 = vsel %vm1340, %v1613, 0
      %v2124 = vsel %vm1340, %v1616, 0
      %v2127 = vsel %vm1340, %v1619, 0
      %v2130 = vsel %vm1340, %v1622, 0
      %v2133 = vsel %vm1340, %v1625, 0
      %v2136 = vsel %vm1340, %v1628, 0
      %v2139 = vsel %vm1340, %v1631, 0
      %v2142 = vsel %vm1340, %v1634, 0
      %2144 = vmatpush.msra.mxu0 0.0
      %2145 = vmatpush.msra.mxu0 0.0
      %2146 = vmatpush.msra.mxu0 0.0
      %2147 = vmatpush.msra.mxu0 0.0
      %2148 = vmatpush.msra.mxu0 0.0
      %2149 = vmatpush.msra.mxu0 0.0
      %2150 = vmatpush.msra.mxu0 0.0
      %2151 = vmatpush.msra.mxu0 0.0
      %2152 = vmatpush.msra.mxu0 0.0
      %2153 = vmatpush.msra.mxu0 0.0
      %2154 = vmatpush.msra.mxu0 0.0
      %2155 = vmatpush.msra.mxu0 0.0
      %2156 = vmatpush.msra.mxu0 %v512
      %2157 = vmatpush.msra.mxu0 %v510
      %2158 = vmatpush.msra.mxu0 %v508
      %2159 = vmatpush.msra.mxu0 %v506
      %2160 = vmatmul.f32.gmra.mxu0 %v2115
      %v2161 = vpop.f32.mrf.mxu0
      %v2162 = vadd.f32 %v2038, %v2161
      %2163 = vmatmul.f32.gmra.mxu0 %v2118
      %v2164 = vpop.f32.mrf.mxu0
      %v2165 = vadd.f32 %v2041, %v2164
      %2166 = vmatmul.f32.gmra.mxu0 %v2121
      %v2167 = vpop.f32.mrf.mxu0
      %v2168 = vadd.f32 %v2044, %v2167
      %2169 = vmatmul.f32.gmra.mxu0 %v2124
      %v2170 = vpop.f32.mrf.mxu0
      %v2171 = vadd.f32 %v2047, %v2170
      %2172 = vmatmul.f32.gmra.mxu0 %v2127
      %v2173 = vpop.f32.mrf.mxu0
      %v2174 = vadd.f32 %v2050, %v2173
      %2175 = vmatmul.f32.gmra.mxu0 %v2130
      %v2176 = vpop.f32.mrf.mxu0
      %v2177 = vadd.f32 %v2053, %v2176
      %2178 = vmatmul.f32.gmra.mxu0 %v2133
      %v2179 = vpop.f32.mrf.mxu0
      %v2180 = vadd.f32 %v2056, %v2179
      %2181 = vmatmul.f32.gmra.mxu0 %v2136
      %v2182 = vpop.f32.mrf.mxu0
      %v2183 = vadd.f32 %v2059, %v2182
      %2184 = vmatmul.f32.gmra.mxu0 %v2139
      %v2185 = vpop.f32.mrf.mxu0
      %v2186 = vadd.f32 %v2062, %v2185
      %2187 = vmatmul.f32.gmra.mxu0 %v2142
      %v2188 = vpop.f32.mrf.mxu0
      %v2189 = vadd.f32 %v2065, %v2188
      %2190 = vdwg.mxu0
      %2191 = vmatpush.msra.mxu0 0.0
      %2192 = vmatpush.msra.mxu0 0.0
      %2193 = vmatpush.msra.mxu0 0.0
      %2194 = vmatpush.msra.mxu0 0.0
      %2195 = vmatpush.msra.mxu0 0.0
      %2196 = vmatpush.msra.mxu0 0.0
      %2197 = vmatpush.msra.mxu0 0.0
      %2198 = vmatpush.msra.mxu0 0.0
      %2199 = vmatpush.msra.mxu0 0.0
      %2200 = vmatpush.msra.mxu0 0.0
      %2201 = vmatpush.msra.mxu0 0.0
      %2202 = vmatpush.msra.mxu0 0.0
      %2203 = vmatpush.msra.mxu0 %v513
      %2204 = vmatpush.msra.mxu0 %v511
      %2205 = vmatpush.msra.mxu0 %v509
      %2206 = vmatpush.msra.mxu0 %v507
      %2207 = vmatmul.f32.gmra.mxu0 %v2115
      %v2208 = vpop.f32.mrf.mxu0
      %v2209 = vadd.f32 %v2085, %v2208
      %2210 = vmatmul.f32.gmra.mxu0 %v2118
      %v2211 = vpop.f32.mrf.mxu0
      %v2212 = vadd.f32 %v2088, %v2211
      %2213 = vmatmul.f32.gmra.mxu0 %v2121
      %v2214 = vpop.f32.mrf.mxu0
      %v2215 = vadd.f32 %v2091, %v2214
      %2216 = vmatmul.f32.gmra.mxu0 %v2124
      %v2217 = vpop.f32.mrf.mxu0
      %v2218 = vadd.f32 %v2094, %v2217
      %2219 = vmatmul.f32.gmra.mxu0 %v2127
      %v2220 = vpop.f32.mrf.mxu0
      %v2221 = vadd.f32 %v2097, %v2220
      %2222 = vmatmul.f32.gmra.mxu0 %v2130
      %v2223 = vpop.f32.mrf.mxu0
      %v2224 = vadd.f32 %v2100, %v2223
      %2225 = vmatmul.f32.gmra.mxu0 %v2133
      %v2226 = vpop.f32.mrf.mxu0
      %v2227 = vadd.f32 %v2103, %v2226
      %2228 = vmatmul.f32.gmra.mxu0 %v2136
      %v2229 = vpop.f32.mrf.mxu0
      %v2230 = vadd.f32 %v2106, %v2229
      %2231 = vmatmul.f32.gmra.mxu0 %v2139
      %v2232 = vpop.f32.mrf.mxu0
      %v2233 = vadd.f32 %v2109, %v2232
      %2234 = vmatmul.f32.gmra.mxu0 %v2142
      %v2235 = vpop.f32.mrf.mxu0
      %v2236 = vadd.f32 %v2112, %v2235
      %2237 = vdwg.mxu0
      %2238 = vrot.lane.b32.xlu0 %v841, 64
      %v2239 = vpop.permute.xlu0 %2238
      %2240 = vrot.lane.b32.xlu0 %v844, 64
      %v2241 = vpop.permute.xlu0 %2240
      %2242 = vrot.lane.b32.xlu0 %v847, 64
      %v2243 = vpop.permute.xlu0 %2242
      %2244 = vrot.lane.b32.xlu0 %v850, 64
      %v2245 = vpop.permute.xlu0 %2244
      %2246 = vrot.lane.b32.xlu0 %v853, 64
      %v2247 = vpop.permute.xlu0 %2246
      %2248 = vrot.lane.b32.xlu0 %v856, 64
      %v2249 = vpop.permute.xlu0 %2248
      %2250 = vrot.lane.b32.xlu0 %v859, 64
      %v2251 = vpop.permute.xlu0 %2250
      %2252 = vrot.lane.b32.xlu0 %v862, 64
      %v2253 = vpop.permute.xlu0 %2252
      %2254 = vrot.lane.b32.xlu0 %v865, 64
      %v2255 = vpop.permute.xlu0 %2254
      %2256 = vrot.lane.b32.xlu0 %v868, 64
      %v2257 = vpop.permute.xlu0 %2256
      %2258 = vrot.lane.b32.xlu0 %v1029, 64
      %v2259 = vpop.permute.xlu0 %2258
      %2260 = vrot.lane.b32.xlu0 %v1032, 64
      %v2261 = vpop.permute.xlu0 %2260
      %2262 = vrot.lane.b32.xlu0 %v1035, 64
      %v2263 = vpop.permute.xlu0 %2262
      %2264 = vrot.lane.b32.xlu0 %v1038, 64
      %v2265 = vpop.permute.xlu0 %2264
      %2266 = vrot.lane.b32.xlu0 %v1041, 64
      %v2267 = vpop.permute.xlu0 %2266
      %2268 = vrot.lane.b32.xlu0 %v1044, 64
      %v2269 = vpop.permute.xlu0 %2268
      %2270 = vrot.lane.b32.xlu0 %v1047, 64
      %v2271 = vpop.permute.xlu0 %2270
      %2272 = vrot.lane.b32.xlu0 %v1050, 64
      %v2273 = vpop.permute.xlu0 %2272
      %2274 = vrot.lane.b32.xlu0 %v1053, 64
      %v2275 = vpop.permute.xlu0 %2274
      %2276 = vrot.lane.b32.xlu0 %v1056, 64
      %v2277 = vpop.permute.xlu0 %2276
      %v2278 = vsel %vm1340, %v2239, 0
      %v2280 = vsel %vm1340, %v2241, 0
      %v2282 = vsel %vm1340, %v2243, 0
      %v2284 = vsel %vm1340, %v2245, 0
      %v2286 = vsel %vm1340, %v2247, 0
      %v2288 = vsel %vm1340, %v2249, 0
      %v2290 = vsel %vm1340, %v2251, 0
      %v2292 = vsel %vm1340, %v2253, 0
      %v2294 = vsel %vm1340, %v2255, 0
      %v2296 = vsel %vm1340, %v2257, 0
      %v2298 = vsel %vm1340, %v2259, 0
      %v2300 = vsel %vm1340, %v2261, 0
      %v2302 = vsel %vm1340, %v2263, 0
      %v2304 = vsel %vm1340, %v2265, 0
      %v2306 = vsel %vm1340, %v2267, 0
      %v2308 = vsel %vm1340, %v2269, 0
      %v2310 = vsel %vm1340, %v2271, 0
      %v2312 = vsel %vm1340, %v2273, 0
      %v2314 = vsel %vm1340, %v2275, 0
      %v2316 = vsel %vm1340, %v2277, 0
      %2318 = vmatpush.xpose.msra.mxu0 0.0
      %2319 = vmatpush.xpose.msra.mxu0 0.0
      %2320 = vmatpush.xpose.msra.mxu0 0.0
      %2321 = vmatpush.xpose.msra.mxu0 0.0
      %2322 = vmatpush.xpose.msra.mxu0 0.0
      %2323 = vmatpush.xpose.msra.mxu0 0.0
      %2324 = vmatpush.xpose.msra.mxu0 %v2316
      %2325 = vmatpush.xpose.msra.mxu0 %v2314
      %2326 = vmatpush.xpose.msra.mxu0 %v2312
      %2327 = vmatpush.xpose.msra.mxu0 %v2310
      %2328 = vmatpush.xpose.msra.mxu0 %v2308
      %2329 = vmatpush.xpose.msra.mxu0 %v2306
      %2330 = vmatpush.xpose.msra.mxu0 %v2304
      %2331 = vmatpush.xpose.msra.mxu0 %v2302
      %2332 = vmatpush.xpose.msra.mxu0 %v2300
      %2333 = vmatpush.xpose.msra.mxu0 %v2298
      %2334 = vmatmul.f32.gmra.mxu0 %v2278
      %v2335 = vpop.f32.mrf.mxu0
      %v2336 = vadd.f32 %v496, %v2335
      %2337 = vmatmul.f32.gmra.mxu0 %v2280
      %v2338 = vpop.f32.mrf.mxu0
      %v2339 = vadd.f32 %v497, %v2338
      %2340 = vmatmul.f32.gmra.mxu0 %v2282
      %v2341 = vpop.f32.mrf.mxu0
      %v2342 = vadd.f32 %v498, %v2341
      %2343 = vmatmul.f32.gmra.mxu0 %v2284
      %v2344 = vpop.f32.mrf.mxu0
      %v2345 = vadd.f32 %v499, %v2344
      %2346 = vmatmul.f32.gmra.mxu0 %v2286
      %v2347 = vpop.f32.mrf.mxu0
      %v2348 = vadd.f32 %v500, %v2347
      %2349 = vmatmul.f32.gmra.mxu0 %v2288
      %v2350 = vpop.f32.mrf.mxu0
      %v2351 = vadd.f32 %v501, %v2350
      %2352 = vmatmul.f32.gmra.mxu0 %v2290
      %v2353 = vpop.f32.mrf.mxu0
      %v2354 = vadd.f32 %v502, %v2353
      %2355 = vmatmul.f32.gmra.mxu0 %v2292
      %v2356 = vpop.f32.mrf.mxu0
      %v2357 = vadd.f32 %v503, %v2356
      %2358 = vmatmul.f32.gmra.mxu0 %v2294
      %v2359 = vpop.f32.mrf.mxu0
      %v2360 = vadd.f32 %v504, %v2359
      %2361 = vmatmul.f32.gmra.mxu0 %v2296
      %v2362 = vpop.f32.mrf.mxu0
      %v2363 = vadd.f32 %v505, %v2362
      %2364 = vdwg.mxu0
      %v2365 = vsel %vm1448, %v2336, -inf
      %2366 = vmax.xlane.f32.xlu0 %v2365
      %v2367 = vpop.xlane.xlu0 %2366
      %v2368 = vsel %vm1448, %v2339, -inf
      %2369 = vmax.xlane.f32.xlu0 %v2368
      %v2370 = vpop.xlane.xlu0 %2369
      %v2371 = vsel %vm1448, %v2342, -inf
      %2372 = vmax.xlane.f32.xlu0 %v2371
      %v2373 = vpop.xlane.xlu0 %2372
      %v2374 = vsel %vm1448, %v2345, -inf
      %2375 = vmax.xlane.f32.xlu0 %v2374
      %v2376 = vpop.xlane.xlu0 %2375
      %v2377 = vsel %vm1448, %v2348, -inf
      %2378 = vmax.xlane.f32.xlu0 %v2377
      %v2379 = vpop.xlane.xlu0 %2378
      %v2380 = vsel %vm1448, %v2351, -inf
      %2381 = vmax.xlane.f32.xlu0 %v2380
      %v2382 = vpop.xlane.xlu0 %2381
      %v2383 = vsel %vm1448, %v2354, -inf
      %2384 = vmax.xlane.f32.xlu0 %v2383
      %v2385 = vpop.xlane.xlu0 %2384
      %v2386 = vsel %vm1448, %v2357, -inf
      %2387 = vmax.xlane.f32.xlu0 %v2386
      %v2388 = vpop.xlane.xlu0 %2387
      %v2389 = vsel %vm1448, %v2360, -inf
      %2390 = vmax.xlane.f32.xlu0 %v2389
      %v2391 = vpop.xlane.xlu0 %2390
      %v2392 = vsel %vm1448, %v2363, -inf
      %2393 = vmax.xlane.f32.xlu0 %v2392
      %v2394 = vpop.xlane.xlu0 %2393
      %v2395 = vsub.f32 %v2336, %v2367
      %v2396 = vsub.f32 %v2339, %v2370
      %v2397 = vsub.f32 %v2342, %v2373
      %v2398 = vsub.f32 %v2345, %v2376
      %v2399 = vsub.f32 %v2348, %v2379
      %v2400 = vsub.f32 %v2351, %v2382
      %v2401 = vsub.f32 %v2354, %v2385
      %v2402 = vsub.f32 %v2357, %v2388
      %v2403 = vsub.f32 %v2360, %v2391
      %v2404 = vsub.f32 %v2363, %v2394
      %v2405 = vmul.f32 %v2395, 1.442695
      %v2406 = vpow.pop %v2405
      %v2407 = vmul.f32 %v2396, 1.442695
      %v2408 = vpow.pop %v2407
      %v2409 = vmul.f32 %v2397, 1.442695
      %v2410 = vpow.pop %v2409
      %v2411 = vmul.f32 %v2398, 1.442695
      %v2412 = vpow.pop %v2411
      %v2413 = vmul.f32 %v2399, 1.442695
      %v2414 = vpow.pop %v2413
      %v2415 = vmul.f32 %v2400, 1.442695
      %v2416 = vpow.pop %v2415
      %v2417 = vmul.f32 %v2401, 1.442695
      %v2418 = vpow.pop %v2417
      %v2419 = vmul.f32 %v2402, 1.442695
      %v2420 = vpow.pop %v2419
      %v2421 = vmul.f32 %v2403, 1.442695
      %v2422 = vpow.pop %v2421
      %v2423 = vmul.f32 %v2404, 1.442695
      %v2424 = vpow.pop %v2423
      %v2425 = vsel %vm1448, %v2406, 0.0
      %2426 = vadd.xlane.f32.xlu0 %v2425
      %v2427 = vpop.xlane.xlu0 %2426
      %v2428 = vsel %vm1448, %v2408, 0.0
      %2429 = vadd.xlane.f32.xlu0 %v2428
      %v2430 = vpop.xlane.xlu0 %2429
      %v2431 = vsel %vm1448, %v2410, 0.0
      %2432 = vadd.xlane.f32.xlu0 %v2431
      %v2433 = vpop.xlane.xlu0 %2432
      %v2434 = vsel %vm1448, %v2412, 0.0
      %2435 = vadd.xlane.f32.xlu0 %v2434
      %v2436 = vpop.xlane.xlu0 %2435
      %v2437 = vsel %vm1448, %v2414, 0.0
      %2438 = vadd.xlane.f32.xlu0 %v2437
      %v2439 = vpop.xlane.xlu0 %2438
      %v2440 = vsel %vm1448, %v2416, 0.0
      %2441 = vadd.xlane.f32.xlu0 %v2440
      %v2442 = vpop.xlane.xlu0 %2441
      %v2443 = vsel %vm1448, %v2418, 0.0
      %2444 = vadd.xlane.f32.xlu0 %v2443
      %v2445 = vpop.xlane.xlu0 %2444
      %v2446 = vsel %vm1448, %v2420, 0.0
      %2447 = vadd.xlane.f32.xlu0 %v2446
      %v2448 = vpop.xlane.xlu0 %2447
      %v2449 = vsel %vm1448, %v2422, 0.0
      %2450 = vadd.xlane.f32.xlu0 %v2449
      %v2451 = vpop.xlane.xlu0 %2450
      %v2452 = vsel %vm1448, %v2424, 0.0
      %2453 = vadd.xlane.f32.xlu0 %v2452
      %v2454 = vpop.xlane.xlu0 %2453
      %v2455 = vrcp.pop %v2427
      %v2456 = vrcp.pop %v2430
      %v2457 = vrcp.pop %v2433
      %v2458 = vrcp.pop %v2436
      %v2459 = vrcp.pop %v2439
      %v2460 = vrcp.pop %v2442
      %v2461 = vrcp.pop %v2445
      %v2462 = vrcp.pop %v2448
      %v2463 = vrcp.pop %v2451
      %v2464 = vrcp.pop %v2454
      %v2465 = vmul.f32 %v2406, %v2455
      %v2466 = vmul.f32 %v2408, %v2456
      %v2467 = vmul.f32 %v2410, %v2457
      %v2468 = vmul.f32 %v2412, %v2458
      %v2469 = vmul.f32 %v2414, %v2459
      %v2470 = vmul.f32 %v2416, %v2460
      %v2471 = vmul.f32 %v2418, %v2461
      %v2472 = vmul.f32 %v2420, %v2462
      %v2473 = vmul.f32 %v2422, %v2463
      %v2474 = vmul.f32 %v2424, %v2464
      %2475 = vrot.lane.b32.xlu0 %v1217, 64
      %v2476 = vpop.permute.xlu0 %2475
      %2477 = vrot.lane.b32.xlu0 %v1220, 64
      %v2478 = vpop.permute.xlu0 %2477
      %2479 = vrot.lane.b32.xlu0 %v1223, 64
      %v2480 = vpop.permute.xlu0 %2479
      %2481 = vrot.lane.b32.xlu0 %v1226, 64
      %v2482 = vpop.permute.xlu0 %2481
      %2483 = vrot.lane.b32.xlu0 %v1229, 64
      %v2484 = vpop.permute.xlu0 %2483
      %2485 = vrot.lane.b32.xlu0 %v1232, 64
      %v2486 = vpop.permute.xlu0 %2485
      %2487 = vrot.lane.b32.xlu0 %v1235, 64
      %v2488 = vpop.permute.xlu0 %2487
      %2489 = vrot.lane.b32.xlu0 %v1238, 64
      %v2490 = vpop.permute.xlu0 %2489
      %2491 = vrot.lane.b32.xlu0 %v1241, 64
      %v2492 = vpop.permute.xlu0 %2491
      %2493 = vrot.lane.b32.xlu0 %v1244, 64
      %v2494 = vpop.permute.xlu0 %2493
      %v2506 = vsel %vm1448, %v2465, 0
      %v2509 = vsel %vm1448, %v2466, 0
      %v2512 = vsel %vm1448, %v2467, 0
      %v2515 = vsel %vm1448, %v2468, 0
      %v2518 = vsel %vm1448, %v2469, 0
      %v2521 = vsel %vm1448, %v2470, 0
      %v2524 = vsel %vm1448, %v2471, 0
      %v2527 = vsel %vm1448, %v2472, 0
      %v2530 = vsel %vm1448, %v2473, 0
      %v2533 = vsel %vm1448, %v2474, 0
      %2535 = vmatpush.msra.mxu0 0.0
      %2536 = vmatpush.msra.mxu0 0.0
      %2537 = vmatpush.msra.mxu0 0.0
      %2538 = vmatpush.msra.mxu0 0.0
      %2539 = vmatpush.msra.mxu0 0.0
      %2540 = vmatpush.msra.mxu0 0.0
      %2541 = vmatpush.msra.mxu0 %v2494
      %2542 = vmatpush.msra.mxu0 %v2492
      %2543 = vmatpush.msra.mxu0 %v2490
      %2544 = vmatpush.msra.mxu0 %v2488
      %2545 = vmatpush.msra.mxu0 %v2486
      %2546 = vmatpush.msra.mxu0 %v2484
      %2547 = vmatpush.msra.mxu0 %v2482
      %2548 = vmatpush.msra.mxu0 %v2480
      %2549 = vmatpush.msra.mxu0 %v2478
      %2550 = vmatpush.msra.mxu0 %v2476
      %2551 = vmatmul.f32.gmra.mxu0 %v2506
      %v2552 = vpop.f32.mrf.mxu0
      %v2553 = vadd.f32 0.0, %v2552
      %2554 = vmatmul.f32.gmra.mxu0 %v2509
      %v2555 = vpop.f32.mrf.mxu0
      %v2556 = vadd.f32 0.0, %v2555
      %2557 = vmatmul.f32.gmra.mxu0 %v2512
      %v2558 = vpop.f32.mrf.mxu0
      %v2559 = vadd.f32 0.0, %v2558
      %2560 = vmatmul.f32.gmra.mxu0 %v2515
      %v2561 = vpop.f32.mrf.mxu0
      %v2562 = vadd.f32 0.0, %v2561
      %2563 = vmatmul.f32.gmra.mxu0 %v2518
      %v2564 = vpop.f32.mrf.mxu0
      %v2565 = vadd.f32 0.0, %v2564
      %2566 = vmatmul.f32.gmra.mxu0 %v2521
      %v2567 = vpop.f32.mrf.mxu0
      %v2568 = vadd.f32 0.0, %v2567
      %2569 = vmatmul.f32.gmra.mxu0 %v2524
      %v2570 = vpop.f32.mrf.mxu0
      %v2571 = vadd.f32 0.0, %v2570
      %2572 = vmatmul.f32.gmra.mxu0 %v2527
      %v2573 = vpop.f32.mrf.mxu0
      %v2574 = vadd.f32 0.0, %v2573
      %2575 = vmatmul.f32.gmra.mxu0 %v2530
      %v2576 = vpop.f32.mrf.mxu0
      %v2577 = vadd.f32 0.0, %v2576
      %2578 = vmatmul.f32.gmra.mxu0 %v2533
      %v2579 = vpop.f32.mrf.mxu0
      %v2580 = vadd.f32 0.0, %v2579
      %2581 = vdwg.mxu0
      %v2583 = vsel %vm1340, %v2553, 0
      %v2586 = vsel %vm1340, %v2556, 0
      %v2589 = vsel %vm1340, %v2559, 0
      %v2592 = vsel %vm1340, %v2562, 0
      %v2595 = vsel %vm1340, %v2565, 0
      %v2598 = vsel %vm1340, %v2568, 0
      %v2601 = vsel %vm1340, %v2571, 0
      %v2604 = vsel %vm1340, %v2574, 0
      %v2607 = vsel %vm1340, %v2577, 0
      %v2610 = vsel %vm1340, %v2580, 0
      %2612 = vmatpush.msra.mxu0 0.0
      %2613 = vmatpush.msra.mxu0 0.0
      %2614 = vmatpush.msra.mxu0 0.0
      %2615 = vmatpush.msra.mxu0 0.0
      %2616 = vmatpush.msra.mxu0 0.0
      %2617 = vmatpush.msra.mxu0 0.0
      %2618 = vmatpush.msra.mxu0 0.0
      %2619 = vmatpush.msra.mxu0 0.0
      %2620 = vmatpush.msra.mxu0 0.0
      %2621 = vmatpush.msra.mxu0 0.0
      %2622 = vmatpush.msra.mxu0 0.0
      %2623 = vmatpush.msra.mxu0 0.0
      %2624 = vmatpush.msra.mxu0 %v528
      %2625 = vmatpush.msra.mxu0 %v526
      %2626 = vmatpush.msra.mxu0 %v524
      %2627 = vmatpush.msra.mxu0 %v522
      %2628 = vmatmul.f32.gmra.mxu0 %v2583
      %v2629 = vpop.f32.mrf.mxu0
      %v2630 = vadd.f32 0.0, %v2629
      %2631 = vmatmul.f32.gmra.mxu0 %v2586
      %v2632 = vpop.f32.mrf.mxu0
      %v2633 = vadd.f32 0.0, %v2632
      %2634 = vmatmul.f32.gmra.mxu0 %v2589
      %v2635 = vpop.f32.mrf.mxu0
      %v2636 = vadd.f32 0.0, %v2635
      %2637 = vmatmul.f32.gmra.mxu0 %v2592
      %v2638 = vpop.f32.mrf.mxu0
      %v2639 = vadd.f32 0.0, %v2638
      %2640 = vmatmul.f32.gmra.mxu0 %v2595
      %v2641 = vpop.f32.mrf.mxu0
      %v2642 = vadd.f32 0.0, %v2641
      %2643 = vmatmul.f32.gmra.mxu0 %v2598
      %v2644 = vpop.f32.mrf.mxu0
      %v2645 = vadd.f32 0.0, %v2644
      %2646 = vmatmul.f32.gmra.mxu0 %v2601
      %v2647 = vpop.f32.mrf.mxu0
      %v2648 = vadd.f32 0.0, %v2647
      %2649 = vmatmul.f32.gmra.mxu0 %v2604
      %v2650 = vpop.f32.mrf.mxu0
      %v2651 = vadd.f32 0.0, %v2650
      %2652 = vmatmul.f32.gmra.mxu0 %v2607
      %v2653 = vpop.f32.mrf.mxu0
      %v2654 = vadd.f32 0.0, %v2653
      %2655 = vmatmul.f32.gmra.mxu0 %v2610
      %v2656 = vpop.f32.mrf.mxu0
      %v2657 = vadd.f32 0.0, %v2656
      %2658 = vdwg.mxu0
      %2659 = vmatpush.msra.mxu0 0.0
      %2660 = vmatpush.msra.mxu0 0.0
      %2661 = vmatpush.msra.mxu0 0.0
      %2662 = vmatpush.msra.mxu0 0.0
      %2663 = vmatpush.msra.mxu0 0.0
      %2664 = vmatpush.msra.mxu0 0.0
      %2665 = vmatpush.msra.mxu0 0.0
      %2666 = vmatpush.msra.mxu0 0.0
      %2667 = vmatpush.msra.mxu0 0.0
      %2668 = vmatpush.msra.mxu0 0.0
      %2669 = vmatpush.msra.mxu0 0.0
      %2670 = vmatpush.msra.mxu0 0.0
      %2671 = vmatpush.msra.mxu0 %v529
      %2672 = vmatpush.msra.mxu0 %v527
      %2673 = vmatpush.msra.mxu0 %v525
      %2674 = vmatpush.msra.mxu0 %v523
      %2675 = vmatmul.f32.gmra.mxu0 %v2583
      %v2676 = vpop.f32.mrf.mxu0
      %v2677 = vadd.f32 0.0, %v2676
      %2678 = vmatmul.f32.gmra.mxu0 %v2586
      %v2679 = vpop.f32.mrf.mxu0
      %v2680 = vadd.f32 0.0, %v2679
      %2681 = vmatmul.f32.gmra.mxu0 %v2589
      %v2682 = vpop.f32.mrf.mxu0
      %v2683 = vadd.f32 0.0, %v2682
      %2684 = vmatmul.f32.gmra.mxu0 %v2592
      %v2685 = vpop.f32.mrf.mxu0
      %v2686 = vadd.f32 0.0, %v2685
      %2687 = vmatmul.f32.gmra.mxu0 %v2595
      %v2688 = vpop.f32.mrf.mxu0
      %v2689 = vadd.f32 0.0, %v2688
      %2690 = vmatmul.f32.gmra.mxu0 %v2598
      %v2691 = vpop.f32.mrf.mxu0
      %v2692 = vadd.f32 0.0, %v2691
      %2693 = vmatmul.f32.gmra.mxu0 %v2601
      %v2694 = vpop.f32.mrf.mxu0
      %v2695 = vadd.f32 0.0, %v2694
      %2696 = vmatmul.f32.gmra.mxu0 %v2604
      %v2697 = vpop.f32.mrf.mxu0
      %v2698 = vadd.f32 0.0, %v2697
      %2699 = vmatmul.f32.gmra.mxu0 %v2607
      %v2700 = vpop.f32.mrf.mxu0
      %v2701 = vadd.f32 0.0, %v2700
      %2702 = vmatmul.f32.gmra.mxu0 %v2610
      %v2703 = vpop.f32.mrf.mxu0
      %v2704 = vadd.f32 0.0, %v2703
      %2705 = vdwg.mxu0
      %v2706 = vadd.f32 %v2162, %v2630
      %v2707 = vadd.f32 %v2209, %v2677
      %v2708 = vadd.f32 %v2165, %v2633
      %v2709 = vadd.f32 %v2212, %v2680
      %v2710 = vadd.f32 %v2168, %v2636
      %v2711 = vadd.f32 %v2215, %v2683
      %v2712 = vadd.f32 %v2171, %v2639
      %v2713 = vadd.f32 %v2218, %v2686
      %v2714 = vadd.f32 %v2174, %v2642
      %v2715 = vadd.f32 %v2221, %v2689
      %v2716 = vadd.f32 %v2177, %v2645
      %v2717 = vadd.f32 %v2224, %v2692
      %v2718 = vadd.f32 %v2180, %v2648
      %v2719 = vadd.f32 %v2227, %v2695
      %v2720 = vadd.f32 %v2183, %v2651
      %v2721 = vadd.f32 %v2230, %v2698
      %v2722 = vadd.f32 %v2186, %v2654
      %v2723 = vadd.f32 %v2233, %v2701
      %v2724 = vadd.f32 %v2189, %v2657
      %v2725 = vadd.f32 %v2236, %v2704
      %2726 = vrot.lane.b32.xlu0 %v841, 32
      %v2727 = vpop.permute.xlu0 %2726
      %2728 = vrot.lane.b32.xlu0 %v844, 32
      %v2729 = vpop.permute.xlu0 %2728
      %2730 = vrot.lane.b32.xlu0 %v847, 32
      %v2731 = vpop.permute.xlu0 %2730
      %2732 = vrot.lane.b32.xlu0 %v850, 32
      %v2733 = vpop.permute.xlu0 %2732
      %2734 = vrot.lane.b32.xlu0 %v853, 32
      %v2735 = vpop.permute.xlu0 %2734
      %2736 = vrot.lane.b32.xlu0 %v856, 32
      %v2737 = vpop.permute.xlu0 %2736
      %2738 = vrot.lane.b32.xlu0 %v859, 32
      %v2739 = vpop.permute.xlu0 %2738
      %2740 = vrot.lane.b32.xlu0 %v862, 32
      %v2741 = vpop.permute.xlu0 %2740
      %2742 = vrot.lane.b32.xlu0 %v865, 32
      %v2743 = vpop.permute.xlu0 %2742
      %2744 = vrot.lane.b32.xlu0 %v868, 32
      %v2745 = vpop.permute.xlu0 %2744
      %2746 = vrot.lane.b32.xlu0 %v1029, 32
      %v2747 = vpop.permute.xlu0 %2746
      %2748 = vrot.lane.b32.xlu0 %v1032, 32
      %v2749 = vpop.permute.xlu0 %2748
      %2750 = vrot.lane.b32.xlu0 %v1035, 32
      %v2751 = vpop.permute.xlu0 %2750
      %2752 = vrot.lane.b32.xlu0 %v1038, 32
      %v2753 = vpop.permute.xlu0 %2752
      %2754 = vrot.lane.b32.xlu0 %v1041, 32
      %v2755 = vpop.permute.xlu0 %2754
      %2756 = vrot.lane.b32.xlu0 %v1044, 32
      %v2757 = vpop.permute.xlu0 %2756
      %2758 = vrot.lane.b32.xlu0 %v1047, 32
      %v2759 = vpop.permute.xlu0 %2758
      %2760 = vrot.lane.b32.xlu0 %v1050, 32
      %v2761 = vpop.permute.xlu0 %2760
      %2762 = vrot.lane.b32.xlu0 %v1053, 32
      %v2763 = vpop.permute.xlu0 %2762
      %2764 = vrot.lane.b32.xlu0 %v1056, 32
      %v2765 = vpop.permute.xlu0 %2764
      %v2766 = vsel %vm1340, %v2727, 0
      %v2768 = vsel %vm1340, %v2729, 0
      %v2770 = vsel %vm1340, %v2731, 0
      %v2772 = vsel %vm1340, %v2733, 0
      %v2774 = vsel %vm1340, %v2735, 0
      %v2776 = vsel %vm1340, %v2737, 0
      %v2778 = vsel %vm1340, %v2739, 0
      %v2780 = vsel %vm1340, %v2741, 0
      %v2782 = vsel %vm1340, %v2743, 0
      %v2784 = vsel %vm1340, %v2745, 0
      %v2786 = vsel %vm1340, %v2747, 0
      %v2788 = vsel %vm1340, %v2749, 0
      %v2790 = vsel %vm1340, %v2751, 0
      %v2792 = vsel %vm1340, %v2753, 0
      %v2794 = vsel %vm1340, %v2755, 0
      %v2796 = vsel %vm1340, %v2757, 0
      %v2798 = vsel %vm1340, %v2759, 0
      %v2800 = vsel %vm1340, %v2761, 0
      %v2802 = vsel %vm1340, %v2763, 0
      %v2804 = vsel %vm1340, %v2765, 0
      %2806 = vmatpush.xpose.msra.mxu0 0.0
      %2807 = vmatpush.xpose.msra.mxu0 0.0
      %2808 = vmatpush.xpose.msra.mxu0 0.0
      %2809 = vmatpush.xpose.msra.mxu0 0.0
      %2810 = vmatpush.xpose.msra.mxu0 0.0
      %2811 = vmatpush.xpose.msra.mxu0 0.0
      %2812 = vmatpush.xpose.msra.mxu0 %v2804
      %2813 = vmatpush.xpose.msra.mxu0 %v2802
      %2814 = vmatpush.xpose.msra.mxu0 %v2800
      %2815 = vmatpush.xpose.msra.mxu0 %v2798
      %2816 = vmatpush.xpose.msra.mxu0 %v2796
      %2817 = vmatpush.xpose.msra.mxu0 %v2794
      %2818 = vmatpush.xpose.msra.mxu0 %v2792
      %2819 = vmatpush.xpose.msra.mxu0 %v2790
      %2820 = vmatpush.xpose.msra.mxu0 %v2788
      %2821 = vmatpush.xpose.msra.mxu0 %v2786
      %2822 = vmatmul.f32.gmra.mxu0 %v2766
      %v2823 = vpop.f32.mrf.mxu0
      %v2824 = vadd.f32 %v496, %v2823
      %2825 = vmatmul.f32.gmra.mxu0 %v2768
      %v2826 = vpop.f32.mrf.mxu0
      %v2827 = vadd.f32 %v497, %v2826
      %2828 = vmatmul.f32.gmra.mxu0 %v2770
      %v2829 = vpop.f32.mrf.mxu0
      %v2830 = vadd.f32 %v498, %v2829
      %2831 = vmatmul.f32.gmra.mxu0 %v2772
      %v2832 = vpop.f32.mrf.mxu0
      %v2833 = vadd.f32 %v499, %v2832
      %2834 = vmatmul.f32.gmra.mxu0 %v2774
      %v2835 = vpop.f32.mrf.mxu0
      %v2836 = vadd.f32 %v500, %v2835
      %2837 = vmatmul.f32.gmra.mxu0 %v2776
      %v2838 = vpop.f32.mrf.mxu0
      %v2839 = vadd.f32 %v501, %v2838
      %2840 = vmatmul.f32.gmra.mxu0 %v2778
      %v2841 = vpop.f32.mrf.mxu0
      %v2842 = vadd.f32 %v502, %v2841
      %2843 = vmatmul.f32.gmra.mxu0 %v2780
      %v2844 = vpop.f32.mrf.mxu0
      %v2845 = vadd.f32 %v503, %v2844
      %2846 = vmatmul.f32.gmra.mxu0 %v2782
      %v2847 = vpop.f32.mrf.mxu0
      %v2848 = vadd.f32 %v504, %v2847
      %2849 = vmatmul.f32.gmra.mxu0 %v2784
      %v2850 = vpop.f32.mrf.mxu0
      %v2851 = vadd.f32 %v505, %v2850
      %2852 = vdwg.mxu0
      %v2853 = vsel %vm1448, %v2824, -inf
      %2854 = vmax.xlane.f32.xlu0 %v2853
      %v2855 = vpop.xlane.xlu0 %2854
      %v2856 = vsel %vm1448, %v2827, -inf
      %2857 = vmax.xlane.f32.xlu0 %v2856
      %v2858 = vpop.xlane.xlu0 %2857
      %v2859 = vsel %vm1448, %v2830, -inf
      %2860 = vmax.xlane.f32.xlu0 %v2859
      %v2861 = vpop.xlane.xlu0 %2860
      %v2862 = vsel %vm1448, %v2833, -inf
      %2863 = vmax.xlane.f32.xlu0 %v2862
      %v2864 = vpop.xlane.xlu0 %2863
      %v2865 = vsel %vm1448, %v2836, -inf
      %2866 = vmax.xlane.f32.xlu0 %v2865
      %v2867 = vpop.xlane.xlu0 %2866
      %v2868 = vsel %vm1448, %v2839, -inf
      %2869 = vmax.xlane.f32.xlu0 %v2868
      %v2870 = vpop.xlane.xlu0 %2869
      %v2871 = vsel %vm1448, %v2842, -inf
      %2872 = vmax.xlane.f32.xlu0 %v2871
      %v2873 = vpop.xlane.xlu0 %2872
      %v2874 = vsel %vm1448, %v2845, -inf
      %2875 = vmax.xlane.f32.xlu0 %v2874
      %v2876 = vpop.xlane.xlu0 %2875
      %v2877 = vsel %vm1448, %v2848, -inf
      %2878 = vmax.xlane.f32.xlu0 %v2877
      %v2879 = vpop.xlane.xlu0 %2878
      %v2880 = vsel %vm1448, %v2851, -inf
      %2881 = vmax.xlane.f32.xlu0 %v2880
      %v2882 = vpop.xlane.xlu0 %2881
      %v2883 = vsub.f32 %v2824, %v2855
      %v2884 = vsub.f32 %v2827, %v2858
      %v2885 = vsub.f32 %v2830, %v2861
      %v2886 = vsub.f32 %v2833, %v2864
      %v2887 = vsub.f32 %v2836, %v2867
      %v2888 = vsub.f32 %v2839, %v2870
      %v2889 = vsub.f32 %v2842, %v2873
      %v2890 = vsub.f32 %v2845, %v2876
      %v2891 = vsub.f32 %v2848, %v2879
      %v2892 = vsub.f32 %v2851, %v2882
      %v2893 = vmul.f32 %v2883, 1.442695
      %v2894 = vpow.pop %v2893
      %v2895 = vmul.f32 %v2884, 1.442695
      %v2896 = vpow.pop %v2895
      %v2897 = vmul.f32 %v2885, 1.442695
      %v2898 = vpow.pop %v2897
      %v2899 = vmul.f32 %v2886, 1.442695
      %v2900 = vpow.pop %v2899
      %v2901 = vmul.f32 %v2887, 1.442695
      %v2902 = vpow.pop %v2901
      %v2903 = vmul.f32 %v2888, 1.442695
      %v2904 = vpow.pop %v2903
      %v2905 = vmul.f32 %v2889, 1.442695
      %v2906 = vpow.pop %v2905
      %v2907 = vmul.f32 %v2890, 1.442695
      %v2908 = vpow.pop %v2907
      %v2909 = vmul.f32 %v2891, 1.442695
      %v2910 = vpow.pop %v2909
      %v2911 = vmul.f32 %v2892, 1.442695
      %v2912 = vpow.pop %v2911
      %v2913 = vsel %vm1448, %v2894, 0.0
      %2914 = vadd.xlane.f32.xlu0 %v2913
      %v2915 = vpop.xlane.xlu0 %2914
      %v2916 = vsel %vm1448, %v2896, 0.0
      %2917 = vadd.xlane.f32.xlu0 %v2916
      %v2918 = vpop.xlane.xlu0 %2917
      %v2919 = vsel %vm1448, %v2898, 0.0
      %2920 = vadd.xlane.f32.xlu0 %v2919
      %v2921 = vpop.xlane.xlu0 %2920
      %v2922 = vsel %vm1448, %v2900, 0.0
      %2923 = vadd.xlane.f32.xlu0 %v2922
      %v2924 = vpop.xlane.xlu0 %2923
      %v2925 = vsel %vm1448, %v2902, 0.0
      %2926 = vadd.xlane.f32.xlu0 %v2925
      %v2927 = vpop.xlane.xlu0 %2926
      %v2928 = vsel %vm1448, %v2904, 0.0
      %2929 = vadd.xlane.f32.xlu0 %v2928
      %v2930 = vpop.xlane.xlu0 %2929
      %v2931 = vsel %vm1448, %v2906, 0.0
      %2932 = vadd.xlane.f32.xlu0 %v2931
      %v2933 = vpop.xlane.xlu0 %2932
      %v2934 = vsel %vm1448, %v2908, 0.0
      %2935 = vadd.xlane.f32.xlu0 %v2934
      %v2936 = vpop.xlane.xlu0 %2935
      %v2937 = vsel %vm1448, %v2910, 0.0
      %2938 = vadd.xlane.f32.xlu0 %v2937
      %v2939 = vpop.xlane.xlu0 %2938
      %v2940 = vsel %vm1448, %v2912, 0.0
      %2941 = vadd.xlane.f32.xlu0 %v2940
      %v2942 = vpop.xlane.xlu0 %2941
      %v2943 = vrcp.pop %v2915
      %v2944 = vrcp.pop %v2918
      %v2945 = vrcp.pop %v2921
      %v2946 = vrcp.pop %v2924
      %v2947 = vrcp.pop %v2927
      %v2948 = vrcp.pop %v2930
      %v2949 = vrcp.pop %v2933
      %v2950 = vrcp.pop %v2936
      %v2951 = vrcp.pop %v2939
      %v2952 = vrcp.pop %v2942
      %v2953 = vmul.f32 %v2894, %v2943
      %v2954 = vmul.f32 %v2896, %v2944
      %v2955 = vmul.f32 %v2898, %v2945
      %v2956 = vmul.f32 %v2900, %v2946
      %v2957 = vmul.f32 %v2902, %v2947
      %v2958 = vmul.f32 %v2904, %v2948
      %v2959 = vmul.f32 %v2906, %v2949
      %v2960 = vmul.f32 %v2908, %v2950
      %v2961 = vmul.f32 %v2910, %v2951
      %v2962 = vmul.f32 %v2912, %v2952
      %2963 = vrot.lane.b32.xlu0 %v1217, 32
      %v2964 = vpop.permute.xlu0 %2963
      %2965 = vrot.lane.b32.xlu0 %v1220, 32
      %v2966 = vpop.permute.xlu0 %2965
      %2967 = vrot.lane.b32.xlu0 %v1223, 32
      %v2968 = vpop.permute.xlu0 %2967
      %2969 = vrot.lane.b32.xlu0 %v1226, 32
      %v2970 = vpop.permute.xlu0 %2969
      %2971 = vrot.lane.b32.xlu0 %v1229, 32
      %v2972 = vpop.permute.xlu0 %2971
      %2973 = vrot.lane.b32.xlu0 %v1232, 32
      %v2974 = vpop.permute.xlu0 %2973
      %2975 = vrot.lane.b32.xlu0 %v1235, 32
      %v2976 = vpop.permute.xlu0 %2975
      %2977 = vrot.lane.b32.xlu0 %v1238, 32
      %v2978 = vpop.permute.xlu0 %2977
      %2979 = vrot.lane.b32.xlu0 %v1241, 32
      %v2980 = vpop.permute.xlu0 %2979
      %2981 = vrot.lane.b32.xlu0 %v1244, 32
      %v2982 = vpop.permute.xlu0 %2981
      %v2994 = vsel %vm1448, %v2953, 0
      %v2997 = vsel %vm1448, %v2954, 0
      %v3000 = vsel %vm1448, %v2955, 0
      %v3003 = vsel %vm1448, %v2956, 0
      %v3006 = vsel %vm1448, %v2957, 0
      %v3009 = vsel %vm1448, %v2958, 0
      %v3012 = vsel %vm1448, %v2959, 0
      %v3015 = vsel %vm1448, %v2960, 0
      %v3018 = vsel %vm1448, %v2961, 0
      %v3021 = vsel %vm1448, %v2962, 0
      %3023 = vmatpush.msra.mxu0 0.0
      %3024 = vmatpush.msra.mxu0 0.0
      %3025 = vmatpush.msra.mxu0 0.0
      %3026 = vmatpush.msra.mxu0 0.0
      %3027 = vmatpush.msra.mxu0 0.0
      %3028 = vmatpush.msra.mxu0 0.0
      %3029 = vmatpush.msra.mxu0 %v2982
      %3030 = vmatpush.msra.mxu0 %v2980
      %3031 = vmatpush.msra.mxu0 %v2978
      %3032 = vmatpush.msra.mxu0 %v2976
      %3033 = vmatpush.msra.mxu0 %v2974
      %3034 = vmatpush.msra.mxu0 %v2972
      %3035 = vmatpush.msra.mxu0 %v2970
      %3036 = vmatpush.msra.mxu0 %v2968
      %3037 = vmatpush.msra.mxu0 %v2966
      %3038 = vmatpush.msra.mxu0 %v2964
      %3039 = vmatmul.f32.gmra.mxu0 %v2994
      %v3040 = vpop.f32.mrf.mxu0
      %v3041 = vadd.f32 0.0, %v3040
      %3042 = vmatmul.f32.gmra.mxu0 %v2997
      %v3043 = vpop.f32.mrf.mxu0
      %v3044 = vadd.f32 0.0, %v3043
      %3045 = vmatmul.f32.gmra.mxu0 %v3000
      %v3046 = vpop.f32.mrf.mxu0
      %v3047 = vadd.f32 0.0, %v3046
      %3048 = vmatmul.f32.gmra.mxu0 %v3003
      %v3049 = vpop.f32.mrf.mxu0
      %v3050 = vadd.f32 0.0, %v3049
      %3051 = vmatmul.f32.gmra.mxu0 %v3006
      %v3052 = vpop.f32.mrf.mxu0
      %v3053 = vadd.f32 0.0, %v3052
      %3054 = vmatmul.f32.gmra.mxu0 %v3009
      %v3055 = vpop.f32.mrf.mxu0
      %v3056 = vadd.f32 0.0, %v3055
      %3057 = vmatmul.f32.gmra.mxu0 %v3012
      %v3058 = vpop.f32.mrf.mxu0
      %v3059 = vadd.f32 0.0, %v3058
      %3060 = vmatmul.f32.gmra.mxu0 %v3015
      %v3061 = vpop.f32.mrf.mxu0
      %v3062 = vadd.f32 0.0, %v3061
      %3063 = vmatmul.f32.gmra.mxu0 %v3018
      %v3064 = vpop.f32.mrf.mxu0
      %v3065 = vadd.f32 0.0, %v3064
      %3066 = vmatmul.f32.gmra.mxu0 %v3021
      %v3067 = vpop.f32.mrf.mxu0
      %v3068 = vadd.f32 0.0, %v3067
      %3069 = vdwg.mxu0
      %v3071 = vsel %vm1340, %v3041, 0
      %v3074 = vsel %vm1340, %v3044, 0
      %v3077 = vsel %vm1340, %v3047, 0
      %v3080 = vsel %vm1340, %v3050, 0
      %v3083 = vsel %vm1340, %v3053, 0
      %v3086 = vsel %vm1340, %v3056, 0
      %v3089 = vsel %vm1340, %v3059, 0
      %v3092 = vsel %vm1340, %v3062, 0
      %v3095 = vsel %vm1340, %v3065, 0
      %v3098 = vsel %vm1340, %v3068, 0
      %3100 = vmatpush.msra.mxu0 0.0
      %3101 = vmatpush.msra.mxu0 0.0
      %3102 = vmatpush.msra.mxu0 0.0
      %3103 = vmatpush.msra.mxu0 0.0
      %3104 = vmatpush.msra.mxu0 0.0
      %3105 = vmatpush.msra.mxu0 0.0
      %3106 = vmatpush.msra.mxu0 0.0
      %3107 = vmatpush.msra.mxu0 0.0
      %3108 = vmatpush.msra.mxu0 0.0
      %3109 = vmatpush.msra.mxu0 0.0
      %3110 = vmatpush.msra.mxu0 0.0
      %3111 = vmatpush.msra.mxu0 0.0
      %3112 = vmatpush.msra.mxu0 %v536
      %3113 = vmatpush.msra.mxu0 %v534
      %3114 = vmatpush.msra.mxu0 %v532
      %3115 = vmatpush.msra.mxu0 %v530
      %3116 = vmatmul.f32.gmra.mxu0 %v3071
      %v3117 = vpop.f32.mrf.mxu0
      %v3118 = vadd.f32 0.0, %v3117
      %3119 = vmatmul.f32.gmra.mxu0 %v3074
      %v3120 = vpop.f32.mrf.mxu0
      %v3121 = vadd.f32 0.0, %v3120
      %3122 = vmatmul.f32.gmra.mxu0 %v3077
      %v3123 = vpop.f32.mrf.mxu0
      %v3124 = vadd.f32 0.0, %v3123
      %3125 = vmatmul.f32.gmra.mxu0 %v3080
      %v3126 = vpop.f32.mrf.mxu0
      %v3127 = vadd.f32 0.0, %v3126
      %3128 = vmatmul.f32.gmra.mxu0 %v3083
      %v3129 = vpop.f32.mrf.mxu0
      %v3130 = vadd.f32 0.0, %v3129
      %3131 = vmatmul.f32.gmra.mxu0 %v3086
      %v3132 = vpop.f32.mrf.mxu0
      %v3133 = vadd.f32 0.0, %v3132
      %3134 = vmatmul.f32.gmra.mxu0 %v3089
      %v3135 = vpop.f32.mrf.mxu0
      %v3136 = vadd.f32 0.0, %v3135
      %3137 = vmatmul.f32.gmra.mxu0 %v3092
      %v3138 = vpop.f32.mrf.mxu0
      %v3139 = vadd.f32 0.0, %v3138
      %3140 = vmatmul.f32.gmra.mxu0 %v3095
      %v3141 = vpop.f32.mrf.mxu0
      %v3142 = vadd.f32 0.0, %v3141
      %3143 = vmatmul.f32.gmra.mxu0 %v3098
      %v3144 = vpop.f32.mrf.mxu0
      %v3145 = vadd.f32 0.0, %v3144
      %3146 = vdwg.mxu0
      %3147 = vmatpush.msra.mxu0 0.0
      %3148 = vmatpush.msra.mxu0 0.0
      %3149 = vmatpush.msra.mxu0 0.0
      %3150 = vmatpush.msra.mxu0 0.0
      %3151 = vmatpush.msra.mxu0 0.0
      %3152 = vmatpush.msra.mxu0 0.0
      %3153 = vmatpush.msra.mxu0 0.0
      %3154 = vmatpush.msra.mxu0 0.0
      %3155 = vmatpush.msra.mxu0 0.0
      %3156 = vmatpush.msra.mxu0 0.0
      %3157 = vmatpush.msra.mxu0 0.0
      %3158 = vmatpush.msra.mxu0 0.0
      %3159 = vmatpush.msra.mxu0 %v537
      %3160 = vmatpush.msra.mxu0 %v535
      %3161 = vmatpush.msra.mxu0 %v533
      %3162 = vmatpush.msra.mxu0 %v531
      %3163 = vmatmul.f32.gmra.mxu0 %v3071
      %v3164 = vpop.f32.mrf.mxu0
      %v3165 = vadd.f32 0.0, %v3164
      %3166 = vmatmul.f32.gmra.mxu0 %v3074
      %v3167 = vpop.f32.mrf.mxu0
      %v3168 = vadd.f32 0.0, %v3167
      %3169 = vmatmul.f32.gmra.mxu0 %v3077
      %v3170 = vpop.f32.mrf.mxu0
      %v3171 = vadd.f32 0.0, %v3170
      %3172 = vmatmul.f32.gmra.mxu0 %v3080
      %v3173 = vpop.f32.mrf.mxu0
      %v3174 = vadd.f32 0.0, %v3173
      %3175 = vmatmul.f32.gmra.mxu0 %v3083
      %v3176 = vpop.f32.mrf.mxu0
      %v3177 = vadd.f32 0.0, %v3176
      %3178 = vmatmul.f32.gmra.mxu0 %v3086
      %v3179 = vpop.f32.mrf.mxu0
      %v3180 = vadd.f32 0.0, %v3179
      %3181 = vmatmul.f32.gmra.mxu0 %v3089
      %v3182 = vpop.f32.mrf.mxu0
      %v3183 = vadd.f32 0.0, %v3182
      %3184 = vmatmul.f32.gmra.mxu0 %v3092
      %v3185 = vpop.f32.mrf.mxu0
      %v3186 = vadd.f32 0.0, %v3185
      %3187 = vmatmul.f32.gmra.mxu0 %v3095
      %v3188 = vpop.f32.mrf.mxu0
      %v3189 = vadd.f32 0.0, %v3188
      %3190 = vmatmul.f32.gmra.mxu0 %v3098
      %v3191 = vpop.f32.mrf.mxu0
      %v3192 = vadd.f32 0.0, %v3191
      %3193 = vdwg.mxu0
      %v3194 = vadd.f32 %v2706, %v3118
      %v3195 = vadd.f32 %v2707, %v3165
      %v3196 = vadd.f32 %v2708, %v3121
      %v3197 = vadd.f32 %v2709, %v3168
      %v3198 = vadd.f32 %v2710, %v3124
      %v3199 = vadd.f32 %v2711, %v3171
      %v3200 = vadd.f32 %v2712, %v3127
      %v3201 = vadd.f32 %v2713, %v3174
      %v3202 = vadd.f32 %v2714, %v3130
      %v3203 = vadd.f32 %v2715, %v3177
      %v3204 = vadd.f32 %v2716, %v3133
      %v3205 = vadd.f32 %v2717, %v3180
      %v3206 = vadd.f32 %v2718, %v3136
      %v3207 = vadd.f32 %v2719, %v3183
      %v3208 = vadd.f32 %v2720, %v3139
      %v3209 = vadd.f32 %v2721, %v3186
      %v3210 = vadd.f32 %v2722, %v3142
      %v3211 = vadd.f32 %v2723, %v3189
      %v3212 = vadd.f32 %v2724, %v3145
      %v3213 = vadd.f32 %v2725, %v3192
      %v3215 = vsel %vm1340, %v935, 0
      %v3218 = vsel %vm1340, %v938, 0
      %v3221 = vsel %vm1340, %v941, 0
      %v3224 = vsel %vm1340, %v944, 0
      %v3227 = vsel %vm1340, %v947, 0
      %v3230 = vsel %vm1340, %v950, 0
      %v3233 = vsel %vm1340, %v953, 0
      %v3236 = vsel %vm1340, %v956, 0
      %v3239 = vsel %vm1340, %v959, 0
      %v3242 = vsel %vm1340, %v962, 0
      %v3245 = vsel %vm1340, %v1123, 0
      %v3248 = vsel %vm1340, %v1126, 0
      %v3251 = vsel %vm1340, %v1129, 0
      %v3254 = vsel %vm1340, %v1132, 0
      %v3257 = vsel %vm1340, %v1135, 0
      %v3260 = vsel %vm1340, %v1138, 0
      %v3263 = vsel %vm1340, %v1141, 0
      %v3266 = vsel %vm1340, %v1144, 0
      %v3269 = vsel %vm1340, %v1147, 0
      %v3272 = vsel %vm1340, %v1150, 0
      %3274 = vmatpush.xpose.msra.mxu0 0.0
      %3275 = vmatpush.xpose.msra.mxu0 0.0
      %3276 = vmatpush.xpose.msra.mxu0 0.0
      %3277 = vmatpush.xpose.msra.mxu0 0.0
      %3278 = vmatpush.xpose.msra.mxu0 0.0
      %3279 = vmatpush.xpose.msra.mxu0 0.0
      %3280 = vmatpush.xpose.msra.mxu0 %v3272
      %3281 = vmatpush.xpose.msra.mxu0 %v3269
      %3282 = vmatpush.xpose.msra.mxu0 %v3266
      %3283 = vmatpush.xpose.msra.mxu0 %v3263
      %3284 = vmatpush.xpose.msra.mxu0 %v3260
      %3285 = vmatpush.xpose.msra.mxu0 %v3257
      %3286 = vmatpush.xpose.msra.mxu0 %v3254
      %3287 = vmatpush.xpose.msra.mxu0 %v3251
      %3288 = vmatpush.xpose.msra.mxu0 %v3248
      %3289 = vmatpush.xpose.msra.mxu0 %v3245
      %3290 = vmatmul.f32.gmra.mxu0 %v3215
      %v3291 = vpop.f32.mrf.mxu0
      %v3292 = vadd.f32 %v496, %v3291
      %3293 = vmatmul.f32.gmra.mxu0 %v3218
      %v3294 = vpop.f32.mrf.mxu0
      %v3295 = vadd.f32 %v497, %v3294
      %3296 = vmatmul.f32.gmra.mxu0 %v3221
      %v3297 = vpop.f32.mrf.mxu0
      %v3298 = vadd.f32 %v498, %v3297
      %3299 = vmatmul.f32.gmra.mxu0 %v3224
      %v3300 = vpop.f32.mrf.mxu0
      %v3301 = vadd.f32 %v499, %v3300
      %3302 = vmatmul.f32.gmra.mxu0 %v3227
      %v3303 = vpop.f32.mrf.mxu0
      %v3304 = vadd.f32 %v500, %v3303
      %3305 = vmatmul.f32.gmra.mxu0 %v3230
      %v3306 = vpop.f32.mrf.mxu0
      %v3307 = vadd.f32 %v501, %v3306
      %3308 = vmatmul.f32.gmra.mxu0 %v3233
      %v3309 = vpop.f32.mrf.mxu0
      %v3310 = vadd.f32 %v502, %v3309
      %3311 = vmatmul.f32.gmra.mxu0 %v3236
      %v3312 = vpop.f32.mrf.mxu0
      %v3313 = vadd.f32 %v503, %v3312
      %3314 = vmatmul.f32.gmra.mxu0 %v3239
      %v3315 = vpop.f32.mrf.mxu0
      %v3316 = vadd.f32 %v504, %v3315
      %3317 = vmatmul.f32.gmra.mxu0 %v3242
      %v3318 = vpop.f32.mrf.mxu0
      %v3319 = vadd.f32 %v505, %v3318
      %3320 = vdwg.mxu0
      %v3321 = vsel %vm1448, %v3292, -inf
      %3322 = vmax.xlane.f32.xlu0 %v3321
      %v3323 = vpop.xlane.xlu0 %3322
      %v3324 = vsel %vm1448, %v3295, -inf
      %3325 = vmax.xlane.f32.xlu0 %v3324
      %v3326 = vpop.xlane.xlu0 %3325
      %v3327 = vsel %vm1448, %v3298, -inf
      %3328 = vmax.xlane.f32.xlu0 %v3327
      %v3329 = vpop.xlane.xlu0 %3328
      %v3330 = vsel %vm1448, %v3301, -inf
      %3331 = vmax.xlane.f32.xlu0 %v3330
      %v3332 = vpop.xlane.xlu0 %3331
      %v3333 = vsel %vm1448, %v3304, -inf
      %3334 = vmax.xlane.f32.xlu0 %v3333
      %v3335 = vpop.xlane.xlu0 %3334
      %v3336 = vsel %vm1448, %v3307, -inf
      %3337 = vmax.xlane.f32.xlu0 %v3336
      %v3338 = vpop.xlane.xlu0 %3337
      %v3339 = vsel %vm1448, %v3310, -inf
      %3340 = vmax.xlane.f32.xlu0 %v3339
      %v3341 = vpop.xlane.xlu0 %3340
      %v3342 = vsel %vm1448, %v3313, -inf
      %3343 = vmax.xlane.f32.xlu0 %v3342
      %v3344 = vpop.xlane.xlu0 %3343
      %v3345 = vsel %vm1448, %v3316, -inf
      %3346 = vmax.xlane.f32.xlu0 %v3345
      %v3347 = vpop.xlane.xlu0 %3346
      %v3348 = vsel %vm1448, %v3319, -inf
      %3349 = vmax.xlane.f32.xlu0 %v3348
      %v3350 = vpop.xlane.xlu0 %3349
      %v3351 = vsub.f32 %v3292, %v3323
      %v3352 = vsub.f32 %v3295, %v3326
      %v3353 = vsub.f32 %v3298, %v3329
      %v3354 = vsub.f32 %v3301, %v3332
      %v3355 = vsub.f32 %v3304, %v3335
      %v3356 = vsub.f32 %v3307, %v3338
      %v3357 = vsub.f32 %v3310, %v3341
      %v3358 = vsub.f32 %v3313, %v3344
      %v3359 = vsub.f32 %v3316, %v3347
      %v3360 = vsub.f32 %v3319, %v3350
      %v3361 = vmul.f32 %v3351, 1.442695
      %v3362 = vpow.pop %v3361
      %v3363 = vmul.f32 %v3352, 1.442695
      %v3364 = vpow.pop %v3363
      %v3365 = vmul.f32 %v3353, 1.442695
      %v3366 = vpow.pop %v3365
      %v3367 = vmul.f32 %v3354, 1.442695
      %v3368 = vpow.pop %v3367
      %v3369 = vmul.f32 %v3355, 1.442695
      %v3370 = vpow.pop %v3369
      %v3371 = vmul.f32 %v3356, 1.442695
      %v3372 = vpow.pop %v3371
      %v3373 = vmul.f32 %v3357, 1.442695
      %v3374 = vpow.pop %v3373
      %v3375 = vmul.f32 %v3358, 1.442695
      %v3376 = vpow.pop %v3375
      %v3377 = vmul.f32 %v3359, 1.442695
      %v3378 = vpow.pop %v3377
      %v3379 = vmul.f32 %v3360, 1.442695
      %v3380 = vpow.pop %v3379
      %v3381 = vsel %vm1448, %v3362, 0.0
      %3382 = vadd.xlane.f32.xlu0 %v3381
      %v3383 = vpop.xlane.xlu0 %3382
      %v3384 = vsel %vm1448, %v3364, 0.0
      %3385 = vadd.xlane.f32.xlu0 %v3384
      %v3386 = vpop.xlane.xlu0 %3385
      %v3387 = vsel %vm1448, %v3366, 0.0
      %3388 = vadd.xlane.f32.xlu0 %v3387
      %v3389 = vpop.xlane.xlu0 %3388
      %v3390 = vsel %vm1448, %v3368, 0.0
      %3391 = vadd.xlane.f32.xlu0 %v3390
      %v3392 = vpop.xlane.xlu0 %3391
      %v3393 = vsel %vm1448, %v3370, 0.0
      %3394 = vadd.xlane.f32.xlu0 %v3393
      %v3395 = vpop.xlane.xlu0 %3394
      %v3396 = vsel %vm1448, %v3372, 0.0
      %3397 = vadd.xlane.f32.xlu0 %v3396
      %v3398 = vpop.xlane.xlu0 %3397
      %v3399 = vsel %vm1448, %v3374, 0.0
      %3400 = vadd.xlane.f32.xlu0 %v3399
      %v3401 = vpop.xlane.xlu0 %3400
      %v3402 = vsel %vm1448, %v3376, 0.0
      %3403 = vadd.xlane.f32.xlu0 %v3402
      %v3404 = vpop.xlane.xlu0 %3403
      %v3405 = vsel %vm1448, %v3378, 0.0
      %3406 = vadd.xlane.f32.xlu0 %v3405
      %v3407 = vpop.xlane.xlu0 %3406
      %v3408 = vsel %vm1448, %v3380, 0.0
      %3409 = vadd.xlane.f32.xlu0 %v3408
      %v3410 = vpop.xlane.xlu0 %3409
      %v3411 = vrcp.pop %v3383
      %v3412 = vrcp.pop %v3386
      %v3413 = vrcp.pop %v3389
      %v3414 = vrcp.pop %v3392
      %v3415 = vrcp.pop %v3395
      %v3416 = vrcp.pop %v3398
      %v3417 = vrcp.pop %v3401
      %v3418 = vrcp.pop %v3404
      %v3419 = vrcp.pop %v3407
      %v3420 = vrcp.pop %v3410
      %v3421 = vmul.f32 %v3362, %v3411
      %v3422 = vmul.f32 %v3364, %v3412
      %v3423 = vmul.f32 %v3366, %v3413
      %v3424 = vmul.f32 %v3368, %v3414
      %v3425 = vmul.f32 %v3370, %v3415
      %v3426 = vmul.f32 %v3372, %v3416
      %v3427 = vmul.f32 %v3374, %v3417
      %v3428 = vmul.f32 %v3376, %v3418
      %v3429 = vmul.f32 %v3378, %v3419
      %v3430 = vmul.f32 %v3380, %v3420
      %v3432 = vsel %vm1448, %v3421, 0
      %v3435 = vsel %vm1448, %v3422, 0
      %v3438 = vsel %vm1448, %v3423, 0
      %v3441 = vsel %vm1448, %v3424, 0
      %v3444 = vsel %vm1448, %v3425, 0
      %v3447 = vsel %vm1448, %v3426, 0
      %v3450 = vsel %vm1448, %v3427, 0
      %v3453 = vsel %vm1448, %v3428, 0
      %v3456 = vsel %vm1448, %v3429, 0
      %v3459 = vsel %vm1448, %v3430, 0
      %3461 = vmatpush.msra.mxu0 0.0
      %3462 = vmatpush.msra.mxu0 0.0
      %3463 = vmatpush.msra.mxu0 0.0
      %3464 = vmatpush.msra.mxu0 0.0
      %3465 = vmatpush.msra.mxu0 0.0
      %3466 = vmatpush.msra.mxu0 0.0
      %3467 = vmatpush.msra.mxu0 %v1338
      %3468 = vmatpush.msra.mxu0 %v1335
      %3469 = vmatpush.msra.mxu0 %v1332
      %3470 = vmatpush.msra.mxu0 %v1329
      %3471 = vmatpush.msra.mxu0 %v1326
      %3472 = vmatpush.msra.mxu0 %v1323
      %3473 = vmatpush.msra.mxu0 %v1320
      %3474 = vmatpush.msra.mxu0 %v1317
      %3475 = vmatpush.msra.mxu0 %v1314
      %3476 = vmatpush.msra.mxu0 %v1311
      %3477 = vmatmul.f32.gmra.mxu0 %v3432
      %v3478 = vpop.f32.mrf.mxu0
      %v3479 = vadd.f32 0.0, %v3478
      %3480 = vmatmul.f32.gmra.mxu0 %v3435
      %v3481 = vpop.f32.mrf.mxu0
      %v3482 = vadd.f32 0.0, %v3481
      %3483 = vmatmul.f32.gmra.mxu0 %v3438
      %v3484 = vpop.f32.mrf.mxu0
      %v3485 = vadd.f32 0.0, %v3484
      %3486 = vmatmul.f32.gmra.mxu0 %v3441
      %v3487 = vpop.f32.mrf.mxu0
      %v3488 = vadd.f32 0.0, %v3487
      %3489 = vmatmul.f32.gmra.mxu0 %v3444
      %v3490 = vpop.f32.mrf.mxu0
      %v3491 = vadd.f32 0.0, %v3490
      %3492 = vmatmul.f32.gmra.mxu0 %v3447
      %v3493 = vpop.f32.mrf.mxu0
      %v3494 = vadd.f32 0.0, %v3493
      %3495 = vmatmul.f32.gmra.mxu0 %v3450
      %v3496 = vpop.f32.mrf.mxu0
      %v3497 = vadd.f32 0.0, %v3496
      %3498 = vmatmul.f32.gmra.mxu0 %v3453
      %v3499 = vpop.f32.mrf.mxu0
      %v3500 = vadd.f32 0.0, %v3499
      %3501 = vmatmul.f32.gmra.mxu0 %v3456
      %v3502 = vpop.f32.mrf.mxu0
      %v3503 = vadd.f32 0.0, %v3502
      %3504 = vmatmul.f32.gmra.mxu0 %v3459
      %v3505 = vpop.f32.mrf.mxu0
      %v3506 = vadd.f32 0.0, %v3505
      %3507 = vdwg.mxu0
      %v3509 = vsel %vm1340, %v3479, 0
      %v3512 = vsel %vm1340, %v3482, 0
      %v3515 = vsel %vm1340, %v3485, 0
      %v3518 = vsel %vm1340, %v3488, 0
      %v3521 = vsel %vm1340, %v3491, 0
      %v3524 = vsel %vm1340, %v3494, 0
      %v3527 = vsel %vm1340, %v3497, 0
      %v3530 = vsel %vm1340, %v3500, 0
      %v3533 = vsel %vm1340, %v3503, 0
      %v3536 = vsel %vm1340, %v3506, 0
      %3538 = vmatpush.msra.mxu0 0.0
      %3539 = vmatpush.msra.mxu0 0.0
      %3540 = vmatpush.msra.mxu0 0.0
      %3541 = vmatpush.msra.mxu0 0.0
      %3542 = vmatpush.msra.mxu0 0.0
      %3543 = vmatpush.msra.mxu0 0.0
      %3544 = vmatpush.msra.mxu0 0.0
      %3545 = vmatpush.msra.mxu0 0.0
      %3546 = vmatpush.msra.mxu0 0.0
      %3547 = vmatpush.msra.mxu0 0.0
      %3548 = vmatpush.msra.mxu0 0.0
      %3549 = vmatpush.msra.mxu0 0.0
      %3550 = vmatpush.msra.mxu0 %v544
      %3551 = vmatpush.msra.mxu0 %v542
      %3552 = vmatpush.msra.mxu0 %v540
      %3553 = vmatpush.msra.mxu0 %v538
      %3554 = vmatmul.f32.gmra.mxu0 %v3509
      %v3555 = vpop.f32.mrf.mxu0
      %v3556 = vadd.f32 0.0, %v3555
      %3557 = vmatmul.f32.gmra.mxu0 %v3512
      %v3558 = vpop.f32.mrf.mxu0
      %v3559 = vadd.f32 0.0, %v3558
      %3560 = vmatmul.f32.gmra.mxu0 %v3515
      %v3561 = vpop.f32.mrf.mxu0
      %v3562 = vadd.f32 0.0, %v3561
      %3563 = vmatmul.f32.gmra.mxu0 %v3518
      %v3564 = vpop.f32.mrf.mxu0
      %v3565 = vadd.f32 0.0, %v3564
      %3566 = vmatmul.f32.gmra.mxu0 %v3521
      %v3567 = vpop.f32.mrf.mxu0
      %v3568 = vadd.f32 0.0, %v3567
      %3569 = vmatmul.f32.gmra.mxu0 %v3524
      %v3570 = vpop.f32.mrf.mxu0
      %v3571 = vadd.f32 0.0, %v3570
      %3572 = vmatmul.f32.gmra.mxu0 %v3527
      %v3573 = vpop.f32.mrf.mxu0
      %v3574 = vadd.f32 0.0, %v3573
      %3575 = vmatmul.f32.gmra.mxu0 %v3530
      %v3576 = vpop.f32.mrf.mxu0
      %v3577 = vadd.f32 0.0, %v3576
      %3578 = vmatmul.f32.gmra.mxu0 %v3533
      %v3579 = vpop.f32.mrf.mxu0
      %v3580 = vadd.f32 0.0, %v3579
      %3581 = vmatmul.f32.gmra.mxu0 %v3536
      %v3582 = vpop.f32.mrf.mxu0
      %v3583 = vadd.f32 0.0, %v3582
      %3584 = vdwg.mxu0
      %3585 = vmatpush.msra.mxu0 0.0
      %3586 = vmatpush.msra.mxu0 0.0
      %3587 = vmatpush.msra.mxu0 0.0
      %3588 = vmatpush.msra.mxu0 0.0
      %3589 = vmatpush.msra.mxu0 0.0
      %3590 = vmatpush.msra.mxu0 0.0
      %3591 = vmatpush.msra.mxu0 0.0
      %3592 = vmatpush.msra.mxu0 0.0
      %3593 = vmatpush.msra.mxu0 0.0
      %3594 = vmatpush.msra.mxu0 0.0
      %3595 = vmatpush.msra.mxu0 0.0
      %3596 = vmatpush.msra.mxu0 0.0
      %3597 = vmatpush.msra.mxu0 %v545
      %3598 = vmatpush.msra.mxu0 %v543
      %3599 = vmatpush.msra.mxu0 %v541
      %3600 = vmatpush.msra.mxu0 %v539
      %3601 = vmatmul.f32.gmra.mxu0 %v3509
      %v3602 = vpop.f32.mrf.mxu0
      %v3603 = vadd.f32 0.0, %v3602
      %3604 = vmatmul.f32.gmra.mxu0 %v3512
      %v3605 = vpop.f32.mrf.mxu0
      %v3606 = vadd.f32 0.0, %v3605
      %3607 = vmatmul.f32.gmra.mxu0 %v3515
      %v3608 = vpop.f32.mrf.mxu0
      %v3609 = vadd.f32 0.0, %v3608
      %3610 = vmatmul.f32.gmra.mxu0 %v3518
      %v3611 = vpop.f32.mrf.mxu0
      %v3612 = vadd.f32 0.0, %v3611
      %3613 = vmatmul.f32.gmra.mxu0 %v3521
      %v3614 = vpop.f32.mrf.mxu0
      %v3615 = vadd.f32 0.0, %v3614
      %3616 = vmatmul.f32.gmra.mxu0 %v3524
      %v3617 = vpop.f32.mrf.mxu0
      %v3618 = vadd.f32 0.0, %v3617
      %3619 = vmatmul.f32.gmra.mxu0 %v3527
      %v3620 = vpop.f32.mrf.mxu0
      %v3621 = vadd.f32 0.0, %v3620
      %3622 = vmatmul.f32.gmra.mxu0 %v3530
      %v3623 = vpop.f32.mrf.mxu0
      %v3624 = vadd.f32 0.0, %v3623
      %3625 = vmatmul.f32.gmra.mxu0 %v3533
      %v3626 = vpop.f32.mrf.mxu0
      %v3627 = vadd.f32 0.0, %v3626
      %3628 = vmatmul.f32.gmra.mxu0 %v3536
      %v3629 = vpop.f32.mrf.mxu0
      %v3630 = vadd.f32 0.0, %v3629
      %3631 = vdwg.mxu0
      %v3632 = vadd.f32 %v3194, %v3556
      %v3633 = vadd.f32 %v3195, %v3603
      %v3634 = vadd.f32 %v3196, %v3559
      %v3635 = vadd.f32 %v3197, %v3606
      %v3636 = vadd.f32 %v3198, %v3562
      %v3637 = vadd.f32 %v3199, %v3609
      %v3638 = vadd.f32 %v3200, %v3565
      %v3639 = vadd.f32 %v3201, %v3612
      %v3640 = vadd.f32 %v3202, %v3568
      %v3641 = vadd.f32 %v3203, %v3615
      %v3642 = vadd.f32 %v3204, %v3571
      %v3643 = vadd.f32 %v3205, %v3618
      %v3644 = vadd.f32 %v3206, %v3574
      %v3645 = vadd.f32 %v3207, %v3621
      %v3646 = vadd.f32 %v3208, %v3577
      %v3647 = vadd.f32 %v3209, %v3624
      %v3648 = vadd.f32 %v3210, %v3580
      %v3649 = vadd.f32 %v3211, %v3627
      %v3650 = vadd.f32 %v3212, %v3583
      %v3651 = vadd.f32 %v3213, %v3630
      %3652 = vrot.lane.b32.xlu0 %v935, 96
      %v3653 = vpop.permute.xlu0 %3652
      %3654 = vrot.lane.b32.xlu0 %v938, 96
      %v3655 = vpop.permute.xlu0 %3654
      %3656 = vrot.lane.b32.xlu0 %v941, 96
      %v3657 = vpop.permute.xlu0 %3656
      %3658 = vrot.lane.b32.xlu0 %v944, 96
      %v3659 = vpop.permute.xlu0 %3658
      %3660 = vrot.lane.b32.xlu0 %v947, 96
      %v3661 = vpop.permute.xlu0 %3660
      %3662 = vrot.lane.b32.xlu0 %v950, 96
      %v3663 = vpop.permute.xlu0 %3662
      %3664 = vrot.lane.b32.xlu0 %v953, 96
      %v3665 = vpop.permute.xlu0 %3664
      %3666 = vrot.lane.b32.xlu0 %v956, 96
      %v3667 = vpop.permute.xlu0 %3666
      %3668 = vrot.lane.b32.xlu0 %v959, 96
      %v3669 = vpop.permute.xlu0 %3668
      %3670 = vrot.lane.b32.xlu0 %v962, 96
      %v3671 = vpop.permute.xlu0 %3670
      %3672 = vrot.lane.b32.xlu0 %v1123, 96
      %v3673 = vpop.permute.xlu0 %3672
      %3674 = vrot.lane.b32.xlu0 %v1126, 96
      %v3675 = vpop.permute.xlu0 %3674
      %3676 = vrot.lane.b32.xlu0 %v1129, 96
      %v3677 = vpop.permute.xlu0 %3676
      %3678 = vrot.lane.b32.xlu0 %v1132, 96
      %v3679 = vpop.permute.xlu0 %3678
      %3680 = vrot.lane.b32.xlu0 %v1135, 96
      %v3681 = vpop.permute.xlu0 %3680
      %3682 = vrot.lane.b32.xlu0 %v1138, 96
      %v3683 = vpop.permute.xlu0 %3682
      %3684 = vrot.lane.b32.xlu0 %v1141, 96
      %v3685 = vpop.permute.xlu0 %3684
      %3686 = vrot.lane.b32.xlu0 %v1144, 96
      %v3687 = vpop.permute.xlu0 %3686
      %3688 = vrot.lane.b32.xlu0 %v1147, 96
      %v3689 = vpop.permute.xlu0 %3688
      %3690 = vrot.lane.b32.xlu0 %v1150, 96
      %v3691 = vpop.permute.xlu0 %3690
      %v3692 = vsel %vm1340, %v3653, 0
      %v3694 = vsel %vm1340, %v3655, 0
      %v3696 = vsel %vm1340, %v3657, 0
      %v3698 = vsel %vm1340, %v3659, 0
      %v3700 = vsel %vm1340, %v3661, 0
      %v3702 = vsel %vm1340, %v3663, 0
      %v3704 = vsel %vm1340, %v3665, 0
      %v3706 = vsel %vm1340, %v3667, 0
      %v3708 = vsel %vm1340, %v3669, 0
      %v3710 = vsel %vm1340, %v3671, 0
      %v3712 = vsel %vm1340, %v3673, 0
      %v3714 = vsel %vm1340, %v3675, 0
      %v3716 = vsel %vm1340, %v3677, 0
      %v3718 = vsel %vm1340, %v3679, 0
      %v3720 = vsel %vm1340, %v3681, 0
      %v3722 = vsel %vm1340, %v3683, 0
      %v3724 = vsel %vm1340, %v3685, 0
      %v3726 = vsel %vm1340, %v3687, 0
      %v3728 = vsel %vm1340, %v3689, 0
      %v3730 = vsel %vm1340, %v3691, 0
      %3732 = vmatpush.xpose.msra.mxu0 0.0
      %3733 = vmatpush.xpose.msra.mxu0 0.0
      %3734 = vmatpush.xpose.msra.mxu0 0.0
      %3735 = vmatpush.xpose.msra.mxu0 0.0
      %3736 = vmatpush.xpose.msra.mxu0 0.0
      %3737 = vmatpush.xpose.msra.mxu0 0.0
      %3738 = vmatpush.xpose.msra.mxu0 %v3730
      %3739 = vmatpush.xpose.msra.mxu0 %v3728
      %3740 = vmatpush.xpose.msra.mxu0 %v3726
      %3741 = vmatpush.xpose.msra.mxu0 %v3724
      %3742 = vmatpush.xpose.msra.mxu0 %v3722
      %3743 = vmatpush.xpose.msra.mxu0 %v3720
      %3744 = vmatpush.xpose.msra.mxu0 %v3718
      %3745 = vmatpush.xpose.msra.mxu0 %v3716
      %3746 = vmatpush.xpose.msra.mxu0 %v3714
      %3747 = vmatpush.xpose.msra.mxu0 %v3712
      %3748 = vmatmul.f32.gmra.mxu0 %v3692
      %v3749 = vpop.f32.mrf.mxu0
      %v3750 = vadd.f32 %v496, %v3749
      %3751 = vmatmul.f32.gmra.mxu0 %v3694
      %v3752 = vpop.f32.mrf.mxu0
      %v3753 = vadd.f32 %v497, %v3752
      %3754 = vmatmul.f32.gmra.mxu0 %v3696
      %v3755 = vpop.f32.mrf.mxu0
      %v3756 = vadd.f32 %v498, %v3755
      %3757 = vmatmul.f32.gmra.mxu0 %v3698
      %v3758 = vpop.f32.mrf.mxu0
      %v3759 = vadd.f32 %v499, %v3758
      %3760 = vmatmul.f32.gmra.mxu0 %v3700
      %v3761 = vpop.f32.mrf.mxu0
      %v3762 = vadd.f32 %v500, %v3761
      %3763 = vmatmul.f32.gmra.mxu0 %v3702
      %v3764 = vpop.f32.mrf.mxu0
      %v3765 = vadd.f32 %v501, %v3764
      %3766 = vmatmul.f32.gmra.mxu0 %v3704
      %v3767 = vpop.f32.mrf.mxu0
      %v3768 = vadd.f32 %v502, %v3767
      %3769 = vmatmul.f32.gmra.mxu0 %v3706
      %v3770 = vpop.f32.mrf.mxu0
      %v3771 = vadd.f32 %v503, %v3770
      %3772 = vmatmul.f32.gmra.mxu0 %v3708
      %v3773 = vpop.f32.mrf.mxu0
      %v3774 = vadd.f32 %v504, %v3773
      %3775 = vmatmul.f32.gmra.mxu0 %v3710
      %v3776 = vpop.f32.mrf.mxu0
      %v3777 = vadd.f32 %v505, %v3776
      %3778 = vdwg.mxu0
      %v3779 = vsel %vm1448, %v3750, -inf
      %3780 = vmax.xlane.f32.xlu0 %v3779
      %v3781 = vpop.xlane.xlu0 %3780
      %v3782 = vsel %vm1448, %v3753, -inf
      %3783 = vmax.xlane.f32.xlu0 %v3782
      %v3784 = vpop.xlane.xlu0 %3783
      %v3785 = vsel %vm1448, %v3756, -inf
      %3786 = vmax.xlane.f32.xlu0 %v3785
      %v3787 = vpop.xlane.xlu0 %3786
      %v3788 = vsel %vm1448, %v3759, -inf
      %3789 = vmax.xlane.f32.xlu0 %v3788
      %v3790 = vpop.xlane.xlu0 %3789
      %v3791 = vsel %vm1448, %v3762, -inf
      %3792 = vmax.xlane.f32.xlu0 %v3791
      %v3793 = vpop.xlane.xlu0 %3792
      %v3794 = vsel %vm1448, %v3765, -inf
      %3795 = vmax.xlane.f32.xlu0 %v3794
      %v3796 = vpop.xlane.xlu0 %3795
      %v3797 = vsel %vm1448, %v3768, -inf
      %3798 = vmax.xlane.f32.xlu0 %v3797
      %v3799 = vpop.xlane.xlu0 %3798
      %v3800 = vsel %vm1448, %v3771, -inf
      %3801 = vmax.xlane.f32.xlu0 %v3800
      %v3802 = vpop.xlane.xlu0 %3801
      %v3803 = vsel %vm1448, %v3774, -inf
      %3804 = vmax.xlane.f32.xlu0 %v3803
      %v3805 = vpop.xlane.xlu0 %3804
      %v3806 = vsel %vm1448, %v3777, -inf
      %3807 = vmax.xlane.f32.xlu0 %v3806
      %v3808 = vpop.xlane.xlu0 %3807
      %v3809 = vsub.f32 %v3750, %v3781
      %v3810 = vsub.f32 %v3753, %v3784
      %v3811 = vsub.f32 %v3756, %v3787
      %v3812 = vsub.f32 %v3759, %v3790
      %v3813 = vsub.f32 %v3762, %v3793
      %v3814 = vsub.f32 %v3765, %v3796
      %v3815 = vsub.f32 %v3768, %v3799
      %v3816 = vsub.f32 %v3771, %v3802
      %v3817 = vsub.f32 %v3774, %v3805
      %v3818 = vsub.f32 %v3777, %v3808
      %v3819 = vmul.f32 %v3809, 1.442695
      %v3820 = vpow.pop %v3819
      %v3821 = vmul.f32 %v3810, 1.442695
      %v3822 = vpow.pop %v3821
      %v3823 = vmul.f32 %v3811, 1.442695
      %v3824 = vpow.pop %v3823
      %v3825 = vmul.f32 %v3812, 1.442695
      %v3826 = vpow.pop %v3825
      %v3827 = vmul.f32 %v3813, 1.442695
      %v3828 = vpow.pop %v3827
      %v3829 = vmul.f32 %v3814, 1.442695
      %v3830 = vpow.pop %v3829
      %v3831 = vmul.f32 %v3815, 1.442695
      %v3832 = vpow.pop %v3831
      %v3833 = vmul.f32 %v3816, 1.442695
      %v3834 = vpow.pop %v3833
      %v3835 = vmul.f32 %v3817, 1.442695
      %v3836 = vpow.pop %v3835
      %v3837 = vmul.f32 %v3818, 1.442695
      %v3838 = vpow.pop %v3837
      %v3839 = vsel %vm1448, %v3820, 0.0
      %3840 = vadd.xlane.f32.xlu0 %v3839
      %v3841 = vpop.xlane.xlu0 %3840
      %v3842 = vsel %vm1448, %v3822, 0.0
      %3843 = vadd.xlane.f32.xlu0 %v3842
      %v3844 = vpop.xlane.xlu0 %3843
      %v3845 = vsel %vm1448, %v3824, 0.0
      %3846 = vadd.xlane.f32.xlu0 %v3845
      %v3847 = vpop.xlane.xlu0 %3846
      %v3848 = vsel %vm1448, %v3826, 0.0
      %3849 = vadd.xlane.f32.xlu0 %v3848
      %v3850 = vpop.xlane.xlu0 %3849
      %v3851 = vsel %vm1448, %v3828, 0.0
      %3852 = vadd.xlane.f32.xlu0 %v3851
      %v3853 = vpop.xlane.xlu0 %3852
      %v3854 = vsel %vm1448, %v3830, 0.0
      %3855 = vadd.xlane.f32.xlu0 %v3854
      %v3856 = vpop.xlane.xlu0 %3855
      %v3857 = vsel %vm1448, %v3832, 0.0
      %3858 = vadd.xlane.f32.xlu0 %v3857
      %v3859 = vpop.xlane.xlu0 %3858
      %v3860 = vsel %vm1448, %v3834, 0.0
      %3861 = vadd.xlane.f32.xlu0 %v3860
      %v3862 = vpop.xlane.xlu0 %3861
      %v3863 = vsel %vm1448, %v3836, 0.0
      %3864 = vadd.xlane.f32.xlu0 %v3863
      %v3865 = vpop.xlane.xlu0 %3864
      %v3866 = vsel %vm1448, %v3838, 0.0
      %3867 = vadd.xlane.f32.xlu0 %v3866
      %v3868 = vpop.xlane.xlu0 %3867
      %v3869 = vrcp.pop %v3841
      %v3870 = vrcp.pop %v3844
      %v3871 = vrcp.pop %v3847
      %v3872 = vrcp.pop %v3850
      %v3873 = vrcp.pop %v3853
      %v3874 = vrcp.pop %v3856
      %v3875 = vrcp.pop %v3859
      %v3876 = vrcp.pop %v3862
      %v3877 = vrcp.pop %v3865
      %v3878 = vrcp.pop %v3868
      %v3879 = vmul.f32 %v3820, %v3869
      %v3880 = vmul.f32 %v3822, %v3870
      %v3881 = vmul.f32 %v3824, %v3871
      %v3882 = vmul.f32 %v3826, %v3872
      %v3883 = vmul.f32 %v3828, %v3873
      %v3884 = vmul.f32 %v3830, %v3874
      %v3885 = vmul.f32 %v3832, %v3875
      %v3886 = vmul.f32 %v3834, %v3876
      %v3887 = vmul.f32 %v3836, %v3877
      %v3888 = vmul.f32 %v3838, %v3878
      %3899 = vrot.lane.b32.xlu0 %v1311, 96
      %v3900 = vpop.permute.xlu0 %3899
      %3901 = vrot.lane.b32.xlu0 %v1314, 96
      %v3902 = vpop.permute.xlu0 %3901
      %3903 = vrot.lane.b32.xlu0 %v1317, 96
      %v3904 = vpop.permute.xlu0 %3903
      %3905 = vrot.lane.b32.xlu0 %v1320, 96
      %v3906 = vpop.permute.xlu0 %3905
      %3907 = vrot.lane.b32.xlu0 %v1323, 96
      %v3908 = vpop.permute.xlu0 %3907
      %3909 = vrot.lane.b32.xlu0 %v1326, 96
      %v3910 = vpop.permute.xlu0 %3909
      %3911 = vrot.lane.b32.xlu0 %v1329, 96
      %v3912 = vpop.permute.xlu0 %3911
      %3913 = vrot.lane.b32.xlu0 %v1332, 96
      %v3914 = vpop.permute.xlu0 %3913
      %3915 = vrot.lane.b32.xlu0 %v1335, 96
      %v3916 = vpop.permute.xlu0 %3915
      %3917 = vrot.lane.b32.xlu0 %v1338, 96
      %v3918 = vpop.permute.xlu0 %3917
      %v3930 = vsel %vm1448, %v3879, 0
      %v3933 = vsel %vm1448, %v3880, 0
      %v3936 = vsel %vm1448, %v3881, 0
      %v3939 = vsel %vm1448, %v3882, 0
      %v3942 = vsel %vm1448, %v3883, 0
      %v3945 = vsel %vm1448, %v3884, 0
      %v3948 = vsel %vm1448, %v3885, 0
      %v3951 = vsel %vm1448, %v3886, 0
      %v3954 = vsel %vm1448, %v3887, 0
      %v3957 = vsel %vm1448, %v3888, 0
      %3959 = vmatpush.msra.mxu0 0.0
      %3960 = vmatpush.msra.mxu0 0.0
      %3961 = vmatpush.msra.mxu0 0.0
      %3962 = vmatpush.msra.mxu0 0.0
      %3963 = vmatpush.msra.mxu0 0.0
      %3964 = vmatpush.msra.mxu0 0.0
      %3965 = vmatpush.msra.mxu0 %v3918
      %3966 = vmatpush.msra.mxu0 %v3916
      %3967 = vmatpush.msra.mxu0 %v3914
      %3968 = vmatpush.msra.mxu0 %v3912
      %3969 = vmatpush.msra.mxu0 %v3910
      %3970 = vmatpush.msra.mxu0 %v3908
      %3971 = vmatpush.msra.mxu0 %v3906
      %3972 = vmatpush.msra.mxu0 %v3904
      %3973 = vmatpush.msra.mxu0 %v3902
      %3974 = vmatpush.msra.mxu0 %v3900
      %3975 = vmatmul.f32.gmra.mxu0 %v3930
      %v3976 = vpop.f32.mrf.mxu0
      %v3977 = vadd.f32 0.0, %v3976
      %3978 = vmatmul.f32.gmra.mxu0 %v3933
      %v3979 = vpop.f32.mrf.mxu0
      %v3980 = vadd.f32 0.0, %v3979
      %3981 = vmatmul.f32.gmra.mxu0 %v3936
      %v3982 = vpop.f32.mrf.mxu0
      %v3983 = vadd.f32 0.0, %v3982
      %3984 = vmatmul.f32.gmra.mxu0 %v3939
      %v3985 = vpop.f32.mrf.mxu0
      %v3986 = vadd.f32 0.0, %v3985
      %3987 = vmatmul.f32.gmra.mxu0 %v3942
      %v3988 = vpop.f32.mrf.mxu0
      %v3989 = vadd.f32 0.0, %v3988
      %3990 = vmatmul.f32.gmra.mxu0 %v3945
      %v3991 = vpop.f32.mrf.mxu0
      %v3992 = vadd.f32 0.0, %v3991
      %3993 = vmatmul.f32.gmra.mxu0 %v3948
      %v3994 = vpop.f32.mrf.mxu0
      %v3995 = vadd.f32 0.0, %v3994
      %3996 = vmatmul.f32.gmra.mxu0 %v3951
      %v3997 = vpop.f32.mrf.mxu0
      %v3998 = vadd.f32 0.0, %v3997
      %3999 = vmatmul.f32.gmra.mxu0 %v3954
      %v4000 = vpop.f32.mrf.mxu0
      %v4001 = vadd.f32 0.0, %v4000
      %4002 = vmatmul.f32.gmra.mxu0 %v3957
      %v4003 = vpop.f32.mrf.mxu0
      %v4004 = vadd.f32 0.0, %v4003
      %4005 = vdwg.mxu0
      %v4007 = vsel %vm1340, %v3977, 0
      %v4010 = vsel %vm1340, %v3980, 0
      %v4013 = vsel %vm1340, %v3983, 0
      %v4016 = vsel %vm1340, %v3986, 0
      %v4019 = vsel %vm1340, %v3989, 0
      %v4022 = vsel %vm1340, %v3992, 0
      %v4025 = vsel %vm1340, %v3995, 0
      %v4028 = vsel %vm1340, %v3998, 0
      %v4031 = vsel %vm1340, %v4001, 0
      %v4034 = vsel %vm1340, %v4004, 0
      %4036 = vmatpush.msra.mxu0 0.0
      %4037 = vmatpush.msra.mxu0 0.0
      %4038 = vmatpush.msra.mxu0 0.0
      %4039 = vmatpush.msra.mxu0 0.0
      %4040 = vmatpush.msra.mxu0 0.0
      %4041 = vmatpush.msra.mxu0 0.0
      %4042 = vmatpush.msra.mxu0 0.0
      %4043 = vmatpush.msra.mxu0 0.0
      %4044 = vmatpush.msra.mxu0 0.0
      %4045 = vmatpush.msra.mxu0 0.0
      %4046 = vmatpush.msra.mxu0 0.0
      %4047 = vmatpush.msra.mxu0 0.0
      %4048 = vmatpush.msra.mxu0 %v552
      %4049 = vmatpush.msra.mxu0 %v550
      %4050 = vmatpush.msra.mxu0 %v548
      %4051 = vmatpush.msra.mxu0 %v546
      %4052 = vmatmul.f32.gmra.mxu0 %v4007
      %v4053 = vpop.f32.mrf.mxu0
      %v4054 = vadd.f32 0.0, %v4053
      %4055 = vmatmul.f32.gmra.mxu0 %v4010
      %v4056 = vpop.f32.mrf.mxu0
      %v4057 = vadd.f32 0.0, %v4056
      %4058 = vmatmul.f32.gmra.mxu0 %v4013
      %v4059 = vpop.f32.mrf.mxu0
      %v4060 = vadd.f32 0.0, %v4059
      %4061 = vmatmul.f32.gmra.mxu0 %v4016
      %v4062 = vpop.f32.mrf.mxu0
      %v4063 = vadd.f32 0.0, %v4062
      %4064 = vmatmul.f32.gmra.mxu0 %v4019
      %v4065 = vpop.f32.mrf.mxu0
      %v4066 = vadd.f32 0.0, %v4065
      %4067 = vmatmul.f32.gmra.mxu0 %v4022
      %v4068 = vpop.f32.mrf.mxu0
      %v4069 = vadd.f32 0.0, %v4068
      %4070 = vmatmul.f32.gmra.mxu0 %v4025
      %v4071 = vpop.f32.mrf.mxu0
      %v4072 = vadd.f32 0.0, %v4071
      %4073 = vmatmul.f32.gmra.mxu0 %v4028
      %v4074 = vpop.f32.mrf.mxu0
      %v4075 = vadd.f32 0.0, %v4074
      %4076 = vmatmul.f32.gmra.mxu0 %v4031
      %v4077 = vpop.f32.mrf.mxu0
      %v4078 = vadd.f32 0.0, %v4077
      %4079 = vmatmul.f32.gmra.mxu0 %v4034
      %v4080 = vpop.f32.mrf.mxu0
      %v4081 = vadd.f32 0.0, %v4080
      %4082 = vdwg.mxu0
      %4083 = vmatpush.msra.mxu0 0.0
      %4084 = vmatpush.msra.mxu0 0.0
      %4085 = vmatpush.msra.mxu0 0.0
      %4086 = vmatpush.msra.mxu0 0.0
      %4087 = vmatpush.msra.mxu0 0.0
      %4088 = vmatpush.msra.mxu0 0.0
      %4089 = vmatpush.msra.mxu0 0.0
      %4090 = vmatpush.msra.mxu0 0.0
      %4091 = vmatpush.msra.mxu0 0.0
      %4092 = vmatpush.msra.mxu0 0.0
      %4093 = vmatpush.msra.mxu0 0.0
      %4094 = vmatpush.msra.mxu0 0.0
      %4095 = vmatpush.msra.mxu0 %v553
      %4096 = vmatpush.msra.mxu0 %v551
      %4097 = vmatpush.msra.mxu0 %v549
      %4098 = vmatpush.msra.mxu0 %v547
      %4099 = vmatmul.f32.gmra.mxu0 %v4007
      %v4100 = vpop.f32.mrf.mxu0
      %v4101 = vadd.f32 0.0, %v4100
      %4102 = vmatmul.f32.gmra.mxu0 %v4010
      %v4103 = vpop.f32.mrf.mxu0
      %v4104 = vadd.f32 0.0, %v4103
      %4105 = vmatmul.f32.gmra.mxu0 %v4013
      %v4106 = vpop.f32.mrf.mxu0
      %v4107 = vadd.f32 0.0, %v4106
      %4108 = vmatmul.f32.gmra.mxu0 %v4016
      %v4109 = vpop.f32.mrf.mxu0
      %v4110 = vadd.f32 0.0, %v4109
      %4111 = vmatmul.f32.gmra.mxu0 %v4019
      %v4112 = vpop.f32.mrf.mxu0
      %v4113 = vadd.f32 0.0, %v4112
      %4114 = vmatmul.f32.gmra.mxu0 %v4022
      %v4115 = vpop.f32.mrf.mxu0
      %v4116 = vadd.f32 0.0, %v4115
      %4117 = vmatmul.f32.gmra.mxu0 %v4025
      %v4118 = vpop.f32.mrf.mxu0
      %v4119 = vadd.f32 0.0, %v4118
      %4120 = vmatmul.f32.gmra.mxu0 %v4028
      %v4121 = vpop.f32.mrf.mxu0
      %v4122 = vadd.f32 0.0, %v4121
      %4123 = vmatmul.f32.gmra.mxu0 %v4031
      %v4124 = vpop.f32.mrf.mxu0
      %v4125 = vadd.f32 0.0, %v4124
      %4126 = vmatmul.f32.gmra.mxu0 %v4034
      %v4127 = vpop.f32.mrf.mxu0
      %v4128 = vadd.f32 0.0, %v4127
      %4129 = vdwg.mxu0
      %v4130 = vadd.f32 %v3632, %v4054
      %v4131 = vadd.f32 %v3633, %v4101
      %v4132 = vadd.f32 %v3634, %v4057
      %v4133 = vadd.f32 %v3635, %v4104
      %v4134 = vadd.f32 %v3636, %v4060
      %v4135 = vadd.f32 %v3637, %v4107
      %v4136 = vadd.f32 %v3638, %v4063
      %v4137 = vadd.f32 %v3639, %v4110
      %v4138 = vadd.f32 %v3640, %v4066
      %v4139 = vadd.f32 %v3641, %v4113
      %v4140 = vadd.f32 %v3642, %v4069
      %v4141 = vadd.f32 %v3643, %v4116
      %v4142 = vadd.f32 %v3644, %v4072
      %v4143 = vadd.f32 %v3645, %v4119
      %v4144 = vadd.f32 %v3646, %v4075
      %v4145 = vadd.f32 %v3647, %v4122
      %v4146 = vadd.f32 %v3648, %v4078
      %v4147 = vadd.f32 %v3649, %v4125
      %v4148 = vadd.f32 %v3650, %v4081
      %v4149 = vadd.f32 %v3651, %v4128
      %4150 = vrot.lane.b32.xlu0 %v935, 64
      %v4151 = vpop.permute.xlu0 %4150
      %4152 = vrot.lane.b32.xlu0 %v938, 64
      %v4153 = vpop.permute.xlu0 %4152
      %4154 = vrot.lane.b32.xlu0 %v941, 64
      %v4155 = vpop.permute.xlu0 %4154
      %4156 = vrot.lane.b32.xlu0 %v944, 64
      %v4157 = vpop.permute.xlu0 %4156
      %4158 = vrot.lane.b32.xlu0 %v947, 64
      %v4159 = vpop.permute.xlu0 %4158
      %4160 = vrot.lane.b32.xlu0 %v950, 64
      %v4161 = vpop.permute.xlu0 %4160
      %4162 = vrot.lane.b32.xlu0 %v953, 64
      %v4163 = vpop.permute.xlu0 %4162
      %4164 = vrot.lane.b32.xlu0 %v956, 64
      %v4165 = vpop.permute.xlu0 %4164
      %4166 = vrot.lane.b32.xlu0 %v959, 64
      %v4167 = vpop.permute.xlu0 %4166
      %4168 = vrot.lane.b32.xlu0 %v962, 64
      %v4169 = vpop.permute.xlu0 %4168
      %4170 = vrot.lane.b32.xlu0 %v1123, 64
      %v4171 = vpop.permute.xlu0 %4170
      %4172 = vrot.lane.b32.xlu0 %v1126, 64
      %v4173 = vpop.permute.xlu0 %4172
      %4174 = vrot.lane.b32.xlu0 %v1129, 64
      %v4175 = vpop.permute.xlu0 %4174
      %4176 = vrot.lane.b32.xlu0 %v1132, 64
      %v4177 = vpop.permute.xlu0 %4176
      %4178 = vrot.lane.b32.xlu0 %v1135, 64
      %v4179 = vpop.permute.xlu0 %4178
      %4180 = vrot.lane.b32.xlu0 %v1138, 64
      %v4181 = vpop.permute.xlu0 %4180
      %4182 = vrot.lane.b32.xlu0 %v1141, 64
      %v4183 = vpop.permute.xlu0 %4182
      %4184 = vrot.lane.b32.xlu0 %v1144, 64
      %v4185 = vpop.permute.xlu0 %4184
      %4186 = vrot.lane.b32.xlu0 %v1147, 64
      %v4187 = vpop.permute.xlu0 %4186
      %4188 = vrot.lane.b32.xlu0 %v1150, 64
      %v4189 = vpop.permute.xlu0 %4188
      %v4190 = vsel %vm1340, %v4151, 0
      %v4192 = vsel %vm1340, %v4153, 0
      %v4194 = vsel %vm1340, %v4155, 0
      %v4196 = vsel %vm1340, %v4157, 0
      %v4198 = vsel %vm1340, %v4159, 0
      %v4200 = vsel %vm1340, %v4161, 0
      %v4202 = vsel %vm1340, %v4163, 0
      %v4204 = vsel %vm1340, %v4165, 0
      %v4206 = vsel %vm1340, %v4167, 0
      %v4208 = vsel %vm1340, %v4169, 0
      %v4210 = vsel %vm1340, %v4171, 0
      %v4212 = vsel %vm1340, %v4173, 0
      %v4214 = vsel %vm1340, %v4175, 0
      %v4216 = vsel %vm1340, %v4177, 0
      %v4218 = vsel %vm1340, %v4179, 0
      %v4220 = vsel %vm1340, %v4181, 0
      %v4222 = vsel %vm1340, %v4183, 0
      %v4224 = vsel %vm1340, %v4185, 0
      %v4226 = vsel %vm1340, %v4187, 0
      %v4228 = vsel %vm1340, %v4189, 0
      %4230 = vmatpush.xpose.msra.mxu0 0.0
      %4231 = vmatpush.xpose.msra.mxu0 0.0
      %4232 = vmatpush.xpose.msra.mxu0 0.0
      %4233 = vmatpush.xpose.msra.mxu0 0.0
      %4234 = vmatpush.xpose.msra.mxu0 0.0
      %4235 = vmatpush.xpose.msra.mxu0 0.0
      %4236 = vmatpush.xpose.msra.mxu0 %v4228
      %4237 = vmatpush.xpose.msra.mxu0 %v4226
      %4238 = vmatpush.xpose.msra.mxu0 %v4224
      %4239 = vmatpush.xpose.msra.mxu0 %v4222
      %4240 = vmatpush.xpose.msra.mxu0 %v4220
      %4241 = vmatpush.xpose.msra.mxu0 %v4218
      %4242 = vmatpush.xpose.msra.mxu0 %v4216
      %4243 = vmatpush.xpose.msra.mxu0 %v4214
      %4244 = vmatpush.xpose.msra.mxu0 %v4212
      %4245 = vmatpush.xpose.msra.mxu0 %v4210
      %4246 = vmatmul.f32.gmra.mxu0 %v4190
      %v4247 = vpop.f32.mrf.mxu0
      %v4248 = vadd.f32 %v496, %v4247
      %4249 = vmatmul.f32.gmra.mxu0 %v4192
      %v4250 = vpop.f32.mrf.mxu0
      %v4251 = vadd.f32 %v497, %v4250
      %4252 = vmatmul.f32.gmra.mxu0 %v4194
      %v4253 = vpop.f32.mrf.mxu0
      %v4254 = vadd.f32 %v498, %v4253
      %4255 = vmatmul.f32.gmra.mxu0 %v4196
      %v4256 = vpop.f32.mrf.mxu0
      %v4257 = vadd.f32 %v499, %v4256
      %4258 = vmatmul.f32.gmra.mxu0 %v4198
      %v4259 = vpop.f32.mrf.mxu0
      %v4260 = vadd.f32 %v500, %v4259
      %4261 = vmatmul.f32.gmra.mxu0 %v4200
      %v4262 = vpop.f32.mrf.mxu0
      %v4263 = vadd.f32 %v501, %v4262
      %4264 = vmatmul.f32.gmra.mxu0 %v4202
      %v4265 = vpop.f32.mrf.mxu0
      %v4266 = vadd.f32 %v502, %v4265
      %4267 = vmatmul.f32.gmra.mxu0 %v4204
      %v4268 = vpop.f32.mrf.mxu0
      %v4269 = vadd.f32 %v503, %v4268
      %4270 = vmatmul.f32.gmra.mxu0 %v4206
      %v4271 = vpop.f32.mrf.mxu0
      %v4272 = vadd.f32 %v504, %v4271
      %4273 = vmatmul.f32.gmra.mxu0 %v4208
      %v4274 = vpop.f32.mrf.mxu0
      %v4275 = vadd.f32 %v505, %v4274
      %4276 = vdwg.mxu0
      %v4277 = vsel %vm1448, %v4248, -inf
      %4278 = vmax.xlane.f32.xlu0 %v4277
      %v4279 = vpop.xlane.xlu0 %4278
      %v4280 = vsel %vm1448, %v4251, -inf
      %4281 = vmax.xlane.f32.xlu0 %v4280
      %v4282 = vpop.xlane.xlu0 %4281
      %v4283 = vsel %vm1448, %v4254, -inf
      %4284 = vmax.xlane.f32.xlu0 %v4283
      %v4285 = vpop.xlane.xlu0 %4284
      %v4286 = vsel %vm1448, %v4257, -inf
      %4287 = vmax.xlane.f32.xlu0 %v4286
      %v4288 = vpop.xlane.xlu0 %4287
      %v4289 = vsel %vm1448, %v4260, -inf
      %4290 = vmax.xlane.f32.xlu0 %v4289
      %v4291 = vpop.xlane.xlu0 %4290
      %v4292 = vsel %vm1448, %v4263, -inf
      %4293 = vmax.xlane.f32.xlu0 %v4292
      %v4294 = vpop.xlane.xlu0 %4293
      %v4295 = vsel %vm1448, %v4266, -inf
      %4296 = vmax.xlane.f32.xlu0 %v4295
      %v4297 = vpop.xlane.xlu0 %4296
      %v4298 = vsel %vm1448, %v4269, -inf
      %4299 = vmax.xlane.f32.xlu0 %v4298
      %v4300 = vpop.xlane.xlu0 %4299
      %v4301 = vsel %vm1448, %v4272, -inf
      %4302 = vmax.xlane.f32.xlu0 %v4301
      %v4303 = vpop.xlane.xlu0 %4302
      %v4304 = vsel %vm1448, %v4275, -inf
      %4305 = vmax.xlane.f32.xlu0 %v4304
      %v4306 = vpop.xlane.xlu0 %4305
      %v4307 = vsub.f32 %v4248, %v4279
      %v4308 = vsub.f32 %v4251, %v4282
      %v4309 = vsub.f32 %v4254, %v4285
      %v4310 = vsub.f32 %v4257, %v4288
      %v4311 = vsub.f32 %v4260, %v4291
      %v4312 = vsub.f32 %v4263, %v4294
      %v4313 = vsub.f32 %v4266, %v4297
      %v4314 = vsub.f32 %v4269, %v4300
      %v4315 = vsub.f32 %v4272, %v4303
      %v4316 = vsub.f32 %v4275, %v4306
      %v4317 = vmul.f32 %v4307, 1.442695
      %v4318 = vpow.pop %v4317
      %v4319 = vmul.f32 %v4308, 1.442695
      %v4320 = vpow.pop %v4319
      %v4321 = vmul.f32 %v4309, 1.442695
      %v4322 = vpow.pop %v4321
      %v4323 = vmul.f32 %v4310, 1.442695
      %v4324 = vpow.pop %v4323
      %v4325 = vmul.f32 %v4311, 1.442695
      %v4326 = vpow.pop %v4325
      %v4327 = vmul.f32 %v4312, 1.442695
      %v4328 = vpow.pop %v4327
      %v4329 = vmul.f32 %v4313, 1.442695
      %v4330 = vpow.pop %v4329
      %v4331 = vmul.f32 %v4314, 1.442695
      %v4332 = vpow.pop %v4331
      %v4333 = vmul.f32 %v4315, 1.442695
      %v4334 = vpow.pop %v4333
      %v4335 = vmul.f32 %v4316, 1.442695
      %v4336 = vpow.pop %v4335
      %v4337 = vsel %vm1448, %v4318, 0.0
      %4338 = vadd.xlane.f32.xlu0 %v4337
      %v4339 = vpop.xlane.xlu0 %4338
      %v4340 = vsel %vm1448, %v4320, 0.0
      %4341 = vadd.xlane.f32.xlu0 %v4340
      %v4342 = vpop.xlane.xlu0 %4341
      %v4343 = vsel %vm1448, %v4322, 0.0
      %4344 = vadd.xlane.f32.xlu0 %v4343
      %v4345 = vpop.xlane.xlu0 %4344
      %v4346 = vsel %vm1448, %v4324, 0.0
      %4347 = vadd.xlane.f32.xlu0 %v4346
      %v4348 = vpop.xlane.xlu0 %4347
      %v4349 = vsel %vm1448, %v4326, 0.0
      %4350 = vadd.xlane.f32.xlu0 %v4349
      %v4351 = vpop.xlane.xlu0 %4350
      %v4352 = vsel %vm1448, %v4328, 0.0
      %4353 = vadd.xlane.f32.xlu0 %v4352
      %v4354 = vpop.xlane.xlu0 %4353
      %v4355 = vsel %vm1448, %v4330, 0.0
      %4356 = vadd.xlane.f32.xlu0 %v4355
      %v4357 = vpop.xlane.xlu0 %4356
      %v4358 = vsel %vm1448, %v4332, 0.0
      %4359 = vadd.xlane.f32.xlu0 %v4358
      %v4360 = vpop.xlane.xlu0 %4359
      %v4361 = vsel %vm1448, %v4334, 0.0
      %4362 = vadd.xlane.f32.xlu0 %v4361
      %v4363 = vpop.xlane.xlu0 %4362
      %v4364 = vsel %vm1448, %v4336, 0.0
      %4365 = vadd.xlane.f32.xlu0 %v4364
      %v4366 = vpop.xlane.xlu0 %4365
      %v4367 = vrcp.pop %v4339
      %v4368 = vrcp.pop %v4342
      %v4369 = vrcp.pop %v4345
      %v4370 = vrcp.pop %v4348
      %v4371 = vrcp.pop %v4351
      %v4372 = vrcp.pop %v4354
      %v4373 = vrcp.pop %v4357
      %v4374 = vrcp.pop %v4360
      %v4375 = vrcp.pop %v4363
      %v4376 = vrcp.pop %v4366
      %v4377 = vmul.f32 %v4318, %v4367
      %v4378 = vmul.f32 %v4320, %v4368
      %v4379 = vmul.f32 %v4322, %v4369
      %v4380 = vmul.f32 %v4324, %v4370
      %v4381 = vmul.f32 %v4326, %v4371
      %v4382 = vmul.f32 %v4328, %v4372
      %v4383 = vmul.f32 %v4330, %v4373
      %v4384 = vmul.f32 %v4332, %v4374
      %v4385 = vmul.f32 %v4334, %v4375
      %v4386 = vmul.f32 %v4336, %v4376
      %4387 = vrot.lane.b32.xlu0 %v1311, 64
      %v4388 = vpop.permute.xlu0 %4387
      %4389 = vrot.lane.b32.xlu0 %v1314, 64
      %v4390 = vpop.permute.xlu0 %4389
      %4391 = vrot.lane.b32.xlu0 %v1317, 64
      %v4392 = vpop.permute.xlu0 %4391
      %4393 = vrot.lane.b32.xlu0 %v1320, 64
      %v4394 = vpop.permute.xlu0 %4393
      %4395 = vrot.lane.b32.xlu0 %v1323, 64
      %v4396 = vpop.permute.xlu0 %4395
      %4397 = vrot.lane.b32.xlu0 %v1326, 64
      %v4398 = vpop.permute.xlu0 %4397
      %4399 = vrot.lane.b32.xlu0 %v1329, 64
      %v4400 = vpop.permute.xlu0 %4399
      %4401 = vrot.lane.b32.xlu0 %v1332, 64
      %v4402 = vpop.permute.xlu0 %4401
      %4403 = vrot.lane.b32.xlu0 %v1335, 64
      %v4404 = vpop.permute.xlu0 %4403
      %4405 = vrot.lane.b32.xlu0 %v1338, 64
      %v4406 = vpop.permute.xlu0 %4405
      %v4418 = vsel %vm1448, %v4377, 0
      %v4421 = vsel %vm1448, %v4378, 0
      %v4424 = vsel %vm1448, %v4379, 0
      %v4427 = vsel %vm1448, %v4380, 0
      %v4430 = vsel %vm1448, %v4381, 0
      %v4433 = vsel %vm1448, %v4382, 0
      %v4436 = vsel %vm1448, %v4383, 0
      %v4439 = vsel %vm1448, %v4384, 0
      %v4442 = vsel %vm1448, %v4385, 0
      %v4445 = vsel %vm1448, %v4386, 0
      %4447 = vmatpush.msra.mxu0 0.0
      %4448 = vmatpush.msra.mxu0 0.0
      %4449 = vmatpush.msra.mxu0 0.0
      %4450 = vmatpush.msra.mxu0 0.0
      %4451 = vmatpush.msra.mxu0 0.0
      %4452 = vmatpush.msra.mxu0 0.0
      %4453 = vmatpush.msra.mxu0 %v4406
      %4454 = vmatpush.msra.mxu0 %v4404
      %4455 = vmatpush.msra.mxu0 %v4402
      %4456 = vmatpush.msra.mxu0 %v4400
      %4457 = vmatpush.msra.mxu0 %v4398
      %4458 = vmatpush.msra.mxu0 %v4396
      %4459 = vmatpush.msra.mxu0 %v4394
      %4460 = vmatpush.msra.mxu0 %v4392
      %4461 = vmatpush.msra.mxu0 %v4390
      %4462 = vmatpush.msra.mxu0 %v4388
      %4463 = vmatmul.f32.gmra.mxu0 %v4418
      %v4464 = vpop.f32.mrf.mxu0
      %v4465 = vadd.f32 0.0, %v4464
      %4466 = vmatmul.f32.gmra.mxu0 %v4421
      %v4467 = vpop.f32.mrf.mxu0
      %v4468 = vadd.f32 0.0, %v4467
      %4469 = vmatmul.f32.gmra.mxu0 %v4424
      %v4470 = vpop.f32.mrf.mxu0
      %v4471 = vadd.f32 0.0, %v4470
      %4472 = vmatmul.f32.gmra.mxu0 %v4427
      %v4473 = vpop.f32.mrf.mxu0
      %v4474 = vadd.f32 0.0, %v4473
      %4475 = vmatmul.f32.gmra.mxu0 %v4430
      %v4476 = vpop.f32.mrf.mxu0
      %v4477 = vadd.f32 0.0, %v4476
      %4478 = vmatmul.f32.gmra.mxu0 %v4433
      %v4479 = vpop.f32.mrf.mxu0
      %v4480 = vadd.f32 0.0, %v4479
      %4481 = vmatmul.f32.gmra.mxu0 %v4436
      %v4482 = vpop.f32.mrf.mxu0
      %v4483 = vadd.f32 0.0, %v4482
      %4484 = vmatmul.f32.gmra.mxu0 %v4439
      %v4485 = vpop.f32.mrf.mxu0
      %v4486 = vadd.f32 0.0, %v4485
      %4487 = vmatmul.f32.gmra.mxu0 %v4442
      %v4488 = vpop.f32.mrf.mxu0
      %v4489 = vadd.f32 0.0, %v4488
      %4490 = vmatmul.f32.gmra.mxu0 %v4445
      %v4491 = vpop.f32.mrf.mxu0
      %v4492 = vadd.f32 0.0, %v4491
      %4493 = vdwg.mxu0
      %v4495 = vsel %vm1340, %v4465, 0
      %v4498 = vsel %vm1340, %v4468, 0
      %v4501 = vsel %vm1340, %v4471, 0
      %v4504 = vsel %vm1340, %v4474, 0
      %v4507 = vsel %vm1340, %v4477, 0
      %v4510 = vsel %vm1340, %v4480, 0
      %v4513 = vsel %vm1340, %v4483, 0
      %v4516 = vsel %vm1340, %v4486, 0
      %v4519 = vsel %vm1340, %v4489, 0
      %v4522 = vsel %vm1340, %v4492, 0
      %4524 = vmatpush.msra.mxu0 0.0
      %4525 = vmatpush.msra.mxu0 0.0
      %4526 = vmatpush.msra.mxu0 0.0
      %4527 = vmatpush.msra.mxu0 0.0
      %4528 = vmatpush.msra.mxu0 0.0
      %4529 = vmatpush.msra.mxu0 0.0
      %4530 = vmatpush.msra.mxu0 0.0
      %4531 = vmatpush.msra.mxu0 0.0
      %4532 = vmatpush.msra.mxu0 0.0
      %4533 = vmatpush.msra.mxu0 0.0
      %4534 = vmatpush.msra.mxu0 0.0
      %4535 = vmatpush.msra.mxu0 0.0
      %4536 = vmatpush.msra.mxu0 %v560
      %4537 = vmatpush.msra.mxu0 %v558
      %4538 = vmatpush.msra.mxu0 %v556
      %4539 = vmatpush.msra.mxu0 %v554
      %4540 = vmatmul.f32.gmra.mxu0 %v4495
      %v4541 = vpop.f32.mrf.mxu0
      %v4542 = vadd.f32 0.0, %v4541
      %4543 = vmatmul.f32.gmra.mxu0 %v4498
      %v4544 = vpop.f32.mrf.mxu0
      %v4545 = vadd.f32 0.0, %v4544
      %4546 = vmatmul.f32.gmra.mxu0 %v4501
      %v4547 = vpop.f32.mrf.mxu0
      %v4548 = vadd.f32 0.0, %v4547
      %4549 = vmatmul.f32.gmra.mxu0 %v4504
      %v4550 = vpop.f32.mrf.mxu0
      %v4551 = vadd.f32 0.0, %v4550
      %4552 = vmatmul.f32.gmra.mxu0 %v4507
      %v4553 = vpop.f32.mrf.mxu0
      %v4554 = vadd.f32 0.0, %v4553
      %4555 = vmatmul.f32.gmra.mxu0 %v4510
      %v4556 = vpop.f32.mrf.mxu0
      %v4557 = vadd.f32 0.0, %v4556
      %4558 = vmatmul.f32.gmra.mxu0 %v4513
      %v4559 = vpop.f32.mrf.mxu0
      %v4560 = vadd.f32 0.0, %v4559
      %4561 = vmatmul.f32.gmra.mxu0 %v4516
      %v4562 = vpop.f32.mrf.mxu0
      %v4563 = vadd.f32 0.0, %v4562
      %4564 = vmatmul.f32.gmra.mxu0 %v4519
      %v4565 = vpop.f32.mrf.mxu0
      %v4566 = vadd.f32 0.0, %v4565
      %4567 = vmatmul.f32.gmra.mxu0 %v4522
      %v4568 = vpop.f32.mrf.mxu0
      %v4569 = vadd.f32 0.0, %v4568
      %4570 = vdwg.mxu0
      %4571 = vmatpush.msra.mxu0 0.0
      %4572 = vmatpush.msra.mxu0 0.0
      %4573 = vmatpush.msra.mxu0 0.0
      %4574 = vmatpush.msra.mxu0 0.0
      %4575 = vmatpush.msra.mxu0 0.0
      %4576 = vmatpush.msra.mxu0 0.0
      %4577 = vmatpush.msra.mxu0 0.0
      %4578 = vmatpush.msra.mxu0 0.0
      %4579 = vmatpush.msra.mxu0 0.0
      %4580 = vmatpush.msra.mxu0 0.0
      %4581 = vmatpush.msra.mxu0 0.0
      %4582 = vmatpush.msra.mxu0 0.0
      %4583 = vmatpush.msra.mxu0 %v561
      %4584 = vmatpush.msra.mxu0 %v559
      %4585 = vmatpush.msra.mxu0 %v557
      %4586 = vmatpush.msra.mxu0 %v555
      %4587 = vmatmul.f32.gmra.mxu0 %v4495
      %v4588 = vpop.f32.mrf.mxu0
      %v4589 = vadd.f32 0.0, %v4588
      %4590 = vmatmul.f32.gmra.mxu0 %v4498
      %v4591 = vpop.f32.mrf.mxu0
      %v4592 = vadd.f32 0.0, %v4591
      %4593 = vmatmul.f32.gmra.mxu0 %v4501
      %v4594 = vpop.f32.mrf.mxu0
      %v4595 = vadd.f32 0.0, %v4594
      %4596 = vmatmul.f32.gmra.mxu0 %v4504
      %v4597 = vpop.f32.mrf.mxu0
      %v4598 = vadd.f32 0.0, %v4597
      %4599 = vmatmul.f32.gmra.mxu0 %v4507
      %v4600 = vpop.f32.mrf.mxu0
      %v4601 = vadd.f32 0.0, %v4600
      %4602 = vmatmul.f32.gmra.mxu0 %v4510
      %v4603 = vpop.f32.mrf.mxu0
      %v4604 = vadd.f32 0.0, %v4603
      %4605 = vmatmul.f32.gmra.mxu0 %v4513
      %v4606 = vpop.f32.mrf.mxu0
      %v4607 = vadd.f32 0.0, %v4606
      %4608 = vmatmul.f32.gmra.mxu0 %v4516
      %v4609 = vpop.f32.mrf.mxu0
      %v4610 = vadd.f32 0.0, %v4609
      %4611 = vmatmul.f32.gmra.mxu0 %v4519
      %v4612 = vpop.f32.mrf.mxu0
      %v4613 = vadd.f32 0.0, %v4612
      %4614 = vmatmul.f32.gmra.mxu0 %v4522
      %v4615 = vpop.f32.mrf.mxu0
      %v4616 = vadd.f32 0.0, %v4615
      %4617 = vdwg.mxu0
      %v4618 = vadd.f32 %v4130, %v4542
      %v4619 = vadd.f32 %v4131, %v4589
      %v4620 = vadd.f32 %v4132, %v4545
      %v4621 = vadd.f32 %v4133, %v4592
      %v4622 = vadd.f32 %v4134, %v4548
      %v4623 = vadd.f32 %v4135, %v4595
      %v4624 = vadd.f32 %v4136, %v4551
      %v4625 = vadd.f32 %v4137, %v4598
      %v4626 = vadd.f32 %v4138, %v4554
      %v4627 = vadd.f32 %v4139, %v4601
      %v4628 = vadd.f32 %v4140, %v4557
      %v4629 = vadd.f32 %v4141, %v4604
      %v4630 = vadd.f32 %v4142, %v4560
      %v4631 = vadd.f32 %v4143, %v4607
      %v4632 = vadd.f32 %v4144, %v4563
      %v4633 = vadd.f32 %v4145, %v4610
      %v4634 = vadd.f32 %v4146, %v4566
      %v4635 = vadd.f32 %v4147, %v4613
      %v4636 = vadd.f32 %v4148, %v4569
      %v4637 = vadd.f32 %v4149, %v4616
      %4638 = vrot.lane.b32.xlu0 %v935, 32
      %v4639 = vpop.permute.xlu0 %4638
      %4640 = vrot.lane.b32.xlu0 %v938, 32
      %v4641 = vpop.permute.xlu0 %4640
      %4642 = vrot.lane.b32.xlu0 %v941, 32
      %v4643 = vpop.permute.xlu0 %4642
      %4644 = vrot.lane.b32.xlu0 %v944, 32
      %v4645 = vpop.permute.xlu0 %4644
      %4646 = vrot.lane.b32.xlu0 %v947, 32
      %v4647 = vpop.permute.xlu0 %4646
      %4648 = vrot.lane.b32.xlu0 %v950, 32
      %v4649 = vpop.permute.xlu0 %4648
      %4650 = vrot.lane.b32.xlu0 %v953, 32
      %v4651 = vpop.permute.xlu0 %4650
      %4652 = vrot.lane.b32.xlu0 %v956, 32
      %v4653 = vpop.permute.xlu0 %4652
      %4654 = vrot.lane.b32.xlu0 %v959, 32
      %v4655 = vpop.permute.xlu0 %4654
      %4656 = vrot.lane.b32.xlu0 %v962, 32
      %v4657 = vpop.permute.xlu0 %4656
      %4658 = vrot.lane.b32.xlu0 %v1123, 32
      %v4659 = vpop.permute.xlu0 %4658
      %4660 = vrot.lane.b32.xlu0 %v1126, 32
      %v4661 = vpop.permute.xlu0 %4660
      %4662 = vrot.lane.b32.xlu0 %v1129, 32
      %v4663 = vpop.permute.xlu0 %4662
      %4664 = vrot.lane.b32.xlu0 %v1132, 32
      %v4665 = vpop.permute.xlu0 %4664
      %4666 = vrot.lane.b32.xlu0 %v1135, 32
      %v4667 = vpop.permute.xlu0 %4666
      %4668 = vrot.lane.b32.xlu0 %v1138, 32
      %v4669 = vpop.permute.xlu0 %4668
      %4670 = vrot.lane.b32.xlu0 %v1141, 32
      %v4671 = vpop.permute.xlu0 %4670
      %4672 = vrot.lane.b32.xlu0 %v1144, 32
      %v4673 = vpop.permute.xlu0 %4672
      %4674 = vrot.lane.b32.xlu0 %v1147, 32
      %v4675 = vpop.permute.xlu0 %4674
      %4676 = vrot.lane.b32.xlu0 %v1150, 32
      %v4677 = vpop.permute.xlu0 %4676
      %v4678 = vsel %vm1340, %v4639, 0
      %v4680 = vsel %vm1340, %v4641, 0
      %v4682 = vsel %vm1340, %v4643, 0
      %v4684 = vsel %vm1340, %v4645, 0
      %v4686 = vsel %vm1340, %v4647, 0
      %v4688 = vsel %vm1340, %v4649, 0
      %v4690 = vsel %vm1340, %v4651, 0
      %v4692 = vsel %vm1340, %v4653, 0
      %v4694 = vsel %vm1340, %v4655, 0
      %v4696 = vsel %vm1340, %v4657, 0
      %v4698 = vsel %vm1340, %v4659, 0
      %v4700 = vsel %vm1340, %v4661, 0
      %v4702 = vsel %vm1340, %v4663, 0
      %v4704 = vsel %vm1340, %v4665, 0
      %v4706 = vsel %vm1340, %v4667, 0
      %v4708 = vsel %vm1340, %v4669, 0
      %v4710 = vsel %vm1340, %v4671, 0
      %v4712 = vsel %vm1340, %v4673, 0
      %v4714 = vsel %vm1340, %v4675, 0
      %v4716 = vsel %vm1340, %v4677, 0
      %4718 = vmatpush.xpose.msra.mxu0 0.0
      %4719 = vmatpush.xpose.msra.mxu0 0.0
      %4720 = vmatpush.xpose.msra.mxu0 0.0
      %4721 = vmatpush.xpose.msra.mxu0 0.0
      %4722 = vmatpush.xpose.msra.mxu0 0.0
      %4723 = vmatpush.xpose.msra.mxu0 0.0
      %4724 = vmatpush.xpose.msra.mxu0 %v4716
      %4725 = vmatpush.xpose.msra.mxu0 %v4714
      %4726 = vmatpush.xpose.msra.mxu0 %v4712
      %4727 = vmatpush.xpose.msra.mxu0 %v4710
      %4728 = vmatpush.xpose.msra.mxu0 %v4708
      %4729 = vmatpush.xpose.msra.mxu0 %v4706
      %4730 = vmatpush.xpose.msra.mxu0 %v4704
      %4731 = vmatpush.xpose.msra.mxu0 %v4702
      %4732 = vmatpush.xpose.msra.mxu0 %v4700
      %4733 = vmatpush.xpose.msra.mxu0 %v4698
      %4734 = vmatmul.f32.gmra.mxu0 %v4678
      %v4735 = vpop.f32.mrf.mxu0
      %v4736 = vadd.f32 %v496, %v4735
      %4737 = vmatmul.f32.gmra.mxu0 %v4680
      %v4738 = vpop.f32.mrf.mxu0
      %v4739 = vadd.f32 %v497, %v4738
      %4740 = vmatmul.f32.gmra.mxu0 %v4682
      %v4741 = vpop.f32.mrf.mxu0
      %v4742 = vadd.f32 %v498, %v4741
      %4743 = vmatmul.f32.gmra.mxu0 %v4684
      %v4744 = vpop.f32.mrf.mxu0
      %v4745 = vadd.f32 %v499, %v4744
      %4746 = vmatmul.f32.gmra.mxu0 %v4686
      %v4747 = vpop.f32.mrf.mxu0
      %v4748 = vadd.f32 %v500, %v4747
      %4749 = vmatmul.f32.gmra.mxu0 %v4688
      %v4750 = vpop.f32.mrf.mxu0
      %v4751 = vadd.f32 %v501, %v4750
      %4752 = vmatmul.f32.gmra.mxu0 %v4690
      %v4753 = vpop.f32.mrf.mxu0
      %v4754 = vadd.f32 %v502, %v4753
      %4755 = vmatmul.f32.gmra.mxu0 %v4692
      %v4756 = vpop.f32.mrf.mxu0
      %v4757 = vadd.f32 %v503, %v4756
      %4758 = vmatmul.f32.gmra.mxu0 %v4694
      %v4759 = vpop.f32.mrf.mxu0
      %v4760 = vadd.f32 %v504, %v4759
      %4761 = vmatmul.f32.gmra.mxu0 %v4696
      %v4762 = vpop.f32.mrf.mxu0
      %v4763 = vadd.f32 %v505, %v4762
      %4764 = vdwg.mxu0
      %v4765 = vsel %vm1448, %v4736, -inf
      %4766 = vmax.xlane.f32.xlu0 %v4765
      %v4767 = vpop.xlane.xlu0 %4766
      %v4768 = vsel %vm1448, %v4739, -inf
      %4769 = vmax.xlane.f32.xlu0 %v4768
      %v4770 = vpop.xlane.xlu0 %4769
      %v4771 = vsel %vm1448, %v4742, -inf
      %4772 = vmax.xlane.f32.xlu0 %v4771
      %v4773 = vpop.xlane.xlu0 %4772
      %v4774 = vsel %vm1448, %v4745, -inf
      %4775 = vmax.xlane.f32.xlu0 %v4774
      %v4776 = vpop.xlane.xlu0 %4775
      %v4777 = vsel %vm1448, %v4748, -inf
      %4778 = vmax.xlane.f32.xlu0 %v4777
      %v4779 = vpop.xlane.xlu0 %4778
      %v4780 = vsel %vm1448, %v4751, -inf
      %4781 = vmax.xlane.f32.xlu0 %v4780
      %v4782 = vpop.xlane.xlu0 %4781
      %v4783 = vsel %vm1448, %v4754, -inf
      %4784 = vmax.xlane.f32.xlu0 %v4783
      %v4785 = vpop.xlane.xlu0 %4784
      %v4786 = vsel %vm1448, %v4757, -inf
      %4787 = vmax.xlane.f32.xlu0 %v4786
      %v4788 = vpop.xlane.xlu0 %4787
      %v4789 = vsel %vm1448, %v4760, -inf
      %4790 = vmax.xlane.f32.xlu0 %v4789
      %v4791 = vpop.xlane.xlu0 %4790
      %v4792 = vsel %vm1448, %v4763, -inf
      %4793 = vmax.xlane.f32.xlu0 %v4792
      %v4794 = vpop.xlane.xlu0 %4793
      %v4795 = vsub.f32 %v4736, %v4767
      %v4796 = vsub.f32 %v4739, %v4770
      %v4797 = vsub.f32 %v4742, %v4773
      %v4798 = vsub.f32 %v4745, %v4776
      %v4799 = vsub.f32 %v4748, %v4779
      %v4800 = vsub.f32 %v4751, %v4782
      %v4801 = vsub.f32 %v4754, %v4785
      %v4802 = vsub.f32 %v4757, %v4788
      %v4803 = vsub.f32 %v4760, %v4791
      %v4804 = vsub.f32 %v4763, %v4794
      %v4805 = vmul.f32 %v4795, 1.442695
      %v4806 = vpow.pop %v4805
      %v4807 = vmul.f32 %v4796, 1.442695
      %v4808 = vpow.pop %v4807
      %v4809 = vmul.f32 %v4797, 1.442695
      %v4810 = vpow.pop %v4809
      %v4811 = vmul.f32 %v4798, 1.442695
      %v4812 = vpow.pop %v4811
      %v4813 = vmul.f32 %v4799, 1.442695
      %v4814 = vpow.pop %v4813
      %v4815 = vmul.f32 %v4800, 1.442695
      %v4816 = vpow.pop %v4815
      %v4817 = vmul.f32 %v4801, 1.442695
      %v4818 = vpow.pop %v4817
      %v4819 = vmul.f32 %v4802, 1.442695
      %v4820 = vpow.pop %v4819
      %v4821 = vmul.f32 %v4803, 1.442695
      %v4822 = vpow.pop %v4821
      %v4823 = vmul.f32 %v4804, 1.442695
      %v4824 = vpow.pop %v4823
      %v4825 = vsel %vm1448, %v4806, 0.0
      %4826 = vadd.xlane.f32.xlu0 %v4825
      %v4827 = vpop.xlane.xlu0 %4826
      %v4828 = vsel %vm1448, %v4808, 0.0
      %4829 = vadd.xlane.f32.xlu0 %v4828
      %v4830 = vpop.xlane.xlu0 %4829
      %v4831 = vsel %vm1448, %v4810, 0.0
      %4832 = vadd.xlane.f32.xlu0 %v4831
      %v4833 = vpop.xlane.xlu0 %4832
      %v4834 = vsel %vm1448, %v4812, 0.0
      %4835 = vadd.xlane.f32.xlu0 %v4834
      %v4836 = vpop.xlane.xlu0 %4835
      %v4837 = vsel %vm1448, %v4814, 0.0
      %4838 = vadd.xlane.f32.xlu0 %v4837
      %v4839 = vpop.xlane.xlu0 %4838
      %v4840 = vsel %vm1448, %v4816, 0.0
      %4841 = vadd.xlane.f32.xlu0 %v4840
      %v4842 = vpop.xlane.xlu0 %4841
      %v4843 = vsel %vm1448, %v4818, 0.0
      %4844 = vadd.xlane.f32.xlu0 %v4843
      %v4845 = vpop.xlane.xlu0 %4844
      %v4846 = vsel %vm1448, %v4820, 0.0
      %4847 = vadd.xlane.f32.xlu0 %v4846
      %v4848 = vpop.xlane.xlu0 %4847
      %v4849 = vsel %vm1448, %v4822, 0.0
      %4850 = vadd.xlane.f32.xlu0 %v4849
      %v4851 = vpop.xlane.xlu0 %4850
      %v4852 = vsel %vm1448, %v4824, 0.0
      %4853 = vadd.xlane.f32.xlu0 %v4852
      %v4854 = vpop.xlane.xlu0 %4853
      %v4855 = vrcp.pop %v4827
      %v4856 = vrcp.pop %v4830
      %v4857 = vrcp.pop %v4833
      %v4858 = vrcp.pop %v4836
      %v4859 = vrcp.pop %v4839
      %v4860 = vrcp.pop %v4842
      %v4861 = vrcp.pop %v4845
      %v4862 = vrcp.pop %v4848
      %v4863 = vrcp.pop %v4851
      %v4864 = vrcp.pop %v4854
      %v4865 = vmul.f32 %v4806, %v4855
      %v4866 = vmul.f32 %v4808, %v4856
      %v4867 = vmul.f32 %v4810, %v4857
      %v4868 = vmul.f32 %v4812, %v4858
      %v4869 = vmul.f32 %v4814, %v4859
      %v4870 = vmul.f32 %v4816, %v4860
      %v4871 = vmul.f32 %v4818, %v4861
      %v4872 = vmul.f32 %v4820, %v4862
      %v4873 = vmul.f32 %v4822, %v4863
      %v4874 = vmul.f32 %v4824, %v4864
      %4875 = vrot.lane.b32.xlu0 %v1311, 32
      %v4876 = vpop.permute.xlu0 %4875
      %4877 = vrot.lane.b32.xlu0 %v1314, 32
      %v4878 = vpop.permute.xlu0 %4877
      %4879 = vrot.lane.b32.xlu0 %v1317, 32
      %v4880 = vpop.permute.xlu0 %4879
      %4881 = vrot.lane.b32.xlu0 %v1320, 32
      %v4882 = vpop.permute.xlu0 %4881
      %4883 = vrot.lane.b32.xlu0 %v1323, 32
      %v4884 = vpop.permute.xlu0 %4883
      %4885 = vrot.lane.b32.xlu0 %v1326, 32
      %v4886 = vpop.permute.xlu0 %4885
      %4887 = vrot.lane.b32.xlu0 %v1329, 32
      %v4888 = vpop.permute.xlu0 %4887
      %4889 = vrot.lane.b32.xlu0 %v1332, 32
      %v4890 = vpop.permute.xlu0 %4889
      %4891 = vrot.lane.b32.xlu0 %v1335, 32
      %v4892 = vpop.permute.xlu0 %4891
      %4893 = vrot.lane.b32.xlu0 %v1338, 32
      %v4894 = vpop.permute.xlu0 %4893
      %v4906 = vsel %vm1448, %v4865, 0
      %v4909 = vsel %vm1448, %v4866, 0
      %v4912 = vsel %vm1448, %v4867, 0
      %v4915 = vsel %vm1448, %v4868, 0
      %v4918 = vsel %vm1448, %v4869, 0
      %v4921 = vsel %vm1448, %v4870, 0
      %v4924 = vsel %vm1448, %v4871, 0
      %v4927 = vsel %vm1448, %v4872, 0
      %v4930 = vsel %vm1448, %v4873, 0
      %v4933 = vsel %vm1448, %v4874, 0
      %4935 = vmatpush.msra.mxu0 0.0
      %4936 = vmatpush.msra.mxu0 0.0
      %4937 = vmatpush.msra.mxu0 0.0
      %4938 = vmatpush.msra.mxu0 0.0
      %4939 = vmatpush.msra.mxu0 0.0
      %4940 = vmatpush.msra.mxu0 0.0
      %4941 = vmatpush.msra.mxu0 %v4894
      %4942 = vmatpush.msra.mxu0 %v4892
      %4943 = vmatpush.msra.mxu0 %v4890
      %4944 = vmatpush.msra.mxu0 %v4888
      %4945 = vmatpush.msra.mxu0 %v4886
      %4946 = vmatpush.msra.mxu0 %v4884
      %4947 = vmatpush.msra.mxu0 %v4882
      %4948 = vmatpush.msra.mxu0 %v4880
      %4949 = vmatpush.msra.mxu0 %v4878
      %4950 = vmatpush.msra.mxu0 %v4876
      %4951 = vmatmul.f32.gmra.mxu0 %v4906
      %v4952 = vpop.f32.mrf.mxu0
      %v4953 = vadd.f32 0.0, %v4952
      %4954 = vmatmul.f32.gmra.mxu0 %v4909
      %v4955 = vpop.f32.mrf.mxu0
      %v4956 = vadd.f32 0.0, %v4955
      %4957 = vmatmul.f32.gmra.mxu0 %v4912
      %v4958 = vpop.f32.mrf.mxu0
      %v4959 = vadd.f32 0.0, %v4958
      %4960 = vmatmul.f32.gmra.mxu0 %v4915
      %v4961 = vpop.f32.mrf.mxu0
      %v4962 = vadd.f32 0.0, %v4961
      %4963 = vmatmul.f32.gmra.mxu0 %v4918
      %v4964 = vpop.f32.mrf.mxu0
      %v4965 = vadd.f32 0.0, %v4964
      %4966 = vmatmul.f32.gmra.mxu0 %v4921
      %v4967 = vpop.f32.mrf.mxu0
      %v4968 = vadd.f32 0.0, %v4967
      %4969 = vmatmul.f32.gmra.mxu0 %v4924
      %v4970 = vpop.f32.mrf.mxu0
      %v4971 = vadd.f32 0.0, %v4970
      %4972 = vmatmul.f32.gmra.mxu0 %v4927
      %v4973 = vpop.f32.mrf.mxu0
      %v4974 = vadd.f32 0.0, %v4973
      %4975 = vmatmul.f32.gmra.mxu0 %v4930
      %v4976 = vpop.f32.mrf.mxu0
      %v4977 = vadd.f32 0.0, %v4976
      %4978 = vmatmul.f32.gmra.mxu0 %v4933
      %v4979 = vpop.f32.mrf.mxu0
      %v4980 = vadd.f32 0.0, %v4979
      %4981 = vdwg.mxu0
      %v4983 = vsel %vm1340, %v4953, 0
      %v4986 = vsel %vm1340, %v4956, 0
      %v4989 = vsel %vm1340, %v4959, 0
      %v4992 = vsel %vm1340, %v4962, 0
      %v4995 = vsel %vm1340, %v4965, 0
      %v4998 = vsel %vm1340, %v4968, 0
      %v5001 = vsel %vm1340, %v4971, 0
      %v5004 = vsel %vm1340, %v4974, 0
      %v5007 = vsel %vm1340, %v4977, 0
      %v5010 = vsel %vm1340, %v4980, 0
      %5012 = vmatpush.msra.mxu0 0.0
      %5013 = vmatpush.msra.mxu0 0.0
      %5014 = vmatpush.msra.mxu0 0.0
      %5015 = vmatpush.msra.mxu0 0.0
      %5016 = vmatpush.msra.mxu0 0.0
      %5017 = vmatpush.msra.mxu0 0.0
      %5018 = vmatpush.msra.mxu0 0.0
      %5019 = vmatpush.msra.mxu0 0.0
      %5020 = vmatpush.msra.mxu0 0.0
      %5021 = vmatpush.msra.mxu0 0.0
      %5022 = vmatpush.msra.mxu0 0.0
      %5023 = vmatpush.msra.mxu0 0.0
      %5024 = vmatpush.msra.mxu0 %v568
      %5025 = vmatpush.msra.mxu0 %v566
      %5026 = vmatpush.msra.mxu0 %v564
      %5027 = vmatpush.msra.mxu0 %v562
      %5028 = vmatmul.f32.gmra.mxu0 %v4983
      %v5029 = vpop.f32.mrf.mxu0
      %v5030 = vadd.f32 0.0, %v5029
      %5031 = vmatmul.f32.gmra.mxu0 %v4986
      %v5032 = vpop.f32.mrf.mxu0
      %v5033 = vadd.f32 0.0, %v5032
      %5034 = vmatmul.f32.gmra.mxu0 %v4989
      %v5035 = vpop.f32.mrf.mxu0
      %v5036 = vadd.f32 0.0, %v5035
      %5037 = vmatmul.f32.gmra.mxu0 %v4992
      %v5038 = vpop.f32.mrf.mxu0
      %v5039 = vadd.f32 0.0, %v5038
      %5040 = vmatmul.f32.gmra.mxu0 %v4995
      %v5041 = vpop.f32.mrf.mxu0
      %v5042 = vadd.f32 0.0, %v5041
      %5043 = vmatmul.f32.gmra.mxu0 %v4998
      %v5044 = vpop.f32.mrf.mxu0
      %v5045 = vadd.f32 0.0, %v5044
      %5046 = vmatmul.f32.gmra.mxu0 %v5001
      %v5047 = vpop.f32.mrf.mxu0
      %v5048 = vadd.f32 0.0, %v5047
      %5049 = vmatmul.f32.gmra.mxu0 %v5004
      %v5050 = vpop.f32.mrf.mxu0
      %v5051 = vadd.f32 0.0, %v5050
      %5052 = vmatmul.f32.gmra.mxu0 %v5007
      %v5053 = vpop.f32.mrf.mxu0
      %v5054 = vadd.f32 0.0, %v5053
      %5055 = vmatmul.f32.gmra.mxu0 %v5010
      %v5056 = vpop.f32.mrf.mxu0
      %v5057 = vadd.f32 0.0, %v5056
      %5058 = vdwg.mxu0
      %5059 = vmatpush.msra.mxu0 0.0
      %5060 = vmatpush.msra.mxu0 0.0
      %5061 = vmatpush.msra.mxu0 0.0
      %5062 = vmatpush.msra.mxu0 0.0
      %5063 = vmatpush.msra.mxu0 0.0
      %5064 = vmatpush.msra.mxu0 0.0
      %5065 = vmatpush.msra.mxu0 0.0
      %5066 = vmatpush.msra.mxu0 0.0
      %5067 = vmatpush.msra.mxu0 0.0
      %5068 = vmatpush.msra.mxu0 0.0
      %5069 = vmatpush.msra.mxu0 0.0
      %5070 = vmatpush.msra.mxu0 0.0
      %5071 = vmatpush.msra.mxu0 %v569
      %5072 = vmatpush.msra.mxu0 %v567
      %5073 = vmatpush.msra.mxu0 %v565
      %5074 = vmatpush.msra.mxu0 %v563
      %5075 = vmatmul.f32.gmra.mxu0 %v4983
      %v5076 = vpop.f32.mrf.mxu0
      %v5077 = vadd.f32 0.0, %v5076
      %5078 = vmatmul.f32.gmra.mxu0 %v4986
      %v5079 = vpop.f32.mrf.mxu0
      %v5080 = vadd.f32 0.0, %v5079
      %5081 = vmatmul.f32.gmra.mxu0 %v4989
      %v5082 = vpop.f32.mrf.mxu0
      %v5083 = vadd.f32 0.0, %v5082
      %5084 = vmatmul.f32.gmra.mxu0 %v4992
      %v5085 = vpop.f32.mrf.mxu0
      %v5086 = vadd.f32 0.0, %v5085
      %5087 = vmatmul.f32.gmra.mxu0 %v4995
      %v5088 = vpop.f32.mrf.mxu0
      %v5089 = vadd.f32 0.0, %v5088
      %5090 = vmatmul.f32.gmra.mxu0 %v4998
      %v5091 = vpop.f32.mrf.mxu0
      %v5092 = vadd.f32 0.0, %v5091
      %5093 = vmatmul.f32.gmra.mxu0 %v5001
      %v5094 = vpop.f32.mrf.mxu0
      %v5095 = vadd.f32 0.0, %v5094
      %5096 = vmatmul.f32.gmra.mxu0 %v5004
      %v5097 = vpop.f32.mrf.mxu0
      %v5098 = vadd.f32 0.0, %v5097
      %5099 = vmatmul.f32.gmra.mxu0 %v5007
      %v5100 = vpop.f32.mrf.mxu0
      %v5101 = vadd.f32 0.0, %v5100
      %5102 = vmatmul.f32.gmra.mxu0 %v5010
      %v5103 = vpop.f32.mrf.mxu0
      %v5104 = vadd.f32 0.0, %v5103
      %5105 = vdwg.mxu0
      %v5106 = vadd.f32 %v4618, %v5030
      %v5107 = vadd.f32 %v4619, %v5077
      %v5108 = vadd.f32 %v4620, %v5033
      %v5109 = vadd.f32 %v4621, %v5080
      %v5110 = vadd.f32 %v4622, %v5036
      %v5111 = vadd.f32 %v4623, %v5083
      %v5112 = vadd.f32 %v4624, %v5039
      %v5113 = vadd.f32 %v4625, %v5086
      %v5114 = vadd.f32 %v4626, %v5042
      %v5115 = vadd.f32 %v4627, %v5089
      %v5116 = vadd.f32 %v4628, %v5045
      %v5117 = vadd.f32 %v4629, %v5092
      %v5118 = vadd.f32 %v4630, %v5048
      %v5119 = vadd.f32 %v4631, %v5095
      %v5120 = vadd.f32 %v4632, %v5051
      %v5121 = vadd.f32 %v4633, %v5098
      %v5122 = vadd.f32 %v4634, %v5054
      %v5123 = vadd.f32 %v4635, %v5101
      %v5124 = vadd.f32 %v4636, %v5057
      %v5125 = vadd.f32 %v4637, %v5104
      %v5126 = vld [vmem:[%s5] sm:$0x3]
      %v5128 = vperm.slane %v5126, 0
      %v5129 = vperm.slane %v5126, 1
      %v5132 = vadd.f32 %v5106, %v5128
      %v5133 = vadd.f32 %v5107, %v5129
      %v5134 = vadd.f32 %v5108, %v5128
      %v5135 = vadd.f32 %v5109, %v5129
      %v5136 = vadd.f32 %v5110, %v5128
      %v5137 = vadd.f32 %v5111, %v5129
      %v5138 = vadd.f32 %v5112, %v5128
      %v5139 = vadd.f32 %v5113, %v5129
      %v5140 = vadd.f32 %v5114, %v5128
      %v5141 = vadd.f32 %v5115, %v5129
      %v5142 = vadd.f32 %v5116, %v5128
      %v5143 = vadd.f32 %v5117, %v5129
      %v5144 = vadd.f32 %v5118, %v5128
      %v5145 = vadd.f32 %v5119, %v5129
      %v5146 = vadd.f32 %v5120, %v5128
      %v5147 = vadd.f32 %v5121, %v5129
      %v5148 = vadd.f32 %v5122, %v5128
      %v5149 = vadd.f32 %v5123, %v5129
      %v5150 = vadd.f32 %v5124, %v5128
      %v5151 = vadd.f32 %v5125, %v5129
      %v5152 = vadd.f32 %v476, %v5132
      %v5153 = vadd.f32 %v477, %v5133
      %v5154 = vadd.f32 %v478, %v5134
      %v5155 = vadd.f32 %v479, %v5135
      %v5156 = vadd.f32 %v480, %v5136
      %v5157 = vadd.f32 %v481, %v5137
      %v5158 = vadd.f32 %v482, %v5138
      %v5159 = vadd.f32 %v483, %v5139
      %v5160 = vadd.f32 %v484, %v5140
      %v5161 = vadd.f32 %v485, %v5141
      %v5162 = vadd.f32 %v486, %v5142
      %v5163 = vadd.f32 %v487, %v5143
      %v5164 = vadd.f32 %v488, %v5144
      %v5165 = vadd.f32 %v489, %v5145
      %v5166 = vadd.f32 %v490, %v5146
      %v5167 = vadd.f32 %v491, %v5147
      %v5168 = vadd.f32 %v492, %v5148
      %v5169 = vadd.f32 %v493, %v5149
      %v5170 = vadd.f32 %v494, %v5150
      %v5171 = vadd.f32 %v495, %v5151
      %v5172 = vld [vmem:[%s6] sm:$0x3]
      %v5173 = vld [vmem:[%s7] sm:$0x3]
      %v5174 = vadd.f32 %v5152, %v5153
      %5175 = vadd.xlane.f32.xlu0 %v5174
      %v5176 = vpop.xlane.xlu0 %5175
      %v5177 = vadd.f32 %v5154, %v5155
      %5178 = vadd.xlane.f32.xlu0 %v5177
      %v5179 = vpop.xlane.xlu0 %5178
      %v5180 = vadd.f32 %v5156, %v5157
      %5181 = vadd.xlane.f32.xlu0 %v5180
      %v5182 = vpop.xlane.xlu0 %5181
      %v5183 = vadd.f32 %v5158, %v5159
      %5184 = vadd.xlane.f32.xlu0 %v5183
      %v5185 = vpop.xlane.xlu0 %5184
      %v5186 = vadd.f32 %v5160, %v5161
      %5187 = vadd.xlane.f32.xlu0 %v5186
      %v5188 = vpop.xlane.xlu0 %5187
      %v5189 = vadd.f32 %v5162, %v5163
      %5190 = vadd.xlane.f32.xlu0 %v5189
      %v5191 = vpop.xlane.xlu0 %5190
      %v5192 = vadd.f32 %v5164, %v5165
      %5193 = vadd.xlane.f32.xlu0 %v5192
      %v5194 = vpop.xlane.xlu0 %5193
      %v5195 = vadd.f32 %v5166, %v5167
      %5196 = vadd.xlane.f32.xlu0 %v5195
      %v5197 = vpop.xlane.xlu0 %5196
      %v5198 = vadd.f32 %v5168, %v5169
      %5199 = vadd.xlane.f32.xlu0 %v5198
      %v5200 = vpop.xlane.xlu0 %5199
      %v5201 = vadd.f32 %v5170, %v5171
      %5202 = vadd.xlane.f32.xlu0 %v5201
      %v5203 = vpop.xlane.xlu0 %5202
      %v5204 = vrcp.pop 256.0
      %v5205 = vmul.f32 256.0, %v5204
      %v5206 = vsub.f32 1.0, %v5205
      %v5207 = vmul.f32 %v5204, %v5206
      %v5208 = vadd.f32 %v5204, %v5207
      %vm5209 = vweird.f32 %v5204
      %v5210 = vsel %vm5209, %v5204, %v5208
      %v5211 = vmul.f32 %v5176, %v5210
      %v5212 = vmul.f32 %v5179, %v5210
      %v5213 = vmul.f32 %v5182, %v5210
      %v5214 = vmul.f32 %v5185, %v5210
      %v5215 = vmul.f32 %v5188, %v5210
      %v5216 = vmul.f32 %v5191, %v5210
      %v5217 = vmul.f32 %v5194, %v5210
      %v5218 = vmul.f32 %v5197, %v5210
      %v5219 = vmul.f32 %v5200, %v5210
      %v5220 = vmul.f32 %v5203, %v5210
      %v5221 = vsub.f32 %v5152, %v5211
      %v5222 = vsub.f32 %v5153, %v5211
      %v5223 = vsub.f32 %v5154, %v5212
      %v5224 = vsub.f32 %v5155, %v5212
      %v5225 = vsub.f32 %v5156, %v5213
      %v5226 = vsub.f32 %v5157, %v5213
      %v5227 = vsub.f32 %v5158, %v5214
      %v5228 = vsub.f32 %v5159, %v5214
      %v5229 = vsub.f32 %v5160, %v5215
      %v5230 = vsub.f32 %v5161, %v5215
      %v5231 = vsub.f32 %v5162, %v5216
      %v5232 = vsub.f32 %v5163, %v5216
      %v5233 = vsub.f32 %v5164, %v5217
      %v5234 = vsub.f32 %v5165, %v5217
      %v5235 = vsub.f32 %v5166, %v5218
      %v5236 = vsub.f32 %v5167, %v5218
      %v5237 = vsub.f32 %v5168, %v5219
      %v5238 = vsub.f32 %v5169, %v5219
      %v5239 = vsub.f32 %v5170, %v5220
      %v5240 = vsub.f32 %v5171, %v5220
      %v5241 = vmul.f32 %v5221, %v5221
      %v5242 = vmul.f32 %v5222, %v5222
      %v5243 = vmul.f32 %v5223, %v5223
      %v5244 = vmul.f32 %v5224, %v5224
      %v5245 = vmul.f32 %v5225, %v5225
      %v5246 = vmul.f32 %v5226, %v5226
      %v5247 = vmul.f32 %v5227, %v5227
      %v5248 = vmul.f32 %v5228, %v5228
      %v5249 = vmul.f32 %v5229, %v5229
      %v5250 = vmul.f32 %v5230, %v5230
      %v5251 = vmul.f32 %v5231, %v5231
      %v5252 = vmul.f32 %v5232, %v5232
      %v5253 = vmul.f32 %v5233, %v5233
      %v5254 = vmul.f32 %v5234, %v5234
      %v5255 = vmul.f32 %v5235, %v5235
      %v5256 = vmul.f32 %v5236, %v5236
      %v5257 = vmul.f32 %v5237, %v5237
      %v5258 = vmul.f32 %v5238, %v5238
      %v5259 = vmul.f32 %v5239, %v5239
      %v5260 = vmul.f32 %v5240, %v5240
      %v5261 = vadd.f32 %v5241, %v5242
      %5262 = vadd.xlane.f32.xlu0 %v5261
      %v5263 = vpop.xlane.xlu0 %5262
      %v5264 = vadd.f32 %v5243, %v5244
      %5265 = vadd.xlane.f32.xlu0 %v5264
      %v5266 = vpop.xlane.xlu0 %5265
      %v5267 = vadd.f32 %v5245, %v5246
      %5268 = vadd.xlane.f32.xlu0 %v5267
      %v5269 = vpop.xlane.xlu0 %5268
      %v5270 = vadd.f32 %v5247, %v5248
      %5271 = vadd.xlane.f32.xlu0 %v5270
      %v5272 = vpop.xlane.xlu0 %5271
      %v5273 = vadd.f32 %v5249, %v5250
      %5274 = vadd.xlane.f32.xlu0 %v5273
      %v5275 = vpop.xlane.xlu0 %5274
      %v5276 = vadd.f32 %v5251, %v5252
      %5277 = vadd.xlane.f32.xlu0 %v5276
      %v5278 = vpop.xlane.xlu0 %5277
      %v5279 = vadd.f32 %v5253, %v5254
      %5280 = vadd.xlane.f32.xlu0 %v5279
      %v5281 = vpop.xlane.xlu0 %5280
      %v5282 = vadd.f32 %v5255, %v5256
      %5283 = vadd.xlane.f32.xlu0 %v5282
      %v5284 = vpop.xlane.xlu0 %5283
      %v5285 = vadd.f32 %v5257, %v5258
      %5286 = vadd.xlane.f32.xlu0 %v5285
      %v5287 = vpop.xlane.xlu0 %5286
      %v5288 = vadd.f32 %v5259, %v5260
      %5289 = vadd.xlane.f32.xlu0 %v5288
      %v5290 = vpop.xlane.xlu0 %5289
      %v5291 = vmul.f32 %v5263, %v5210
      %v5292 = vmul.f32 %v5266, %v5210
      %v5293 = vmul.f32 %v5269, %v5210
      %v5294 = vmul.f32 %v5272, %v5210
      %v5295 = vmul.f32 %v5275, %v5210
      %v5296 = vmul.f32 %v5278, %v5210
      %v5297 = vmul.f32 %v5281, %v5210
      %v5298 = vmul.f32 %v5284, %v5210
      %v5299 = vmul.f32 %v5287, %v5210
      %v5300 = vmul.f32 %v5290, %v5210
      %v5301 = vadd.f32 %v5291, 1e-05
      %v5302 = vadd.f32 %v5292, 1e-05
      %v5303 = vadd.f32 %v5293, 1e-05
      %v5304 = vadd.f32 %v5294, 1e-05
      %v5305 = vadd.f32 %v5295, 1e-05
      %v5306 = vadd.f32 %v5296, 1e-05
      %v5307 = vadd.f32 %v5297, 1e-05
      %v5308 = vadd.f32 %v5298, 1e-05
      %v5309 = vadd.f32 %v5299, 1e-05
      %v5310 = vadd.f32 %v5300, 1e-05
      %v5311 = vrsqrt.pop %v5301
      %v5312 = vmul.f32 %v5311, %v5301
      %v5313 = vmul.f32 %v5312, %v5311
      %v5314 = vmul.f32 0.5, %v5313
      %v5315 = vsub.f32 1.5, %v5314
      %v5316 = vmul.f32 %v5311, %v5315
      %vm5317 = vweird.f32 %v5301
      %vm5318 = vweird.f32 %v5311
      %vm5319 = vmor %vm5317, %vm5318
      %v5320 = vsel %vm5319, %v5311, %v5316
      %v5321 = vrsqrt.pop %v5302
      %v5322 = vmul.f32 %v5321, %v5302
      %v5323 = vmul.f32 %v5322, %v5321
      %v5324 = vmul.f32 0.5, %v5323
      %v5325 = vsub.f32 1.5, %v5324
      %v5326 = vmul.f32 %v5321, %v5325
      %vm5327 = vweird.f32 %v5302
      %vm5328 = vweird.f32 %v5321
      %vm5329 = vmor %vm5327, %vm5328
      %v5330 = vsel %vm5329, %v5321, %v5326
      %v5331 = vrsqrt.pop %v5303
      %v5332 = vmul.f32 %v5331, %v5303
      %v5333 = vmul.f32 %v5332, %v5331
      %v5334 = vmul.f32 0.5, %v5333
      %v5335 = vsub.f32 1.5, %v5334
      %v5336 = vmul.f32 %v5331, %v5335
      %vm5337 = vweird.f32 %v5303
      %vm5338 = vweird.f32 %v5331
      %vm5339 = vmor %vm5337, %vm5338
      %v5340 = vsel %vm5339, %v5331, %v5336
      %v5341 = vrsqrt.pop %v5304
      %v5342 = vmul.f32 %v5341, %v5304
      %v5343 = vmul.f32 %v5342, %v5341
      %v5344 = vmul.f32 0.5, %v5343
      %v5345 = vsub.f32 1.5, %v5344
      %v5346 = vmul.f32 %v5341, %v5345
      %vm5347 = vweird.f32 %v5304
      %vm5348 = vweird.f32 %v5341
      %vm5349 = vmor %vm5347, %vm5348
      %v5350 = vsel %vm5349, %v5341, %v5346
      %v5351 = vrsqrt.pop %v5305
      %v5352 = vmul.f32 %v5351, %v5305
      %v5353 = vmul.f32 %v5352, %v5351
      %v5354 = vmul.f32 0.5, %v5353
      %v5355 = vsub.f32 1.5, %v5354
      %v5356 = vmul.f32 %v5351, %v5355
      %vm5357 = vweird.f32 %v5305
      %vm5358 = vweird.f32 %v5351
      %vm5359 = vmor %vm5357, %vm5358
      %v5360 = vsel %vm5359, %v5351, %v5356
      %v5361 = vrsqrt.pop %v5306
      %v5362 = vmul.f32 %v5361, %v5306
      %v5363 = vmul.f32 %v5362, %v5361
      %v5364 = vmul.f32 0.5, %v5363
      %v5365 = vsub.f32 1.5, %v5364
      %v5366 = vmul.f32 %v5361, %v5365
      %vm5367 = vweird.f32 %v5306
      %vm5368 = vweird.f32 %v5361
      %vm5369 = vmor %vm5367, %vm5368
      %v5370 = vsel %vm5369, %v5361, %v5366
      %v5371 = vrsqrt.pop %v5307
      %v5372 = vmul.f32 %v5371, %v5307
      %v5373 = vmul.f32 %v5372, %v5371
      %v5374 = vmul.f32 0.5, %v5373
      %v5375 = vsub.f32 1.5, %v5374
      %v5376 = vmul.f32 %v5371, %v5375
      %vm5377 = vweird.f32 %v5307
      %vm5378 = vweird.f32 %v5371
      %vm5379 = vmor %vm5377, %vm5378
      %v5380 = vsel %vm5379, %v5371, %v5376
      %v5381 = vrsqrt.pop %v5308
      %v5382 = vmul.f32 %v5381, %v5308
      %v5383 = vmul.f32 %v5382, %v5381
      %v5384 = vmul.f32 0.5, %v5383
      %v5385 = vsub.f32 1.5, %v5384
      %v5386 = vmul.f32 %v5381, %v5385
      %vm5387 = vweird.f32 %v5308
      %vm5388 = vweird.f32 %v5381
      %vm5389 = vmor %vm5387, %vm5388
      %v5390 = vsel %vm5389, %v5381, %v5386
      %v5391 = vrsqrt.pop %v5309
      %v5392 = vmul.f32 %v5391, %v5309
      %v5393 = vmul.f32 %v5392, %v5391
      %v5394 = vmul.f32 0.5, %v5393
      %v5395 = vsub.f32 1.5, %v5394
      %v5396 = vmul.f32 %v5391, %v5395
      %vm5397 = vweird.f32 %v5309
      %vm5398 = vweird.f32 %v5391
      %vm5399 = vmor %vm5397, %vm5398
      %v5400 = vsel %vm5399, %v5391, %v5396
      %v5401 = vrsqrt.pop %v5310
      %v5402 = vmul.f32 %v5401, %v5310
      %v5403 = vmul.f32 %v5402, %v5401
      %v5404 = vmul.f32 0.5, %v5403
      %v5405 = vsub.f32 1.5, %v5404
      %v5406 = vmul.f32 %v5401, %v5405
      %vm5407 = vweird.f32 %v5310
      %vm5408 = vweird.f32 %v5401
      %vm5409 = vmor %vm5407, %vm5408
      %v5410 = vsel %vm5409, %v5401, %v5406
      %v5411 = vmul.f32 %v5221, %v5320
      %v5412 = vmul.f32 %v5222, %v5320
      %v5413 = vmul.f32 %v5223, %v5330
      %v5414 = vmul.f32 %v5224, %v5330
      %v5415 = vmul.f32 %v5225, %v5340
      %v5416 = vmul.f32 %v5226, %v5340
      %v5417 = vmul.f32 %v5227, %v5350
      %v5418 = vmul.f32 %v5228, %v5350
      %v5419 = vmul.f32 %v5229, %v5360
      %v5420 = vmul.f32 %v5230, %v5360
      %v5421 = vmul.f32 %v5231, %v5370
      %v5422 = vmul.f32 %v5232, %v5370
      %v5423 = vmul.f32 %v5233, %v5380
      %v5424 = vmul.f32 %v5234, %v5380
      %v5425 = vmul.f32 %v5235, %v5390
      %v5426 = vmul.f32 %v5236, %v5390
      %v5427 = vmul.f32 %v5237, %v5400
      %v5428 = vmul.f32 %v5238, %v5400
      %v5429 = vmul.f32 %v5239, %v5410
      %v5430 = vmul.f32 %v5240, %v5410
      %v5432 = vperm.slane %v5172, 0
      %v5433 = vperm.slane %v5172, 1
      %v5436 = vmul.f32 %v5411, %v5432
      %v5437 = vmul.f32 %v5412, %v5433
      %v5438 = vmul.f32 %v5413, %v5432
      %v5439 = vmul.f32 %v5414, %v5433
      %v5440 = vmul.f32 %v5415, %v5432
      %v5441 = vmul.f32 %v5416, %v5433
      %v5442 = vmul.f32 %v5417, %v5432
      %v5443 = vmul.f32 %v5418, %v5433
      %v5444 = vmul.f32 %v5419, %v5432
      %v5445 = vmul.f32 %v5420, %v5433
      %v5446 = vmul.f32 %v5421, %v5432
      %v5447 = vmul.f32 %v5422, %v5433
      %v5448 = vmul.f32 %v5423, %v5432
      %v5449 = vmul.f32 %v5424, %v5433
      %v5450 = vmul.f32 %v5425, %v5432
      %v5451 = vmul.f32 %v5426, %v5433
      %v5452 = vmul.f32 %v5427, %v5432
      %v5453 = vmul.f32 %v5428, %v5433
      %v5454 = vmul.f32 %v5429, %v5432
      %v5455 = vmul.f32 %v5430, %v5433
      %v5457 = vperm.slane %v5173, 0
      %v5458 = vperm.slane %v5173, 1
      %v5461 = vadd.f32 %v5436, %v5457
      %v5462 = vadd.f32 %v5437, %v5458
      %v5463 = vadd.f32 %v5438, %v5457
      %v5464 = vadd.f32 %v5439, %v5458
      %v5465 = vadd.f32 %v5440, %v5457
      %v5466 = vadd.f32 %v5441, %v5458
      %v5467 = vadd.f32 %v5442, %v5457
      %v5468 = vadd.f32 %v5443, %v5458
      %v5469 = vadd.f32 %v5444, %v5457
      %v5470 = vadd.f32 %v5445, %v5458
      %v5471 = vadd.f32 %v5446, %v5457
      %v5472 = vadd.f32 %v5447, %v5458
      %v5473 = vadd.f32 %v5448, %v5457
      %v5474 = vadd.f32 %v5449, %v5458
      %v5475 = vadd.f32 %v5450, %v5457
      %v5476 = vadd.f32 %v5451, %v5458
      %v5477 = vadd.f32 %v5452, %v5457
      %v5478 = vadd.f32 %v5453, %v5458
      %v5479 = vadd.f32 %v5454, %v5457
      %v5480 = vadd.f32 %v5455, %v5458
      %v5481 = vld [vmem:[%s8] sm:$0xff]
      %v5482 = vld [vmem:[%s8 + $0x8] sm:$0xff]
      %v5483 = vld [vmem:[%s8 + $0x10] sm:$0xff]
      %v5484 = vld [vmem:[%s8 + $0x18] sm:$0xff]
      %v5485 = vld [vmem:[%s8 + $0x20] sm:$0xff]
      %v5486 = vld [vmem:[%s8 + $0x28] sm:$0xff]
      %v5487 = vld [vmem:[%s8 + $0x30] sm:$0xff]
      %v5488 = vld [vmem:[%s8 + $0x38] sm:$0xff]
      %v5489 = vld [vmem:[%s8 + $0x40] sm:$0xff]
      %v5490 = vld [vmem:[%s8 + $0x48] sm:$0xff]
      %v5491 = vld [vmem:[%s8 + $0x50] sm:$0xff]
      %v5492 = vld [vmem:[%s8 + $0x58] sm:$0xff]
      %v5493 = vld [vmem:[%s8 + $0x60] sm:$0xff]
      %v5494 = vld [vmem:[%s8 + $0x68] sm:$0xff]
      %v5495 = vld [vmem:[%s8 + $0x70] sm:$0xff]
      %v5496 = vld [vmem:[%s8 + $0x78] sm:$0xff]
      %v5497 = vld [vmem:[%s8 + $0x80] sm:$0xff]
      %v5498 = vld [vmem:[%s8 + $0x88] sm:$0xff]
      %v5499 = vld [vmem:[%s8 + $0x90] sm:$0xff]
      %v5500 = vld [vmem:[%s8 + $0x98] sm:$0xff]
      %v5501 = vld [vmem:[%s8 + $0xa0] sm:$0xff]
      %v5502 = vld [vmem:[%s8 + $0xa8] sm:$0xff]
      %v5503 = vld [vmem:[%s8 + $0xb0] sm:$0xff]
      %v5504 = vld [vmem:[%s8 + $0xb8] sm:$0xff]
      %v5505 = vld [vmem:[%s8 + $0xc0] sm:$0xff]
      %v5506 = vld [vmem:[%s8 + $0xc8] sm:$0xff]
      %v5507 = vld [vmem:[%s8 + $0xd0] sm:$0xff]
      %v5508 = vld [vmem:[%s8 + $0xd8] sm:$0xff]
      %v5509 = vld [vmem:[%s8 + $0xe0] sm:$0xff]
      %v5510 = vld [vmem:[%s8 + $0xe8] sm:$0xff]
      %v5511 = vld [vmem:[%s8 + $0xf0] sm:$0xff]
      %v5512 = vld [vmem:[%s8 + $0xf8] sm:$0xff]
      %v5513 = vld [vmem:[%s8 + $0x100] sm:$0xff]
      %v5514 = vld [vmem:[%s8 + $0x108] sm:$0xff]
      %v5515 = vld [vmem:[%s8 + $0x110] sm:$0xff]
      %v5516 = vld [vmem:[%s8 + $0x118] sm:$0xff]
      %v5517 = vld [vmem:[%s8 + $0x120] sm:$0xff]
      %v5518 = vld [vmem:[%s8 + $0x128] sm:$0xff]
      %v5519 = vld [vmem:[%s8 + $0x130] sm:$0xff]
      %v5520 = vld [vmem:[%s8 + $0x138] sm:$0xff]
      %v5521 = vld [vmem:[%s8 + $0x140] sm:$0xff]
      %v5522 = vld [vmem:[%s8 + $0x148] sm:$0xff]
      %v5523 = vld [vmem:[%s8 + $0x150] sm:$0xff]
      %v5524 = vld [vmem:[%s8 + $0x158] sm:$0xff]
      %v5525 = vld [vmem:[%s8 + $0x160] sm:$0xff]
      %v5526 = vld [vmem:[%s8 + $0x168] sm:$0xff]
      %v5527 = vld [vmem:[%s8 + $0x170] sm:$0xff]
      %v5528 = vld [vmem:[%s8 + $0x178] sm:$0xff]
      %v5529 = vld [vmem:[%s8 + $0x180] sm:$0xff]
      %v5530 = vld [vmem:[%s8 + $0x188] sm:$0xff]
      %v5531 = vld [vmem:[%s8 + $0x190] sm:$0xff]
      %v5532 = vld [vmem:[%s8 + $0x198] sm:$0xff]
      %v5533 = vld [vmem:[%s8 + $0x1a0] sm:$0xff]
      %v5534 = vld [vmem:[%s8 + $0x1a8] sm:$0xff]
      %v5535 = vld [vmem:[%s8 + $0x1b0] sm:$0xff]
      %v5536 = vld [vmem:[%s8 + $0x1b8] sm:$0xff]
      %v5537 = vld [vmem:[%s8 + $0x1c0] sm:$0xff]
      %v5538 = vld [vmem:[%s8 + $0x1c8] sm:$0xff]
      %v5539 = vld [vmem:[%s8 + $0x1d0] sm:$0xff]
      %v5540 = vld [vmem:[%s8 + $0x1d8] sm:$0xff]
      %v5541 = vld [vmem:[%s8 + $0x1e0] sm:$0xff]
      %v5542 = vld [vmem:[%s8 + $0x1e8] sm:$0xff]
      %v5543 = vld [vmem:[%s8 + $0x1f0] sm:$0xff]
      %v5544 = vld [vmem:[%s8 + $0x1f8] sm:$0xff]
      %v5545 = vld [vmem:[%s9] sm:$0x3]
      %v5547 = vperm.slane %v5545, 0
      %v5548 = vperm.slane %v5545, 1
      %5551 = vmatpush.msra.mxu0 %v5511
      %5552 = vmatpush.msra.mxu0 %v5509
      %5553 = vmatpush.msra.mxu0 %v5507
      %5554 = vmatpush.msra.mxu0 %v5505
      %5555 = vmatpush.msra.mxu0 %v5503
      %5556 = vmatpush.msra.mxu0 %v5501
      %5557 = vmatpush.msra.mxu0 %v5499
      %5558 = vmatpush.msra.mxu0 %v5497
      %5559 = vmatpush.msra.mxu0 %v5495
      %5560 = vmatpush.msra.mxu0 %v5493
      %5561 = vmatpush.msra.mxu0 %v5491
      %5562 = vmatpush.msra.mxu0 %v5489
      %5563 = vmatpush.msra.mxu0 %v5487
      %5564 = vmatpush.msra.mxu0 %v5485
      %5565 = vmatpush.msra.mxu0 %v5483
      %5566 = vmatpush.msra.mxu0 %v5481
      %5567 = vmatmul.f32.gmra.mxu0 %v5461
      %v5568 = vpop.f32.mrf.mxu0
      %v5569 = vadd.f32 %v5547, %v5568
      %5570 = vmatmul.f32.gmra.mxu0 %v5463
      %v5571 = vpop.f32.mrf.mxu0
      %v5572 = vadd.f32 %v5547, %v5571
      %5573 = vmatmul.f32.gmra.mxu0 %v5465
      %v5574 = vpop.f32.mrf.mxu0
      %v5575 = vadd.f32 %v5547, %v5574
      %5576 = vmatmul.f32.gmra.mxu0 %v5467
      %v5577 = vpop.f32.mrf.mxu0
      %v5578 = vadd.f32 %v5547, %v5577
      %5579 = vmatmul.f32.gmra.mxu0 %v5469
      %v5580 = vpop.f32.mrf.mxu0
      %v5581 = vadd.f32 %v5547, %v5580
      %5582 = vmatmul.f32.gmra.mxu0 %v5471
      %v5583 = vpop.f32.mrf.mxu0
      %v5584 = vadd.f32 %v5547, %v5583
      %5585 = vmatmul.f32.gmra.mxu0 %v5473
      %v5586 = vpop.f32.mrf.mxu0
      %v5587 = vadd.f32 %v5547, %v5586
      %5588 = vmatmul.f32.gmra.mxu0 %v5475
      %v5589 = vpop.f32.mrf.mxu0
      %v5590 = vadd.f32 %v5547, %v5589
      %5591 = vmatmul.f32.gmra.mxu0 %v5477
      %v5592 = vpop.f32.mrf.mxu0
      %v5593 = vadd.f32 %v5547, %v5592
      %5594 = vmatmul.f32.gmra.mxu0 %v5479
      %v5595 = vpop.f32.mrf.mxu0
      %v5596 = vadd.f32 %v5547, %v5595
      %5597 = vdwg.mxu0
      %5598 = vmatpush.msra.mxu0 %v5543
      %5599 = vmatpush.msra.mxu0 %v5541
      %5600 = vmatpush.msra.mxu0 %v5539
      %5601 = vmatpush.msra.mxu0 %v5537
      %5602 = vmatpush.msra.mxu0 %v5535
      %5603 = vmatpush.msra.mxu0 %v5533
      %5604 = vmatpush.msra.mxu0 %v5531
      %5605 = vmatpush.msra.mxu0 %v5529
      %5606 = vmatpush.msra.mxu0 %v5527
      %5607 = vmatpush.msra.mxu0 %v5525
      %5608 = vmatpush.msra.mxu0 %v5523
      %5609 = vmatpush.msra.mxu0 %v5521
      %5610 = vmatpush.msra.mxu0 %v5519
      %5611 = vmatpush.msra.mxu0 %v5517
      %5612 = vmatpush.msra.mxu0 %v5515
      %5613 = vmatpush.msra.mxu0 %v5513
      %5614 = vmatmul.f32.gmra.mxu0 %v5462
      %v5615 = vpop.f32.mrf.mxu0
      %v5616 = vadd.f32 %v5569, %v5615
      %5617 = vmatmul.f32.gmra.mxu0 %v5464
      %v5618 = vpop.f32.mrf.mxu0
      %v5619 = vadd.f32 %v5572, %v5618
      %5620 = vmatmul.f32.gmra.mxu0 %v5466
      %v5621 = vpop.f32.mrf.mxu0
      %v5622 = vadd.f32 %v5575, %v5621
      %5623 = vmatmul.f32.gmra.mxu0 %v5468
      %v5624 = vpop.f32.mrf.mxu0
      %v5625 = vadd.f32 %v5578, %v5624
      %5626 = vmatmul.f32.gmra.mxu0 %v5470
      %v5627 = vpop.f32.mrf.mxu0
      %v5628 = vadd.f32 %v5581, %v5627
      %5629 = vmatmul.f32.gmra.mxu0 %v5472
      %v5630 = vpop.f32.mrf.mxu0
      %v5631 = vadd.f32 %v5584, %v5630
      %5632 = vmatmul.f32.gmra.mxu0 %v5474
      %v5633 = vpop.f32.mrf.mxu0
      %v5634 = vadd.f32 %v5587, %v5633
      %5635 = vmatmul.f32.gmra.mxu0 %v5476
      %v5636 = vpop.f32.mrf.mxu0
      %v5637 = vadd.f32 %v5590, %v5636
      %5638 = vmatmul.f32.gmra.mxu0 %v5478
      %v5639 = vpop.f32.mrf.mxu0
      %v5640 = vadd.f32 %v5593, %v5639
      %5641 = vmatmul.f32.gmra.mxu0 %v5480
      %v5642 = vpop.f32.mrf.mxu0
      %v5643 = vadd.f32 %v5596, %v5642
      %5644 = vdwg.mxu0
      %5645 = vmatpush.msra.mxu0 %v5512
      %5646 = vmatpush.msra.mxu0 %v5510
      %5647 = vmatpush.msra.mxu0 %v5508
      %5648 = vmatpush.msra.mxu0 %v5506
      %5649 = vmatpush.msra.mxu0 %v5504
      %5650 = vmatpush.msra.mxu0 %v5502
      %5651 = vmatpush.msra.mxu0 %v5500
      %5652 = vmatpush.msra.mxu0 %v5498
      %5653 = vmatpush.msra.mxu0 %v5496
      %5654 = vmatpush.msra.mxu0 %v5494
      %5655 = vmatpush.msra.mxu0 %v5492
      %5656 = vmatpush.msra.mxu0 %v5490
      %5657 = vmatpush.msra.mxu0 %v5488
      %5658 = vmatpush.msra.mxu0 %v5486
      %5659 = vmatpush.msra.mxu0 %v5484
      %5660 = vmatpush.msra.mxu0 %v5482
      %5661 = vmatmul.f32.gmra.mxu0 %v5461
      %v5662 = vpop.f32.mrf.mxu0
      %v5663 = vadd.f32 %v5548, %v5662
      %5664 = vmatmul.f32.gmra.mxu0 %v5463
      %v5665 = vpop.f32.mrf.mxu0
      %v5666 = vadd.f32 %v5548, %v5665
      %5667 = vmatmul.f32.gmra.mxu0 %v5465
      %v5668 = vpop.f32.mrf.mxu0
      %v5669 = vadd.f32 %v5548, %v5668
      %5670 = vmatmul.f32.gmra.mxu0 %v5467
      %v5671 = vpop.f32.mrf.mxu0
      %v5672 = vadd.f32 %v5548, %v5671
      %5673 = vmatmul.f32.gmra.mxu0 %v5469
      %v5674 = vpop.f32.mrf.mxu0
      %v5675 = vadd.f32 %v5548, %v5674
      %5676 = vmatmul.f32.gmra.mxu0 %v5471
      %v5677 = vpop.f32.mrf.mxu0
      %v5678 = vadd.f32 %v5548, %v5677
      %5679 = vmatmul.f32.gmra.mxu0 %v5473
      %v5680 = vpop.f32.mrf.mxu0
      %v5681 = vadd.f32 %v5548, %v5680
      %5682 = vmatmul.f32.gmra.mxu0 %v5475
      %v5683 = vpop.f32.mrf.mxu0
      %v5684 = vadd.f32 %v5548, %v5683
      %5685 = vmatmul.f32.gmra.mxu0 %v5477
      %v5686 = vpop.f32.mrf.mxu0
      %v5687 = vadd.f32 %v5548, %v5686
      %5688 = vmatmul.f32.gmra.mxu0 %v5479
      %v5689 = vpop.f32.mrf.mxu0
      %v5690 = vadd.f32 %v5548, %v5689
      %5691 = vdwg.mxu0
      %5692 = vmatpush.msra.mxu0 %v5544
      %5693 = vmatpush.msra.mxu0 %v5542
      %5694 = vmatpush.msra.mxu0 %v5540
      %5695 = vmatpush.msra.mxu0 %v5538
      %5696 = vmatpush.msra.mxu0 %v5536
      %5697 = vmatpush.msra.mxu0 %v5534
      %5698 = vmatpush.msra.mxu0 %v5532
      %5699 = vmatpush.msra.mxu0 %v5530
      %5700 = vmatpush.msra.mxu0 %v5528
      %5701 = vmatpush.msra.mxu0 %v5526
      %5702 = vmatpush.msra.mxu0 %v5524
      %5703 = vmatpush.msra.mxu0 %v5522
      %5704 = vmatpush.msra.mxu0 %v5520
      %5705 = vmatpush.msra.mxu0 %v5518
      %5706 = vmatpush.msra.mxu0 %v5516
      %5707 = vmatpush.msra.mxu0 %v5514
      %5708 = vmatmul.f32.gmra.mxu0 %v5462
      %v5709 = vpop.f32.mrf.mxu0
      %v5710 = vadd.f32 %v5663, %v5709
      %5711 = vmatmul.f32.gmra.mxu0 %v5464
      %v5712 = vpop.f32.mrf.mxu0
      %v5713 = vadd.f32 %v5666, %v5712
      %5714 = vmatmul.f32.gmra.mxu0 %v5466
      %v5715 = vpop.f32.mrf.mxu0
      %v5716 = vadd.f32 %v5669, %v5715
      %5717 = vmatmul.f32.gmra.mxu0 %v5468
      %v5718 = vpop.f32.mrf.mxu0
      %v5719 = vadd.f32 %v5672, %v5718
      %5720 = vmatmul.f32.gmra.mxu0 %v5470
      %v5721 = vpop.f32.mrf.mxu0
      %v5722 = vadd.f32 %v5675, %v5721
      %5723 = vmatmul.f32.gmra.mxu0 %v5472
      %v5724 = vpop.f32.mrf.mxu0
      %v5725 = vadd.f32 %v5678, %v5724
      %5726 = vmatmul.f32.gmra.mxu0 %v5474
      %v5727 = vpop.f32.mrf.mxu0
      %v5728 = vadd.f32 %v5681, %v5727
      %5729 = vmatmul.f32.gmra.mxu0 %v5476
      %v5730 = vpop.f32.mrf.mxu0
      %v5731 = vadd.f32 %v5684, %v5730
      %5732 = vmatmul.f32.gmra.mxu0 %v5478
      %v5733 = vpop.f32.mrf.mxu0
      %v5734 = vadd.f32 %v5687, %v5733
      %5735 = vmatmul.f32.gmra.mxu0 %v5480
      %v5736 = vpop.f32.mrf.mxu0
      %v5737 = vadd.f32 %v5690, %v5736
      %5738 = vdwg.mxu0
      %v5739 = vmax.f32 %v5616, 0.0
      %v5740 = vmax.f32 %v5710, 0.0
      %v5741 = vmax.f32 %v5619, 0.0
      %v5742 = vmax.f32 %v5713, 0.0
      %v5743 = vmax.f32 %v5622, 0.0
      %v5744 = vmax.f32 %v5716, 0.0
      %v5745 = vmax.f32 %v5625, 0.0
      %v5746 = vmax.f32 %v5719, 0.0
      %v5747 = vmax.f32 %v5628, 0.0
      %v5748 = vmax.f32 %v5722, 0.0
      %v5749 = vmax.f32 %v5631, 0.0
      %v5750 = vmax.f32 %v5725, 0.0
      %v5751 = vmax.f32 %v5634, 0.0
      %v5752 = vmax.f32 %v5728, 0.0
      %v5753 = vmax.f32 %v5637, 0.0
      %v5754 = vmax.f32 %v5731, 0.0
      %v5755 = vmax.f32 %v5640, 0.0
      %v5756 = vmax.f32 %v5734, 0.0
      %v5757 = vmax.f32 %v5643, 0.0
      %v5758 = vmax.f32 %v5737, 0.0
      %v5759 = vld [vmem:[%s10] sm:$0xff]
      %v5760 = vld [vmem:[%s10 + $0x8] sm:$0xff]
      %v5761 = vld [vmem:[%s10 + $0x10] sm:$0xff]
      %v5762 = vld [vmem:[%s10 + $0x18] sm:$0xff]
      %v5763 = vld [vmem:[%s10 + $0x20] sm:$0xff]
      %v5764 = vld [vmem:[%s10 + $0x28] sm:$0xff]
      %v5765 = vld [vmem:[%s10 + $0x30] sm:$0xff]
      %v5766 = vld [vmem:[%s10 + $0x38] sm:$0xff]
      %v5767 = vld [vmem:[%s10 + $0x40] sm:$0xff]
      %v5768 = vld [vmem:[%s10 + $0x48] sm:$0xff]
      %v5769 = vld [vmem:[%s10 + $0x50] sm:$0xff]
      %v5770 = vld [vmem:[%s10 + $0x58] sm:$0xff]
      %v5771 = vld [vmem:[%s10 + $0x60] sm:$0xff]
      %v5772 = vld [vmem:[%s10 + $0x68] sm:$0xff]
      %v5773 = vld [vmem:[%s10 + $0x70] sm:$0xff]
      %v5774 = vld [vmem:[%s10 + $0x78] sm:$0xff]
      %v5775 = vld [vmem:[%s10 + $0x80] sm:$0xff]
      %v5776 = vld [vmem:[%s10 + $0x88] sm:$0xff]
      %v5777 = vld [vmem:[%s10 + $0x90] sm:$0xff]
      %v5778 = vld [vmem:[%s10 + $0x98] sm:$0xff]
      %v5779 = vld [vmem:[%s10 + $0xa0] sm:$0xff]
      %v5780 = vld [vmem:[%s10 + $0xa8] sm:$0xff]
      %v5781 = vld [vmem:[%s10 + $0xb0] sm:$0xff]
      %v5782 = vld [vmem:[%s10 + $0xb8] sm:$0xff]
      %v5783 = vld [vmem:[%s10 + $0xc0] sm:$0xff]
      %v5784 = vld [vmem:[%s10 + $0xc8] sm:$0xff]
      %v5785 = vld [vmem:[%s10 + $0xd0] sm:$0xff]
      %v5786 = vld [vmem:[%s10 + $0xd8] sm:$0xff]
      %v5787 = vld [vmem:[%s10 + $0xe0] sm:$0xff]
      %v5788 = vld [vmem:[%s10 + $0xe8] sm:$0xff]
      %v5789 = vld [vmem:[%s10 + $0xf0] sm:$0xff]
      %v5790 = vld [vmem:[%s10 + $0xf8] sm:$0xff]
      %v5791 = vld [vmem:[%s10 + $0x100] sm:$0xff]
      %v5792 = vld [vmem:[%s10 + $0x108] sm:$0xff]
      %v5793 = vld [vmem:[%s10 + $0x110] sm:$0xff]
      %v5794 = vld [vmem:[%s10 + $0x118] sm:$0xff]
      %v5795 = vld [vmem:[%s10 + $0x120] sm:$0xff]
      %v5796 = vld [vmem:[%s10 + $0x128] sm:$0xff]
      %v5797 = vld [vmem:[%s10 + $0x130] sm:$0xff]
      %v5798 = vld [vmem:[%s10 + $0x138] sm:$0xff]
      %v5799 = vld [vmem:[%s10 + $0x140] sm:$0xff]
      %v5800 = vld [vmem:[%s10 + $0x148] sm:$0xff]
      %v5801 = vld [vmem:[%s10 + $0x150] sm:$0xff]
      %v5802 = vld [vmem:[%s10 + $0x158] sm:$0xff]
      %v5803 = vld [vmem:[%s10 + $0x160] sm:$0xff]
      %v5804 = vld [vmem:[%s10 + $0x168] sm:$0xff]
      %v5805 = vld [vmem:[%s10 + $0x170] sm:$0xff]
      %v5806 = vld [vmem:[%s10 + $0x178] sm:$0xff]
      %v5807 = vld [vmem:[%s10 + $0x180] sm:$0xff]
      %v5808 = vld [vmem:[%s10 + $0x188] sm:$0xff]
      %v5809 = vld [vmem:[%s10 + $0x190] sm:$0xff]
      %v5810 = vld [vmem:[%s10 + $0x198] sm:$0xff]
      %v5811 = vld [vmem:[%s10 + $0x1a0] sm:$0xff]
      %v5812 = vld [vmem:[%s10 + $0x1a8] sm:$0xff]
      %v5813 = vld [vmem:[%s10 + $0x1b0] sm:$0xff]
      %v5814 = vld [vmem:[%s10 + $0x1b8] sm:$0xff]
      %v5815 = vld [vmem:[%s10 + $0x1c0] sm:$0xff]
      %v5816 = vld [vmem:[%s10 + $0x1c8] sm:$0xff]
      %v5817 = vld [vmem:[%s10 + $0x1d0] sm:$0xff]
      %v5818 = vld [vmem:[%s10 + $0x1d8] sm:$0xff]
      %v5819 = vld [vmem:[%s10 + $0x1e0] sm:$0xff]
      %v5820 = vld [vmem:[%s10 + $0x1e8] sm:$0xff]
      %v5821 = vld [vmem:[%s10 + $0x1f0] sm:$0xff]
      %v5822 = vld [vmem:[%s10 + $0x1f8] sm:$0xff]
      %v5823 = vld [vmem:[%s11] sm:$0x3]
      %v5825 = vperm.slane %v5823, 0
      %v5826 = vperm.slane %v5823, 1
      %5829 = vmatpush.msra.mxu0 %v5789
      %5830 = vmatpush.msra.mxu0 %v5787
      %5831 = vmatpush.msra.mxu0 %v5785
      %5832 = vmatpush.msra.mxu0 %v5783
      %5833 = vmatpush.msra.mxu0 %v5781
      %5834 = vmatpush.msra.mxu0 %v5779
      %5835 = vmatpush.msra.mxu0 %v5777
      %5836 = vmatpush.msra.mxu0 %v5775
      %5837 = vmatpush.msra.mxu0 %v5773
      %5838 = vmatpush.msra.mxu0 %v5771
      %5839 = vmatpush.msra.mxu0 %v5769
      %5840 = vmatpush.msra.mxu0 %v5767
      %5841 = vmatpush.msra.mxu0 %v5765
      %5842 = vmatpush.msra.mxu0 %v5763
      %5843 = vmatpush.msra.mxu0 %v5761
      %5844 = vmatpush.msra.mxu0 %v5759
      %5845 = vmatmul.f32.gmra.mxu0 %v5739
      %v5846 = vpop.f32.mrf.mxu0
      %v5847 = vadd.f32 %v5825, %v5846
      %5848 = vmatmul.f32.gmra.mxu0 %v5741
      %v5849 = vpop.f32.mrf.mxu0
      %v5850 = vadd.f32 %v5825, %v5849
      %5851 = vmatmul.f32.gmra.mxu0 %v5743
      %v5852 = vpop.f32.mrf.mxu0
      %v5853 = vadd.f32 %v5825, %v5852
      %5854 = vmatmul.f32.gmra.mxu0 %v5745
      %v5855 = vpop.f32.mrf.mxu0
      %v5856 = vadd.f32 %v5825, %v5855
      %5857 = vmatmul.f32.gmra.mxu0 %v5747
      %v5858 = vpop.f32.mrf.mxu0
      %v5859 = vadd.f32 %v5825, %v5858
      %5860 = vmatmul.f32.gmra.mxu0 %v5749
      %v5861 = vpop.f32.mrf.mxu0
      %v5862 = vadd.f32 %v5825, %v5861
      %5863 = vmatmul.f32.gmra.mxu0 %v5751
      %v5864 = vpop.f32.mrf.mxu0
      %v5865 = vadd.f32 %v5825, %v5864
      %5866 = vmatmul.f32.gmra.mxu0 %v5753
      %v5867 = vpop.f32.mrf.mxu0
      %v5868 = vadd.f32 %v5825, %v5867
      %5869 = vmatmul.f32.gmra.mxu0 %v5755
      %v5870 = vpop.f32.mrf.mxu0
      %v5871 = vadd.f32 %v5825, %v5870
      %5872 = vmatmul.f32.gmra.mxu0 %v5757
      %v5873 = vpop.f32.mrf.mxu0
      %v5874 = vadd.f32 %v5825, %v5873
      %5875 = vdwg.mxu0
      %5876 = vmatpush.msra.mxu0 %v5821
      %5877 = vmatpush.msra.mxu0 %v5819
      %5878 = vmatpush.msra.mxu0 %v5817
      %5879 = vmatpush.msra.mxu0 %v5815
      %5880 = vmatpush.msra.mxu0 %v5813
      %5881 = vmatpush.msra.mxu0 %v5811
      %5882 = vmatpush.msra.mxu0 %v5809
      %5883 = vmatpush.msra.mxu0 %v5807
      %5884 = vmatpush.msra.mxu0 %v5805
      %5885 = vmatpush.msra.mxu0 %v5803
      %5886 = vmatpush.msra.mxu0 %v5801
      %5887 = vmatpush.msra.mxu0 %v5799
      %5888 = vmatpush.msra.mxu0 %v5797
      %5889 = vmatpush.msra.mxu0 %v5795
      %5890 = vmatpush.msra.mxu0 %v5793
      %5891 = vmatpush.msra.mxu0 %v5791
      %5892 = vmatmul.f32.gmra.mxu0 %v5740
      %v5893 = vpop.f32.mrf.mxu0
      %v5894 = vadd.f32 %v5847, %v5893
      %5895 = vmatmul.f32.gmra.mxu0 %v5742
      %v5896 = vpop.f32.mrf.mxu0
      %v5897 = vadd.f32 %v5850, %v5896
      %5898 = vmatmul.f32.gmra.mxu0 %v5744
      %v5899 = vpop.f32.mrf.mxu0
      %v5900 = vadd.f32 %v5853, %v5899
      %5901 = vmatmul.f32.gmra.mxu0 %v5746
      %v5902 = vpop.f32.mrf.mxu0
      %v5903 = vadd.f32 %v5856, %v5902
      %5904 = vmatmul.f32.gmra.mxu0 %v5748
      %v5905 = vpop.f32.mrf.mxu0
      %v5906 = vadd.f32 %v5859, %v5905
      %5907 = vmatmul.f32.gmra.mxu0 %v5750
      %v5908 = vpop.f32.mrf.mxu0
      %v5909 = vadd.f32 %v5862, %v5908
      %5910 = vmatmul.f32.gmra.mxu0 %v5752
      %v5911 = vpop.f32.mrf.mxu0
      %v5912 = vadd.f32 %v5865, %v5911
      %5913 = vmatmul.f32.gmra.mxu0 %v5754
      %v5914 = vpop.f32.mrf.mxu0
      %v5915 = vadd.f32 %v5868, %v5914
      %5916 = vmatmul.f32.gmra.mxu0 %v5756
      %v5917 = vpop.f32.mrf.mxu0
      %v5918 = vadd.f32 %v5871, %v5917
      %5919 = vmatmul.f32.gmra.mxu0 %v5758
      %v5920 = vpop.f32.mrf.mxu0
      %v5921 = vadd.f32 %v5874, %v5920
      %5922 = vdwg.mxu0
      %5923 = vmatpush.msra.mxu0 %v5790
      %5924 = vmatpush.msra.mxu0 %v5788
      %5925 = vmatpush.msra.mxu0 %v5786
      %5926 = vmatpush.msra.mxu0 %v5784
      %5927 = vmatpush.msra.mxu0 %v5782
      %5928 = vmatpush.msra.mxu0 %v5780
      %5929 = vmatpush.msra.mxu0 %v5778
      %5930 = vmatpush.msra.mxu0 %v5776
      %5931 = vmatpush.msra.mxu0 %v5774
      %5932 = vmatpush.msra.mxu0 %v5772
      %5933 = vmatpush.msra.mxu0 %v5770
      %5934 = vmatpush.msra.mxu0 %v5768
      %5935 = vmatpush.msra.mxu0 %v5766
      %5936 = vmatpush.msra.mxu0 %v5764
      %5937 = vmatpush.msra.mxu0 %v5762
      %5938 = vmatpush.msra.mxu0 %v5760
      %5939 = vmatmul.f32.gmra.mxu0 %v5739
      %v5940 = vpop.f32.mrf.mxu0
      %v5941 = vadd.f32 %v5826, %v5940
      %5942 = vmatmul.f32.gmra.mxu0 %v5741
      %v5943 = vpop.f32.mrf.mxu0
      %v5944 = vadd.f32 %v5826, %v5943
      %5945 = vmatmul.f32.gmra.mxu0 %v5743
      %v5946 = vpop.f32.mrf.mxu0
      %v5947 = vadd.f32 %v5826, %v5946
      %5948 = vmatmul.f32.gmra.mxu0 %v5745
      %v5949 = vpop.f32.mrf.mxu0
      %v5950 = vadd.f32 %v5826, %v5949
      %5951 = vmatmul.f32.gmra.mxu0 %v5747
      %v5952 = vpop.f32.mrf.mxu0
      %v5953 = vadd.f32 %v5826, %v5952
      %5954 = vmatmul.f32.gmra.mxu0 %v5749
      %v5955 = vpop.f32.mrf.mxu0
      %v5956 = vadd.f32 %v5826, %v5955
      %5957 = vmatmul.f32.gmra.mxu0 %v5751
      %v5958 = vpop.f32.mrf.mxu0
      %v5959 = vadd.f32 %v5826, %v5958
      %5960 = vmatmul.f32.gmra.mxu0 %v5753
      %v5961 = vpop.f32.mrf.mxu0
      %v5962 = vadd.f32 %v5826, %v5961
      %5963 = vmatmul.f32.gmra.mxu0 %v5755
      %v5964 = vpop.f32.mrf.mxu0
      %v5965 = vadd.f32 %v5826, %v5964
      %5966 = vmatmul.f32.gmra.mxu0 %v5757
      %v5967 = vpop.f32.mrf.mxu0
      %v5968 = vadd.f32 %v5826, %v5967
      %5969 = vdwg.mxu0
      %5970 = vmatpush.msra.mxu0 %v5822
      %5971 = vmatpush.msra.mxu0 %v5820
      %5972 = vmatpush.msra.mxu0 %v5818
      %5973 = vmatpush.msra.mxu0 %v5816
      %5974 = vmatpush.msra.mxu0 %v5814
      %5975 = vmatpush.msra.mxu0 %v5812
      %5976 = vmatpush.msra.mxu0 %v5810
      %5977 = vmatpush.msra.mxu0 %v5808
      %5978 = vmatpush.msra.mxu0 %v5806
      %5979 = vmatpush.msra.mxu0 %v5804
      %5980 = vmatpush.msra.mxu0 %v5802
      %5981 = vmatpush.msra.mxu0 %v5800
      %5982 = vmatpush.msra.mxu0 %v5798
      %5983 = vmatpush.msra.mxu0 %v5796
      %5984 = vmatpush.msra.mxu0 %v5794
      %5985 = vmatpush.msra.mxu0 %v5792
      %5986 = vmatmul.f32.gmra.mxu0 %v5740
      %v5987 = vpop.f32.mrf.mxu0
      %v5988 = vadd.f32 %v5941, %v5987
      %5989 = vmatmul.f32.gmra.mxu0 %v5742
      %v5990 = vpop.f32.mrf.mxu0
      %v5991 = vadd.f32 %v5944, %v5990
      %5992 = vmatmul.f32.gmra.mxu0 %v5744
      %v5993 = vpop.f32.mrf.mxu0
      %v5994 = vadd.f32 %v5947, %v5993
      %5995 = vmatmul.f32.gmra.mxu0 %v5746
      %v5996 = vpop.f32.mrf.mxu0
      %v5997 = vadd.f32 %v5950, %v5996
      %5998 = vmatmul.f32.gmra.mxu0 %v5748
      %v5999 = vpop.f32.mrf.mxu0
      %v6000 = vadd.f32 %v5953, %v5999
      %6001 = vmatmul.f32.gmra.mxu0 %v5750
      %v6002 = vpop.f32.mrf.mxu0
      %v6003 = vadd.f32 %v5956, %v6002
      %6004 = vmatmul.f32.gmra.mxu0 %v5752
      %v6005 = vpop.f32.mrf.mxu0
      %v6006 = vadd.f32 %v5959, %v6005
      %6007 = vmatmul.f32.gmra.mxu0 %v5754
      %v6008 = vpop.f32.mrf.mxu0
      %v6009 = vadd.f32 %v5962, %v6008
      %6010 = vmatmul.f32.gmra.mxu0 %v5756
      %v6011 = vpop.f32.mrf.mxu0
      %v6012 = vadd.f32 %v5965, %v6011
      %6013 = vmatmul.f32.gmra.mxu0 %v5758
      %v6014 = vpop.f32.mrf.mxu0
      %v6015 = vadd.f32 %v5968, %v6014
      %6016 = vdwg.mxu0
      %v6017 = vadd.f32 %v5461, %v5894
      %v6018 = vadd.f32 %v5462, %v5988
      %v6019 = vadd.f32 %v5463, %v5897
      %v6020 = vadd.f32 %v5464, %v5991
      %v6021 = vadd.f32 %v5465, %v5900
      %v6022 = vadd.f32 %v5466, %v5994
      %v6023 = vadd.f32 %v5467, %v5903
      %v6024 = vadd.f32 %v5468, %v5997
      %v6025 = vadd.f32 %v5469, %v5906
      %v6026 = vadd.f32 %v5470, %v6000
      %v6027 = vadd.f32 %v5471, %v5909
      %v6028 = vadd.f32 %v5472, %v6003
      %v6029 = vadd.f32 %v5473, %v5912
      %v6030 = vadd.f32 %v5474, %v6006
      %v6031 = vadd.f32 %v5475, %v5915
      %v6032 = vadd.f32 %v5476, %v6009
      %v6033 = vadd.f32 %v5477, %v5918
      %v6034 = vadd.f32 %v5478, %v6012
      %v6035 = vadd.f32 %v5479, %v5921
      %v6036 = vadd.f32 %v5480, %v6015
      %v6037 = vld [vmem:[%s12] sm:$0x3]
      %v6038 = vld [vmem:[%s13] sm:$0x3]
      %v6039 = vadd.f32 %v6017, %v6018
      %6040 = vadd.xlane.f32.xlu0 %v6039
      %v6041 = vpop.xlane.xlu0 %6040
      %v6042 = vadd.f32 %v6019, %v6020
      %6043 = vadd.xlane.f32.xlu0 %v6042
      %v6044 = vpop.xlane.xlu0 %6043
      %v6045 = vadd.f32 %v6021, %v6022
      %6046 = vadd.xlane.f32.xlu0 %v6045
      %v6047 = vpop.xlane.xlu0 %6046
      %v6048 = vadd.f32 %v6023, %v6024
      %6049 = vadd.xlane.f32.xlu0 %v6048
      %v6050 = vpop.xlane.xlu0 %6049
      %v6051 = vadd.f32 %v6025, %v6026
      %6052 = vadd.xlane.f32.xlu0 %v6051
      %v6053 = vpop.xlane.xlu0 %6052
      %v6054 = vadd.f32 %v6027, %v6028
      %6055 = vadd.xlane.f32.xlu0 %v6054
      %v6056 = vpop.xlane.xlu0 %6055
      %v6057 = vadd.f32 %v6029, %v6030
      %6058 = vadd.xlane.f32.xlu0 %v6057
      %v6059 = vpop.xlane.xlu0 %6058
      %v6060 = vadd.f32 %v6031, %v6032
      %6061 = vadd.xlane.f32.xlu0 %v6060
      %v6062 = vpop.xlane.xlu0 %6061
      %v6063 = vadd.f32 %v6033, %v6034
      %6064 = vadd.xlane.f32.xlu0 %v6063
      %v6065 = vpop.xlane.xlu0 %6064
      %v6066 = vadd.f32 %v6035, %v6036
      %6067 = vadd.xlane.f32.xlu0 %v6066
      %v6068 = vpop.xlane.xlu0 %6067
      %v6069 = vmul.f32 %v6041, %v5210
      %v6070 = vmul.f32 %v6044, %v5210
      %v6071 = vmul.f32 %v6047, %v5210
      %v6072 = vmul.f32 %v6050, %v5210
      %v6073 = vmul.f32 %v6053, %v5210
      %v6074 = vmul.f32 %v6056, %v5210
      %v6075 = vmul.f32 %v6059, %v5210
      %v6076 = vmul.f32 %v6062, %v5210
      %v6077 = vmul.f32 %v6065, %v5210
      %v6078 = vmul.f32 %v6068, %v5210
      %v6079 = vsub.f32 %v6017, %v6069
      %v6080 = vsub.f32 %v6018, %v6069
      %v6081 = vsub.f32 %v6019, %v6070
      %v6082 = vsub.f32 %v6020, %v6070
      %v6083 = vsub.f32 %v6021, %v6071
      %v6084 = vsub.f32 %v6022, %v6071
      %v6085 = vsub.f32 %v6023, %v6072
      %v6086 = vsub.f32 %v6024, %v6072
      %v6087 = vsub.f32 %v6025, %v6073
      %v6088 = vsub.f32 %v6026, %v6073
      %v6089 = vsub.f32 %v6027, %v6074
      %v6090 = vsub.f32 %v6028, %v6074
      %v6091 = vsub.f32 %v6029, %v6075
      %v6092 = vsub.f32 %v6030, %v6075
      %v6093 = vsub.f32 %v6031, %v6076
      %v6094 = vsub.f32 %v6032, %v6076
      %v6095 = vsub.f32 %v6033, %v6077
      %v6096 = vsub.f32 %v6034, %v6077
      %v6097 = vsub.f32 %v6035, %v6078
      %v6098 = vsub.f32 %v6036, %v6078
      %v6099 = vmul.f32 %v6079, %v6079
      %v6100 = vmul.f32 %v6080, %v6080
      %v6101 = vmul.f32 %v6081, %v6081
      %v6102 = vmul.f32 %v6082, %v6082
      %v6103 = vmul.f32 %v6083, %v6083
      %v6104 = vmul.f32 %v6084, %v6084
      %v6105 = vmul.f32 %v6085, %v6085
      %v6106 = vmul.f32 %v6086, %v6086
      %v6107 = vmul.f32 %v6087, %v6087
      %v6108 = vmul.f32 %v6088, %v6088
      %v6109 = vmul.f32 %v6089, %v6089
      %v6110 = vmul.f32 %v6090, %v6090
      %v6111 = vmul.f32 %v6091, %v6091
      %v6112 = vmul.f32 %v6092, %v6092
      %v6113 = vmul.f32 %v6093, %v6093
      %v6114 = vmul.f32 %v6094, %v6094
      %v6115 = vmul.f32 %v6095, %v6095
      %v6116 = vmul.f32 %v6096, %v6096
      %v6117 = vmul.f32 %v6097, %v6097
      %v6118 = vmul.f32 %v6098, %v6098
      %v6119 = vadd.f32 %v6099, %v6100
      %6120 = vadd.xlane.f32.xlu0 %v6119
      %v6121 = vpop.xlane.xlu0 %6120
      %v6122 = vadd.f32 %v6101, %v6102
      %6123 = vadd.xlane.f32.xlu0 %v6122
      %v6124 = vpop.xlane.xlu0 %6123
      %v6125 = vadd.f32 %v6103, %v6104
      %6126 = vadd.xlane.f32.xlu0 %v6125
      %v6127 = vpop.xlane.xlu0 %6126
      %v6128 = vadd.f32 %v6105, %v6106
      %6129 = vadd.xlane.f32.xlu0 %v6128
      %v6130 = vpop.xlane.xlu0 %6129
      %v6131 = vadd.f32 %v6107, %v6108
      %6132 = vadd.xlane.f32.xlu0 %v6131
      %v6133 = vpop.xlane.xlu0 %6132
      %v6134 = vadd.f32 %v6109, %v6110
      %6135 = vadd.xlane.f32.xlu0 %v6134
      %v6136 = vpop.xlane.xlu0 %6135
      %v6137 = vadd.f32 %v6111, %v6112
      %6138 = vadd.xlane.f32.xlu0 %v6137
      %v6139 = vpop.xlane.xlu0 %6138
      %v6140 = vadd.f32 %v6113, %v6114
      %6141 = vadd.xlane.f32.xlu0 %v6140
      %v6142 = vpop.xlane.xlu0 %6141
      %v6143 = vadd.f32 %v6115, %v6116
      %6144 = vadd.xlane.f32.xlu0 %v6143
      %v6145 = vpop.xlane.xlu0 %6144
      %v6146 = vadd.f32 %v6117, %v6118
      %6147 = vadd.xlane.f32.xlu0 %v6146
      %v6148 = vpop.xlane.xlu0 %6147
      %v6149 = vmul.f32 %v6121, %v5210
      %v6150 = vmul.f32 %v6124, %v5210
      %v6151 = vmul.f32 %v6127, %v5210
      %v6152 = vmul.f32 %v6130, %v5210
      %v6153 = vmul.f32 %v6133, %v5210
      %v6154 = vmul.f32 %v6136, %v5210
      %v6155 = vmul.f32 %v6139, %v5210
      %v6156 = vmul.f32 %v6142, %v5210
      %v6157 = vmul.f32 %v6145, %v5210
      %v6158 = vmul.f32 %v6148, %v5210
      %v6159 = vadd.f32 %v6149, 1e-05
      %v6160 = vadd.f32 %v6150, 1e-05
      %v6161 = vadd.f32 %v6151, 1e-05
      %v6162 = vadd.f32 %v6152, 1e-05
      %v6163 = vadd.f32 %v6153, 1e-05
      %v6164 = vadd.f32 %v6154, 1e-05
      %v6165 = vadd.f32 %v6155, 1e-05
      %v6166 = vadd.f32 %v6156, 1e-05
      %v6167 = vadd.f32 %v6157, 1e-05
      %v6168 = vadd.f32 %v6158, 1e-05
      %v6169 = vrsqrt.pop %v6159
      %v6170 = vmul.f32 %v6169, %v6159
      %v6171 = vmul.f32 %v6170, %v6169
      %v6172 = vmul.f32 0.5, %v6171
      %v6173 = vsub.f32 1.5, %v6172
      %v6174 = vmul.f32 %v6169, %v6173
      %vm6175 = vweird.f32 %v6159
      %vm6176 = vweird.f32 %v6169
      %vm6177 = vmor %vm6175, %vm6176
      %v6178 = vsel %vm6177, %v6169, %v6174
      %v6179 = vrsqrt.pop %v6160
      %v6180 = vmul.f32 %v6179, %v6160
      %v6181 = vmul.f32 %v6180, %v6179
      %v6182 = vmul.f32 0.5, %v6181
      %v6183 = vsub.f32 1.5, %v6182
      %v6184 = vmul.f32 %v6179, %v6183
      %vm6185 = vweird.f32 %v6160
      %vm6186 = vweird.f32 %v6179
      %vm6187 = vmor %vm6185, %vm6186
      %v6188 = vsel %vm6187, %v6179, %v6184
      %v6189 = vrsqrt.pop %v6161
      %v6190 = vmul.f32 %v6189, %v6161
      %v6191 = vmul.f32 %v6190, %v6189
      %v6192 = vmul.f32 0.5, %v6191
      %v6193 = vsub.f32 1.5, %v6192
      %v6194 = vmul.f32 %v6189, %v6193
      %vm6195 = vweird.f32 %v6161
      %vm6196 = vweird.f32 %v6189
      %vm6197 = vmor %vm6195, %vm6196
      %v6198 = vsel %vm6197, %v6189, %v6194
      %v6199 = vrsqrt.pop %v6162
      %v6200 = vmul.f32 %v6199, %v6162
      %v6201 = vmul.f32 %v6200, %v6199
      %v6202 = vmul.f32 0.5, %v6201
      %v6203 = vsub.f32 1.5, %v6202
      %v6204 = vmul.f32 %v6199, %v6203
      %vm6205 = vweird.f32 %v6162
      %vm6206 = vweird.f32 %v6199
      %vm6207 = vmor %vm6205, %vm6206
      %v6208 = vsel %vm6207, %v6199, %v6204
      %v6209 = vrsqrt.pop %v6163
      %v6210 = vmul.f32 %v6209, %v6163
      %v6211 = vmul.f32 %v6210, %v6209
      %v6212 = vmul.f32 0.5, %v6211
      %v6213 = vsub.f32 1.5, %v6212
      %v6214 = vmul.f32 %v6209, %v6213
      %vm6215 = vweird.f32 %v6163
      %vm6216 = vweird.f32 %v6209
      %vm6217 = vmor %vm6215, %vm6216
      %v6218 = vsel %vm6217, %v6209, %v6214
      %v6219 = vrsqrt.pop %v6164
      %v6220 = vmul.f32 %v6219, %v6164
      %v6221 = vmul.f32 %v6220, %v6219
      %v6222 = vmul.f32 0.5, %v6221
      %v6223 = vsub.f32 1.5, %v6222
      %v6224 = vmul.f32 %v6219, %v6223
      %vm6225 = vweird.f32 %v6164
      %vm6226 = vweird.f32 %v6219
      %vm6227 = vmor %vm6225, %vm6226
      %v6228 = vsel %vm6227, %v6219, %v6224
      %v6229 = vrsqrt.pop %v6165
      %v6230 = vmul.f32 %v6229, %v6165
      %v6231 = vmul.f32 %v6230, %v6229
      %v6232 = vmul.f32 0.5, %v6231
      %v6233 = vsub.f32 1.5, %v6232
      %v6234 = vmul.f32 %v6229, %v6233
      %vm6235 = vweird.f32 %v6165
      %vm6236 = vweird.f32 %v6229
      %vm6237 = vmor %vm6235, %vm6236
      %v6238 = vsel %vm6237, %v6229, %v6234
      %v6239 = vrsqrt.pop %v6166
      %v6240 = vmul.f32 %v6239, %v6166
      %v6241 = vmul.f32 %v6240, %v6239
      %v6242 = vmul.f32 0.5, %v6241
      %v6243 = vsub.f32 1.5, %v6242
      %v6244 = vmul.f32 %v6239, %v6243
      %vm6245 = vweird.f32 %v6166
      %vm6246 = vweird.f32 %v6239
      %vm6247 = vmor %vm6245, %vm6246
      %v6248 = vsel %vm6247, %v6239, %v6244
      %v6249 = vrsqrt.pop %v6167
      %v6250 = vmul.f32 %v6249, %v6167
      %v6251 = vmul.f32 %v6250, %v6249
      %v6252 = vmul.f32 0.5, %v6251
      %v6253 = vsub.f32 1.5, %v6252
      %v6254 = vmul.f32 %v6249, %v6253
      %vm6255 = vweird.f32 %v6167
      %vm6256 = vweird.f32 %v6249
      %vm6257 = vmor %vm6255, %vm6256
      %v6258 = vsel %vm6257, %v6249, %v6254
      %v6259 = vrsqrt.pop %v6168
      %v6260 = vmul.f32 %v6259, %v6168
      %v6261 = vmul.f32 %v6260, %v6259
      %v6262 = vmul.f32 0.5, %v6261
      %v6263 = vsub.f32 1.5, %v6262
      %v6264 = vmul.f32 %v6259, %v6263
      %vm6265 = vweird.f32 %v6168
      %vm6266 = vweird.f32 %v6259
      %vm6267 = vmor %vm6265, %vm6266
      %v6268 = vsel %vm6267, %v6259, %v6264
      %v6269 = vmul.f32 %v6079, %v6178
      %v6270 = vmul.f32 %v6080, %v6178
      %v6271 = vmul.f32 %v6081, %v6188
      %v6272 = vmul.f32 %v6082, %v6188
      %v6273 = vmul.f32 %v6083, %v6198
      %v6274 = vmul.f32 %v6084, %v6198
      %v6275 = vmul.f32 %v6085, %v6208
      %v6276 = vmul.f32 %v6086, %v6208
      %v6277 = vmul.f32 %v6087, %v6218
      %v6278 = vmul.f32 %v6088, %v6218
      %v6279 = vmul.f32 %v6089, %v6228
      %v6280 = vmul.f32 %v6090, %v6228
      %v6281 = vmul.f32 %v6091, %v6238
      %v6282 = vmul.f32 %v6092, %v6238
      %v6283 = vmul.f32 %v6093, %v6248
      %v6284 = vmul.f32 %v6094, %v6248
      %v6285 = vmul.f32 %v6095, %v6258
      %v6286 = vmul.f32 %v6096, %v6258
      %v6287 = vmul.f32 %v6097, %v6268
      %v6288 = vmul.f32 %v6098, %v6268
      %v6290 = vperm.slane %v6037, 0
      %v6291 = vperm.slane %v6037, 1
      %v6294 = vmul.f32 %v6269, %v6290
      %v6295 = vmul.f32 %v6270, %v6291
      %v6296 = vmul.f32 %v6271, %v6290
      %v6297 = vmul.f32 %v6272, %v6291
      %v6298 = vmul.f32 %v6273, %v6290
      %v6299 = vmul.f32 %v6274, %v6291
      %v6300 = vmul.f32 %v6275, %v6290
      %v6301 = vmul.f32 %v6276, %v6291
      %v6302 = vmul.f32 %v6277, %v6290
      %v6303 = vmul.f32 %v6278, %v6291
      %v6304 = vmul.f32 %v6279, %v6290
      %v6305 = vmul.f32 %v6280, %v6291
      %v6306 = vmul.f32 %v6281, %v6290
      %v6307 = vmul.f32 %v6282, %v6291
      %v6308 = vmul.f32 %v6283, %v6290
      %v6309 = vmul.f32 %v6284, %v6291
      %v6310 = vmul.f32 %v6285, %v6290
      %v6311 = vmul.f32 %v6286, %v6291
      %v6312 = vmul.f32 %v6287, %v6290
      %v6313 = vmul.f32 %v6288, %v6291
      %v6315 = vperm.slane %v6038, 0
      %v6316 = vperm.slane %v6038, 1
      %v6319 = vadd.f32 %v6294, %v6315
      %v6320 = vadd.f32 %v6295, %v6316
      %v6321 = vadd.f32 %v6296, %v6315
      %v6322 = vadd.f32 %v6297, %v6316
      %v6323 = vadd.f32 %v6298, %v6315
      %v6324 = vadd.f32 %v6299, %v6316
      %v6325 = vadd.f32 %v6300, %v6315
      %v6326 = vadd.f32 %v6301, %v6316
      %v6327 = vadd.f32 %v6302, %v6315
      %v6328 = vadd.f32 %v6303, %v6316
      %v6329 = vadd.f32 %v6304, %v6315
      %v6330 = vadd.f32 %v6305, %v6316
      %v6331 = vadd.f32 %v6306, %v6315
      %v6332 = vadd.f32 %v6307, %v6316
      %v6333 = vadd.f32 %v6308, %v6315
      %v6334 = vadd.f32 %v6309, %v6316
      %v6335 = vadd.f32 %v6310, %v6315
      %v6336 = vadd.f32 %v6311, %v6316
      %v6337 = vadd.f32 %v6312, %v6315
      %v6338 = vadd.f32 %v6313, %v6316
      %6339 = vst [vmem:[%s474] sm:$0xff] %v6319
      %6340 = vst [vmem:[%s474 + $0x8] sm:$0xff] %v6320
      %6341 = vst [vmem:[%s474 + $0x10] sm:$0xff] %v6321
      %6342 = vst [vmem:[%s474 + $0x18] sm:$0xff] %v6322
      %6343 = vst [vmem:[%s474 + $0x20] sm:$0xff] %v6323
      %6344 = vst [vmem:[%s474 + $0x28] sm:$0xff] %v6324
      %6345 = vst [vmem:[%s474 + $0x30] sm:$0xff] %v6325
      %6346 = vst [vmem:[%s474 + $0x38] sm:$0xff] %v6326
      %6347 = vst [vmem:[%s474 + $0x40] sm:$0xff] %v6327
      %6348 = vst [vmem:[%s474 + $0x48] sm:$0xff] %v6328
      %6349 = vst [vmem:[%s474 + $0x50] sm:$0xff] %v6329
      %6350 = vst [vmem:[%s474 + $0x58] sm:$0xff] %v6330
      %6351 = vst [vmem:[%s474 + $0x60] sm:$0xff] %v6331
      %6352 = vst [vmem:[%s474 + $0x68] sm:$0xff] %v6332
      %6353 = vst [vmem:[%s474 + $0x70] sm:$0xff] %v6333
      %6354 = vst [vmem:[%s474 + $0x78] sm:$0xff] %v6334
      %6355 = vst [vmem:[%s474 + $0x80] sm:$0xff] %v6335
      %6356 = vst [vmem:[%s474 + $0x88] sm:$0xff] %v6336
      %6357 = vst [vmem:[%s474 + $0x90] sm:$0xff] %v6337
      %6358 = vst [vmem:[%s474 + $0x98] sm:$0xff] %v6338
      %s6359 = smul.u32 10, %s25
      %p6360 = scmp.lt.s32.totalorder %s6359, 19
      %s6361 = scalar_select %p6360, %s6359, 19
      %s6362 = smul.addr %s6361, 2
      %s6363 = smul.addr %s6362, 8
      %s6364 = scalar_lea.vmem %s14, %s6363
      // Predicated region
      $region77: #{forward.2} parent=75 // pred_check
        %p6365 = pneg %p342
      $region78: #{forward.2} parent=75 // pred_check_branch
        %6367 = sbr.rel (%p6365) target = $region80
      $region79: #{forward.2} parent=75 // pred_region
        %s6368 = smul.u32 10, %s25
      $region80: #{forward.2} parent=75 // pred_fallthru
        _
    $region76: #{forward.2} parent=5 // pred_fallthru
      _
    %p6369 = scmp.le.s32.totalorder 2, %s20
    // Predicated region
    $region81: #{forward.2} parent=5 // pred_check
      %p6370 = pneg %p6369
    $region82: #{forward.2} parent=5 // pred_check_branch
      %6372 = sbr.rel (%p6370) target = $region84
    $region83: #{forward.2} parent=5 // pred_region
      %s6373 = ssub.s32 %s20, 2
      // Predicated region
      $region85: #{forward.2} parent=83 // pred_check
        %p6374 = pneg %p348
      $region86: #{forward.2} parent=83 // pred_check_branch
        %6376 = sbr.rel (%p6374) target = $region88
      $region87: #{forward.2} parent=83 // pred_region
        %s6377 = smul.u32 10, %s26
        %p6378 = scmp.lt.s32.totalorder %s6377, 19
        %s6379 = scalar_select %p6378, %s6377, 19
        %s6380 = smul.addr %s6379, 2
        %s6381 = smul.addr %s6380, 8
        %s6382 = scalar_lea.vmem %s14, %s6381
      $region88: #{forward.2} parent=83 // pred_fallthru
        _
    $region84: #{forward.2} parent=5 // pred_fallthru
      _
  $region6: #{forward.2} parent=0 // loop_footer
    %s24 = sadd.s32 1, %s20
  $region7: #{forward.2} parent=0 // loop_footer_branch
    %19 = sbr.rel target = $region3
  $region8: #{forward.2} parent=0 // loop_exit
    _

</llo_original>
